<compile_context>
chip_gen: v7x
topology: tpu7x:2x2x1
jax: 0.10.0
libtpu: 0.0.40
codegen_flags: <defaults>
</compile_context>

<pallas_src>
import numpy as np

import jax
import jax.numpy as jnp
from jax import lax
from jax.experimental import pallas as pl
from jax.experimental.pallas import tpu as pltpu


def _round_up(x, m):
    return (x + m - 1) // m * m


# ------------------------------ fused Pallas kernel ------------------------------

def _make_kernel(n1p, l_rows, bp, pad_rows):
    """Fused CNNCifar forward for a fixed (static) problem size.

    n1p      : rows of the pooled conv1 activation matrix (B*14*14, rounded up to 8)
    l_rows   : lane-dense working row count for the conv2 stage (>= n1p, multiple of 128)
    bp       : batch slots (B rounded up to 8)
    pad_rows : zero tail rows in the VMEM scratch (so shifted reads stay in bounds)
    """

    def kernel(p1_ref, w1c_ref, b1c_ref, w2big_ref, b2c_ref, sel_ref,
               w1big_ref, b1f_ref, w2f_ref, b2f_ref, w3f_ref, b3f_ref,
               o_ref, a1p_ref):
        # ---- conv1: one im2col matmul; 2x2 maxpool as a max over the 4 offset slabs.
        z1 = jnp.dot(p1_ref[...], w1c_ref[...], preferred_element_type=jnp.float32)
        m = jnp.maximum(jnp.maximum(z1[0 * n1p:1 * n1p], z1[1 * n1p:2 * n1p]),
                        jnp.maximum(z1[2 * n1p:3 * n1p], z1[3 * n1p:4 * n1p]))
        a1 = jnp.maximum(m + b1c_ref[...], 0.0)          # rows = (b, pi, pj) on the 14x14 grid

        # Stage pooled activations (+ zero tail) in VMEM scratch for shifted row reads.
        a1p_ref[pl.ds(0, n1p), :] = a1
        a1p_ref[pl.ds(n1p, pad_rows), :] = jnp.zeros((pad_rows, 128), jnp.float32)

        # ---- conv2: build im2col in VMEM (25 shifted views, lane-concat), ONE big matmul.
        patches = [a1p_ref[pl.ds(kh * 14 + kw, l_rows), :]
                   for kh in range(5) for kw in range(5)]
        p2 = jnp.concatenate(patches, axis=1)                                   # (l_rows, 3200)
        zc2 = jnp.dot(p2, w2big_ref[...], preferred_element_type=jnp.float32)   # (l_rows, 128)

        # ---- 2x2 maxpool + gather of pooled windows into (25 positions) x (bp batch slots).
        zp0 = jnp.dot(sel_ref[0], zc2, preferred_element_type=jnp.float32)
        zp1 = jnp.dot(sel_ref[1], zc2, preferred_element_type=jnp.float32)
        zp2 = jnp.dot(sel_ref[2], zc2, preferred_element_type=jnp.float32)
        zp3 = jnp.dot(sel_ref[3], zc2, preferred_element_type=jnp.float32)
        a2 = jnp.maximum(jnp.maximum(zp0, zp1), jnp.maximum(zp2, zp3))
        a2 = jnp.maximum(a2 + b2c_ref[...], 0.0)                                # (25*bp, 128)

        # ---- flatten (aligned row blocks lane-concatenated; NCHW order folded into w1big)
        #      + fc1/fc2/fc3 + numerically-stable log_softmax.
        x1 = jnp.concatenate([a2[s * bp:(s + 1) * bp, :] for s in range(25)], axis=1)
        h1 = jnp.maximum(
            jnp.dot(x1, w1big_ref[...], preferred_element_type=jnp.float32) + b1f_ref[...], 0.0)
        h2 = jnp.maximum(
            jnp.dot(h1, w2f_ref[...], preferred_element_type=jnp.float32) + b2f_ref[...], 0.0)
        z = jnp.dot(h2, w3f_ref[...], preferred_element_type=jnp.float32) + b3f_ref[...]
        zmax = jnp.max(z, axis=-1, keepdims=True)
        lse = jnp.log(jnp.sum(jnp.exp(z - zmax), axis=-1, keepdims=True)) + zmax
        o_ref[...] = z - lse

    return kernel


# ------------------------------ JAX-side glue ------------------------------

def _build_conv1_patches(x_nhwc, n1p):
    """(B,32,32,3) -> (4*n1p, 128) conv1 im2col; rows ordered (pool_offset, b, pi, pj),
    columns ordered ci*25 + kh*5 + kw (torch weight.view(Cout,-1) order), zero padded."""
    b = x_nhwc.shape[0]
    slabs = [x_nhwc[:, kh:kh + 28, kw:kw + 28, :] for kh in range(5) for kw in range(5)]
    p = jnp.stack(slabs, axis=-1)                  # (B, 28, 28, 3, 25)
    p = p.reshape(b, 28, 28, 75)                   # col = ci*25 + kh*5 + kw
    offs = [p[:, di::2, dj::2, :] for di in (0, 1) for dj in (0, 1)]
    p4 = jnp.stack(offs, axis=0).reshape(4, b * 196, 75)
    p4 = jnp.pad(p4, ((0, 0), (0, n1p - b * 196), (0, 128 - 75)))
    return p4.reshape(4 * n1p, 128)


def pack_params(params, batch):
    """One-time packing of torch-layout weights into lane-dense, MXU-friendly operands."""
    f32 = jnp.float32
    n1 = batch * 196                       # pooled conv1 rows (14*14 per image)
    l_rows = _round_up(n1, 128)            # lane-dense contraction dim for the pool gather
    bp = _round_up(batch, 8)               # sublane-aligned batch slots

    # conv1: (6,3,5,5) -> (75,6), zero padded to (128,128)
    w1 = params["conv1_w"].reshape(6, 75).T
    w1c = jnp.zeros((128, 128), f32).at[:75, :6].set(w1)
    b1c = jnp.zeros((1, 128), f32).at[0, :6].set(params["conv1_b"])

    # conv2: rows ordered (kh*5+kw)*128 + ci to match the in-kernel shifted-concat im2col
    w2 = jnp.transpose(params["conv2_w"], (2, 3, 1, 0)).reshape(25, 6, 16)
    w2big = jnp.zeros((25, 128, 128), f32).at[:, :6, :16].set(w2).reshape(3200, 128)
    b2c = jnp.zeros((1, 128), f32).at[0, :16].set(params["conv2_b"])

    # pooled-window gather: sel[d, (p*5+q)*bp + b, b*196 + (2p+di)*14 + (2q+dj)] = 1
    sel = np.zeros((4, 25 * bp, l_rows), np.float32)
    for d, (di, dj) in enumerate(((0, 0), (0, 1), (1, 0), (1, 1))):
        for p in range(5):
            for q in range(5):
                for b in range(batch):
                    sel[d, (p * 5 + q) * bp + b,
                        b * 196 + (2 * p + di) * 14 + (2 * q + dj)] = 1.0

    # fc1: fold torch's NCHW flatten order (c*25 + p*5 + q) into the packed weight; rows
    # ordered (p*5+q)*128 + c to match the in-kernel lane-concat flatten.
    w1fc = jnp.transpose(params["fc1_w"].reshape(120, 16, 25), (2, 1, 0))   # (s, c, f)
    w1big = jnp.zeros((25, 128, 128), f32).at[:, :16, :120].set(w1fc).reshape(3200, 128)
    b1f = jnp.zeros((1, 128), f32).at[0, :120].set(params["fc1_b"])

    w2f = jnp.zeros((128, 128), f32).at[:120, :84].set(params["fc2_w"].T)
    b2f = jnp.zeros((1, 128), f32).at[0, :84].set(params["fc2_b"])

    nc = params["fc3_w"].shape[0]
    w3f = jnp.zeros((128, 128), f32).at[:84, :nc].set(params["fc3_w"].T)
    # padded class columns get a -1e30 bias so the in-kernel log_softmax ignores them
    b3f = jnp.full((1, 128), -1e30, f32).at[0, :nc].set(params["fc3_b"])

    return {
        "w1c": w1c, "b1c": b1c, "w2big": w2big, "b2c": b2c, "sel": jnp.asarray(sel),
        "w1big": w1big, "b1f": b1f, "w2f": w2f, "b2f": b2f, "w3f": w3f, "b3f": b3f,
    }


def cnn_cifar_forward(packed, x_nchw, num_classes=10):
    b, c, h, w = x_nchw.shape
    assert (c, h, w) == (3, 32, 32), "CNNCifar expects 3x32x32 inputs"
    n1 = b * 196
    n1p = _round_up(n1, 8)
    l_rows = _round_up(n1, 128)
    bp = _round_up(b, 8)
    pad_rows = l_rows + 72 - n1p           # zero tail (max shift is 4*14 + 4 = 60 rows)

    x_nhwc = jnp.transpose(x_nchw, (0, 2, 3, 1)).astype(jnp.float32)
    p1 = _build_conv1_patches(x_nhwc, n1p)

    kernel = _make_kernel(n1p, l_rows, bp, pad_rows)
    in_specs = [pl.BlockSpec(memory_space=pltpu.MemorySpace.VMEM) for _ in range(12)]
    out = pl.pallas_call(
        kernel,
        out_shape=jax.ShapeDtypeStruct((bp, 128), jnp.float32),
        in_specs=in_specs,
        out_specs=pl.BlockSpec(memory_space=pltpu.MemorySpace.VMEM),
        scratch_shapes=[pltpu.VMEM((l_rows + 72, 128), jnp.float32)],
        compiler_params=pltpu.CompilerParams(vmem_limit_bytes=48 * 1024 * 1024),
    )(p1, packed["w1c"], packed["b1c"], packed["w2big"], packed["b2c"], packed["sel"],
      packed["w1big"], packed["b1f"], packed["w2f"], packed["b2f"],
      packed["w3f"], packed["b3f"])
    return out[:b, :num_classes]


# ----------------------- params + pure-JAX reference -----------------------

def init_params(key, num_classes=10):
    ks = jax.random.split(key, 10)

    def unif(k, shape, fan_in):
        bound = 1.0 / jnp.sqrt(jnp.float32(fan_in))
        return jax.random.uniform(k, shape, jnp.float32, -bound, bound)

    return {
        "conv1_w": unif(ks[0], (6, 3, 5, 5), 3 * 25),
        "conv1_b": unif(ks[1], (6,), 3 * 25),
        "conv2_w": unif(ks[2], (16, 6, 5, 5), 6 * 25),
        "conv2_b": unif(ks[3], (16,), 6 * 25),
        "fc1_w": unif(ks[4], (120, 400), 400),
        "fc1_b": unif(ks[5], (120,), 400),
        "fc2_w": unif(ks[6], (84, 120), 120),
        "fc2_b": unif(ks[7], (84,), 120),
        "fc3_w": unif(ks[8], (num_classes, 84), 84),
        "fc3_b": unif(ks[9], (num_classes,), 84),
    }


def reference_forward(params, x_nchw):
    hp = lax.Precision.HIGHEST

    def conv(x, w, b):
        y = lax.conv_general_dilated(
            x, w, (1, 1), "VALID",
            dimension_numbers=("NCHW", "OIHW", "NCHW"), precision=hp)
        return y + b[None, :, None, None]

    def pool(x):
        return lax.reduce_window(x, -jnp.inf, lax.max, (1, 1, 2, 2), (1, 1, 2, 2), "VALID")

    x = pool(jax.nn.relu(conv(x_nchw, params["conv1_w"], params["conv1_b"])))
    x = pool(jax.nn.relu(conv(x, params["conv2_w"], params["conv2_b"])))
    x = x.reshape(x.shape[0], -1)
    x = jax.nn.relu(jnp.dot(x, params["fc1_w"].T, precision=hp) + params["fc1_b"])
    x = jax.nn.relu(jnp.dot(x, params["fc2_w"].T, precision=hp) + params["fc2_b"])
    x = jnp.dot(x, params["fc3_w"].T, precision=hp) + params["fc3_b"]
    return jax.nn.log_softmax(x, axis=1)


if __name__ == "__main__":
    key = jax.random.PRNGKey(0)
    kx, kp = jax.random.split(key)
    # CIFAR-shaped input: 32x32 is required for the 16*5*5 flatten to line up.
    x = jax.random.normal(kx, (2, 3, 32, 32), dtype=jnp.float32)
    params = init_params(kp, num_classes=10)

    packed = pack_params(params, batch=x.shape[0])       # one-time weight packing
    fwd = jax.jit(cnn_cifar_forward, static_argnames=("num_classes",))

    out = jax.block_until_ready(fwd(packed, x, num_classes=10))
    ref = jax.block_until_ready(jax.jit(reference_forward)(params, x))

    assert out.shape == (2, 10), out.shape
    assert bool(jnp.all(jnp.isfinite(out)))
    # Kernel runs at MXU default (bf16-pass) precision per the perf review, while the
    # reference is f32 HIGHEST; observed differences sit at the few-1e-3 level, so 5e-2
    # leaves a comfortable margin across chips.
    err = float(jnp.max(jnp.abs(out - ref)))
    assert err < 5e-2, f"max abs err {err}"
    print("KERNEL_OK")
</pallas_src>

<mosaic_0001>
module attributes {stable_mosaic.version = 11 : i64} {
  func.func @kernel(%arg0: memref<1568x128xf32, #tpu.memory_space<vmem>>, %arg1: memref<128x128xf32, #tpu.memory_space<vmem>>, %arg2: memref<1x128xf32, #tpu.memory_space<vmem>>, %arg3: memref<3200x128xf32, #tpu.memory_space<vmem>>, %arg4: memref<1x128xf32, #tpu.memory_space<vmem>>, %arg5: memref<4x200x512xf32, #tpu.memory_space<vmem>>, %arg6: memref<3200x128xf32, #tpu.memory_space<vmem>>, %arg7: memref<1x128xf32, #tpu.memory_space<vmem>>, %arg8: memref<128x128xf32, #tpu.memory_space<vmem>>, %arg9: memref<1x128xf32, #tpu.memory_space<vmem>>, %arg10: memref<128x128xf32, #tpu.memory_space<vmem>>, %arg11: memref<1x128xf32, #tpu.memory_space<vmem>>, %arg12: memref<8x128xf32, #tpu.memory_space<vmem>>, %arg13: memref<584x128xf32, #tpu.memory_space<vmem>>) attributes {dimension_semantics = [], scalar_prefetch = 0 : i64, scratch_operands = 1 : i64, tpu.core_type = #tpu.core_type<tc>} {
    %c0 = arith.constant 0 : index
    %c0_0 = arith.constant 0 : index
    %0 = vector.load %arg0[%c0, %c0_0] : memref<1568x128xf32, #tpu.memory_space<vmem>>, vector<1568x128xf32>
    %c0_1 = arith.constant 0 : index
    %c0_2 = arith.constant 0 : index
    %1 = vector.load %arg1[%c0_1, %c0_2] : memref<128x128xf32, #tpu.memory_space<vmem>>, vector<128x128xf32>
    %cst = arith.constant dense<0.000000e+00> : vector<1568x128xf32>
    %2 = tpu.matmul %0, %1, %cst {dimension_numbers = #tpu.dot_dimension_numbers<[1], [0], [0], [1], [0, 0, 1, 1], [], []>} : vector<1568x128xf32>, vector<128x128xf32>, vector<1568x128xf32> -> vector<1568x128xf32>
    %3 = vector.extract_strided_slice %2 {offsets = [0, 0], sizes = [392, 128], strides = [1, 1]} : vector<1568x128xf32> to vector<392x128xf32>
    %4 = vector.extract_strided_slice %2 {offsets = [392, 0], sizes = [392, 128], strides = [1, 1]} : vector<1568x128xf32> to vector<392x128xf32>
    %5 = arith.maximumf %3, %4 : vector<392x128xf32>
    %6 = vector.extract_strided_slice %2 {offsets = [784, 0], sizes = [392, 128], strides = [1, 1]} : vector<1568x128xf32> to vector<392x128xf32>
    %7 = vector.extract_strided_slice %2 {offsets = [1176, 0], sizes = [392, 128], strides = [1, 1]} : vector<1568x128xf32> to vector<392x128xf32>
    %8 = arith.maximumf %6, %7 : vector<392x128xf32>
    %9 = arith.maximumf %5, %8 : vector<392x128xf32>
    %c0_3 = arith.constant 0 : index
    %c0_4 = arith.constant 0 : index
    %10 = vector.load %arg2[%c0_3, %c0_4] : memref<1x128xf32, #tpu.memory_space<vmem>>, vector<1x128xf32>
    %11 = vector.broadcast %10 : vector<1x128xf32> to vector<392x128xf32>
    %12 = arith.addf %9, %11 : vector<392x128xf32>
    %cst_5 = arith.constant 0.000000e+00 : f32
    %13 = vector.broadcast %cst_5 : f32 to vector<392x128xf32>
    %14 = arith.maximumf %12, %13 : vector<392x128xf32>
    %c0_6 = arith.constant 0 : index
    %c0_7 = arith.constant 0 : index
    %15 = vector.load %arg13[%c0_6, %c0_7] : memref<584x128xf32, #tpu.memory_space<vmem>>, vector<392x128xf32>
    tpu.vector_store %arg13[%c0_6, %c0_7], %14 {strides = array<i32>} : memref<584x128xf32, #tpu.memory_space<vmem>>, vector<392x128xf32>,
    %cst_8 = arith.constant 0.000000e+00 : f32
    %16 = vector.broadcast %cst_8 : f32 to vector<192x128xf32>
    %c392 = arith.constant 392 : index
    %c0_9 = arith.constant 0 : index
    %17 = vector.load %arg13[%c392, %c0_9] : memref<584x128xf32, #tpu.memory_space<vmem>>, vector<192x128xf32>
    tpu.vector_store %arg13[%c392, %c0_9], %16 {strides = array<i32>} : memref<584x128xf32, #tpu.memory_space<vmem>>, vector<192x128xf32>,
    %c0_10 = arith.constant 0 : index
    %c0_11 = arith.constant 0 : index
    %18 = vector.load %arg13[%c0_10, %c0_11] : memref<584x128xf32, #tpu.memory_space<vmem>>, vector<512x128xf32>
    %c1 = arith.constant 1 : index
    %c0_12 = arith.constant 0 : index
    %19 = vector.load %arg13[%c1, %c0_12] : memref<584x128xf32, #tpu.memory_space<vmem>>, vector<512x128xf32>
    %c2 = arith.constant 2 : index
    %c0_13 = arith.constant 0 : index
    %20 = vector.load %arg13[%c2, %c0_13] : memref<584x128xf32, #tpu.memory_space<vmem>>, vector<512x128xf32>
    %c3 = arith.constant 3 : index
    %c0_14 = arith.constant 0 : index
    %21 = vector.load %arg13[%c3, %c0_14] : memref<584x128xf32, #tpu.memory_space<vmem>>, vector<512x128xf32>
    %c4 = arith.constant 4 : index
    %c0_15 = arith.constant 0 : index
    %22 = vector.load %arg13[%c4, %c0_15] : memref<584x128xf32, #tpu.memory_space<vmem>>, vector<512x128xf32>
    %c14 = arith.constant 14 : index
    %c0_16 = arith.constant 0 : index
    %23 = vector.load %arg13[%c14, %c0_16] : memref<584x128xf32, #tpu.memory_space<vmem>>, vector<512x128xf32>
    %c15 = arith.constant 15 : index
    %c0_17 = arith.constant 0 : index
    %24 = vector.load %arg13[%c15, %c0_17] : memref<584x128xf32, #tpu.memory_space<vmem>>, vector<512x128xf32>
    %c16 = arith.constant 16 : index
    %c0_18 = arith.constant 0 : index
    %25 = vector.load %arg13[%c16, %c0_18] : memref<584x128xf32, #tpu.memory_space<vmem>>, vector<512x128xf32>
    %c17 = arith.constant 17 : index
    %c0_19 = arith.constant 0 : index
    %26 = vector.load %arg13[%c17, %c0_19] : memref<584x128xf32, #tpu.memory_space<vmem>>, vector<512x128xf32>
    %c18 = arith.constant 18 : index
    %c0_20 = arith.constant 0 : index
    %27 = vector.load %arg13[%c18, %c0_20] : memref<584x128xf32, #tpu.memory_space<vmem>>, vector<512x128xf32>
    %c28 = arith.constant 28 : index
    %c0_21 = arith.constant 0 : index
    %28 = vector.load %arg13[%c28, %c0_21] : memref<584x128xf32, #tpu.memory_space<vmem>>, vector<512x128xf32>
    %c29 = arith.constant 29 : index
    %c0_22 = arith.constant 0 : index
    %29 = vector.load %arg13[%c29, %c0_22] : memref<584x128xf32, #tpu.memory_space<vmem>>, vector<512x128xf32>
    %c30 = arith.constant 30 : index
    %c0_23 = arith.constant 0 : index
    %30 = vector.load %arg13[%c30, %c0_23] : memref<584x128xf32, #tpu.memory_space<vmem>>, vector<512x128xf32>
    %c31 = arith.constant 31 : index
    %c0_24 = arith.constant 0 : index
    %31 = vector.load %arg13[%c31, %c0_24] : memref<584x128xf32, #tpu.memory_space<vmem>>, vector<512x128xf32>
    %c32 = arith.constant 32 : index
    %c0_25 = arith.constant 0 : index
    %32 = vector.load %arg13[%c32, %c0_25] : memref<584x128xf32, #tpu.memory_space<vmem>>, vector<512x128xf32>
    %c42 = arith.constant 42 : index
    %c0_26 = arith.constant 0 : index
    %33 = vector.load %arg13[%c42, %c0_26] : memref<584x128xf32, #tpu.memory_space<vmem>>, vector<512x128xf32>
    %c43 = arith.constant 43 : index
    %c0_27 = arith.constant 0 : index
    %34 = vector.load %arg13[%c43, %c0_27] : memref<584x128xf32, #tpu.memory_space<vmem>>, vector<512x128xf32>
    %c44 = arith.constant 44 : index
    %c0_28 = arith.constant 0 : index
    %35 = vector.load %arg13[%c44, %c0_28] : memref<584x128xf32, #tpu.memory_space<vmem>>, vector<512x128xf32>
    %c45 = arith.constant 45 : index
    %c0_29 = arith.constant 0 : index
    %36 = vector.load %arg13[%c45, %c0_29] : memref<584x128xf32, #tpu.memory_space<vmem>>, vector<512x128xf32>
    %c46 = arith.constant 46 : index
    %c0_30 = arith.constant 0 : index
    %37 = vector.load %arg13[%c46, %c0_30] : memref<584x128xf32, #tpu.memory_space<vmem>>, vector<512x128xf32>
    %c56 = arith.constant 56 : index
    %c0_31 = arith.constant 0 : index
    %38 = vector.load %arg13[%c56, %c0_31] : memref<584x128xf32, #tpu.memory_space<vmem>>, vector<512x128xf32>
    %c57 = arith.constant 57 : index
    %c0_32 = arith.constant 0 : index
    %39 = vector.load %arg13[%c57, %c0_32] : memref<584x128xf32, #tpu.memory_space<vmem>>, vector<512x128xf32>
    %c58 = arith.constant 58 : index
    %c0_33 = arith.constant 0 : index
    %40 = vector.load %arg13[%c58, %c0_33] : memref<584x128xf32, #tpu.memory_space<vmem>>, vector<512x128xf32>
    %c59 = arith.constant 59 : index
    %c0_34 = arith.constant 0 : index
    %41 = vector.load %arg13[%c59, %c0_34] : memref<584x128xf32, #tpu.memory_space<vmem>>, vector<512x128xf32>
    %c60 = arith.constant 60 : index
    %c0_35 = arith.constant 0 : index
    %42 = vector.load %arg13[%c60, %c0_35] : memref<584x128xf32, #tpu.memory_space<vmem>>, vector<512x128xf32>
    %43 = tpu.concatenate %18, %19, %20, %21, %22, %23, %24, %25, %26, %27, %28, %29, %30, %31, %32, %33 in 1 : vector<512x128xf32>, vector<512x128xf32>, vector<512x128xf32>, vector<512x128xf32>, vector<512x128xf32>, vector<512x128xf32>, vector<512x128xf32>, vector<512x128xf32>, vector<512x128xf32>, vector<512x128xf32>, vector<512x128xf32>, vector<512x128xf32>, vector<512x128xf32>, vector<512x128xf32>, vector<512x128xf32>, vector<512x128xf32> -> vector<512x2048xf32>
    %44 = tpu.concatenate %34, %35, %36, %37, %38, %39, %40, %41, %42 in 1 : vector<512x128xf32>, vector<512x128xf32>, vector<512x128xf32>, vector<512x128xf32>, vector<512x128xf32>, vector<512x128xf32>, vector<512x128xf32>, vector<512x128xf32>, vector<512x128xf32> -> vector<512x1152xf32>
    %45 = tpu.concatenate %43, %44 in 1 : vector<512x2048xf32>, vector<512x1152xf32> -> vector<512x3200xf32>
    %c0_36 = arith.constant 0 : index
    %c0_37 = arith.constant 0 : index
    %46 = vector.load %arg3[%c0_36, %c0_37] : memref<3200x128xf32, #tpu.memory_space<vmem>>, vector<3200x128xf32>
    %cst_38 = arith.constant dense<0.000000e+00> : vector<512x128xf32>
    %47 = tpu.matmul %45, %46, %cst_38 {dimension_numbers = #tpu.dot_dimension_numbers<[1], [0], [0], [1], [0, 0, 1, 1], [], []>} : vector<512x3200xf32>, vector<3200x128xf32>, vector<512x128xf32> -> vector<512x128xf32>
    %c0_39 = arith.constant 0 : index
    %c0_40 = arith.constant 0 : index
    %c0_41 = arith.constant 0 : index
    %48 = vector.load %arg5[%c0_39, %c0_40, %c0_41] : memref<4x200x512xf32, #tpu.memory_space<vmem>>, vector<1x200x512xf32>
    %49 = vector.shape_cast %48 : vector<1x200x512xf32> to vector<200x512xf32>
    %cst_42 = arith.constant dense<0.000000e+00> : vector<200x128xf32>
    %50 = tpu.matmul %49, %47, %cst_42 {dimension_numbers = #tpu.dot_dimension_numbers<[1], [0], [0], [1], [0, 0, 1, 1], [], []>} : vector<200x512xf32>, vector<512x128xf32>, vector<200x128xf32> -> vector<200x128xf32>
    %c1_43 = arith.constant 1 : index
    %c0_44 = arith.constant 0 : index
    %c0_45 = arith.constant 0 : index
    %51 = vector.load %arg5[%c1_43, %c0_44, %c0_45] : memref<4x200x512xf32, #tpu.memory_space<vmem>>, vector<1x200x512xf32>
    %52 = vector.shape_cast %51 : vector<1x200x512xf32> to vector<200x512xf32>
    %cst_46 = arith.constant dense<0.000000e+00> : vector<200x128xf32>
    %53 = tpu.matmul %52, %47, %cst_46 {dimension_numbers = #tpu.dot_dimension_numbers<[1], [0], [0], [1], [0, 0, 1, 1], [], []>} : vector<200x512xf32>, vector<512x128xf32>, vector<200x128xf32> -> vector<200x128xf32>
    %c2_47 = arith.constant 2 : index
    %c0_48 = arith.constant 0 : index
    %c0_49 = arith.constant 0 : index
    %54 = vector.load %arg5[%c2_47, %c0_48, %c0_49] : memref<4x200x512xf32, #tpu.memory_space<vmem>>, vector<1x200x512xf32>
    %55 = vector.shape_cast %54 : vector<1x200x512xf32> to vector<200x512xf32>
    %cst_50 = arith.constant dense<0.000000e+00> : vector<200x128xf32>
    %56 = tpu.matmul %55, %47, %cst_50 {dimension_numbers = #tpu.dot_dimension_numbers<[1], [0], [0], [1], [0, 0, 1, 1], [], []>} : vector<200x512xf32>, vector<512x128xf32>, vector<200x128xf32> -> vector<200x128xf32>
    %c3_51 = arith.constant 3 : index
    %c0_52 = arith.constant 0 : index
    %c0_53 = arith.constant 0 : index
    %57 = vector.load %arg5[%c3_51, %c0_52, %c0_53] : memref<4x200x512xf32, #tpu.memory_space<vmem>>, vector<1x200x512xf32>
    %58 = vector.shape_cast %57 : vector<1x200x512xf32> to vector<200x512xf32>
    %cst_54 = arith.constant dense<0.000000e+00> : vector<200x128xf32>
    %59 = tpu.matmul %58, %47, %cst_54 {dimension_numbers = #tpu.dot_dimension_numbers<[1], [0], [0], [1], [0, 0, 1, 1], [], []>} : vector<200x512xf32>, vector<512x128xf32>, vector<200x128xf32> -> vector<200x128xf32>
    %60 = arith.maximumf %50, %53 : vector<200x128xf32>
    %61 = arith.maximumf %56, %59 : vector<200x128xf32>
    %62 = arith.maximumf %60, %61 : vector<200x128xf32>
    %c0_55 = arith.constant 0 : index
    %c0_56 = arith.constant 0 : index
    %63 = vector.load %arg4[%c0_55, %c0_56] : memref<1x128xf32, #tpu.memory_space<vmem>>, vector<1x128xf32>
    %64 = vector.broadcast %63 : vector<1x128xf32> to vector<200x128xf32>
    %65 = arith.addf %62, %64 : vector<200x128xf32>
    %cst_57 = arith.constant 0.000000e+00 : f32
    %66 = vector.broadcast %cst_57 : f32 to vector<200x128xf32>
    %67 = arith.maximumf %65, %66 : vector<200x128xf32>
    %68 = vector.extract_strided_slice %67 {offsets = [0, 0], sizes = [8, 128], strides = [1, 1]} : vector<200x128xf32> to vector<8x128xf32>
    %69 = vector.extract_strided_slice %67 {offsets = [8, 0], sizes = [8, 128], strides = [1, 1]} : vector<200x128xf32> to vector<8x128xf32>
    %70 = vector.extract_strided_slice %67 {offsets = [16, 0], sizes = [8, 128], strides = [1, 1]} : vector<200x128xf32> to vector<8x128xf32>
    %71 = vector.extract_strided_slice %67 {offsets = [24, 0], sizes = [8, 128], strides = [1, 1]} : vector<200x128xf32> to vector<8x128xf32>
    %72 = vector.extract_strided_slice %67 {offsets = [32, 0], sizes = [8, 128], strides = [1, 1]} : vector<200x128xf32> to vector<8x128xf32>
    %73 = vector.extract_strided_slice %67 {offsets = [40, 0], sizes = [8, 128], strides = [1, 1]} : vector<200x128xf32> to vector<8x128xf32>
    %74 = vector.extract_strided_slice %67 {offsets = [48, 0], sizes = [8, 128], strides = [1, 1]} : vector<200x128xf32> to vector<8x128xf32>
    %75 = vector.extract_strided_slice %67 {offsets = [56, 0], sizes = [8, 128], strides = [1, 1]} : vector<200x128xf32> to vector<8x128xf32>
    %76 = vector.extract_strided_slice %67 {offsets = [64, 0], sizes = [8, 128], strides = [1, 1]} : vector<200x128xf32> to vector<8x128xf32>
    %77 = vector.extract_strided_slice %67 {offsets = [72, 0], sizes = [8, 128], strides = [1, 1]} : vector<200x128xf32> to vector<8x128xf32>
    %78 = vector.extract_strided_slice %67 {offsets = [80, 0], sizes = [8, 128], strides = [1, 1]} : vector<200x128xf32> to vector<8x128xf32>
    %79 = vector.extract_strided_slice %67 {offsets = [88, 0], sizes = [8, 128], strides = [1, 1]} : vector<200x128xf32> to vector<8x128xf32>
    %80 = vector.extract_strided_slice %67 {offsets = [96, 0], sizes = [8, 128], strides = [1, 1]} : vector<200x128xf32> to vector<8x128xf32>
    %81 = vector.extract_strided_slice %67 {offsets = [104, 0], sizes = [8, 128], strides = [1, 1]} : vector<200x128xf32> to vector<8x128xf32>
    %82 = vector.extract_strided_slice %67 {offsets = [112, 0], sizes = [8, 128], strides = [1, 1]} : vector<200x128xf32> to vector<8x128xf32>
    %83 = vector.extract_strided_slice %67 {offsets = [120, 0], sizes = [8, 128], strides = [1, 1]} : vector<200x128xf32> to vector<8x128xf32>
    %84 = vector.extract_strided_slice %67 {offsets = [128, 0], sizes = [8, 128], strides = [1, 1]} : vector<200x128xf32> to vector<8x128xf32>
    %85 = vector.extract_strided_slice %67 {offsets = [136, 0], sizes = [8, 128], strides = [1, 1]} : vector<200x128xf32> to vector<8x128xf32>
    %86 = vector.extract_strided_slice %67 {offsets = [144, 0], sizes = [8, 128], strides = [1, 1]} : vector<200x128xf32> to vector<8x128xf32>
    %87 = vector.extract_strided_slice %67 {offsets = [152, 0], sizes = [8, 128], strides = [1, 1]} : vector<200x128xf32> to vector<8x128xf32>
    %88 = vector.extract_strided_slice %67 {offsets = [160, 0], sizes = [8, 128], strides = [1, 1]} : vector<200x128xf32> to vector<8x128xf32>
    %89 = vector.extract_strided_slice %67 {offsets = [168, 0], sizes = [8, 128], strides = [1, 1]} : vector<200x128xf32> to vector<8x128xf32>
    %90 = vector.extract_strided_slice %67 {offsets = [176, 0], sizes = [8, 128], strides = [1, 1]} : vector<200x128xf32> to vector<8x128xf32>
    %91 = vector.extract_strided_slice %67 {offsets = [184, 0], sizes = [8, 128], strides = [1, 1]} : vector<200x128xf32> to vector<8x128xf32>
    %92 = vector.extract_strided_slice %67 {offsets = [192, 0], sizes = [8, 128], strides = [1, 1]} : vector<200x128xf32> to vector<8x128xf32>
    %93 = tpu.concatenate %68, %69, %70, %71, %72, %73, %74, %75, %76, %77, %78, %79, %80, %81, %82, %83 in 1 : vector<8x128xf32>, vector<8x128xf32>, vector<8x128xf32>, vector<8x128xf32>, vector<8x128xf32>, vector<8x128xf32>, vector<8x128xf32>, vector<8x128xf32>, vector<8x128xf32>, vector<8x128xf32>, vector<8x128xf32>, vector<8x128xf32>, vector<8x128xf32>, vector<8x128xf32>, vector<8x128xf32>, vector<8x128xf32> -> vector<8x2048xf32>
    %94 = tpu.concatenate %84, %85, %86, %87, %88, %89, %90, %91, %92 in 1 : vector<8x128xf32>, vector<8x128xf32>, vector<8x128xf32>, vector<8x128xf32>, vector<8x128xf32>, vector<8x128xf32>, vector<8x128xf32>, vector<8x128xf32>, vector<8x128xf32> -> vector<8x1152xf32>
    %95 = tpu.concatenate %93, %94 in 1 : vector<8x2048xf32>, vector<8x1152xf32> -> vector<8x3200xf32>
    %c0_58 = arith.constant 0 : index
    %c0_59 = arith.constant 0 : index
    %96 = vector.load %arg6[%c0_58, %c0_59] : memref<3200x128xf32, #tpu.memory_space<vmem>>, vector<3200x128xf32>
    %cst_60 = arith.constant dense<0.000000e+00> : vector<8x128xf32>
    %97 = tpu.matmul %95, %96, %cst_60 {dimension_numbers = #tpu.dot_dimension_numbers<[1], [0], [0], [1], [0, 0, 1, 1], [], []>} : vector<8x3200xf32>, vector<3200x128xf32>, vector<8x128xf32> -> vector<8x128xf32>
    %c0_61 = arith.constant 0 : index
    %c0_62 = arith.constant 0 : index
    %98 = vector.load %arg7[%c0_61, %c0_62] : memref<1x128xf32, #tpu.memory_space<vmem>>, vector<1x128xf32>
    %99 = vector.broadcast %98 : vector<1x128xf32> to vector<8x128xf32>
    %100 = arith.addf %97, %99 : vector<8x128xf32>
    %cst_63 = arith.constant 0.000000e+00 : f32
    %101 = vector.broadcast %cst_63 : f32 to vector<8x128xf32>
    %102 = arith.maximumf %100, %101 : vector<8x128xf32>
    %c0_64 = arith.constant 0 : index
    %c0_65 = arith.constant 0 : index
    %103 = vector.load %arg8[%c0_64, %c0_65] : memref<128x128xf32, #tpu.memory_space<vmem>>, vector<128x128xf32>
    %cst_66 = arith.constant dense<0.000000e+00> : vector<8x128xf32>
    %104 = tpu.matmul %102, %103, %cst_66 {dimension_numbers = #tpu.dot_dimension_numbers<[1], [0], [0], [1], [0, 0, 1, 1], [], []>} : vector<8x128xf32>, vector<128x128xf32>, vector<8x128xf32> -> vector<8x128xf32>
    %c0_67 = arith.constant 0 : index
    %c0_68 = arith.constant 0 : index
    %105 = vector.load %arg9[%c0_67, %c0_68] : memref<1x128xf32, #tpu.memory_space<vmem>>, vector<1x128xf32>
    %106 = vector.broadcast %105 : vector<1x128xf32> to vector<8x128xf32>
    %107 = arith.addf %104, %106 : vector<8x128xf32>
    %cst_69 = arith.constant 0.000000e+00 : f32
    %108 = vector.broadcast %cst_69 : f32 to vector<8x128xf32>
    %109 = arith.maximumf %107, %108 : vector<8x128xf32>
    %c0_70 = arith.constant 0 : index
    %c0_71 = arith.constant 0 : index
    %110 = vector.load %arg10[%c0_70, %c0_71] : memref<128x128xf32, #tpu.memory_space<vmem>>, vector<128x128xf32>
    %cst_72 = arith.constant dense<0.000000e+00> : vector<8x128xf32>
    %111 = tpu.matmul %109, %110, %cst_72 {dimension_numbers = #tpu.dot_dimension_numbers<[1], [0], [0], [1], [0, 0, 1, 1], [], []>} : vector<8x128xf32>, vector<128x128xf32>, vector<8x128xf32> -> vector<8x128xf32>
    %c0_73 = arith.constant 0 : index
    %c0_74 = arith.constant 0 : index
    %112 = vector.load %arg11[%c0_73, %c0_74] : memref<1x128xf32, #tpu.memory_space<vmem>>, vector<1x128xf32>
    %113 = vector.broadcast %112 : vector<1x128xf32> to vector<8x128xf32>
    %114 = arith.addf %111, %113 : vector<8x128xf32>
    %cst_75 = arith.constant dense<0xFF800000> : vector<8xf32>
    %115 = vector.multi_reduction <maximumf>, %114, %cst_75 [1] : vector<8x128xf32> to vector<8xf32>
    %116 = vector.shape_cast %115 : vector<8xf32> to vector<8x1xf32>
    %117 = vector.broadcast %116 : vector<8x1xf32> to vector<8x128xf32>
    %118 = arith.subf %114, %117 : vector<8x128xf32>
    %119 = math.exp %118 : vector<8x128xf32>
    %cst_76 = arith.constant dense<0.000000e+00> : vector<8xf32>
    %120 = vector.multi_reduction <add>, %119, %cst_76 [1] : vector<8x128xf32> to vector<8xf32>
    %121 = vector.shape_cast %120 : vector<8xf32> to vector<8x1xf32>
    %122 = math.log %121 : vector<8x1xf32>
    %123 = arith.addf %122, %116 : vector<8x1xf32>
    %124 = vector.broadcast %123 : vector<8x1xf32> to vector<8x128xf32>
    %125 = arith.subf %114, %124 : vector<8x128xf32>
    %c0_77 = arith.constant 0 : index
    %c0_78 = arith.constant 0 : index
    %126 = vector.load %arg12[%c0_77, %c0_78] : memref<8x128xf32, #tpu.memory_space<vmem>>, vector<8x128xf32>
    tpu.vector_store %arg12[%c0_77, %c0_78], %125 {strides = array<i32>} : memref<8x128xf32, #tpu.memory_space<vmem>>, vector<8x128xf32>,
    return
  }
}

</mosaic_0001>

<llo_original>
// kernel: cnn_cifar_forward.1
$region0: #{cnn_cifar_forward.1}
  #allocation0 [shape = 'u32[]', space=smem, size = 0x4, offset = 0x4, fixed_abs, tag = 'smem constant byte address 0x4 - core index']
  #allocation1 [shape = 'u32[144,128]{1,0:T(1,128)}', space=vmem, size = 0x12000, scoped, tag = 'internal scratch']
  #allocation2 [shape = 'f32[584,128]{1,0:T(8,128)}', space=vmem, size = 0x49000, scoped, tag = 'scratch operand']
  %s0 = inlined_call_operand.vmem [shape: f32[1568,128], index: 0, kind: input, shape index: {}]
  %s1 = inlined_call_operand.vmem [shape: f32[128,128], index: 1, kind: input, shape index: {}]
  %s2 = inlined_call_operand.vmem [shape: f32[1,128], index: 2, kind: input, shape index: {}]
  %s3 = inlined_call_operand.vmem [shape: f32[3200,128], index: 3, kind: input, shape index: {}]
  %s4 = inlined_call_operand.vmem [shape: f32[1,128], index: 4, kind: input, shape index: {}]
  %s5 = inlined_call_operand.vmem [shape: f32[4,200,512], index: 5, kind: input, shape index: {}]
  %s6 = inlined_call_operand.vmem [shape: f32[3200,128], index: 6, kind: input, shape index: {}]
  %s7 = inlined_call_operand.vmem [shape: f32[1,128], index: 7, kind: input, shape index: {}]
  %s8 = inlined_call_operand.vmem [shape: f32[128,128], index: 8, kind: input, shape index: {}]
  %s9 = inlined_call_operand.vmem [shape: f32[1,128], index: 9, kind: input, shape index: {}]
  %s10 = inlined_call_operand.vmem [shape: f32[128,128], index: 10, kind: input, shape index: {}]
  %s11 = inlined_call_operand.vmem [shape: f32[1,128], index: 11, kind: input, shape index: {}]
  %s12 = inlined_call_operand.vmem [shape: f32[8,128], index: 12, kind: output, shape index: {}]
  %s13 = sld [smem:[#allocation0]]
  $region58: #{cnn_cifar_forward.1} parent=0
    _
  %s15 = ssub.s32 1, %s13
  %s16 = scalar_select 0, %s15, %s13
  // Predicated region
  $region2: #{cnn_cifar_forward.1} parent=0 // pred_check
    _
  $region3: #{cnn_cifar_forward.1} parent=0 // pred_check_branch
    %18 = sbr.rel (0) target = $region5
  $region4: #{cnn_cifar_forward.1} parent=0 // pred_region
    _
  $region5: #{cnn_cifar_forward.1} parent=0 // pred_fallthru
    _
  // Predicated region
  $region6: #{cnn_cifar_forward.1} parent=0 // pred_check
    _
  $region7: #{cnn_cifar_forward.1} parent=0 // pred_check_branch
    %20 = sbr.rel (0) target = $region9
  $region8: #{cnn_cifar_forward.1} parent=0 // pred_region
    _
  $region9: #{cnn_cifar_forward.1} parent=0 // pred_fallthru
    _
  // Predicated region
  $region10: #{cnn_cifar_forward.1} parent=0 // pred_check
    _
  $region11: #{cnn_cifar_forward.1} parent=0 // pred_check_branch
    %22 = sbr.rel (0) target = $region13
  $region12: #{cnn_cifar_forward.1} parent=0 // pred_region
    _
  $region13: #{cnn_cifar_forward.1} parent=0 // pred_fallthru
    _
  // Predicated region
  $region14: #{cnn_cifar_forward.1} parent=0 // pred_check
    _
  $region15: #{cnn_cifar_forward.1} parent=0 // pred_check_branch
    %24 = sbr.rel (0) target = $region17
  $region16: #{cnn_cifar_forward.1} parent=0 // pred_region
    _
  $region17: #{cnn_cifar_forward.1} parent=0 // pred_fallthru
    _
  // Predicated region
  $region18: #{cnn_cifar_forward.1} parent=0 // pred_check
    _
  $region19: #{cnn_cifar_forward.1} parent=0 // pred_check_branch
    %26 = sbr.rel (0) target = $region21
  $region20: #{cnn_cifar_forward.1} parent=0 // pred_region
    _
  $region21: #{cnn_cifar_forward.1} parent=0 // pred_fallthru
    _
  // Predicated region
  $region22: #{cnn_cifar_forward.1} parent=0 // pred_check
    _
  $region23: #{cnn_cifar_forward.1} parent=0 // pred_check_branch
    %28 = sbr.rel (0) target = $region25
  $region24: #{cnn_cifar_forward.1} parent=0 // pred_region
    _
  $region25: #{cnn_cifar_forward.1} parent=0 // pred_fallthru
    _
  // Predicated region
  $region26: #{cnn_cifar_forward.1} parent=0 // pred_check
    _
  $region27: #{cnn_cifar_forward.1} parent=0 // pred_check_branch
    %30 = sbr.rel (0) target = $region29
  $region28: #{cnn_cifar_forward.1} parent=0 // pred_region
    _
  $region29: #{cnn_cifar_forward.1} parent=0 // pred_fallthru
    _
  // Predicated region
  $region30: #{cnn_cifar_forward.1} parent=0 // pred_check
    _
  $region31: #{cnn_cifar_forward.1} parent=0 // pred_check_branch
    %32 = sbr.rel (0) target = $region33
  $region32: #{cnn_cifar_forward.1} parent=0 // pred_region
    _
  $region33: #{cnn_cifar_forward.1} parent=0 // pred_fallthru
    _
  // Predicated region
  $region34: #{cnn_cifar_forward.1} parent=0 // pred_check
    _
  $region35: #{cnn_cifar_forward.1} parent=0 // pred_check_branch
    %34 = sbr.rel (0) target = $region37
  $region36: #{cnn_cifar_forward.1} parent=0 // pred_region
    _
  $region37: #{cnn_cifar_forward.1} parent=0 // pred_fallthru
    _
  // Predicated region
  $region38: #{cnn_cifar_forward.1} parent=0 // pred_check
    _
  $region39: #{cnn_cifar_forward.1} parent=0 // pred_check_branch
    %36 = sbr.rel (0) target = $region41
  $region40: #{cnn_cifar_forward.1} parent=0 // pred_region
    _
  $region41: #{cnn_cifar_forward.1} parent=0 // pred_fallthru
    _
  // Predicated region
  $region42: #{cnn_cifar_forward.1} parent=0 // pred_check
    _
  $region43: #{cnn_cifar_forward.1} parent=0 // pred_check_branch
    %38 = sbr.rel (0) target = $region45
  $region44: #{cnn_cifar_forward.1} parent=0 // pred_region
    _
  $region45: #{cnn_cifar_forward.1} parent=0 // pred_fallthru
    _
  // Predicated region
  $region46: #{cnn_cifar_forward.1} parent=0 // pred_check
    _
  $region47: #{cnn_cifar_forward.1} parent=0 // pred_check_branch
    %40 = sbr.rel (0) target = $region49
  $region48: #{cnn_cifar_forward.1} parent=0 // pred_region
    _
  $region49: #{cnn_cifar_forward.1} parent=0 // pred_fallthru
    _
  %v41 = vld [vmem:[%s0] sm:$0xff]
  %v42 = vld [vmem:[%s0 + $0x8] sm:$0xff]
  %v43 = vld [vmem:[%s0 + $0x10] sm:$0xff]
  %v44 = vld [vmem:[%s0 + $0x18] sm:$0xff]
  %v45 = vld [vmem:[%s0 + $0x20] sm:$0xff]
  %v46 = vld [vmem:[%s0 + $0x28] sm:$0xff]
  %v47 = vld [vmem:[%s0 + $0x30] sm:$0xff]
  %v48 = vld [vmem:[%s0 + $0x38] sm:$0xff]
  %v49 = vld [vmem:[%s0 + $0x40] sm:$0xff]
  %v50 = vld [vmem:[%s0 + $0x48] sm:$0xff]
  %v51 = vld [vmem:[%s0 + $0x50] sm:$0xff]
  %v52 = vld [vmem:[%s0 + $0x58] sm:$0xff]
  %v53 = vld [vmem:[%s0 + $0x60] sm:$0xff]
  %v54 = vld [vmem:[%s0 + $0x68] sm:$0xff]
  %v55 = vld [vmem:[%s0 + $0x70] sm:$0xff]
  %v56 = vld [vmem:[%s0 + $0x78] sm:$0xff]
  %v57 = vld [vmem:[%s0 + $0x80] sm:$0xff]
  %v58 = vld [vmem:[%s0 + $0x88] sm:$0xff]
  %v59 = vld [vmem:[%s0 + $0x90] sm:$0xff]
  %v60 = vld [vmem:[%s0 + $0x98] sm:$0xff]
  %v61 = vld [vmem:[%s0 + $0xa0] sm:$0xff]
  %v62 = vld [vmem:[%s0 + $0xa8] sm:$0xff]
  %v63 = vld [vmem:[%s0 + $0xb0] sm:$0xff]
  %v64 = vld [vmem:[%s0 + $0xb8] sm:$0xff]
  %v65 = vld [vmem:[%s0 + $0xc0] sm:$0xff]
  %v66 = vld [vmem:[%s0 + $0xc8] sm:$0xff]
  %v67 = vld [vmem:[%s0 + $0xd0] sm:$0xff]
  %v68 = vld [vmem:[%s0 + $0xd8] sm:$0xff]
  %v69 = vld [vmem:[%s0 + $0xe0] sm:$0xff]
  %v70 = vld [vmem:[%s0 + $0xe8] sm:$0xff]
  %v71 = vld [vmem:[%s0 + $0xf0] sm:$0xff]
  %v72 = vld [vmem:[%s0 + $0xf8] sm:$0xff]
  %v73 = vld [vmem:[%s0 + $0x100] sm:$0xff]
  %v74 = vld [vmem:[%s0 + $0x108] sm:$0xff]
  %v75 = vld [vmem:[%s0 + $0x110] sm:$0xff]
  %v76 = vld [vmem:[%s0 + $0x118] sm:$0xff]
  %v77 = vld [vmem:[%s0 + $0x120] sm:$0xff]
  %v78 = vld [vmem:[%s0 + $0x128] sm:$0xff]
  %v79 = vld [vmem:[%s0 + $0x130] sm:$0xff]
  %v80 = vld [vmem:[%s0 + $0x138] sm:$0xff]
  %v81 = vld [vmem:[%s0 + $0x140] sm:$0xff]
  %v82 = vld [vmem:[%s0 + $0x148] sm:$0xff]
  %v83 = vld [vmem:[%s0 + $0x150] sm:$0xff]
  %v84 = vld [vmem:[%s0 + $0x158] sm:$0xff]
  %v85 = vld [vmem:[%s0 + $0x160] sm:$0xff]
  %v86 = vld [vmem:[%s0 + $0x168] sm:$0xff]
  %v87 = vld [vmem:[%s0 + $0x170] sm:$0xff]
  %v88 = vld [vmem:[%s0 + $0x178] sm:$0xff]
  %v89 = vld [vmem:[%s0 + $0x180] sm:$0xff]
  %v90 = vld [vmem:[%s0 + $0x188] sm:$0xff]
  %v91 = vld [vmem:[%s0 + $0x190] sm:$0xff]
  %v92 = vld [vmem:[%s0 + $0x198] sm:$0xff]
  %v93 = vld [vmem:[%s0 + $0x1a0] sm:$0xff]
  %v94 = vld [vmem:[%s0 + $0x1a8] sm:$0xff]
  %v95 = vld [vmem:[%s0 + $0x1b0] sm:$0xff]
  %v96 = vld [vmem:[%s0 + $0x1b8] sm:$0xff]
  %v97 = vld [vmem:[%s0 + $0x1c0] sm:$0xff]
  %v98 = vld [vmem:[%s0 + $0x1c8] sm:$0xff]
  %v99 = vld [vmem:[%s0 + $0x1d0] sm:$0xff]
  %v100 = vld [vmem:[%s0 + $0x1d8] sm:$0xff]
  %v101 = vld [vmem:[%s0 + $0x1e0] sm:$0xff]
  %v102 = vld [vmem:[%s0 + $0x1e8] sm:$0xff]
  %v103 = vld [vmem:[%s0 + $0x1f0] sm:$0xff]
  %v104 = vld [vmem:[%s0 + $0x1f8] sm:$0xff]
  %v105 = vld [vmem:[%s0 + $0x200] sm:$0xff]
  %v106 = vld [vmem:[%s0 + $0x208] sm:$0xff]
  %v107 = vld [vmem:[%s0 + $0x210] sm:$0xff]
  %v108 = vld [vmem:[%s0 + $0x218] sm:$0xff]
  %v109 = vld [vmem:[%s0 + $0x220] sm:$0xff]
  %v110 = vld [vmem:[%s0 + $0x228] sm:$0xff]
  %v111 = vld [vmem:[%s0 + $0x230] sm:$0xff]
  %v112 = vld [vmem:[%s0 + $0x238] sm:$0xff]
  %v113 = vld [vmem:[%s0 + $0x240] sm:$0xff]
  %v114 = vld [vmem:[%s0 + $0x248] sm:$0xff]
  %v115 = vld [vmem:[%s0 + $0x250] sm:$0xff]
  %v116 = vld [vmem:[%s0 + $0x258] sm:$0xff]
  %v117 = vld [vmem:[%s0 + $0x260] sm:$0xff]
  %v118 = vld [vmem:[%s0 + $0x268] sm:$0xff]
  %v119 = vld [vmem:[%s0 + $0x270] sm:$0xff]
  %v120 = vld [vmem:[%s0 + $0x278] sm:$0xff]
  %v121 = vld [vmem:[%s0 + $0x280] sm:$0xff]
  %v122 = vld [vmem:[%s0 + $0x288] sm:$0xff]
  %v123 = vld [vmem:[%s0 + $0x290] sm:$0xff]
  %v124 = vld [vmem:[%s0 + $0x298] sm:$0xff]
  %v125 = vld [vmem:[%s0 + $0x2a0] sm:$0xff]
  %v126 = vld [vmem:[%s0 + $0x2a8] sm:$0xff]
  %v127 = vld [vmem:[%s0 + $0x2b0] sm:$0xff]
  %v128 = vld [vmem:[%s0 + $0x2b8] sm:$0xff]
  %v129 = vld [vmem:[%s0 + $0x2c0] sm:$0xff]
  %v130 = vld [vmem:[%s0 + $0x2c8] sm:$0xff]
  %v131 = vld [vmem:[%s0 + $0x2d0] sm:$0xff]
  %v132 = vld [vmem:[%s0 + $0x2d8] sm:$0xff]
  %v133 = vld [vmem:[%s0 + $0x2e0] sm:$0xff]
  %v134 = vld [vmem:[%s0 + $0x2e8] sm:$0xff]
  %v135 = vld [vmem:[%s0 + $0x2f0] sm:$0xff]
  %v136 = vld [vmem:[%s0 + $0x2f8] sm:$0xff]
  %v137 = vld [vmem:[%s0 + $0x300] sm:$0xff]
  %v138 = vld [vmem:[%s0 + $0x308] sm:$0xff]
  %v139 = vld [vmem:[%s0 + $0x310] sm:$0xff]
  %v140 = vld [vmem:[%s0 + $0x318] sm:$0xff]
  %v141 = vld [vmem:[%s0 + $0x320] sm:$0xff]
  %v142 = vld [vmem:[%s0 + $0x328] sm:$0xff]
  %v143 = vld [vmem:[%s0 + $0x330] sm:$0xff]
  %v144 = vld [vmem:[%s0 + $0x338] sm:$0xff]
  %v145 = vld [vmem:[%s0 + $0x340] sm:$0xff]
  %v146 = vld [vmem:[%s0 + $0x348] sm:$0xff]
  %v147 = vld [vmem:[%s0 + $0x350] sm:$0xff]
  %v148 = vld [vmem:[%s0 + $0x358] sm:$0xff]
  %v149 = vld [vmem:[%s0 + $0x360] sm:$0xff]
  %v150 = vld [vmem:[%s0 + $0x368] sm:$0xff]
  %v151 = vld [vmem:[%s0 + $0x370] sm:$0xff]
  %v152 = vld [vmem:[%s0 + $0x378] sm:$0xff]
  %v153 = vld [vmem:[%s0 + $0x380] sm:$0xff]
  %v154 = vld [vmem:[%s0 + $0x388] sm:$0xff]
  %v155 = vld [vmem:[%s0 + $0x390] sm:$0xff]
  %v156 = vld [vmem:[%s0 + $0x398] sm:$0xff]
  %v157 = vld [vmem:[%s0 + $0x3a0] sm:$0xff]
  %v158 = vld [vmem:[%s0 + $0x3a8] sm:$0xff]
  %v159 = vld [vmem:[%s0 + $0x3b0] sm:$0xff]
  %v160 = vld [vmem:[%s0 + $0x3b8] sm:$0xff]
  %v161 = vld [vmem:[%s0 + $0x3c0] sm:$0xff]
  %v162 = vld [vmem:[%s0 + $0x3c8] sm:$0xff]
  %v163 = vld [vmem:[%s0 + $0x3d0] sm:$0xff]
  %v164 = vld [vmem:[%s0 + $0x3d8] sm:$0xff]
  %v165 = vld [vmem:[%s0 + $0x3e0] sm:$0xff]
  %v166 = vld [vmem:[%s0 + $0x3e8] sm:$0xff]
  %v167 = vld [vmem:[%s0 + $0x3f0] sm:$0xff]
  %v168 = vld [vmem:[%s0 + $0x3f8] sm:$0xff]
  %v169 = vld [vmem:[%s0 + $0x400] sm:$0xff]
  %v170 = vld [vmem:[%s0 + $0x408] sm:$0xff]
  %v171 = vld [vmem:[%s0 + $0x410] sm:$0xff]
  %v172 = vld [vmem:[%s0 + $0x418] sm:$0xff]
  %v173 = vld [vmem:[%s0 + $0x420] sm:$0xff]
  %v174 = vld [vmem:[%s0 + $0x428] sm:$0xff]
  %v175 = vld [vmem:[%s0 + $0x430] sm:$0xff]
  %v176 = vld [vmem:[%s0 + $0x438] sm:$0xff]
  %v177 = vld [vmem:[%s0 + $0x440] sm:$0xff]
  %v178 = vld [vmem:[%s0 + $0x448] sm:$0xff]
  %v179 = vld [vmem:[%s0 + $0x450] sm:$0xff]
  %v180 = vld [vmem:[%s0 + $0x458] sm:$0xff]
  %v181 = vld [vmem:[%s0 + $0x460] sm:$0xff]
  %v182 = vld [vmem:[%s0 + $0x468] sm:$0xff]
  %v183 = vld [vmem:[%s0 + $0x470] sm:$0xff]
  %v184 = vld [vmem:[%s0 + $0x478] sm:$0xff]
  %v185 = vld [vmem:[%s0 + $0x480] sm:$0xff]
  %v186 = vld [vmem:[%s0 + $0x488] sm:$0xff]
  %v187 = vld [vmem:[%s0 + $0x490] sm:$0xff]
  %v188 = vld [vmem:[%s0 + $0x498] sm:$0xff]
  %v189 = vld [vmem:[%s0 + $0x4a0] sm:$0xff]
  %v190 = vld [vmem:[%s0 + $0x4a8] sm:$0xff]
  %v191 = vld [vmem:[%s0 + $0x4b0] sm:$0xff]
  %v192 = vld [vmem:[%s0 + $0x4b8] sm:$0xff]
  %v193 = vld [vmem:[%s0 + $0x4c0] sm:$0xff]
  %v194 = vld [vmem:[%s0 + $0x4c8] sm:$0xff]
  %v195 = vld [vmem:[%s0 + $0x4d0] sm:$0xff]
  %v196 = vld [vmem:[%s0 + $0x4d8] sm:$0xff]
  %v197 = vld [vmem:[%s0 + $0x4e0] sm:$0xff]
  %v198 = vld [vmem:[%s0 + $0x4e8] sm:$0xff]
  %v199 = vld [vmem:[%s0 + $0x4f0] sm:$0xff]
  %v200 = vld [vmem:[%s0 + $0x4f8] sm:$0xff]
  %v201 = vld [vmem:[%s0 + $0x500] sm:$0xff]
  %v202 = vld [vmem:[%s0 + $0x508] sm:$0xff]
  %v203 = vld [vmem:[%s0 + $0x510] sm:$0xff]
  %v204 = vld [vmem:[%s0 + $0x518] sm:$0xff]
  %v205 = vld [vmem:[%s0 + $0x520] sm:$0xff]
  %v206 = vld [vmem:[%s0 + $0x528] sm:$0xff]
  %v207 = vld [vmem:[%s0 + $0x530] sm:$0xff]
  %v208 = vld [vmem:[%s0 + $0x538] sm:$0xff]
  %v209 = vld [vmem:[%s0 + $0x540] sm:$0xff]
  %v210 = vld [vmem:[%s0 + $0x548] sm:$0xff]
  %v211 = vld [vmem:[%s0 + $0x550] sm:$0xff]
  %v212 = vld [vmem:[%s0 + $0x558] sm:$0xff]
  %v213 = vld [vmem:[%s0 + $0x560] sm:$0xff]
  %v214 = vld [vmem:[%s0 + $0x568] sm:$0xff]
  %v215 = vld [vmem:[%s0 + $0x570] sm:$0xff]
  %v216 = vld [vmem:[%s0 + $0x578] sm:$0xff]
  %v217 = vld [vmem:[%s0 + $0x580] sm:$0xff]
  %v218 = vld [vmem:[%s0 + $0x588] sm:$0xff]
  %v219 = vld [vmem:[%s0 + $0x590] sm:$0xff]
  %v220 = vld [vmem:[%s0 + $0x598] sm:$0xff]
  %v221 = vld [vmem:[%s0 + $0x5a0] sm:$0xff]
  %v222 = vld [vmem:[%s0 + $0x5a8] sm:$0xff]
  %v223 = vld [vmem:[%s0 + $0x5b0] sm:$0xff]
  %v224 = vld [vmem:[%s0 + $0x5b8] sm:$0xff]
  %v225 = vld [vmem:[%s0 + $0x5c0] sm:$0xff]
  %v226 = vld [vmem:[%s0 + $0x5c8] sm:$0xff]
  %v227 = vld [vmem:[%s0 + $0x5d0] sm:$0xff]
  %v228 = vld [vmem:[%s0 + $0x5d8] sm:$0xff]
  %v229 = vld [vmem:[%s0 + $0x5e0] sm:$0xff]
  %v230 = vld [vmem:[%s0 + $0x5e8] sm:$0xff]
  %v231 = vld [vmem:[%s0 + $0x5f0] sm:$0xff]
  %v232 = vld [vmem:[%s0 + $0x5f8] sm:$0xff]
  %v233 = vld [vmem:[%s0 + $0x600] sm:$0xff]
  %v234 = vld [vmem:[%s0 + $0x608] sm:$0xff]
  %v235 = vld [vmem:[%s0 + $0x610] sm:$0xff]
  %v236 = vld [vmem:[%s0 + $0x618] sm:$0xff]
  %v237 = vld [vmem:[%s1] sm:$0xff]
  %v238 = vld [vmem:[%s1 + $0x8] sm:$0xff]
  %v239 = vld [vmem:[%s1 + $0x10] sm:$0xff]
  %v240 = vld [vmem:[%s1 + $0x18] sm:$0xff]
  %v241 = vld [vmem:[%s1 + $0x20] sm:$0xff]
  %v242 = vld [vmem:[%s1 + $0x28] sm:$0xff]
  %v243 = vld [vmem:[%s1 + $0x30] sm:$0xff]
  %v244 = vld [vmem:[%s1 + $0x38] sm:$0xff]
  %v245 = vld [vmem:[%s1 + $0x40] sm:$0xff]
  %v246 = vld [vmem:[%s1 + $0x48] sm:$0xff]
  %v247 = vld [vmem:[%s1 + $0x50] sm:$0xff]
  %v248 = vld [vmem:[%s1 + $0x58] sm:$0xff]
  %v249 = vld [vmem:[%s1 + $0x60] sm:$0xff]
  %v250 = vld [vmem:[%s1 + $0x68] sm:$0xff]
  %v251 = vld [vmem:[%s1 + $0x70] sm:$0xff]
  %v252 = vld [vmem:[%s1 + $0x78] sm:$0xff]
  %253 = vmatprep.subr.mxu0 0.0
  %254 = vmatpush1.msra.mxu0 %v237
  %255 = vmatprep.subr.mxu0 0.0
  %256 = vmatpush1.msra.mxu0 %v238
  %257 = vmatprep.subr.mxu0 0.0
  %258 = vmatpush1.msra.mxu0 %v239
  %259 = vmatprep.subr.mxu0 0.0
  %260 = vmatpush1.msra.mxu0 %v240
  %261 = vmatprep.subr.mxu0 0.0
  %262 = vmatpush1.msra.mxu0 %v241
  %263 = vmatprep.subr.mxu0 0.0
  %264 = vmatpush1.msra.mxu0 %v242
  %265 = vmatprep.subr.mxu0 0.0
  %266 = vmatpush1.msra.mxu0 %v243
  %267 = vmatprep.subr.mxu0 0.0
  %268 = vmatpush1.msra.mxu0 %v244
  %269 = vmatprep.subr.mxu0 0.0
  %270 = vmatpush1.msra.mxu0 %v245
  %271 = vmatprep.subr.mxu0 0.0
  %272 = vmatpush1.msra.mxu0 %v246
  %273 = vmatprep.subr.mxu0 0.0
  %274 = vmatpush1.msra.mxu0 %v247
  %275 = vmatprep.subr.mxu0 0.0
  %276 = vmatpush1.msra.mxu0 %v248
  %277 = vmatprep.subr.mxu0 0.0
  %278 = vmatpush1.msra.mxu0 %v249
  %279 = vmatprep.subr.mxu0 0.0
  %280 = vmatpush1.msra.mxu0 %v250
  %281 = vmatprep.subr.mxu0 0.0
  %282 = vmatpush1.msra.mxu0 %v251
  %283 = vmatprep.subr.mxu0 0.0
  %284 = vmatpush1.msra.mxu0 %v252
  %285 = vmatprep.subr.mxu0 0.0
  %286 = vmatpush1.msra.mxu0 0.0
  %287 = vmatprep.subr.mxu0 0.0
  %288 = vmatpush1.msra.mxu0 0.0
  %289 = vmatprep.subr.mxu0 0.0
  %290 = vmatpush1.msra.mxu0 0.0
  %291 = vmatprep.subr.mxu0 0.0
  %292 = vmatpush1.msra.mxu0 0.0
  %293 = vmatprep.subr.mxu0 0.0
  %294 = vmatpush1.msra.mxu0 0.0
  %295 = vmatprep.subr.mxu0 0.0
  %296 = vmatpush1.msra.mxu0 0.0
  %297 = vmatprep.subr.mxu0 0.0
  %298 = vmatpush1.msra.mxu0 0.0
  %299 = vmatprep.subr.mxu0 0.0
  %300 = vmatpush1.msra.mxu0 0.0
  %301 = vmatprep.subr.mxu0 0.0
  %302 = vmatpush1.msra.mxu0 0.0
  %303 = vmatprep.subr.mxu0 0.0
  %304 = vmatpush1.msra.mxu0 0.0
  %305 = vmatprep.subr.mxu0 0.0
  %306 = vmatpush1.msra.mxu0 0.0
  %307 = vmatprep.subr.mxu0 0.0
  %308 = vmatpush1.msra.mxu0 0.0
  %309 = vmatprep.subr.mxu0 0.0
  %310 = vmatpush1.msra.mxu0 0.0
  %311 = vmatprep.subr.mxu0 0.0
  %312 = vmatpush1.msra.mxu0 0.0
  %313 = vmatprep.subr.mxu0 0.0
  %314 = vmatpush1.msra.mxu0 0.0
  %315 = vmatprep.subr.mxu0 0.0
  %316 = vmatpush1.msra.mxu0 0.0
  %317 = vmatprep.mubr.f32.mxu0 0.0
  %318 = vmatmul.mubr.f32.gmra.mrb[0].mxu0 %v41
  %v319 = vpop.f32.mrb[0].mxu0
  %v320 = vadd.f32 0.0, %v319
  %v321 = vpop.f32.mrb[0].mxu0
  %322 = vmatprep.mubr.f32.mxu0 0.0
  %323 = vmatmul.mubr.f32.gmra.mrb[0].mxu0 %v42
  %v324 = vpop.f32.mrb[0].mxu0
  %v325 = vadd.f32 0.0, %v324
  %v326 = vpop.f32.mrb[0].mxu0
  %327 = vmatprep.mubr.f32.mxu0 0.0
  %328 = vmatmul.mubr.f32.gmra.mrb[0].mxu0 %v43
  %v329 = vpop.f32.mrb[0].mxu0
  %v330 = vadd.f32 0.0, %v329
  %v331 = vpop.f32.mrb[0].mxu0
  %332 = vmatprep.mubr.f32.mxu0 0.0
  %333 = vmatmul.mubr.f32.gmra.mrb[0].mxu0 %v44
  %v334 = vpop.f32.mrb[0].mxu0
  %v335 = vadd.f32 0.0, %v334
  %v336 = vpop.f32.mrb[0].mxu0
  %337 = vmatprep.mubr.f32.mxu0 0.0
  %338 = vmatmul.mubr.f32.gmra.mrb[0].mxu0 %v45
  %v339 = vpop.f32.mrb[0].mxu0
  %v340 = vadd.f32 0.0, %v339
  %v341 = vpop.f32.mrb[0].mxu0
  %342 = vmatprep.mubr.f32.mxu0 0.0
  %343 = vmatmul.mubr.f32.gmra.mrb[0].mxu0 %v46
  %v344 = vpop.f32.mrb[0].mxu0
  %v345 = vadd.f32 0.0, %v344
  %v346 = vpop.f32.mrb[0].mxu0
  %347 = vmatprep.mubr.f32.mxu0 0.0
  %348 = vmatmul.mubr.f32.gmra.mrb[0].mxu0 %v47
  %v349 = vpop.f32.mrb[0].mxu0
  %v350 = vadd.f32 0.0, %v349
  %v351 = vpop.f32.mrb[0].mxu0
  %352 = vmatprep.mubr.f32.mxu0 0.0
  %353 = vmatmul.mubr.f32.gmra.mrb[0].mxu0 %v48
  %v354 = vpop.f32.mrb[0].mxu0
  %v355 = vadd.f32 0.0, %v354
  %v356 = vpop.f32.mrb[0].mxu0
  %357 = vmatprep.mubr.f32.mxu0 0.0
  %358 = vmatmul.mubr.f32.gmra.mrb[0].mxu0 %v49
  %v359 = vpop.f32.mrb[0].mxu0
  %v360 = vadd.f32 0.0, %v359
  %v361 = vpop.f32.mrb[0].mxu0
  %362 = vmatprep.mubr.f32.mxu0 0.0
  %363 = vmatmul.mubr.f32.gmra.mrb[0].mxu0 %v50
  %v364 = vpop.f32.mrb[0].mxu0
  %v365 = vadd.f32 0.0, %v364
  %v366 = vpop.f32.mrb[0].mxu0
  %367 = vmatprep.mubr.f32.mxu0 0.0
  %368 = vmatmul.mubr.f32.gmra.mrb[0].mxu0 %v51
  %v369 = vpop.f32.mrb[0].mxu0
  %v370 = vadd.f32 0.0, %v369
  %v371 = vpop.f32.mrb[0].mxu0
  %372 = vmatprep.mubr.f32.mxu0 0.0
  %373 = vmatmul.mubr.f32.gmra.mrb[0].mxu0 %v52
  %v374 = vpop.f32.mrb[0].mxu0
  %v375 = vadd.f32 0.0, %v374
  %v376 = vpop.f32.mrb[0].mxu0
  %377 = vmatprep.mubr.f32.mxu0 0.0
  %378 = vmatmul.mubr.f32.gmra.mrb[0].mxu0 %v53
  %v379 = vpop.f32.mrb[0].mxu0
  %v380 = vadd.f32 0.0, %v379
  %v381 = vpop.f32.mrb[0].mxu0
  %382 = vmatprep.mubr.f32.mxu0 0.0
  %383 = vmatmul.mubr.f32.gmra.mrb[0].mxu0 %v54
  %v384 = vpop.f32.mrb[0].mxu0
  %v385 = vadd.f32 0.0, %v384
  %v386 = vpop.f32.mrb[0].mxu0
  %387 = vmatprep.mubr.f32.mxu0 0.0
  %388 = vmatmul.mubr.f32.gmra.mrb[0].mxu0 %v55
  %v389 = vpop.f32.mrb[0].mxu0
  %v390 = vadd.f32 0.0, %v389
  %v391 = vpop.f32.mrb[0].mxu0
  %392 = vmatprep.mubr.f32.mxu0 0.0
  %393 = vmatmul.mubr.f32.gmra.mrb[0].mxu0 %v56
  %v394 = vpop.f32.mrb[0].mxu0
  %v395 = vadd.f32 0.0, %v394
  %v396 = vpop.f32.mrb[0].mxu0
  %397 = vmatprep.mubr.f32.mxu0 0.0
  %398 = vmatmul.mubr.f32.gmra.mrb[0].mxu0 %v57
  %v399 = vpop.f32.mrb[0].mxu0
  %v400 = vadd.f32 0.0, %v399
  %v401 = vpop.f32.mrb[0].mxu0
  %402 = vmatprep.mubr.f32.mxu0 0.0
  %403 = vmatmul.mubr.f32.gmra.mrb[0].mxu0 %v58
  %v404 = vpop.f32.mrb[0].mxu0
  %v405 = vadd.f32 0.0, %v404
  %v406 = vpop.f32.mrb[0].mxu0
  %407 = vmatprep.mubr.f32.mxu0 0.0
  %408 = vmatmul.mubr.f32.gmra.mrb[0].mxu0 %v59
  %v409 = vpop.f32.mrb[0].mxu0
  %v410 = vadd.f32 0.0, %v409
  %v411 = vpop.f32.mrb[0].mxu0
  %412 = vmatprep.mubr.f32.mxu0 0.0
  %413 = vmatmul.mubr.f32.gmra.mrb[0].mxu0 %v60
  %v414 = vpop.f32.mrb[0].mxu0
  %v415 = vadd.f32 0.0, %v414
  %v416 = vpop.f32.mrb[0].mxu0
  %417 = vmatprep.mubr.f32.mxu0 0.0
  %418 = vmatmul.mubr.f32.gmra.mrb[0].mxu0 %v61
  %v419 = vpop.f32.mrb[0].mxu0
  %v420 = vadd.f32 0.0, %v419
  %v421 = vpop.f32.mrb[0].mxu0
  %422 = vmatprep.mubr.f32.mxu0 0.0
  %423 = vmatmul.mubr.f32.gmra.mrb[0].mxu0 %v62
  %v424 = vpop.f32.mrb[0].mxu0
  %v425 = vadd.f32 0.0, %v424
  %v426 = vpop.f32.mrb[0].mxu0
  %427 = vmatprep.mubr.f32.mxu0 0.0
  %428 = vmatmul.mubr.f32.gmra.mrb[0].mxu0 %v63
  %v429 = vpop.f32.mrb[0].mxu0
  %v430 = vadd.f32 0.0, %v429
  %v431 = vpop.f32.mrb[0].mxu0
  %432 = vmatprep.mubr.f32.mxu0 0.0
  %433 = vmatmul.mubr.f32.gmra.mrb[0].mxu0 %v64
  %v434 = vpop.f32.mrb[0].mxu0
  %v435 = vadd.f32 0.0, %v434
  %v436 = vpop.f32.mrb[0].mxu0
  %437 = vmatprep.mubr.f32.mxu0 0.0
  %438 = vmatmul.mubr.f32.gmra.mrb[0].mxu0 %v65
  %v439 = vpop.f32.mrb[0].mxu0
  %v440 = vadd.f32 0.0, %v439
  %v441 = vpop.f32.mrb[0].mxu0
  %442 = vmatprep.mubr.f32.mxu0 0.0
  %443 = vmatmul.mubr.f32.gmra.mrb[0].mxu0 %v66
  %v444 = vpop.f32.mrb[0].mxu0
  %v445 = vadd.f32 0.0, %v444
  %v446 = vpop.f32.mrb[0].mxu0
  %447 = vmatprep.mubr.f32.mxu0 0.0
  %448 = vmatmul.mubr.f32.gmra.mrb[0].mxu0 %v67
  %v449 = vpop.f32.mrb[0].mxu0
  %v450 = vadd.f32 0.0, %v449
  %v451 = vpop.f32.mrb[0].mxu0
  %452 = vmatprep.mubr.f32.mxu0 0.0
  %453 = vmatmul.mubr.f32.gmra.mrb[0].mxu0 %v68
  %v454 = vpop.f32.mrb[0].mxu0
  %v455 = vadd.f32 0.0, %v454
  %v456 = vpop.f32.mrb[0].mxu0
  %457 = vmatprep.mubr.f32.mxu0 0.0
  %458 = vmatmul.mubr.f32.gmra.mrb[0].mxu0 %v69
  %v459 = vpop.f32.mrb[0].mxu0
  %v460 = vadd.f32 0.0, %v459
  %v461 = vpop.f32.mrb[0].mxu0
  %462 = vmatprep.mubr.f32.mxu0 0.0
  %463 = vmatmul.mubr.f32.gmra.mrb[0].mxu0 %v70
  %v464 = vpop.f32.mrb[0].mxu0
  %v465 = vadd.f32 0.0, %v464
  %v466 = vpop.f32.mrb[0].mxu0
  %467 = vmatprep.mubr.f32.mxu0 0.0
  %468 = vmatmul.mubr.f32.gmra.mrb[0].mxu0 %v71
  %v469 = vpop.f32.mrb[0].mxu0
  %v470 = vadd.f32 0.0, %v469
  %v471 = vpop.f32.mrb[0].mxu0
  %472 = vmatprep.mubr.f32.mxu0 0.0
  %473 = vmatmul.mubr.f32.gmra.mrb[0].mxu0 %v72
  %v474 = vpop.f32.mrb[0].mxu0
  %v475 = vadd.f32 0.0, %v474
  %v476 = vpop.f32.mrb[0].mxu0
  %477 = vmatprep.mubr.f32.mxu0 0.0
  %478 = vmatmul.mubr.f32.gmra.mrb[0].mxu0 %v73
  %v479 = vpop.f32.mrb[0].mxu0
  %v480 = vadd.f32 0.0, %v479
  %v481 = vpop.f32.mrb[0].mxu0
  %482 = vmatprep.mubr.f32.mxu0 0.0
  %483 = vmatmul.mubr.f32.gmra.mrb[0].mxu0 %v74
  %v484 = vpop.f32.mrb[0].mxu0
  %v485 = vadd.f32 0.0, %v484
  %v486 = vpop.f32.mrb[0].mxu0
  %487 = vmatprep.mubr.f32.mxu0 0.0
  %488 = vmatmul.mubr.f32.gmra.mrb[0].mxu0 %v75
  %v489 = vpop.f32.mrb[0].mxu0
  %v490 = vadd.f32 0.0, %v489
  %v491 = vpop.f32.mrb[0].mxu0
  %492 = vmatprep.mubr.f32.mxu0 0.0
  %493 = vmatmul.mubr.f32.gmra.mrb[0].mxu0 %v76
  %v494 = vpop.f32.mrb[0].mxu0
  %v495 = vadd.f32 0.0, %v494
  %v496 = vpop.f32.mrb[0].mxu0
  %497 = vmatprep.mubr.f32.mxu0 0.0
  %498 = vmatmul.mubr.f32.gmra.mrb[0].mxu0 %v77
  %v499 = vpop.f32.mrb[0].mxu0
  %v500 = vadd.f32 0.0, %v499
  %v501 = vpop.f32.mrb[0].mxu0
  %502 = vmatprep.mubr.f32.mxu0 0.0
  %503 = vmatmul.mubr.f32.gmra.mrb[0].mxu0 %v78
  %v504 = vpop.f32.mrb[0].mxu0
  %v505 = vadd.f32 0.0, %v504
  %v506 = vpop.f32.mrb[0].mxu0
  %507 = vmatprep.mubr.f32.mxu0 0.0
  %508 = vmatmul.mubr.f32.gmra.mrb[0].mxu0 %v79
  %v509 = vpop.f32.mrb[0].mxu0
  %v510 = vadd.f32 0.0, %v509
  %v511 = vpop.f32.mrb[0].mxu0
  %512 = vmatprep.mubr.f32.mxu0 0.0
  %513 = vmatmul.mubr.f32.gmra.mrb[0].mxu0 %v80
  %v514 = vpop.f32.mrb[0].mxu0
  %v515 = vadd.f32 0.0, %v514
  %v516 = vpop.f32.mrb[0].mxu0
  %517 = vmatprep.mubr.f32.mxu0 0.0
  %518 = vmatmul.mubr.f32.gmra.mrb[0].mxu0 %v81
  %v519 = vpop.f32.mrb[0].mxu0
  %v520 = vadd.f32 0.0, %v519
  %v521 = vpop.f32.mrb[0].mxu0
  %522 = vmatprep.mubr.f32.mxu0 0.0
  %523 = vmatmul.mubr.f32.gmra.mrb[0].mxu0 %v82
  %v524 = vpop.f32.mrb[0].mxu0
  %v525 = vadd.f32 0.0, %v524
  %v526 = vpop.f32.mrb[0].mxu0
  %527 = vmatprep.mubr.f32.mxu0 0.0
  %528 = vmatmul.mubr.f32.gmra.mrb[0].mxu0 %v83
  %v529 = vpop.f32.mrb[0].mxu0
  %v530 = vadd.f32 0.0, %v529
  %v531 = vpop.f32.mrb[0].mxu0
  %532 = vmatprep.mubr.f32.mxu0 0.0
  %533 = vmatmul.mubr.f32.gmra.mrb[0].mxu0 %v84
  %v534 = vpop.f32.mrb[0].mxu0
  %v535 = vadd.f32 0.0, %v534
  %v536 = vpop.f32.mrb[0].mxu0
  %537 = vmatprep.mubr.f32.mxu0 0.0
  %538 = vmatmul.mubr.f32.gmra.mrb[0].mxu0 %v85
  %v539 = vpop.f32.mrb[0].mxu0
  %v540 = vadd.f32 0.0, %v539
  %v541 = vpop.f32.mrb[0].mxu0
  %542 = vmatprep.mubr.f32.mxu0 0.0
  %543 = vmatmul.mubr.f32.gmra.mrb[0].mxu0 %v86
  %v544 = vpop.f32.mrb[0].mxu0
  %v545 = vadd.f32 0.0, %v544
  %v546 = vpop.f32.mrb[0].mxu0
  %547 = vmatprep.mubr.f32.mxu0 0.0
  %548 = vmatmul.mubr.f32.gmra.mrb[0].mxu0 %v87
  %v549 = vpop.f32.mrb[0].mxu0
  %v550 = vadd.f32 0.0, %v549
  %v551 = vpop.f32.mrb[0].mxu0
  %552 = vmatprep.mubr.f32.mxu0 0.0
  %553 = vmatmul.mubr.f32.gmra.mrb[0].mxu0 %v88
  %v554 = vpop.f32.mrb[0].mxu0
  %v555 = vadd.f32 0.0, %v554
  %v556 = vpop.f32.mrb[0].mxu0
  %557 = vmatprep.mubr.f32.mxu0 0.0
  %558 = vmatmul.mubr.f32.gmra.mrb[0].mxu0 %v89
  %v559 = vpop.f32.mrb[0].mxu0
  %v560 = vadd.f32 0.0, %v559
  %v561 = vpop.f32.mrb[0].mxu0
  %562 = vmatprep.mubr.f32.mxu0 0.0
  %563 = vmatmul.mubr.f32.gmra.mrb[0].mxu0 %v90
  %v564 = vpop.f32.mrb[0].mxu0
  %v565 = vadd.f32 0.0, %v564
  %v566 = vpop.f32.mrb[0].mxu0
  %567 = vmatprep.mubr.f32.mxu0 0.0
  %568 = vmatmul.mubr.f32.gmra.mrb[0].mxu0 %v91
  %v569 = vpop.f32.mrb[0].mxu0
  %v570 = vadd.f32 0.0, %v569
  %v571 = vpop.f32.mrb[0].mxu0
  %572 = vmatprep.mubr.f32.mxu0 0.0
  %573 = vmatmul.mubr.f32.gmra.mrb[0].mxu0 %v92
  %v574 = vpop.f32.mrb[0].mxu0
  %v575 = vadd.f32 0.0, %v574
  %v576 = vpop.f32.mrb[0].mxu0
  %577 = vmatprep.mubr.f32.mxu0 0.0
  %578 = vmatmul.mubr.f32.gmra.mrb[0].mxu0 %v93
  %v579 = vpop.f32.mrb[0].mxu0
  %v580 = vadd.f32 0.0, %v579
  %v581 = vpop.f32.mrb[0].mxu0
  %582 = vmatprep.mubr.f32.mxu0 0.0
  %583 = vmatmul.mubr.f32.gmra.mrb[0].mxu0 %v94
  %v584 = vpop.f32.mrb[0].mxu0
  %v585 = vadd.f32 0.0, %v584
  %v586 = vpop.f32.mrb[0].mxu0
  %587 = vmatprep.mubr.f32.mxu0 0.0
  %588 = vmatmul.mubr.f32.gmra.mrb[0].mxu0 %v95
  %v589 = vpop.f32.mrb[0].mxu0
  %v590 = vadd.f32 0.0, %v589
  %v591 = vpop.f32.mrb[0].mxu0
  %592 = vmatprep.mubr.f32.mxu0 0.0
  %593 = vmatmul.mubr.f32.gmra.mrb[0].mxu0 %v96
  %v594 = vpop.f32.mrb[0].mxu0
  %v595 = vadd.f32 0.0, %v594
  %v596 = vpop.f32.mrb[0].mxu0
  %597 = vmatprep.mubr.f32.mxu0 0.0
  %598 = vmatmul.mubr.f32.gmra.mrb[0].mxu0 %v97
  %v599 = vpop.f32.mrb[0].mxu0
  %v600 = vadd.f32 0.0, %v599
  %v601 = vpop.f32.mrb[0].mxu0
  %602 = vmatprep.mubr.f32.mxu0 0.0
  %603 = vmatmul.mubr.f32.gmra.mrb[0].mxu0 %v98
  %v604 = vpop.f32.mrb[0].mxu0
  %v605 = vadd.f32 0.0, %v604
  %v606 = vpop.f32.mrb[0].mxu0
  %607 = vmatprep.mubr.f32.mxu0 0.0
  %608 = vmatmul.mubr.f32.gmra.mrb[0].mxu0 %v99
  %v609 = vpop.f32.mrb[0].mxu0
  %v610 = vadd.f32 0.0, %v609
  %v611 = vpop.f32.mrb[0].mxu0
  %612 = vmatprep.mubr.f32.mxu0 0.0
  %613 = vmatmul.mubr.f32.gmra.mrb[0].mxu0 %v100
  %v614 = vpop.f32.mrb[0].mxu0
  %v615 = vadd.f32 0.0, %v614
  %v616 = vpop.f32.mrb[0].mxu0
  %617 = vmatprep.mubr.f32.mxu0 0.0
  %618 = vmatmul.mubr.f32.gmra.mrb[0].mxu0 %v101
  %v619 = vpop.f32.mrb[0].mxu0
  %v620 = vadd.f32 0.0, %v619
  %v621 = vpop.f32.mrb[0].mxu0
  %622 = vmatprep.mubr.f32.mxu0 0.0
  %623 = vmatmul.mubr.f32.gmra.mrb[0].mxu0 %v102
  %v624 = vpop.f32.mrb[0].mxu0
  %v625 = vadd.f32 0.0, %v624
  %v626 = vpop.f32.mrb[0].mxu0
  %627 = vmatprep.mubr.f32.mxu0 0.0
  %628 = vmatmul.mubr.f32.gmra.mrb[0].mxu0 %v103
  %v629 = vpop.f32.mrb[0].mxu0
  %v630 = vadd.f32 0.0, %v629
  %v631 = vpop.f32.mrb[0].mxu0
  %632 = vmatprep.mubr.f32.mxu0 0.0
  %633 = vmatmul.mubr.f32.gmra.mrb[0].mxu0 %v104
  %v634 = vpop.f32.mrb[0].mxu0
  %v635 = vadd.f32 0.0, %v634
  %v636 = vpop.f32.mrb[0].mxu0
  %637 = vmatprep.mubr.f32.mxu0 0.0
  %638 = vmatmul.mubr.f32.gmra.mrb[0].mxu0 %v105
  %v639 = vpop.f32.mrb[0].mxu0
  %v640 = vadd.f32 0.0, %v639
  %v641 = vpop.f32.mrb[0].mxu0
  %642 = vmatprep.mubr.f32.mxu0 0.0
  %643 = vmatmul.mubr.f32.gmra.mrb[0].mxu0 %v106
  %v644 = vpop.f32.mrb[0].mxu0
  %v645 = vadd.f32 0.0, %v644
  %v646 = vpop.f32.mrb[0].mxu0
  %647 = vmatprep.mubr.f32.mxu0 0.0
  %648 = vmatmul.mubr.f32.gmra.mrb[0].mxu0 %v107
  %v649 = vpop.f32.mrb[0].mxu0
  %v650 = vadd.f32 0.0, %v649
  %v651 = vpop.f32.mrb[0].mxu0
  %652 = vmatprep.mubr.f32.mxu0 0.0
  %653 = vmatmul.mubr.f32.gmra.mrb[0].mxu0 %v108
  %v654 = vpop.f32.mrb[0].mxu0
  %v655 = vadd.f32 0.0, %v654
  %v656 = vpop.f32.mrb[0].mxu0
  %657 = vmatprep.mubr.f32.mxu0 0.0
  %658 = vmatmul.mubr.f32.gmra.mrb[0].mxu0 %v109
  %v659 = vpop.f32.mrb[0].mxu0
  %v660 = vadd.f32 0.0, %v659
  %v661 = vpop.f32.mrb[0].mxu0
  %662 = vmatprep.mubr.f32.mxu0 0.0
  %663 = vmatmul.mubr.f32.gmra.mrb[0].mxu0 %v110
  %v664 = vpop.f32.mrb[0].mxu0
  %v665 = vadd.f32 0.0, %v664
  %v666 = vpop.f32.mrb[0].mxu0
  %667 = vmatprep.mubr.f32.mxu0 0.0
  %668 = vmatmul.mubr.f32.gmra.mrb[0].mxu0 %v111
  %v669 = vpop.f32.mrb[0].mxu0
  %v670 = vadd.f32 0.0, %v669
  %v671 = vpop.f32.mrb[0].mxu0
  %672 = vmatprep.mubr.f32.mxu0 0.0
  %673 = vmatmul.mubr.f32.gmra.mrb[0].mxu0 %v112
  %v674 = vpop.f32.mrb[0].mxu0
  %v675 = vadd.f32 0.0, %v674
  %v676 = vpop.f32.mrb[0].mxu0
  %677 = vmatprep.mubr.f32.mxu0 0.0
  %678 = vmatmul.mubr.f32.gmra.mrb[0].mxu0 %v113
  %v679 = vpop.f32.mrb[0].mxu0
  %v680 = vadd.f32 0.0, %v679
  %v681 = vpop.f32.mrb[0].mxu0
  %682 = vmatprep.mubr.f32.mxu0 0.0
  %683 = vmatmul.mubr.f32.gmra.mrb[0].mxu0 %v114
  %v684 = vpop.f32.mrb[0].mxu0
  %v685 = vadd.f32 0.0, %v684
  %v686 = vpop.f32.mrb[0].mxu0
  %687 = vmatprep.mubr.f32.mxu0 0.0
  %688 = vmatmul.mubr.f32.gmra.mrb[0].mxu0 %v115
  %v689 = vpop.f32.mrb[0].mxu0
  %v690 = vadd.f32 0.0, %v689
  %v691 = vpop.f32.mrb[0].mxu0
  %692 = vmatprep.mubr.f32.mxu0 0.0
  %693 = vmatmul.mubr.f32.gmra.mrb[0].mxu0 %v116
  %v694 = vpop.f32.mrb[0].mxu0
  %v695 = vadd.f32 0.0, %v694
  %v696 = vpop.f32.mrb[0].mxu0
  %697 = vmatprep.mubr.f32.mxu0 0.0
  %698 = vmatmul.mubr.f32.gmra.mrb[0].mxu0 %v117
  %v699 = vpop.f32.mrb[0].mxu0
  %v700 = vadd.f32 0.0, %v699
  %v701 = vpop.f32.mrb[0].mxu0
  %702 = vmatprep.mubr.f32.mxu0 0.0
  %703 = vmatmul.mubr.f32.gmra.mrb[0].mxu0 %v118
  %v704 = vpop.f32.mrb[0].mxu0
  %v705 = vadd.f32 0.0, %v704
  %v706 = vpop.f32.mrb[0].mxu0
  %707 = vmatprep.mubr.f32.mxu0 0.0
  %708 = vmatmul.mubr.f32.gmra.mrb[0].mxu0 %v119
  %v709 = vpop.f32.mrb[0].mxu0
  %v710 = vadd.f32 0.0, %v709
  %v711 = vpop.f32.mrb[0].mxu0
  %712 = vmatprep.mubr.f32.mxu0 0.0
  %713 = vmatmul.mubr.f32.gmra.mrb[0].mxu0 %v120
  %v714 = vpop.f32.mrb[0].mxu0
  %v715 = vadd.f32 0.0, %v714
  %v716 = vpop.f32.mrb[0].mxu0
  %717 = vmatprep.mubr.f32.mxu0 0.0
  %718 = vmatmul.mubr.f32.gmra.mrb[0].mxu0 %v121
  %v719 = vpop.f32.mrb[0].mxu0
  %v720 = vadd.f32 0.0, %v719
  %v721 = vpop.f32.mrb[0].mxu0
  %722 = vmatprep.mubr.f32.mxu0 0.0
  %723 = vmatmul.mubr.f32.gmra.mrb[0].mxu0 %v122
  %v724 = vpop.f32.mrb[0].mxu0
  %v725 = vadd.f32 0.0, %v724
  %v726 = vpop.f32.mrb[0].mxu0
  %727 = vmatprep.mubr.f32.mxu0 0.0
  %728 = vmatmul.mubr.f32.gmra.mrb[0].mxu0 %v123
  %v729 = vpop.f32.mrb[0].mxu0
  %v730 = vadd.f32 0.0, %v729
  %v731 = vpop.f32.mrb[0].mxu0
  %732 = vmatprep.mubr.f32.mxu0 0.0
  %733 = vmatmul.mubr.f32.gmra.mrb[0].mxu0 %v124
  %v734 = vpop.f32.mrb[0].mxu0
  %v735 = vadd.f32 0.0, %v734
  %v736 = vpop.f32.mrb[0].mxu0
  %737 = vmatprep.mubr.f32.mxu0 0.0
  %738 = vmatmul.mubr.f32.gmra.mrb[0].mxu0 %v125
  %v739 = vpop.f32.mrb[0].mxu0
  %v740 = vadd.f32 0.0, %v739
  %v741 = vpop.f32.mrb[0].mxu0
  %742 = vmatprep.mubr.f32.mxu0 0.0
  %743 = vmatmul.mubr.f32.gmra.mrb[0].mxu0 %v126
  %v744 = vpop.f32.mrb[0].mxu0
  %v745 = vadd.f32 0.0, %v744
  %v746 = vpop.f32.mrb[0].mxu0
  %747 = vmatprep.mubr.f32.mxu0 0.0
  %748 = vmatmul.mubr.f32.gmra.mrb[0].mxu0 %v127
  %v749 = vpop.f32.mrb[0].mxu0
  %v750 = vadd.f32 0.0, %v749
  %v751 = vpop.f32.mrb[0].mxu0
  %752 = vmatprep.mubr.f32.mxu0 0.0
  %753 = vmatmul.mubr.f32.gmra.mrb[0].mxu0 %v128
  %v754 = vpop.f32.mrb[0].mxu0
  %v755 = vadd.f32 0.0, %v754
  %v756 = vpop.f32.mrb[0].mxu0
  %757 = vmatprep.mubr.f32.mxu0 0.0
  %758 = vmatmul.mubr.f32.gmra.mrb[0].mxu0 %v129
  %v759 = vpop.f32.mrb[0].mxu0
  %v760 = vadd.f32 0.0, %v759
  %v761 = vpop.f32.mrb[0].mxu0
  %762 = vmatprep.mubr.f32.mxu0 0.0
  %763 = vmatmul.mubr.f32.gmra.mrb[0].mxu0 %v130
  %v764 = vpop.f32.mrb[0].mxu0
  %v765 = vadd.f32 0.0, %v764
  %v766 = vpop.f32.mrb[0].mxu0
  %767 = vmatprep.mubr.f32.mxu0 0.0
  %768 = vmatmul.mubr.f32.gmra.mrb[0].mxu0 %v131
  %v769 = vpop.f32.mrb[0].mxu0
  %v770 = vadd.f32 0.0, %v769
  %v771 = vpop.f32.mrb[0].mxu0
  %772 = vmatprep.mubr.f32.mxu0 0.0
  %773 = vmatmul.mubr.f32.gmra.mrb[0].mxu0 %v132
  %v774 = vpop.f32.mrb[0].mxu0
  %v775 = vadd.f32 0.0, %v774
  %v776 = vpop.f32.mrb[0].mxu0
  %777 = vmatprep.mubr.f32.mxu0 0.0
  %778 = vmatmul.mubr.f32.gmra.mrb[0].mxu0 %v133
  %v779 = vpop.f32.mrb[0].mxu0
  %v780 = vadd.f32 0.0, %v779
  %v781 = vpop.f32.mrb[0].mxu0
  %782 = vmatprep.mubr.f32.mxu0 0.0
  %783 = vmatmul.mubr.f32.gmra.mrb[0].mxu0 %v134
  %v784 = vpop.f32.mrb[0].mxu0
  %v785 = vadd.f32 0.0, %v784
  %v786 = vpop.f32.mrb[0].mxu0
  %787 = vmatprep.mubr.f32.mxu0 0.0
  %788 = vmatmul.mubr.f32.gmra.mrb[0].mxu0 %v135
  %v789 = vpop.f32.mrb[0].mxu0
  %v790 = vadd.f32 0.0, %v789
  %v791 = vpop.f32.mrb[0].mxu0
  %792 = vmatprep.mubr.f32.mxu0 0.0
  %793 = vmatmul.mubr.f32.gmra.mrb[0].mxu0 %v136
  %v794 = vpop.f32.mrb[0].mxu0
  %v795 = vadd.f32 0.0, %v794
  %v796 = vpop.f32.mrb[0].mxu0
  %797 = vmatprep.mubr.f32.mxu0 0.0
  %798 = vmatmul.mubr.f32.gmra.mrb[0].mxu0 %v137
  %v799 = vpop.f32.mrb[0].mxu0
  %v800 = vadd.f32 0.0, %v799
  %v801 = vpop.f32.mrb[0].mxu0
  %802 = vmatprep.mubr.f32.mxu0 0.0
  %803 = vmatmul.mubr.f32.gmra.mrb[0].mxu0 %v138
  %v804 = vpop.f32.mrb[0].mxu0
  %v805 = vadd.f32 0.0, %v804
  %v806 = vpop.f32.mrb[0].mxu0
  %807 = vmatprep.mubr.f32.mxu0 0.0
  %808 = vmatmul.mubr.f32.gmra.mrb[0].mxu0 %v139
  %v809 = vpop.f32.mrb[0].mxu0
  %v810 = vadd.f32 0.0, %v809
  %v811 = vpop.f32.mrb[0].mxu0
  %812 = vmatprep.mubr.f32.mxu0 0.0
  %813 = vmatmul.mubr.f32.gmra.mrb[0].mxu0 %v140
  %v814 = vpop.f32.mrb[0].mxu0
  %v815 = vadd.f32 0.0, %v814
  %v816 = vpop.f32.mrb[0].mxu0
  %817 = vmatprep.mubr.f32.mxu0 0.0
  %818 = vmatmul.mubr.f32.gmra.mrb[0].mxu0 %v141
  %v819 = vpop.f32.mrb[0].mxu0
  %v820 = vadd.f32 0.0, %v819
  %v821 = vpop.f32.mrb[0].mxu0
  %822 = vmatprep.mubr.f32.mxu0 0.0
  %823 = vmatmul.mubr.f32.gmra.mrb[0].mxu0 %v142
  %v824 = vpop.f32.mrb[0].mxu0
  %v825 = vadd.f32 0.0, %v824
  %v826 = vpop.f32.mrb[0].mxu0
  %827 = vmatprep.mubr.f32.mxu0 0.0
  %828 = vmatmul.mubr.f32.gmra.mrb[0].mxu0 %v143
  %v829 = vpop.f32.mrb[0].mxu0
  %v830 = vadd.f32 0.0, %v829
  %v831 = vpop.f32.mrb[0].mxu0
  %832 = vmatprep.mubr.f32.mxu0 0.0
  %833 = vmatmul.mubr.f32.gmra.mrb[0].mxu0 %v144
  %v834 = vpop.f32.mrb[0].mxu0
  %v835 = vadd.f32 0.0, %v834
  %v836 = vpop.f32.mrb[0].mxu0
  %837 = vmatprep.mubr.f32.mxu0 0.0
  %838 = vmatmul.mubr.f32.gmra.mrb[0].mxu0 %v145
  %v839 = vpop.f32.mrb[0].mxu0
  %v840 = vadd.f32 0.0, %v839
  %v841 = vpop.f32.mrb[0].mxu0
  %842 = vmatprep.mubr.f32.mxu0 0.0
  %843 = vmatmul.mubr.f32.gmra.mrb[0].mxu0 %v146
  %v844 = vpop.f32.mrb[0].mxu0
  %v845 = vadd.f32 0.0, %v844
  %v846 = vpop.f32.mrb[0].mxu0
  %847 = vmatprep.mubr.f32.mxu0 0.0
  %848 = vmatmul.mubr.f32.gmra.mrb[0].mxu0 %v147
  %v849 = vpop.f32.mrb[0].mxu0
  %v850 = vadd.f32 0.0, %v849
  %v851 = vpop.f32.mrb[0].mxu0
  %852 = vmatprep.mubr.f32.mxu0 0.0
  %853 = vmatmul.mubr.f32.gmra.mrb[0].mxu0 %v148
  %v854 = vpop.f32.mrb[0].mxu0
  %v855 = vadd.f32 0.0, %v854
  %v856 = vpop.f32.mrb[0].mxu0
  %857 = vmatprep.mubr.f32.mxu0 0.0
  %858 = vmatmul.mubr.f32.gmra.mrb[0].mxu0 %v149
  %v859 = vpop.f32.mrb[0].mxu0
  %v860 = vadd.f32 0.0, %v859
  %v861 = vpop.f32.mrb[0].mxu0
  %862 = vmatprep.mubr.f32.mxu0 0.0
  %863 = vmatmul.mubr.f32.gmra.mrb[0].mxu0 %v150
  %v864 = vpop.f32.mrb[0].mxu0
  %v865 = vadd.f32 0.0, %v864
  %v866 = vpop.f32.mrb[0].mxu0
  %867 = vmatprep.mubr.f32.mxu0 0.0
  %868 = vmatmul.mubr.f32.gmra.mrb[0].mxu0 %v151
  %v869 = vpop.f32.mrb[0].mxu0
  %v870 = vadd.f32 0.0, %v869
  %v871 = vpop.f32.mrb[0].mxu0
  %872 = vmatprep.mubr.f32.mxu0 0.0
  %873 = vmatmul.mubr.f32.gmra.mrb[0].mxu0 %v152
  %v874 = vpop.f32.mrb[0].mxu0
  %v875 = vadd.f32 0.0, %v874
  %v876 = vpop.f32.mrb[0].mxu0
  %877 = vmatprep.mubr.f32.mxu0 0.0
  %878 = vmatmul.mubr.f32.gmra.mrb[0].mxu0 %v153
  %v879 = vpop.f32.mrb[0].mxu0
  %v880 = vadd.f32 0.0, %v879
  %v881 = vpop.f32.mrb[0].mxu0
  %882 = vmatprep.mubr.f32.mxu0 0.0
  %883 = vmatmul.mubr.f32.gmra.mrb[0].mxu0 %v154
  %v884 = vpop.f32.mrb[0].mxu0
  %v885 = vadd.f32 0.0, %v884
  %v886 = vpop.f32.mrb[0].mxu0
  %887 = vmatprep.mubr.f32.mxu0 0.0
  %888 = vmatmul.mubr.f32.gmra.mrb[0].mxu0 %v155
  %v889 = vpop.f32.mrb[0].mxu0
  %v890 = vadd.f32 0.0, %v889
  %v891 = vpop.f32.mrb[0].mxu0
  %892 = vmatprep.mubr.f32.mxu0 0.0
  %893 = vmatmul.mubr.f32.gmra.mrb[0].mxu0 %v156
  %v894 = vpop.f32.mrb[0].mxu0
  %v895 = vadd.f32 0.0, %v894
  %v896 = vpop.f32.mrb[0].mxu0
  %897 = vmatprep.mubr.f32.mxu0 0.0
  %898 = vmatmul.mubr.f32.gmra.mrb[0].mxu0 %v157
  %v899 = vpop.f32.mrb[0].mxu0
  %v900 = vadd.f32 0.0, %v899
  %v901 = vpop.f32.mrb[0].mxu0
  %902 = vmatprep.mubr.f32.mxu0 0.0
  %903 = vmatmul.mubr.f32.gmra.mrb[0].mxu0 %v158
  %v904 = vpop.f32.mrb[0].mxu0
  %v905 = vadd.f32 0.0, %v904
  %v906 = vpop.f32.mrb[0].mxu0
  %907 = vmatprep.mubr.f32.mxu0 0.0
  %908 = vmatmul.mubr.f32.gmra.mrb[0].mxu0 %v159
  %v909 = vpop.f32.mrb[0].mxu0
  %v910 = vadd.f32 0.0, %v909
  %v911 = vpop.f32.mrb[0].mxu0
  %912 = vmatprep.mubr.f32.mxu0 0.0
  %913 = vmatmul.mubr.f32.gmra.mrb[0].mxu0 %v160
  %v914 = vpop.f32.mrb[0].mxu0
  %v915 = vadd.f32 0.0, %v914
  %v916 = vpop.f32.mrb[0].mxu0
  %917 = vmatprep.mubr.f32.mxu0 0.0
  %918 = vmatmul.mubr.f32.gmra.mrb[0].mxu0 %v161
  %v919 = vpop.f32.mrb[0].mxu0
  %v920 = vadd.f32 0.0, %v919
  %v921 = vpop.f32.mrb[0].mxu0
  %922 = vmatprep.mubr.f32.mxu0 0.0
  %923 = vmatmul.mubr.f32.gmra.mrb[0].mxu0 %v162
  %v924 = vpop.f32.mrb[0].mxu0
  %v925 = vadd.f32 0.0, %v924
  %v926 = vpop.f32.mrb[0].mxu0
  %927 = vmatprep.mubr.f32.mxu0 0.0
  %928 = vmatmul.mubr.f32.gmra.mrb[0].mxu0 %v163
  %v929 = vpop.f32.mrb[0].mxu0
  %v930 = vadd.f32 0.0, %v929
  %v931 = vpop.f32.mrb[0].mxu0
  %932 = vmatprep.mubr.f32.mxu0 0.0
  %933 = vmatmul.mubr.f32.gmra.mrb[0].mxu0 %v164
  %v934 = vpop.f32.mrb[0].mxu0
  %v935 = vadd.f32 0.0, %v934
  %v936 = vpop.f32.mrb[0].mxu0
  %937 = vmatprep.mubr.f32.mxu0 0.0
  %938 = vmatmul.mubr.f32.gmra.mrb[0].mxu0 %v165
  %v939 = vpop.f32.mrb[0].mxu0
  %v940 = vadd.f32 0.0, %v939
  %v941 = vpop.f32.mrb[0].mxu0
  %942 = vmatprep.mubr.f32.mxu0 0.0
  %943 = vmatmul.mubr.f32.gmra.mrb[0].mxu0 %v166
  %v944 = vpop.f32.mrb[0].mxu0
  %v945 = vadd.f32 0.0, %v944
  %v946 = vpop.f32.mrb[0].mxu0
  %947 = vmatprep.mubr.f32.mxu0 0.0
  %948 = vmatmul.mubr.f32.gmra.mrb[0].mxu0 %v167
  %v949 = vpop.f32.mrb[0].mxu0
  %v950 = vadd.f32 0.0, %v949
  %v951 = vpop.f32.mrb[0].mxu0
  %952 = vmatprep.mubr.f32.mxu0 0.0
  %953 = vmatmul.mubr.f32.gmra.mrb[0].mxu0 %v168
  %v954 = vpop.f32.mrb[0].mxu0
  %v955 = vadd.f32 0.0, %v954
  %v956 = vpop.f32.mrb[0].mxu0
  %957 = vmatprep.mubr.f32.mxu0 0.0
  %958 = vmatmul.mubr.f32.gmra.mrb[0].mxu0 %v169
  %v959 = vpop.f32.mrb[0].mxu0
  %v960 = vadd.f32 0.0, %v959
  %v961 = vpop.f32.mrb[0].mxu0
  %962 = vmatprep.mubr.f32.mxu0 0.0
  %963 = vmatmul.mubr.f32.gmra.mrb[0].mxu0 %v170
  %v964 = vpop.f32.mrb[0].mxu0
  %v965 = vadd.f32 0.0, %v964
  %v966 = vpop.f32.mrb[0].mxu0
  %967 = vmatprep.mubr.f32.mxu0 0.0
  %968 = vmatmul.mubr.f32.gmra.mrb[0].mxu0 %v171
  %v969 = vpop.f32.mrb[0].mxu0
  %v970 = vadd.f32 0.0, %v969
  %v971 = vpop.f32.mrb[0].mxu0
  %972 = vmatprep.mubr.f32.mxu0 0.0
  %973 = vmatmul.mubr.f32.gmra.mrb[0].mxu0 %v172
  %v974 = vpop.f32.mrb[0].mxu0
  %v975 = vadd.f32 0.0, %v974
  %v976 = vpop.f32.mrb[0].mxu0
  %977 = vmatprep.mubr.f32.mxu0 0.0
  %978 = vmatmul.mubr.f32.gmra.mrb[0].mxu0 %v173
  %v979 = vpop.f32.mrb[0].mxu0
  %v980 = vadd.f32 0.0, %v979
  %v981 = vpop.f32.mrb[0].mxu0
  %982 = vmatprep.mubr.f32.mxu0 0.0
  %983 = vmatmul.mubr.f32.gmra.mrb[0].mxu0 %v174
  %v984 = vpop.f32.mrb[0].mxu0
  %v985 = vadd.f32 0.0, %v984
  %v986 = vpop.f32.mrb[0].mxu0
  %987 = vmatprep.mubr.f32.mxu0 0.0
  %988 = vmatmul.mubr.f32.gmra.mrb[0].mxu0 %v175
  %v989 = vpop.f32.mrb[0].mxu0
  %v990 = vadd.f32 0.0, %v989
  %v991 = vpop.f32.mrb[0].mxu0
  %992 = vmatprep.mubr.f32.mxu0 0.0
  %993 = vmatmul.mubr.f32.gmra.mrb[0].mxu0 %v176
  %v994 = vpop.f32.mrb[0].mxu0
  %v995 = vadd.f32 0.0, %v994
  %v996 = vpop.f32.mrb[0].mxu0
  %997 = vmatprep.mubr.f32.mxu0 0.0
  %998 = vmatmul.mubr.f32.gmra.mrb[0].mxu0 %v177
  %v999 = vpop.f32.mrb[0].mxu0
  %v1000 = vadd.f32 0.0, %v999
  %v1001 = vpop.f32.mrb[0].mxu0
  %1002 = vmatprep.mubr.f32.mxu0 0.0
  %1003 = vmatmul.mubr.f32.gmra.mrb[0].mxu0 %v178
  %v1004 = vpop.f32.mrb[0].mxu0
  %v1005 = vadd.f32 0.0, %v1004
  %v1006 = vpop.f32.mrb[0].mxu0
  %1007 = vmatprep.mubr.f32.mxu0 0.0
  %1008 = vmatmul.mubr.f32.gmra.mrb[0].mxu0 %v179
  %v1009 = vpop.f32.mrb[0].mxu0
  %v1010 = vadd.f32 0.0, %v1009
  %v1011 = vpop.f32.mrb[0].mxu0
  %1012 = vmatprep.mubr.f32.mxu0 0.0
  %1013 = vmatmul.mubr.f32.gmra.mrb[0].mxu0 %v180
  %v1014 = vpop.f32.mrb[0].mxu0
  %v1015 = vadd.f32 0.0, %v1014
  %v1016 = vpop.f32.mrb[0].mxu0
  %1017 = vmatprep.mubr.f32.mxu0 0.0
  %1018 = vmatmul.mubr.f32.gmra.mrb[0].mxu0 %v181
  %v1019 = vpop.f32.mrb[0].mxu0
  %v1020 = vadd.f32 0.0, %v1019
  %v1021 = vpop.f32.mrb[0].mxu0
  %1022 = vmatprep.mubr.f32.mxu0 0.0
  %1023 = vmatmul.mubr.f32.gmra.mrb[0].mxu0 %v182
  %v1024 = vpop.f32.mrb[0].mxu0
  %v1025 = vadd.f32 0.0, %v1024
  %v1026 = vpop.f32.mrb[0].mxu0
  %1027 = vmatprep.mubr.f32.mxu0 0.0
  %1028 = vmatmul.mubr.f32.gmra.mrb[0].mxu0 %v183
  %v1029 = vpop.f32.mrb[0].mxu0
  %v1030 = vadd.f32 0.0, %v1029
  %v1031 = vpop.f32.mrb[0].mxu0
  %1032 = vmatprep.mubr.f32.mxu0 0.0
  %1033 = vmatmul.mubr.f32.gmra.mrb[0].mxu0 %v184
  %v1034 = vpop.f32.mrb[0].mxu0
  %v1035 = vadd.f32 0.0, %v1034
  %v1036 = vpop.f32.mrb[0].mxu0
  %1037 = vmatprep.mubr.f32.mxu0 0.0
  %1038 = vmatmul.mubr.f32.gmra.mrb[0].mxu0 %v185
  %v1039 = vpop.f32.mrb[0].mxu0
  %v1040 = vadd.f32 0.0, %v1039
  %v1041 = vpop.f32.mrb[0].mxu0
  %1042 = vmatprep.mubr.f32.mxu0 0.0
  %1043 = vmatmul.mubr.f32.gmra.mrb[0].mxu0 %v186
  %v1044 = vpop.f32.mrb[0].mxu0
  %v1045 = vadd.f32 0.0, %v1044
  %v1046 = vpop.f32.mrb[0].mxu0
  %1047 = vmatprep.mubr.f32.mxu0 0.0
  %1048 = vmatmul.mubr.f32.gmra.mrb[0].mxu0 %v187
  %v1049 = vpop.f32.mrb[0].mxu0
  %v1050 = vadd.f32 0.0, %v1049
  %v1051 = vpop.f32.mrb[0].mxu0
  %1052 = vmatprep.mubr.f32.mxu0 0.0
  %1053 = vmatmul.mubr.f32.gmra.mrb[0].mxu0 %v188
  %v1054 = vpop.f32.mrb[0].mxu0
  %v1055 = vadd.f32 0.0, %v1054
  %v1056 = vpop.f32.mrb[0].mxu0
  %1057 = vmatprep.mubr.f32.mxu0 0.0
  %1058 = vmatmul.mubr.f32.gmra.mrb[0].mxu0 %v189
  %v1059 = vpop.f32.mrb[0].mxu0
  %v1060 = vadd.f32 0.0, %v1059
  %v1061 = vpop.f32.mrb[0].mxu0
  %1062 = vmatprep.mubr.f32.mxu0 0.0
  %1063 = vmatmul.mubr.f32.gmra.mrb[0].mxu0 %v190
  %v1064 = vpop.f32.mrb[0].mxu0
  %v1065 = vadd.f32 0.0, %v1064
  %v1066 = vpop.f32.mrb[0].mxu0
  %1067 = vmatprep.mubr.f32.mxu0 0.0
  %1068 = vmatmul.mubr.f32.gmra.mrb[0].mxu0 %v191
  %v1069 = vpop.f32.mrb[0].mxu0
  %v1070 = vadd.f32 0.0, %v1069
  %v1071 = vpop.f32.mrb[0].mxu0
  %1072 = vmatprep.mubr.f32.mxu0 0.0
  %1073 = vmatmul.mubr.f32.gmra.mrb[0].mxu0 %v192
  %v1074 = vpop.f32.mrb[0].mxu0
  %v1075 = vadd.f32 0.0, %v1074
  %v1076 = vpop.f32.mrb[0].mxu0
  %1077 = vmatprep.mubr.f32.mxu0 0.0
  %1078 = vmatmul.mubr.f32.gmra.mrb[0].mxu0 %v193
  %v1079 = vpop.f32.mrb[0].mxu0
  %v1080 = vadd.f32 0.0, %v1079
  %v1081 = vpop.f32.mrb[0].mxu0
  %1082 = vmatprep.mubr.f32.mxu0 0.0
  %1083 = vmatmul.mubr.f32.gmra.mrb[0].mxu0 %v194
  %v1084 = vpop.f32.mrb[0].mxu0
  %v1085 = vadd.f32 0.0, %v1084
  %v1086 = vpop.f32.mrb[0].mxu0
  %1087 = vmatprep.mubr.f32.mxu0 0.0
  %1088 = vmatmul.mubr.f32.gmra.mrb[0].mxu0 %v195
  %v1089 = vpop.f32.mrb[0].mxu0
  %v1090 = vadd.f32 0.0, %v1089
  %v1091 = vpop.f32.mrb[0].mxu0
  %1092 = vmatprep.mubr.f32.mxu0 0.0
  %1093 = vmatmul.mubr.f32.gmra.mrb[0].mxu0 %v196
  %v1094 = vpop.f32.mrb[0].mxu0
  %v1095 = vadd.f32 0.0, %v1094
  %v1096 = vpop.f32.mrb[0].mxu0
  %1097 = vmatprep.mubr.f32.mxu0 0.0
  %1098 = vmatmul.mubr.f32.gmra.mrb[0].mxu0 %v197
  %v1099 = vpop.f32.mrb[0].mxu0
  %v1100 = vadd.f32 0.0, %v1099
  %v1101 = vpop.f32.mrb[0].mxu0
  %1102 = vmatprep.mubr.f32.mxu0 0.0
  %1103 = vmatmul.mubr.f32.gmra.mrb[0].mxu0 %v198
  %v1104 = vpop.f32.mrb[0].mxu0
  %v1105 = vadd.f32 0.0, %v1104
  %v1106 = vpop.f32.mrb[0].mxu0
  %1107 = vmatprep.mubr.f32.mxu0 0.0
  %1108 = vmatmul.mubr.f32.gmra.mrb[0].mxu0 %v199
  %v1109 = vpop.f32.mrb[0].mxu0
  %v1110 = vadd.f32 0.0, %v1109
  %v1111 = vpop.f32.mrb[0].mxu0
  %1112 = vmatprep.mubr.f32.mxu0 0.0
  %1113 = vmatmul.mubr.f32.gmra.mrb[0].mxu0 %v200
  %v1114 = vpop.f32.mrb[0].mxu0
  %v1115 = vadd.f32 0.0, %v1114
  %v1116 = vpop.f32.mrb[0].mxu0
  %1117 = vmatprep.mubr.f32.mxu0 0.0
  %1118 = vmatmul.mubr.f32.gmra.mrb[0].mxu0 %v201
  %v1119 = vpop.f32.mrb[0].mxu0
  %v1120 = vadd.f32 0.0, %v1119
  %v1121 = vpop.f32.mrb[0].mxu0
  %1122 = vmatprep.mubr.f32.mxu0 0.0
  %1123 = vmatmul.mubr.f32.gmra.mrb[0].mxu0 %v202
  %v1124 = vpop.f32.mrb[0].mxu0
  %v1125 = vadd.f32 0.0, %v1124
  %v1126 = vpop.f32.mrb[0].mxu0
  %1127 = vmatprep.mubr.f32.mxu0 0.0
  %1128 = vmatmul.mubr.f32.gmra.mrb[0].mxu0 %v203
  %v1129 = vpop.f32.mrb[0].mxu0
  %v1130 = vadd.f32 0.0, %v1129
  %v1131 = vpop.f32.mrb[0].mxu0
  %1132 = vmatprep.mubr.f32.mxu0 0.0
  %1133 = vmatmul.mubr.f32.gmra.mrb[0].mxu0 %v204
  %v1134 = vpop.f32.mrb[0].mxu0
  %v1135 = vadd.f32 0.0, %v1134
  %v1136 = vpop.f32.mrb[0].mxu0
  %1137 = vmatprep.mubr.f32.mxu0 0.0
  %1138 = vmatmul.mubr.f32.gmra.mrb[0].mxu0 %v205
  %v1139 = vpop.f32.mrb[0].mxu0
  %v1140 = vadd.f32 0.0, %v1139
  %v1141 = vpop.f32.mrb[0].mxu0
  %1142 = vmatprep.mubr.f32.mxu0 0.0
  %1143 = vmatmul.mubr.f32.gmra.mrb[0].mxu0 %v206
  %v1144 = vpop.f32.mrb[0].mxu0
  %v1145 = vadd.f32 0.0, %v1144
  %v1146 = vpop.f32.mrb[0].mxu0
  %1147 = vmatprep.mubr.f32.mxu0 0.0
  %1148 = vmatmul.mubr.f32.gmra.mrb[0].mxu0 %v207
  %v1149 = vpop.f32.mrb[0].mxu0
  %v1150 = vadd.f32 0.0, %v1149
  %v1151 = vpop.f32.mrb[0].mxu0
  %1152 = vmatprep.mubr.f32.mxu0 0.0
  %1153 = vmatmul.mubr.f32.gmra.mrb[0].mxu0 %v208
  %v1154 = vpop.f32.mrb[0].mxu0
  %v1155 = vadd.f32 0.0, %v1154
  %v1156 = vpop.f32.mrb[0].mxu0
  %1157 = vmatprep.mubr.f32.mxu0 0.0
  %1158 = vmatmul.mubr.f32.gmra.mrb[0].mxu0 %v209
  %v1159 = vpop.f32.mrb[0].mxu0
  %v1160 = vadd.f32 0.0, %v1159
  %v1161 = vpop.f32.mrb[0].mxu0
  %1162 = vmatprep.mubr.f32.mxu0 0.0
  %1163 = vmatmul.mubr.f32.gmra.mrb[0].mxu0 %v210
  %v1164 = vpop.f32.mrb[0].mxu0
  %v1165 = vadd.f32 0.0, %v1164
  %v1166 = vpop.f32.mrb[0].mxu0
  %1167 = vmatprep.mubr.f32.mxu0 0.0
  %1168 = vmatmul.mubr.f32.gmra.mrb[0].mxu0 %v211
  %v1169 = vpop.f32.mrb[0].mxu0
  %v1170 = vadd.f32 0.0, %v1169
  %v1171 = vpop.f32.mrb[0].mxu0
  %1172 = vmatprep.mubr.f32.mxu0 0.0
  %1173 = vmatmul.mubr.f32.gmra.mrb[0].mxu0 %v212
  %v1174 = vpop.f32.mrb[0].mxu0
  %v1175 = vadd.f32 0.0, %v1174
  %v1176 = vpop.f32.mrb[0].mxu0
  %1177 = vmatprep.mubr.f32.mxu0 0.0
  %1178 = vmatmul.mubr.f32.gmra.mrb[0].mxu0 %v213
  %v1179 = vpop.f32.mrb[0].mxu0
  %v1180 = vadd.f32 0.0, %v1179
  %v1181 = vpop.f32.mrb[0].mxu0
  %1182 = vmatprep.mubr.f32.mxu0 0.0
  %1183 = vmatmul.mubr.f32.gmra.mrb[0].mxu0 %v214
  %v1184 = vpop.f32.mrb[0].mxu0
  %v1185 = vadd.f32 0.0, %v1184
  %v1186 = vpop.f32.mrb[0].mxu0
  %1187 = vmatprep.mubr.f32.mxu0 0.0
  %1188 = vmatmul.mubr.f32.gmra.mrb[0].mxu0 %v215
  %v1189 = vpop.f32.mrb[0].mxu0
  %v1190 = vadd.f32 0.0, %v1189
  %v1191 = vpop.f32.mrb[0].mxu0
  %1192 = vmatprep.mubr.f32.mxu0 0.0
  %1193 = vmatmul.mubr.f32.gmra.mrb[0].mxu0 %v216
  %v1194 = vpop.f32.mrb[0].mxu0
  %v1195 = vadd.f32 0.0, %v1194
  %v1196 = vpop.f32.mrb[0].mxu0
  %1197 = vmatprep.mubr.f32.mxu0 0.0
  %1198 = vmatmul.mubr.f32.gmra.mrb[0].mxu0 %v217
  %v1199 = vpop.f32.mrb[0].mxu0
  %v1200 = vadd.f32 0.0, %v1199
  %v1201 = vpop.f32.mrb[0].mxu0
  %1202 = vmatprep.mubr.f32.mxu0 0.0
  %1203 = vmatmul.mubr.f32.gmra.mrb[0].mxu0 %v218
  %v1204 = vpop.f32.mrb[0].mxu0
  %v1205 = vadd.f32 0.0, %v1204
  %v1206 = vpop.f32.mrb[0].mxu0
  %1207 = vmatprep.mubr.f32.mxu0 0.0
  %1208 = vmatmul.mubr.f32.gmra.mrb[0].mxu0 %v219
  %v1209 = vpop.f32.mrb[0].mxu0
  %v1210 = vadd.f32 0.0, %v1209
  %v1211 = vpop.f32.mrb[0].mxu0
  %1212 = vmatprep.mubr.f32.mxu0 0.0
  %1213 = vmatmul.mubr.f32.gmra.mrb[0].mxu0 %v220
  %v1214 = vpop.f32.mrb[0].mxu0
  %v1215 = vadd.f32 0.0, %v1214
  %v1216 = vpop.f32.mrb[0].mxu0
  %1217 = vmatprep.mubr.f32.mxu0 0.0
  %1218 = vmatmul.mubr.f32.gmra.mrb[0].mxu0 %v221
  %v1219 = vpop.f32.mrb[0].mxu0
  %v1220 = vadd.f32 0.0, %v1219
  %v1221 = vpop.f32.mrb[0].mxu0
  %1222 = vmatprep.mubr.f32.mxu0 0.0
  %1223 = vmatmul.mubr.f32.gmra.mrb[0].mxu0 %v222
  %v1224 = vpop.f32.mrb[0].mxu0
  %v1225 = vadd.f32 0.0, %v1224
  %v1226 = vpop.f32.mrb[0].mxu0
  %1227 = vmatprep.mubr.f32.mxu0 0.0
  %1228 = vmatmul.mubr.f32.gmra.mrb[0].mxu0 %v223
  %v1229 = vpop.f32.mrb[0].mxu0
  %v1230 = vadd.f32 0.0, %v1229
  %v1231 = vpop.f32.mrb[0].mxu0
  %1232 = vmatprep.mubr.f32.mxu0 0.0
  %1233 = vmatmul.mubr.f32.gmra.mrb[0].mxu0 %v224
  %v1234 = vpop.f32.mrb[0].mxu0
  %v1235 = vadd.f32 0.0, %v1234
  %v1236 = vpop.f32.mrb[0].mxu0
  %1237 = vmatprep.mubr.f32.mxu0 0.0
  %1238 = vmatmul.mubr.f32.gmra.mrb[0].mxu0 %v225
  %v1239 = vpop.f32.mrb[0].mxu0
  %v1240 = vadd.f32 0.0, %v1239
  %v1241 = vpop.f32.mrb[0].mxu0
  %1242 = vmatprep.mubr.f32.mxu0 0.0
  %1243 = vmatmul.mubr.f32.gmra.mrb[0].mxu0 %v226
  %v1244 = vpop.f32.mrb[0].mxu0
  %v1245 = vadd.f32 0.0, %v1244
  %v1246 = vpop.f32.mrb[0].mxu0
  %1247 = vmatprep.mubr.f32.mxu0 0.0
  %1248 = vmatmul.mubr.f32.gmra.mrb[0].mxu0 %v227
  %v1249 = vpop.f32.mrb[0].mxu0
  %v1250 = vadd.f32 0.0, %v1249
  %v1251 = vpop.f32.mrb[0].mxu0
  %1252 = vmatprep.mubr.f32.mxu0 0.0
  %1253 = vmatmul.mubr.f32.gmra.mrb[0].mxu0 %v228
  %v1254 = vpop.f32.mrb[0].mxu0
  %v1255 = vadd.f32 0.0, %v1254
  %v1256 = vpop.f32.mrb[0].mxu0
  %1257 = vmatprep.mubr.f32.mxu0 0.0
  %1258 = vmatmul.mubr.f32.gmra.mrb[0].mxu0 %v229
  %v1259 = vpop.f32.mrb[0].mxu0
  %v1260 = vadd.f32 0.0, %v1259
  %v1261 = vpop.f32.mrb[0].mxu0
  %1262 = vmatprep.mubr.f32.mxu0 0.0
  %1263 = vmatmul.mubr.f32.gmra.mrb[0].mxu0 %v230
  %v1264 = vpop.f32.mrb[0].mxu0
  %v1265 = vadd.f32 0.0, %v1264
  %v1266 = vpop.f32.mrb[0].mxu0
  %1267 = vmatprep.mubr.f32.mxu0 0.0
  %1268 = vmatmul.mubr.f32.gmra.mrb[0].mxu0 %v231
  %v1269 = vpop.f32.mrb[0].mxu0
  %v1270 = vadd.f32 0.0, %v1269
  %v1271 = vpop.f32.mrb[0].mxu0
  %1272 = vmatprep.mubr.f32.mxu0 0.0
  %1273 = vmatmul.mubr.f32.gmra.mrb[0].mxu0 %v232
  %v1274 = vpop.f32.mrb[0].mxu0
  %v1275 = vadd.f32 0.0, %v1274
  %v1276 = vpop.f32.mrb[0].mxu0
  %1277 = vmatprep.mubr.f32.mxu0 0.0
  %1278 = vmatmul.mubr.f32.gmra.mrb[0].mxu0 %v233
  %v1279 = vpop.f32.mrb[0].mxu0
  %v1280 = vadd.f32 0.0, %v1279
  %v1281 = vpop.f32.mrb[0].mxu0
  %1282 = vmatprep.mubr.f32.mxu0 0.0
  %1283 = vmatmul.mubr.f32.gmra.mrb[0].mxu0 %v234
  %v1284 = vpop.f32.mrb[0].mxu0
  %v1285 = vadd.f32 0.0, %v1284
  %v1286 = vpop.f32.mrb[0].mxu0
  %1287 = vmatprep.mubr.f32.mxu0 0.0
  %1288 = vmatmul.mubr.f32.gmra.mrb[0].mxu0 %v235
  %v1289 = vpop.f32.mrb[0].mxu0
  %v1290 = vadd.f32 0.0, %v1289
  %v1291 = vpop.f32.mrb[0].mxu0
  %1292 = vmatprep.mubr.f32.mxu0 0.0
  %1293 = vmatmul.mubr.f32.gmra.mrb[0].mxu0 %v236
  %v1294 = vpop.f32.mrb[0].mxu0
  %v1295 = vadd.f32 0.0, %v1294
  %v1296 = vpop.f32.mrb[0].mxu0
  %1297 = vdwg.mxu0
  %v1298 = vmax.f32 %v320, %v565
  %v1299 = vmax.f32 %v325, %v570
  %v1300 = vmax.f32 %v330, %v575
  %v1301 = vmax.f32 %v335, %v580
  %v1302 = vmax.f32 %v340, %v585
  %v1303 = vmax.f32 %v345, %v590
  %v1304 = vmax.f32 %v350, %v595
  %v1305 = vmax.f32 %v355, %v600
  %v1306 = vmax.f32 %v360, %v605
  %v1307 = vmax.f32 %v365, %v610
  %v1308 = vmax.f32 %v370, %v615
  %v1309 = vmax.f32 %v375, %v620
  %v1310 = vmax.f32 %v380, %v625
  %v1311 = vmax.f32 %v385, %v630
  %v1312 = vmax.f32 %v390, %v635
  %v1313 = vmax.f32 %v395, %v640
  %v1314 = vmax.f32 %v400, %v645
  %v1315 = vmax.f32 %v405, %v650
  %v1316 = vmax.f32 %v410, %v655
  %v1317 = vmax.f32 %v415, %v660
  %v1318 = vmax.f32 %v420, %v665
  %v1319 = vmax.f32 %v425, %v670
  %v1320 = vmax.f32 %v430, %v675
  %v1321 = vmax.f32 %v435, %v680
  %v1322 = vmax.f32 %v440, %v685
  %v1323 = vmax.f32 %v445, %v690
  %v1324 = vmax.f32 %v450, %v695
  %v1325 = vmax.f32 %v455, %v700
  %v1326 = vmax.f32 %v460, %v705
  %v1327 = vmax.f32 %v465, %v710
  %v1328 = vmax.f32 %v470, %v715
  %v1329 = vmax.f32 %v475, %v720
  %v1330 = vmax.f32 %v480, %v725
  %v1331 = vmax.f32 %v485, %v730
  %v1332 = vmax.f32 %v490, %v735
  %v1333 = vmax.f32 %v495, %v740
  %v1334 = vmax.f32 %v500, %v745
  %v1335 = vmax.f32 %v505, %v750
  %v1336 = vmax.f32 %v510, %v755
  %v1337 = vmax.f32 %v515, %v760
  %v1338 = vmax.f32 %v520, %v765
  %v1339 = vmax.f32 %v525, %v770
  %v1340 = vmax.f32 %v530, %v775
  %v1341 = vmax.f32 %v535, %v780
  %v1342 = vmax.f32 %v540, %v785
  %v1343 = vmax.f32 %v545, %v790
  %v1344 = vmax.f32 %v550, %v795
  %v1345 = vmax.f32 %v555, %v800
  %v1346 = vmax.f32 %v560, %v805
  %v1347 = vmax.f32 %v810, %v1055
  %v1348 = vmax.f32 %v815, %v1060
  %v1349 = vmax.f32 %v820, %v1065
  %v1350 = vmax.f32 %v825, %v1070
  %v1351 = vmax.f32 %v830, %v1075
  %v1352 = vmax.f32 %v835, %v1080
  %v1353 = vmax.f32 %v840, %v1085
  %v1354 = vmax.f32 %v845, %v1090
  %v1355 = vmax.f32 %v850, %v1095
  %v1356 = vmax.f32 %v855, %v1100
  %v1357 = vmax.f32 %v860, %v1105
  %v1358 = vmax.f32 %v865, %v1110
  %v1359 = vmax.f32 %v870, %v1115
  %v1360 = vmax.f32 %v875, %v1120
  %v1361 = vmax.f32 %v880, %v1125
  %v1362 = vmax.f32 %v885, %v1130
  %v1363 = vmax.f32 %v890, %v1135
  %v1364 = vmax.f32 %v895, %v1140
  %v1365 = vmax.f32 %v900, %v1145
  %v1366 = vmax.f32 %v905, %v1150
  %v1367 = vmax.f32 %v910, %v1155
  %v1368 = vmax.f32 %v915, %v1160
  %v1369 = vmax.f32 %v920, %v1165
  %v1370 = vmax.f32 %v925, %v1170
  %v1371 = vmax.f32 %v930, %v1175
  %v1372 = vmax.f32 %v935, %v1180
  %v1373 = vmax.f32 %v940, %v1185
  %v1374 = vmax.f32 %v945, %v1190
  %v1375 = vmax.f32 %v950, %v1195
  %v1376 = vmax.f32 %v955, %v1200
  %v1377 = vmax.f32 %v960, %v1205
  %v1378 = vmax.f32 %v965, %v1210
  %v1379 = vmax.f32 %v970, %v1215
  %v1380 = vmax.f32 %v975, %v1220
  %v1381 = vmax.f32 %v980, %v1225
  %v1382 = vmax.f32 %v985, %v1230
  %v1383 = vmax.f32 %v990, %v1235
  %v1384 = vmax.f32 %v995, %v1240
  %v1385 = vmax.f32 %v1000, %v1245
  %v1386 = vmax.f32 %v1005, %v1250
  %v1387 = vmax.f32 %v1010, %v1255
  %v1388 = vmax.f32 %v1015, %v1260
  %v1389 = vmax.f32 %v1020, %v1265
  %v1390 = vmax.f32 %v1025, %v1270
  %v1391 = vmax.f32 %v1030, %v1275
  %v1392 = vmax.f32 %v1035, %v1280
  %v1393 = vmax.f32 %v1040, %v1285
  %v1394 = vmax.f32 %v1045, %v1290
  %v1395 = vmax.f32 %v1050, %v1295
  %v1396 = vmax.f32 %v1298, %v1347
  %v1397 = vmax.f32 %v1299, %v1348
  %v1398 = vmax.f32 %v1300, %v1349
  %v1399 = vmax.f32 %v1301, %v1350
  %v1400 = vmax.f32 %v1302, %v1351
  %v1401 = vmax.f32 %v1303, %v1352
  %v1402 = vmax.f32 %v1304, %v1353
  %v1403 = vmax.f32 %v1305, %v1354
  %v1404 = vmax.f32 %v1306, %v1355
  %v1405 = vmax.f32 %v1307, %v1356
  %v1406 = vmax.f32 %v1308, %v1357
  %v1407 = vmax.f32 %v1309, %v1358
  %v1408 = vmax.f32 %v1310, %v1359
  %v1409 = vmax.f32 %v1311, %v1360
  %v1410 = vmax.f32 %v1312, %v1361
  %v1411 = vmax.f32 %v1313, %v1362
  %v1412 = vmax.f32 %v1314, %v1363
  %v1413 = vmax.f32 %v1315, %v1364
  %v1414 = vmax.f32 %v1316, %v1365
  %v1415 = vmax.f32 %v1317, %v1366
  %v1416 = vmax.f32 %v1318, %v1367
  %v1417 = vmax.f32 %v1319, %v1368
  %v1418 = vmax.f32 %v1320, %v1369
  %v1419 = vmax.f32 %v1321, %v1370
  %v1420 = vmax.f32 %v1322, %v1371
  %v1421 = vmax.f32 %v1323, %v1372
  %v1422 = vmax.f32 %v1324, %v1373
  %v1423 = vmax.f32 %v1325, %v1374
  %v1424 = vmax.f32 %v1326, %v1375
  %v1425 = vmax.f32 %v1327, %v1376
  %v1426 = vmax.f32 %v1328, %v1377
  %v1427 = vmax.f32 %v1329, %v1378
  %v1428 = vmax.f32 %v1330, %v1379
  %v1429 = vmax.f32 %v1331, %v1380
  %v1430 = vmax.f32 %v1332, %v1381
  %v1431 = vmax.f32 %v1333, %v1382
  %v1432 = vmax.f32 %v1334, %v1383
  %v1433 = vmax.f32 %v1335, %v1384
  %v1434 = vmax.f32 %v1336, %v1385
  %v1435 = vmax.f32 %v1337, %v1386
  %v1436 = vmax.f32 %v1338, %v1387
  %v1437 = vmax.f32 %v1339, %v1388
  %v1438 = vmax.f32 %v1340, %v1389
  %v1439 = vmax.f32 %v1341, %v1390
  %v1440 = vmax.f32 %v1342, %v1391
  %v1441 = vmax.f32 %v1343, %v1392
  %v1442 = vmax.f32 %v1344, %v1393
  %v1443 = vmax.f32 %v1345, %v1394
  %v1444 = vmax.f32 %v1346, %v1395
  %v1445 = vld [vmem:[%s2] sm:$0x1]
  %v1447 = vlaneseq
  %v1448 = vshrl.u32 %v1447, 7
  %v1449 = vsub.s32 0, %v1448
  %v1450 = vrot.slane %v1445, %v1449
  %v1452 = vadd.f32 %v1396, %v1450
  %v1453 = vadd.f32 %v1397, %v1450
  %v1454 = vadd.f32 %v1398, %v1450
  %v1455 = vadd.f32 %v1399, %v1450
  %v1456 = vadd.f32 %v1400, %v1450
  %v1457 = vadd.f32 %v1401, %v1450
  %v1458 = vadd.f32 %v1402, %v1450
  %v1459 = vadd.f32 %v1403, %v1450
  %v1460 = vadd.f32 %v1404, %v1450
  %v1461 = vadd.f32 %v1405, %v1450
  %v1462 = vadd.f32 %v1406, %v1450
  %v1463 = vadd.f32 %v1407, %v1450
  %v1464 = vadd.f32 %v1408, %v1450
  %v1465 = vadd.f32 %v1409, %v1450
  %v1466 = vadd.f32 %v1410, %v1450
  %v1467 = vadd.f32 %v1411, %v1450
  %v1468 = vadd.f32 %v1412, %v1450
  %v1469 = vadd.f32 %v1413, %v1450
  %v1470 = vadd.f32 %v1414, %v1450
  %v1471 = vadd.f32 %v1415, %v1450
  %v1472 = vadd.f32 %v1416, %v1450
  %v1473 = vadd.f32 %v1417, %v1450
  %v1474 = vadd.f32 %v1418, %v1450
  %v1475 = vadd.f32 %v1419, %v1450
  %v1476 = vadd.f32 %v1420, %v1450
  %v1477 = vadd.f32 %v1421, %v1450
  %v1478 = vadd.f32 %v1422, %v1450
  %v1479 = vadd.f32 %v1423, %v1450
  %v1480 = vadd.f32 %v1424, %v1450
  %v1481 = vadd.f32 %v1425, %v1450
  %v1482 = vadd.f32 %v1426, %v1450
  %v1483 = vadd.f32 %v1427, %v1450
  %v1484 = vadd.f32 %v1428, %v1450
  %v1485 = vadd.f32 %v1429, %v1450
  %v1486 = vadd.f32 %v1430, %v1450
  %v1487 = vadd.f32 %v1431, %v1450
  %v1488 = vadd.f32 %v1432, %v1450
  %v1489 = vadd.f32 %v1433, %v1450
  %v1490 = vadd.f32 %v1434, %v1450
  %v1491 = vadd.f32 %v1435, %v1450
  %v1492 = vadd.f32 %v1436, %v1450
  %v1493 = vadd.f32 %v1437, %v1450
  %v1494 = vadd.f32 %v1438, %v1450
  %v1495 = vadd.f32 %v1439, %v1450
  %v1496 = vadd.f32 %v1440, %v1450
  %v1497 = vadd.f32 %v1441, %v1450
  %v1498 = vadd.f32 %v1442, %v1450
  %v1499 = vadd.f32 %v1443, %v1450
  %v1500 = vadd.f32 %v1444, %v1450
  %v1501 = vmax.f32 %v1452, 0.0
  %v1502 = vmax.f32 %v1453, 0.0
  %v1503 = vmax.f32 %v1454, 0.0
  %v1504 = vmax.f32 %v1455, 0.0
  %v1505 = vmax.f32 %v1456, 0.0
  %v1506 = vmax.f32 %v1457, 0.0
  %v1507 = vmax.f32 %v1458, 0.0
  %v1508 = vmax.f32 %v1459, 0.0
  %v1509 = vmax.f32 %v1460, 0.0
  %v1510 = vmax.f32 %v1461, 0.0
  %v1511 = vmax.f32 %v1462, 0.0
  %v1512 = vmax.f32 %v1463, 0.0
  %v1513 = vmax.f32 %v1464, 0.0
  %v1514 = vmax.f32 %v1465, 0.0
  %v1515 = vmax.f32 %v1466, 0.0
  %v1516 = vmax.f32 %v1467, 0.0
  %v1517 = vmax.f32 %v1468, 0.0
  %v1518 = vmax.f32 %v1469, 0.0
  %v1519 = vmax.f32 %v1470, 0.0
  %v1520 = vmax.f32 %v1471, 0.0
  %v1521 = vmax.f32 %v1472, 0.0
  %v1522 = vmax.f32 %v1473, 0.0
  %v1523 = vmax.f32 %v1474, 0.0
  %v1524 = vmax.f32 %v1475, 0.0
  %v1525 = vmax.f32 %v1476, 0.0
  %v1526 = vmax.f32 %v1477, 0.0
  %v1527 = vmax.f32 %v1478, 0.0
  %v1528 = vmax.f32 %v1479, 0.0
  %v1529 = vmax.f32 %v1480, 0.0
  %v1530 = vmax.f32 %v1481, 0.0
  %v1531 = vmax.f32 %v1482, 0.0
  %v1532 = vmax.f32 %v1483, 0.0
  %v1533 = vmax.f32 %v1484, 0.0
  %v1534 = vmax.f32 %v1485, 0.0
  %v1535 = vmax.f32 %v1486, 0.0
  %v1536 = vmax.f32 %v1487, 0.0
  %v1537 = vmax.f32 %v1488, 0.0
  %v1538 = vmax.f32 %v1489, 0.0
  %v1539 = vmax.f32 %v1490, 0.0
  %v1540 = vmax.f32 %v1491, 0.0
  %v1541 = vmax.f32 %v1492, 0.0
  %v1542 = vmax.f32 %v1493, 0.0
  %v1543 = vmax.f32 %v1494, 0.0
  %v1544 = vmax.f32 %v1495, 0.0
  %v1545 = vmax.f32 %v1496, 0.0
  %v1546 = vmax.f32 %v1497, 0.0
  %v1547 = vmax.f32 %v1498, 0.0
  %v1548 = vmax.f32 %v1499, 0.0
  %v1549 = vmax.f32 %v1500, 0.0
  %1550 = vst [vmem:[#allocation2] sm:$0xff] %v1501
  %1551 = vst [vmem:[#allocation2 + $0x8] sm:$0xff] %v1502
  %1552 = vst [vmem:[#allocation2 + $0x10] sm:$0xff] %v1503
  %1553 = vst [vmem:[#allocation2 + $0x18] sm:$0xff] %v1504
  %1554 = vst [vmem:[#allocation2 + $0x20] sm:$0xff] %v1505
  %1555 = vst [vmem:[#allocation2 + $0x28] sm:$0xff] %v1506
  %1556 = vst [vmem:[#allocation2 + $0x30] sm:$0xff] %v1507
  %1557 = vst [vmem:[#allocation2 + $0x38] sm:$0xff] %v1508
  %1558 = vst [vmem:[#allocation2 + $0x40] sm:$0xff] %v1509
  %1559 = vst [vmem:[#allocation2 + $0x48] sm:$0xff] %v1510
  %1560 = vst [vmem:[#allocation2 + $0x50] sm:$0xff] %v1511
  %1561 = vst [vmem:[#allocation2 + $0x58] sm:$0xff] %v1512
  %1562 = vst [vmem:[#allocation2 + $0x60] sm:$0xff] %v1513
  %1563 = vst [vmem:[#allocation2 + $0x68] sm:$0xff] %v1514
  %1564 = vst [vmem:[#allocation2 + $0x70] sm:$0xff] %v1515
  %1565 = vst [vmem:[#allocation2 + $0x78] sm:$0xff] %v1516
  %1566 = vst [vmem:[#allocation2 + $0x80] sm:$0xff] %v1517
  %1567 = vst [vmem:[#allocation2 + $0x88] sm:$0xff] %v1518
  %1568 = vst [vmem:[#allocation2 + $0x90] sm:$0xff] %v1519
  %1569 = vst [vmem:[#allocation2 + $0x98] sm:$0xff] %v1520
  %1570 = vst [vmem:[#allocation2 + $0xa0] sm:$0xff] %v1521
  %1571 = vst [vmem:[#allocation2 + $0xa8] sm:$0xff] %v1522
  %1572 = vst [vmem:[#allocation2 + $0xb0] sm:$0xff] %v1523
  %1573 = vst [vmem:[#allocation2 + $0xb8] sm:$0xff] %v1524
  %1574 = vst [vmem:[#allocation2 + $0xc0] sm:$0xff] %v1525
  %1575 = vst [vmem:[#allocation2 + $0xc8] sm:$0xff] %v1526
  %1576 = vst [vmem:[#allocation2 + $0xd0] sm:$0xff] %v1527
  %1577 = vst [vmem:[#allocation2 + $0xd8] sm:$0xff] %v1528
  %1578 = vst [vmem:[#allocation2 + $0xe0] sm:$0xff] %v1529
  %1579 = vst [vmem:[#allocation2 + $0xe8] sm:$0xff] %v1530
  %1580 = vst [vmem:[#allocation2 + $0xf0] sm:$0xff] %v1531
  %1581 = vst [vmem:[#allocation2 + $0xf8] sm:$0xff] %v1532
  %1582 = vst [vmem:[#allocation2 + $0x100] sm:$0xff] %v1533
  %1583 = vst [vmem:[#allocation2 + $0x108] sm:$0xff] %v1534
  %1584 = vst [vmem:[#allocation2 + $0x110] sm:$0xff] %v1535
  %1585 = vst [vmem:[#allocation2 + $0x118] sm:$0xff] %v1536
  %1586 = vst [vmem:[#allocation2 + $0x120] sm:$0xff] %v1537
  %1587 = vst [vmem:[#allocation2 + $0x128] sm:$0xff] %v1538
  %1588 = vst [vmem:[#allocation2 + $0x130] sm:$0xff] %v1539
  %1589 = vst [vmem:[#allocation2 + $0x138] sm:$0xff] %v1540
  %1590 = vst [vmem:[#allocation2 + $0x140] sm:$0xff] %v1541
  %1591 = vst [vmem:[#allocation2 + $0x148] sm:$0xff] %v1542
  %1592 = vst [vmem:[#allocation2 + $0x150] sm:$0xff] %v1543
  %1593 = vst [vmem:[#allocation2 + $0x158] sm:$0xff] %v1544
  %1594 = vst [vmem:[#allocation2 + $0x160] sm:$0xff] %v1545
  %1595 = vst [vmem:[#allocation2 + $0x168] sm:$0xff] %v1546
  %1596 = vst [vmem:[#allocation2 + $0x170] sm:$0xff] %v1547
  %1597 = vst [vmem:[#allocation2 + $0x178] sm:$0xff] %v1548
  %1598 = vst [vmem:[#allocation2 + $0x180] sm:$0xff] %v1549
  %1599 = vst [vmem:[#allocation2 + $0x188] sm:$0xff] 0.0
  %1600 = vst [vmem:[#allocation2 + $0x190] sm:$0xff] 0.0
  %1601 = vst [vmem:[#allocation2 + $0x198] sm:$0xff] 0.0
  %1602 = vst [vmem:[#allocation2 + $0x1a0] sm:$0xff] 0.0
  %1603 = vst [vmem:[#allocation2 + $0x1a8] sm:$0xff] 0.0
  %1604 = vst [vmem:[#allocation2 + $0x1b0] sm:$0xff] 0.0
  %1605 = vst [vmem:[#allocation2 + $0x1b8] sm:$0xff] 0.0
  %1606 = vst [vmem:[#allocation2 + $0x1c0] sm:$0xff] 0.0
  %1607 = vst [vmem:[#allocation2 + $0x1c8] sm:$0xff] 0.0
  %1608 = vst [vmem:[#allocation2 + $0x1d0] sm:$0xff] 0.0
  %1609 = vst [vmem:[#allocation2 + $0x1d8] sm:$0xff] 0.0
  %1610 = vst [vmem:[#allocation2 + $0x1e0] sm:$0xff] 0.0
  %1611 = vst [vmem:[#allocation2 + $0x1e8] sm:$0xff] 0.0
  %1612 = vst [vmem:[#allocation2 + $0x1f0] sm:$0xff] 0.0
  %1613 = vst [vmem:[#allocation2 + $0x1f8] sm:$0xff] 0.0
  %1614 = vst [vmem:[#allocation2 + $0x200] sm:$0xff] 0.0
  %1615 = vst [vmem:[#allocation2 + $0x208] sm:$0xff] 0.0
  %1616 = vst [vmem:[#allocation2 + $0x210] sm:$0xff] 0.0
  %1617 = vst [vmem:[#allocation2 + $0x218] sm:$0xff] 0.0
  %1618 = vst [vmem:[#allocation2 + $0x220] sm:$0xff] 0.0
  %1619 = vst [vmem:[#allocation2 + $0x228] sm:$0xff] 0.0
  %1620 = vst [vmem:[#allocation2 + $0x230] sm:$0xff] 0.0
  %1621 = vst [vmem:[#allocation2 + $0x238] sm:$0xff] 0.0
  %1622 = vst [vmem:[#allocation2 + $0x240] sm:$0xff] 0.0
  %v1623 = vld [vmem:[#allocation2] sm:$0xff]
  %v1624 = vld [vmem:[#allocation2 + $0x8] sm:$0xff]
  %v1625 = vld [vmem:[#allocation2 + $0x10] sm:$0xff]
  %v1626 = vld [vmem:[#allocation2 + $0x18] sm:$0xff]
  %v1627 = vld [vmem:[#allocation2 + $0x20] sm:$0xff]
  %v1628 = vld [vmem:[#allocation2 + $0x28] sm:$0xff]
  %v1629 = vld [vmem:[#allocation2 + $0x30] sm:$0xff]
  %v1630 = vld [vmem:[#allocation2 + $0x38] sm:$0xff]
  %v1631 = vld [vmem:[#allocation2 + $0x40] sm:$0xff]
  %v1632 = vld [vmem:[#allocation2 + $0x48] sm:$0xff]
  %v1633 = vld [vmem:[#allocation2 + $0x50] sm:$0xff]
  %v1634 = vld [vmem:[#allocation2 + $0x58] sm:$0xff]
  %v1635 = vld [vmem:[#allocation2 + $0x60] sm:$0xff]
  %v1636 = vld [vmem:[#allocation2 + $0x68] sm:$0xff]
  %v1637 = vld [vmem:[#allocation2 + $0x70] sm:$0xff]
  %v1638 = vld [vmem:[#allocation2 + $0x78] sm:$0xff]
  %v1639 = vld [vmem:[#allocation2 + $0x80] sm:$0xff]
  %v1640 = vld [vmem:[#allocation2 + $0x88] sm:$0xff]
  %v1641 = vld [vmem:[#allocation2 + $0x90] sm:$0xff]
  %v1642 = vld [vmem:[#allocation2 + $0x98] sm:$0xff]
  %v1643 = vld [vmem:[#allocation2 + $0xa0] sm:$0xff]
  %v1644 = vld [vmem:[#allocation2 + $0xa8] sm:$0xff]
  %v1645 = vld [vmem:[#allocation2 + $0xb0] sm:$0xff]
  %v1646 = vld [vmem:[#allocation2 + $0xb8] sm:$0xff]
  %v1647 = vld [vmem:[#allocation2 + $0xc0] sm:$0xff]
  %v1648 = vld [vmem:[#allocation2 + $0xc8] sm:$0xff]
  %v1649 = vld [vmem:[#allocation2 + $0xd0] sm:$0xff]
  %v1650 = vld [vmem:[#allocation2 + $0xd8] sm:$0xff]
  %v1651 = vld [vmem:[#allocation2 + $0xe0] sm:$0xff]
  %v1652 = vld [vmem:[#allocation2 + $0xe8] sm:$0xff]
  %v1653 = vld [vmem:[#allocation2 + $0xf0] sm:$0xff]
  %v1654 = vld [vmem:[#allocation2 + $0xf8] sm:$0xff]
  %v1655 = vld [vmem:[#allocation2 + $0x100] sm:$0xff]
  %v1656 = vld [vmem:[#allocation2 + $0x108] sm:$0xff]
  %v1657 = vld [vmem:[#allocation2 + $0x110] sm:$0xff]
  %v1658 = vld [vmem:[#allocation2 + $0x118] sm:$0xff]
  %v1659 = vld [vmem:[#allocation2 + $0x120] sm:$0xff]
  %v1660 = vld [vmem:[#allocation2 + $0x128] sm:$0xff]
  %v1661 = vld [vmem:[#allocation2 + $0x130] sm:$0xff]
  %v1662 = vld [vmem:[#allocation2 + $0x138] sm:$0xff]
  %v1663 = vld [vmem:[#allocation2 + $0x140] sm:$0xff]
  %v1664 = vld [vmem:[#allocation2 + $0x148] sm:$0xff]
  %v1665 = vld [vmem:[#allocation2 + $0x150] sm:$0xff]
  %v1666 = vld [vmem:[#allocation2 + $0x158] sm:$0xff]
  %v1667 = vld [vmem:[#allocation2 + $0x160] sm:$0xff]
  %v1668 = vld [vmem:[#allocation2 + $0x168] sm:$0xff]
  %v1669 = vld [vmem:[#allocation2 + $0x170] sm:$0xff]
  %v1670 = vld [vmem:[#allocation2 + $0x178] sm:$0xff]
  %v1671 = vld [vmem:[#allocation2 + $0x180] sm:$0xff]
  %v1672 = vld [vmem:[#allocation2 + $0x188] sm:$0xff]
  %v1673 = vld [vmem:[#allocation2 + $0x190] sm:$0xff]
  %v1674 = vld [vmem:[#allocation2 + $0x198] sm:$0xff]
  %v1675 = vld [vmem:[#allocation2 + $0x1a0] sm:$0xff]
  %v1676 = vld [vmem:[#allocation2 + $0x1a8] sm:$0xff]
  %v1677 = vld [vmem:[#allocation2 + $0x1b0] sm:$0xff]
  %v1678 = vld [vmem:[#allocation2 + $0x1b8] sm:$0xff]
  %v1679 = vld [vmem:[#allocation2 + $0x1c0] sm:$0xff]
  %v1680 = vld [vmem:[#allocation2 + $0x1c8] sm:$0xff]
  %v1681 = vld [vmem:[#allocation2 + $0x1d0] sm:$0xff]
  %v1682 = vld [vmem:[#allocation2 + $0x1d8] sm:$0xff]
  %v1683 = vld [vmem:[#allocation2 + $0x1e0] sm:$0xff]
  %v1684 = vld [vmem:[#allocation2 + $0x1e8] sm:$0xff]
  %v1685 = vld [vmem:[#allocation2 + $0x1f0] sm:$0xff]
  %v1686 = vld [vmem:[#allocation2 + $0x1f8] sm:$0xff]
  %v1687 = vld [vmem:[#allocation2 + $0x1] sm:$0xff]
  %v1688 = vld [vmem:[#allocation2 + $0x9] sm:$0xff]
  %v1689 = vld [vmem:[#allocation2 + $0x11] sm:$0xff]
  %v1690 = vld [vmem:[#allocation2 + $0x19] sm:$0xff]
  %v1691 = vld [vmem:[#allocation2 + $0x21] sm:$0xff]
  %v1692 = vld [vmem:[#allocation2 + $0x29] sm:$0xff]
  %v1693 = vld [vmem:[#allocation2 + $0x31] sm:$0xff]
  %v1694 = vld [vmem:[#allocation2 + $0x39] sm:$0xff]
  %v1695 = vld [vmem:[#allocation2 + $0x41] sm:$0xff]
  %v1696 = vld [vmem:[#allocation2 + $0x49] sm:$0xff]
  %v1697 = vld [vmem:[#allocation2 + $0x51] sm:$0xff]
  %v1698 = vld [vmem:[#allocation2 + $0x59] sm:$0xff]
  %v1699 = vld [vmem:[#allocation2 + $0x61] sm:$0xff]
  %v1700 = vld [vmem:[#allocation2 + $0x69] sm:$0xff]
  %v1701 = vld [vmem:[#allocation2 + $0x71] sm:$0xff]
  %v1702 = vld [vmem:[#allocation2 + $0x79] sm:$0xff]
  %v1703 = vld [vmem:[#allocation2 + $0x81] sm:$0xff]
  %v1704 = vld [vmem:[#allocation2 + $0x89] sm:$0xff]
  %v1705 = vld [vmem:[#allocation2 + $0x91] sm:$0xff]
  %v1706 = vld [vmem:[#allocation2 + $0x99] sm:$0xff]
  %v1707 = vld [vmem:[#allocation2 + $0xa1] sm:$0xff]
  %v1708 = vld [vmem:[#allocation2 + $0xa9] sm:$0xff]
  %v1709 = vld [vmem:[#allocation2 + $0xb1] sm:$0xff]
  %v1710 = vld [vmem:[#allocation2 + $0xb9] sm:$0xff]
  %v1711 = vld [vmem:[#allocation2 + $0xc1] sm:$0xff]
  %v1712 = vld [vmem:[#allocation2 + $0xc9] sm:$0xff]
  %v1713 = vld [vmem:[#allocation2 + $0xd1] sm:$0xff]
  %v1714 = vld [vmem:[#allocation2 + $0xd9] sm:$0xff]
  %v1715 = vld [vmem:[#allocation2 + $0xe1] sm:$0xff]
  %v1716 = vld [vmem:[#allocation2 + $0xe9] sm:$0xff]
  %v1717 = vld [vmem:[#allocation2 + $0xf1] sm:$0xff]
  %v1718 = vld [vmem:[#allocation2 + $0xf9] sm:$0xff]
  %v1719 = vld [vmem:[#allocation2 + $0x101] sm:$0xff]
  %v1720 = vld [vmem:[#allocation2 + $0x109] sm:$0xff]
  %v1721 = vld [vmem:[#allocation2 + $0x111] sm:$0xff]
  %v1722 = vld [vmem:[#allocation2 + $0x119] sm:$0xff]
  %v1723 = vld [vmem:[#allocation2 + $0x121] sm:$0xff]
  %v1724 = vld [vmem:[#allocation2 + $0x129] sm:$0xff]
  %v1725 = vld [vmem:[#allocation2 + $0x131] sm:$0xff]
  %v1726 = vld [vmem:[#allocation2 + $0x139] sm:$0xff]
  %v1727 = vld [vmem:[#allocation2 + $0x141] sm:$0xff]
  %v1728 = vld [vmem:[#allocation2 + $0x149] sm:$0xff]
  %v1729 = vld [vmem:[#allocation2 + $0x151] sm:$0xff]
  %v1730 = vld [vmem:[#allocation2 + $0x159] sm:$0xff]
  %v1731 = vld [vmem:[#allocation2 + $0x161] sm:$0xff]
  %v1732 = vld [vmem:[#allocation2 + $0x169] sm:$0xff]
  %v1733 = vld [vmem:[#allocation2 + $0x171] sm:$0xff]
  %v1734 = vld [vmem:[#allocation2 + $0x179] sm:$0xff]
  %v1735 = vld [vmem:[#allocation2 + $0x181] sm:$0xff]
  %v1736 = vld [vmem:[#allocation2 + $0x189] sm:$0xff]
  %v1737 = vld [vmem:[#allocation2 + $0x191] sm:$0xff]
  %v1738 = vld [vmem:[#allocation2 + $0x199] sm:$0xff]
  %v1739 = vld [vmem:[#allocation2 + $0x1a1] sm:$0xff]
  %v1740 = vld [vmem:[#allocation2 + $0x1a9] sm:$0xff]
  %v1741 = vld [vmem:[#allocation2 + $0x1b1] sm:$0xff]
  %v1742 = vld [vmem:[#allocation2 + $0x1b9] sm:$0xff]
  %v1743 = vld [vmem:[#allocation2 + $0x1c1] sm:$0xff]
  %v1744 = vld [vmem:[#allocation2 + $0x1c9] sm:$0xff]
  %v1745 = vld [vmem:[#allocation2 + $0x1d1] sm:$0xff]
  %v1746 = vld [vmem:[#allocation2 + $0x1d9] sm:$0xff]
  %v1747 = vld [vmem:[#allocation2 + $0x1e1] sm:$0xff]
  %v1748 = vld [vmem:[#allocation2 + $0x1e9] sm:$0xff]
  %v1749 = vld [vmem:[#allocation2 + $0x1f1] sm:$0xff]
  %v1750 = vld [vmem:[#allocation2 + $0x1f9] sm:$0xff]
  %v1751 = vld [vmem:[#allocation2 + $0x2] sm:$0xff]
  %v1752 = vld [vmem:[#allocation2 + $0xa] sm:$0xff]
  %v1753 = vld [vmem:[#allocation2 + $0x12] sm:$0xff]
  %v1754 = vld [vmem:[#allocation2 + $0x1a] sm:$0xff]
  %v1755 = vld [vmem:[#allocation2 + $0x22] sm:$0xff]
  %v1756 = vld [vmem:[#allocation2 + $0x2a] sm:$0xff]
  %v1757 = vld [vmem:[#allocation2 + $0x32] sm:$0xff]
  %v1758 = vld [vmem:[#allocation2 + $0x3a] sm:$0xff]
  %v1759 = vld [vmem:[#allocation2 + $0x42] sm:$0xff]
  %v1760 = vld [vmem:[#allocation2 + $0x4a] sm:$0xff]
  %v1761 = vld [vmem:[#allocation2 + $0x52] sm:$0xff]
  %v1762 = vld [vmem:[#allocation2 + $0x5a] sm:$0xff]
  %v1763 = vld [vmem:[#allocation2 + $0x62] sm:$0xff]
  %v1764 = vld [vmem:[#allocation2 + $0x6a] sm:$0xff]
  %v1765 = vld [vmem:[#allocation2 + $0x72] sm:$0xff]
  %v1766 = vld [vmem:[#allocation2 + $0x7a] sm:$0xff]
  %v1767 = vld [vmem:[#allocation2 + $0x82] sm:$0xff]
  %v1768 = vld [vmem:[#allocation2 + $0x8a] sm:$0xff]
  %v1769 = vld [vmem:[#allocation2 + $0x92] sm:$0xff]
  %v1770 = vld [vmem:[#allocation2 + $0x9a] sm:$0xff]
  %v1771 = vld [vmem:[#allocation2 + $0xa2] sm:$0xff]
  %v1772 = vld [vmem:[#allocation2 + $0xaa] sm:$0xff]
  %v1773 = vld [vmem:[#allocation2 + $0xb2] sm:$0xff]
  %v1774 = vld [vmem:[#allocation2 + $0xba] sm:$0xff]
  %v1775 = vld [vmem:[#allocation2 + $0xc2] sm:$0xff]
  %v1776 = vld [vmem:[#allocation2 + $0xca] sm:$0xff]
  %v1777 = vld [vmem:[#allocation2 + $0xd2] sm:$0xff]
  %v1778 = vld [vmem:[#allocation2 + $0xda] sm:$0xff]
  %v1779 = vld [vmem:[#allocation2 + $0xe2] sm:$0xff]
  %v1780 = vld [vmem:[#allocation2 + $0xea] sm:$0xff]
  %v1781 = vld [vmem:[#allocation2 + $0xf2] sm:$0xff]
  %v1782 = vld [vmem:[#allocation2 + $0xfa] sm:$0xff]
  %v1783 = vld [vmem:[#allocation2 + $0x102] sm:$0xff]
  %v1784 = vld [vmem:[#allocation2 + $0x10a] sm:$0xff]
  %v1785 = vld [vmem:[#allocation2 + $0x112] sm:$0xff]
  %v1786 = vld [vmem:[#allocation2 + $0x11a] sm:$0xff]
  %v1787 = vld [vmem:[#allocation2 + $0x122] sm:$0xff]
  %v1788 = vld [vmem:[#allocation2 + $0x12a] sm:$0xff]
  %v1789 = vld [vmem:[#allocation2 + $0x132] sm:$0xff]
  %v1790 = vld [vmem:[#allocation2 + $0x13a] sm:$0xff]
  %v1791 = vld [vmem:[#allocation2 + $0x142] sm:$0xff]
  %v1792 = vld [vmem:[#allocation2 + $0x14a] sm:$0xff]
  %v1793 = vld [vmem:[#allocation2 + $0x152] sm:$0xff]
  %v1794 = vld [vmem:[#allocation2 + $0x15a] sm:$0xff]
  %v1795 = vld [vmem:[#allocation2 + $0x162] sm:$0xff]
  %v1796 = vld [vmem:[#allocation2 + $0x16a] sm:$0xff]
  %v1797 = vld [vmem:[#allocation2 + $0x172] sm:$0xff]
  %v1798 = vld [vmem:[#allocation2 + $0x17a] sm:$0xff]
  %v1799 = vld [vmem:[#allocation2 + $0x182] sm:$0xff]
  %v1800 = vld [vmem:[#allocation2 + $0x18a] sm:$0xff]
  %v1801 = vld [vmem:[#allocation2 + $0x192] sm:$0xff]
  %v1802 = vld [vmem:[#allocation2 + $0x19a] sm:$0xff]
  %v1803 = vld [vmem:[#allocation2 + $0x1a2] sm:$0xff]
  %v1804 = vld [vmem:[#allocation2 + $0x1aa] sm:$0xff]
  %v1805 = vld [vmem:[#allocation2 + $0x1b2] sm:$0xff]
  %v1806 = vld [vmem:[#allocation2 + $0x1ba] sm:$0xff]
  %v1807 = vld [vmem:[#allocation2 + $0x1c2] sm:$0xff]
  %v1808 = vld [vmem:[#allocation2 + $0x1ca] sm:$0xff]
  %v1809 = vld [vmem:[#allocation2 + $0x1d2] sm:$0xff]
  %v1810 = vld [vmem:[#allocation2 + $0x1da] sm:$0xff]
  %v1811 = vld [vmem:[#allocation2 + $0x1e2] sm:$0xff]
  %v1812 = vld [vmem:[#allocation2 + $0x1ea] sm:$0xff]
  %v1813 = vld [vmem:[#allocation2 + $0x1f2] sm:$0xff]
  %v1814 = vld [vmem:[#allocation2 + $0x1fa] sm:$0xff]
  %v1815 = vld [vmem:[#allocation2 + $0x3] sm:$0xff]
  %v1816 = vld [vmem:[#allocation2 + $0xb] sm:$0xff]
  %v1817 = vld [vmem:[#allocation2 + $0x13] sm:$0xff]
  %v1818 = vld [vmem:[#allocation2 + $0x1b] sm:$0xff]
  %v1819 = vld [vmem:[#allocation2 + $0x23] sm:$0xff]
  %v1820 = vld [vmem:[#allocation2 + $0x2b] sm:$0xff]
  %v1821 = vld [vmem:[#allocation2 + $0x33] sm:$0xff]
  %v1822 = vld [vmem:[#allocation2 + $0x3b] sm:$0xff]
  %v1823 = vld [vmem:[#allocation2 + $0x43] sm:$0xff]
  %v1824 = vld [vmem:[#allocation2 + $0x4b] sm:$0xff]
  %v1825 = vld [vmem:[#allocation2 + $0x53] sm:$0xff]
  %v1826 = vld [vmem:[#allocation2 + $0x5b] sm:$0xff]
  %v1827 = vld [vmem:[#allocation2 + $0x63] sm:$0xff]
  %v1828 = vld [vmem:[#allocation2 + $0x6b] sm:$0xff]
  %v1829 = vld [vmem:[#allocation2 + $0x73] sm:$0xff]
  %v1830 = vld [vmem:[#allocation2 + $0x7b] sm:$0xff]
  %v1831 = vld [vmem:[#allocation2 + $0x83] sm:$0xff]
  %v1832 = vld [vmem:[#allocation2 + $0x8b] sm:$0xff]
  %v1833 = vld [vmem:[#allocation2 + $0x93] sm:$0xff]
  %v1834 = vld [vmem:[#allocation2 + $0x9b] sm:$0xff]
  %v1835 = vld [vmem:[#allocation2 + $0xa3] sm:$0xff]
  %v1836 = vld [vmem:[#allocation2 + $0xab] sm:$0xff]
  %v1837 = vld [vmem:[#allocation2 + $0xb3] sm:$0xff]
  %v1838 = vld [vmem:[#allocation2 + $0xbb] sm:$0xff]
  %v1839 = vld [vmem:[#allocation2 + $0xc3] sm:$0xff]
  %v1840 = vld [vmem:[#allocation2 + $0xcb] sm:$0xff]
  %v1841 = vld [vmem:[#allocation2 + $0xd3] sm:$0xff]
  %v1842 = vld [vmem:[#allocation2 + $0xdb] sm:$0xff]
  %v1843 = vld [vmem:[#allocation2 + $0xe3] sm:$0xff]
  %v1844 = vld [vmem:[#allocation2 + $0xeb] sm:$0xff]
  %v1845 = vld [vmem:[#allocation2 + $0xf3] sm:$0xff]
  %v1846 = vld [vmem:[#allocation2 + $0xfb] sm:$0xff]
  %v1847 = vld [vmem:[#allocation2 + $0x103] sm:$0xff]
  %v1848 = vld [vmem:[#allocation2 + $0x10b] sm:$0xff]
  %v1849 = vld [vmem:[#allocation2 + $0x113] sm:$0xff]
  %v1850 = vld [vmem:[#allocation2 + $0x11b] sm:$0xff]
  %v1851 = vld [vmem:[#allocation2 + $0x123] sm:$0xff]
  %v1852 = vld [vmem:[#allocation2 + $0x12b] sm:$0xff]
  %v1853 = vld [vmem:[#allocation2 + $0x133] sm:$0xff]
  %v1854 = vld [vmem:[#allocation2 + $0x13b] sm:$0xff]
  %v1855 = vld [vmem:[#allocation2 + $0x143] sm:$0xff]
  %v1856 = vld [vmem:[#allocation2 + $0x14b] sm:$0xff]
  %v1857 = vld [vmem:[#allocation2 + $0x153] sm:$0xff]
  %v1858 = vld [vmem:[#allocation2 + $0x15b] sm:$0xff]
  %v1859 = vld [vmem:[#allocation2 + $0x163] sm:$0xff]
  %v1860 = vld [vmem:[#allocation2 + $0x16b] sm:$0xff]
  %v1861 = vld [vmem:[#allocation2 + $0x173] sm:$0xff]
  %v1862 = vld [vmem:[#allocation2 + $0x17b] sm:$0xff]
  %v1863 = vld [vmem:[#allocation2 + $0x183] sm:$0xff]
  %v1864 = vld [vmem:[#allocation2 + $0x18b] sm:$0xff]
  %v1865 = vld [vmem:[#allocation2 + $0x193] sm:$0xff]
  %v1866 = vld [vmem:[#allocation2 + $0x19b] sm:$0xff]
  %v1867 = vld [vmem:[#allocation2 + $0x1a3] sm:$0xff]
  %v1868 = vld [vmem:[#allocation2 + $0x1ab] sm:$0xff]
  %v1869 = vld [vmem:[#allocation2 + $0x1b3] sm:$0xff]
  %v1870 = vld [vmem:[#allocation2 + $0x1bb] sm:$0xff]
  %v1871 = vld [vmem:[#allocation2 + $0x1c3] sm:$0xff]
  %v1872 = vld [vmem:[#allocation2 + $0x1cb] sm:$0xff]
  %v1873 = vld [vmem:[#allocation2 + $0x1d3] sm:$0xff]
  %v1874 = vld [vmem:[#allocation2 + $0x1db] sm:$0xff]
  %v1875 = vld [vmem:[#allocation2 + $0x1e3] sm:$0xff]
  %v1876 = vld [vmem:[#allocation2 + $0x1eb] sm:$0xff]
  %v1877 = vld [vmem:[#allocation2 + $0x1f3] sm:$0xff]
  %v1878 = vld [vmem:[#allocation2 + $0x1fb] sm:$0xff]
  %v1879 = vld [vmem:[#allocation2 + $0x4] sm:$0xff]
  %v1880 = vld [vmem:[#allocation2 + $0xc] sm:$0xff]
  %v1881 = vld [vmem:[#allocation2 + $0x14] sm:$0xff]
  %v1882 = vld [vmem:[#allocation2 + $0x1c] sm:$0xff]
  %v1883 = vld [vmem:[#allocation2 + $0x24] sm:$0xff]
  %v1884 = vld [vmem:[#allocation2 + $0x2c] sm:$0xff]
  %v1885 = vld [vmem:[#allocation2 + $0x34] sm:$0xff]
  %v1886 = vld [vmem:[#allocation2 + $0x3c] sm:$0xff]
  %v1887 = vld [vmem:[#allocation2 + $0x44] sm:$0xff]
  %v1888 = vld [vmem:[#allocation2 + $0x4c] sm:$0xff]
  %v1889 = vld [vmem:[#allocation2 + $0x54] sm:$0xff]
  %v1890 = vld [vmem:[#allocation2 + $0x5c] sm:$0xff]
  %v1891 = vld [vmem:[#allocation2 + $0x64] sm:$0xff]
  %v1892 = vld [vmem:[#allocation2 + $0x6c] sm:$0xff]
  %v1893 = vld [vmem:[#allocation2 + $0x74] sm:$0xff]
  %v1894 = vld [vmem:[#allocation2 + $0x7c] sm:$0xff]
  %v1895 = vld [vmem:[#allocation2 + $0x84] sm:$0xff]
  %v1896 = vld [vmem:[#allocation2 + $0x8c] sm:$0xff]
  %v1897 = vld [vmem:[#allocation2 + $0x94] sm:$0xff]
  %v1898 = vld [vmem:[#allocation2 + $0x9c] sm:$0xff]
  %v1899 = vld [vmem:[#allocation2 + $0xa4] sm:$0xff]
  %v1900 = vld [vmem:[#allocation2 + $0xac] sm:$0xff]
  %v1901 = vld [vmem:[#allocation2 + $0xb4] sm:$0xff]
  %v1902 = vld [vmem:[#allocation2 + $0xbc] sm:$0xff]
  %v1903 = vld [vmem:[#allocation2 + $0xc4] sm:$0xff]
  %v1904 = vld [vmem:[#allocation2 + $0xcc] sm:$0xff]
  %v1905 = vld [vmem:[#allocation2 + $0xd4] sm:$0xff]
  %v1906 = vld [vmem:[#allocation2 + $0xdc] sm:$0xff]
  %v1907 = vld [vmem:[#allocation2 + $0xe4] sm:$0xff]
  %v1908 = vld [vmem:[#allocation2 + $0xec] sm:$0xff]
  %v1909 = vld [vmem:[#allocation2 + $0xf4] sm:$0xff]
  %v1910 = vld [vmem:[#allocation2 + $0xfc] sm:$0xff]
  %v1911 = vld [vmem:[#allocation2 + $0x104] sm:$0xff]
  %v1912 = vld [vmem:[#allocation2 + $0x10c] sm:$0xff]
  %v1913 = vld [vmem:[#allocation2 + $0x114] sm:$0xff]
  %v1914 = vld [vmem:[#allocation2 + $0x11c] sm:$0xff]
  %v1915 = vld [vmem:[#allocation2 + $0x124] sm:$0xff]
  %v1916 = vld [vmem:[#allocation2 + $0x12c] sm:$0xff]
  %v1917 = vld [vmem:[#allocation2 + $0x134] sm:$0xff]
  %v1918 = vld [vmem:[#allocation2 + $0x13c] sm:$0xff]
  %v1919 = vld [vmem:[#allocation2 + $0x144] sm:$0xff]
  %v1920 = vld [vmem:[#allocation2 + $0x14c] sm:$0xff]
  %v1921 = vld [vmem:[#allocation2 + $0x154] sm:$0xff]
  %v1922 = vld [vmem:[#allocation2 + $0x15c] sm:$0xff]
  %v1923 = vld [vmem:[#allocation2 + $0x164] sm:$0xff]
  %v1924 = vld [vmem:[#allocation2 + $0x16c] sm:$0xff]
  %v1925 = vld [vmem:[#allocation2 + $0x174] sm:$0xff]
  %v1926 = vld [vmem:[#allocation2 + $0x17c] sm:$0xff]
  %v1927 = vld [vmem:[#allocation2 + $0x184] sm:$0xff]
  %v1928 = vld [vmem:[#allocation2 + $0x18c] sm:$0xff]
  %v1929 = vld [vmem:[#allocation2 + $0x194] sm:$0xff]
  %v1930 = vld [vmem:[#allocation2 + $0x19c] sm:$0xff]
  %v1931 = vld [vmem:[#allocation2 + $0x1a4] sm:$0xff]
  %v1932 = vld [vmem:[#allocation2 + $0x1ac] sm:$0xff]
  %v1933 = vld [vmem:[#allocation2 + $0x1b4] sm:$0xff]
  %v1934 = vld [vmem:[#allocation2 + $0x1bc] sm:$0xff]
  %v1935 = vld [vmem:[#allocation2 + $0x1c4] sm:$0xff]
  %v1936 = vld [vmem:[#allocation2 + $0x1cc] sm:$0xff]
  %v1937 = vld [vmem:[#allocation2 + $0x1d4] sm:$0xff]
  %v1938 = vld [vmem:[#allocation2 + $0x1dc] sm:$0xff]
  %v1939 = vld [vmem:[#allocation2 + $0x1e4] sm:$0xff]
  %v1940 = vld [vmem:[#allocation2 + $0x1ec] sm:$0xff]
  %v1941 = vld [vmem:[#allocation2 + $0x1f4] sm:$0xff]
  %v1942 = vld [vmem:[#allocation2 + $0x1fc] sm:$0xff]
  %v1943 = vld [vmem:[#allocation2 + $0xe] sm:$0xff]
  %v1944 = vld [vmem:[#allocation2 + $0x16] sm:$0xff]
  %v1945 = vld [vmem:[#allocation2 + $0x1e] sm:$0xff]
  %v1946 = vld [vmem:[#allocation2 + $0x26] sm:$0xff]
  %v1947 = vld [vmem:[#allocation2 + $0x2e] sm:$0xff]
  %v1948 = vld [vmem:[#allocation2 + $0x36] sm:$0xff]
  %v1949 = vld [vmem:[#allocation2 + $0x3e] sm:$0xff]
  %v1950 = vld [vmem:[#allocation2 + $0x46] sm:$0xff]
  %v1951 = vld [vmem:[#allocation2 + $0x4e] sm:$0xff]
  %v1952 = vld [vmem:[#allocation2 + $0x56] sm:$0xff]
  %v1953 = vld [vmem:[#allocation2 + $0x5e] sm:$0xff]
  %v1954 = vld [vmem:[#allocation2 + $0x66] sm:$0xff]
  %v1955 = vld [vmem:[#allocation2 + $0x6e] sm:$0xff]
  %v1956 = vld [vmem:[#allocation2 + $0x76] sm:$0xff]
  %v1957 = vld [vmem:[#allocation2 + $0x7e] sm:$0xff]
  %v1958 = vld [vmem:[#allocation2 + $0x86] sm:$0xff]
  %v1959 = vld [vmem:[#allocation2 + $0x8e] sm:$0xff]
  %v1960 = vld [vmem:[#allocation2 + $0x96] sm:$0xff]
  %v1961 = vld [vmem:[#allocation2 + $0x9e] sm:$0xff]
  %v1962 = vld [vmem:[#allocation2 + $0xa6] sm:$0xff]
  %v1963 = vld [vmem:[#allocation2 + $0xae] sm:$0xff]
  %v1964 = vld [vmem:[#allocation2 + $0xb6] sm:$0xff]
  %v1965 = vld [vmem:[#allocation2 + $0xbe] sm:$0xff]
  %v1966 = vld [vmem:[#allocation2 + $0xc6] sm:$0xff]
  %v1967 = vld [vmem:[#allocation2 + $0xce] sm:$0xff]
  %v1968 = vld [vmem:[#allocation2 + $0xd6] sm:$0xff]
  %v1969 = vld [vmem:[#allocation2 + $0xde] sm:$0xff]
  %v1970 = vld [vmem:[#allocation2 + $0xe6] sm:$0xff]
  %v1971 = vld [vmem:[#allocation2 + $0xee] sm:$0xff]
  %v1972 = vld [vmem:[#allocation2 + $0xf6] sm:$0xff]
  %v1973 = vld [vmem:[#allocation2 + $0xfe] sm:$0xff]
  %v1974 = vld [vmem:[#allocation2 + $0x106] sm:$0xff]
  %v1975 = vld [vmem:[#allocation2 + $0x10e] sm:$0xff]
  %v1976 = vld [vmem:[#allocation2 + $0x116] sm:$0xff]
  %v1977 = vld [vmem:[#allocation2 + $0x11e] sm:$0xff]
  %v1978 = vld [vmem:[#allocation2 + $0x126] sm:$0xff]
  %v1979 = vld [vmem:[#allocation2 + $0x12e] sm:$0xff]
  %v1980 = vld [vmem:[#allocation2 + $0x136] sm:$0xff]
  %v1981 = vld [vmem:[#allocation2 + $0x13e] sm:$0xff]
  %v1982 = vld [vmem:[#allocation2 + $0x146] sm:$0xff]
  %v1983 = vld [vmem:[#allocation2 + $0x14e] sm:$0xff]
  %v1984 = vld [vmem:[#allocation2 + $0x156] sm:$0xff]
  %v1985 = vld [vmem:[#allocation2 + $0x15e] sm:$0xff]
  %v1986 = vld [vmem:[#allocation2 + $0x166] sm:$0xff]
  %v1987 = vld [vmem:[#allocation2 + $0x16e] sm:$0xff]
  %v1988 = vld [vmem:[#allocation2 + $0x176] sm:$0xff]
  %v1989 = vld [vmem:[#allocation2 + $0x17e] sm:$0xff]
  %v1990 = vld [vmem:[#allocation2 + $0x186] sm:$0xff]
  %v1991 = vld [vmem:[#allocation2 + $0x18e] sm:$0xff]
  %v1992 = vld [vmem:[#allocation2 + $0x196] sm:$0xff]
  %v1993 = vld [vmem:[#allocation2 + $0x19e] sm:$0xff]
  %v1994 = vld [vmem:[#allocation2 + $0x1a6] sm:$0xff]
  %v1995 = vld [vmem:[#allocation2 + $0x1ae] sm:$0xff]
  %v1996 = vld [vmem:[#allocation2 + $0x1b6] sm:$0xff]
  %v1997 = vld [vmem:[#allocation2 + $0x1be] sm:$0xff]
  %v1998 = vld [vmem:[#allocation2 + $0x1c6] sm:$0xff]
  %v1999 = vld [vmem:[#allocation2 + $0x1ce] sm:$0xff]
  %v2000 = vld [vmem:[#allocation2 + $0x1d6] sm:$0xff]
  %v2001 = vld [vmem:[#allocation2 + $0x1de] sm:$0xff]
  %v2002 = vld [vmem:[#allocation2 + $0x1e6] sm:$0xff]
  %v2003 = vld [vmem:[#allocation2 + $0x1ee] sm:$0xff]
  %v2004 = vld [vmem:[#allocation2 + $0x1f6] sm:$0xff]
  %v2005 = vld [vmem:[#allocation2 + $0x1fe] sm:$0xff]
  %v2006 = vld [vmem:[#allocation2 + $0x206] sm:$0xff]
  %v2007 = vld [vmem:[#allocation2 + $0xf] sm:$0xff]
  %v2008 = vld [vmem:[#allocation2 + $0x17] sm:$0xff]
  %v2009 = vld [vmem:[#allocation2 + $0x1f] sm:$0xff]
  %v2010 = vld [vmem:[#allocation2 + $0x27] sm:$0xff]
  %v2011 = vld [vmem:[#allocation2 + $0x2f] sm:$0xff]
  %v2012 = vld [vmem:[#allocation2 + $0x37] sm:$0xff]
  %v2013 = vld [vmem:[#allocation2 + $0x3f] sm:$0xff]
  %v2014 = vld [vmem:[#allocation2 + $0x47] sm:$0xff]
  %v2015 = vld [vmem:[#allocation2 + $0x4f] sm:$0xff]
  %v2016 = vld [vmem:[#allocation2 + $0x57] sm:$0xff]
  %v2017 = vld [vmem:[#allocation2 + $0x5f] sm:$0xff]
  %v2018 = vld [vmem:[#allocation2 + $0x67] sm:$0xff]
  %v2019 = vld [vmem:[#allocation2 + $0x6f] sm:$0xff]
  %v2020 = vld [vmem:[#allocation2 + $0x77] sm:$0xff]
  %v2021 = vld [vmem:[#allocation2 + $0x7f] sm:$0xff]
  %v2022 = vld [vmem:[#allocation2 + $0x87] sm:$0xff]
  %v2023 = vld [vmem:[#allocation2 + $0x8f] sm:$0xff]
  %v2024 = vld [vmem:[#allocation2 + $0x97] sm:$0xff]
  %v2025 = vld [vmem:[#allocation2 + $0x9f] sm:$0xff]
  %v2026 = vld [vmem:[#allocation2 + $0xa7] sm:$0xff]
  %v2027 = vld [vmem:[#allocation2 + $0xaf] sm:$0xff]
  %v2028 = vld [vmem:[#allocation2 + $0xb7] sm:$0xff]
  %v2029 = vld [vmem:[#allocation2 + $0xbf] sm:$0xff]
  %v2030 = vld [vmem:[#allocation2 + $0xc7] sm:$0xff]
  %v2031 = vld [vmem:[#allocation2 + $0xcf] sm:$0xff]
  %v2032 = vld [vmem:[#allocation2 + $0xd7] sm:$0xff]
  %v2033 = vld [vmem:[#allocation2 + $0xdf] sm:$0xff]
  %v2034 = vld [vmem:[#allocation2 + $0xe7] sm:$0xff]
  %v2035 = vld [vmem:[#allocation2 + $0xef] sm:$0xff]
  %v2036 = vld [vmem:[#allocation2 + $0xf7] sm:$0xff]
  %v2037 = vld [vmem:[#allocation2 + $0xff] sm:$0xff]
  %v2038 = vld [vmem:[#allocation2 + $0x107] sm:$0xff]
  %v2039 = vld [vmem:[#allocation2 + $0x10f] sm:$0xff]
  %v2040 = vld [vmem:[#allocation2 + $0x117] sm:$0xff]
  %v2041 = vld [vmem:[#allocation2 + $0x11f] sm:$0xff]
  %v2042 = vld [vmem:[#allocation2 + $0x127] sm:$0xff]
  %v2043 = vld [vmem:[#allocation2 + $0x12f] sm:$0xff]
  %v2044 = vld [vmem:[#allocation2 + $0x137] sm:$0xff]
  %v2045 = vld [vmem:[#allocation2 + $0x13f] sm:$0xff]
  %v2046 = vld [vmem:[#allocation2 + $0x147] sm:$0xff]
  %v2047 = vld [vmem:[#allocation2 + $0x14f] sm:$0xff]
  %v2048 = vld [vmem:[#allocation2 + $0x157] sm:$0xff]
  %v2049 = vld [vmem:[#allocation2 + $0x15f] sm:$0xff]
  %v2050 = vld [vmem:[#allocation2 + $0x167] sm:$0xff]
  %v2051 = vld [vmem:[#allocation2 + $0x16f] sm:$0xff]
  %v2052 = vld [vmem:[#allocation2 + $0x177] sm:$0xff]
  %v2053 = vld [vmem:[#allocation2 + $0x17f] sm:$0xff]
  %v2054 = vld [vmem:[#allocation2 + $0x187] sm:$0xff]
  %v2055 = vld [vmem:[#allocation2 + $0x18f] sm:$0xff]
  %v2056 = vld [vmem:[#allocation2 + $0x197] sm:$0xff]
  %v2057 = vld [vmem:[#allocation2 + $0x19f] sm:$0xff]
  %v2058 = vld [vmem:[#allocation2 + $0x1a7] sm:$0xff]
  %v2059 = vld [vmem:[#allocation2 + $0x1af] sm:$0xff]
  %v2060 = vld [vmem:[#allocation2 + $0x1b7] sm:$0xff]
  %v2061 = vld [vmem:[#allocation2 + $0x1bf] sm:$0xff]
  %v2062 = vld [vmem:[#allocation2 + $0x1c7] sm:$0xff]
  %v2063 = vld [vmem:[#allocation2 + $0x1cf] sm:$0xff]
  %v2064 = vld [vmem:[#allocation2 + $0x1d7] sm:$0xff]
  %v2065 = vld [vmem:[#allocation2 + $0x1df] sm:$0xff]
  %v2066 = vld [vmem:[#allocation2 + $0x1e7] sm:$0xff]
  %v2067 = vld [vmem:[#allocation2 + $0x1ef] sm:$0xff]
  %v2068 = vld [vmem:[#allocation2 + $0x1f7] sm:$0xff]
  %v2069 = vld [vmem:[#allocation2 + $0x1ff] sm:$0xff]
  %v2070 = vld [vmem:[#allocation2 + $0x207] sm:$0xff]
  %v2071 = vld [vmem:[#allocation2 + $0x200] sm:$0xff]
  %v2072 = vld [vmem:[#allocation2 + $0x208] sm:$0xff]
  %v2073 = vld [vmem:[#allocation2 + $0x201] sm:$0xff]
  %v2074 = vld [vmem:[#allocation2 + $0x209] sm:$0xff]
  %v2075 = vld [vmem:[#allocation2 + $0x202] sm:$0xff]
  %v2076 = vld [vmem:[#allocation2 + $0x20a] sm:$0xff]
  %v2077 = vld [vmem:[#allocation2 + $0x204] sm:$0xff]
  %v2078 = vld [vmem:[#allocation2 + $0x20c] sm:$0xff]
  %v2079 = vld [vmem:[#allocation2 + $0x214] sm:$0xff]
  %v2080 = vld [vmem:[#allocation2 + $0x1d] sm:$0xff]
  %v2081 = vld [vmem:[#allocation2 + $0x25] sm:$0xff]
  %v2082 = vld [vmem:[#allocation2 + $0x2d] sm:$0xff]
  %v2083 = vld [vmem:[#allocation2 + $0x35] sm:$0xff]
  %v2084 = vld [vmem:[#allocation2 + $0x3d] sm:$0xff]
  %v2085 = vld [vmem:[#allocation2 + $0x45] sm:$0xff]
  %v2086 = vld [vmem:[#allocation2 + $0x4d] sm:$0xff]
  %v2087 = vld [vmem:[#allocation2 + $0x55] sm:$0xff]
  %v2088 = vld [vmem:[#allocation2 + $0x5d] sm:$0xff]
  %v2089 = vld [vmem:[#allocation2 + $0x65] sm:$0xff]
  %v2090 = vld [vmem:[#allocation2 + $0x6d] sm:$0xff]
  %v2091 = vld [vmem:[#allocation2 + $0x75] sm:$0xff]
  %v2092 = vld [vmem:[#allocation2 + $0x7d] sm:$0xff]
  %v2093 = vld [vmem:[#allocation2 + $0x85] sm:$0xff]
  %v2094 = vld [vmem:[#allocation2 + $0x8d] sm:$0xff]
  %v2095 = vld [vmem:[#allocation2 + $0x95] sm:$0xff]
  %v2096 = vld [vmem:[#allocation2 + $0x9d] sm:$0xff]
  %v2097 = vld [vmem:[#allocation2 + $0xa5] sm:$0xff]
  %v2098 = vld [vmem:[#allocation2 + $0xad] sm:$0xff]
  %v2099 = vld [vmem:[#allocation2 + $0xb5] sm:$0xff]
  %v2100 = vld [vmem:[#allocation2 + $0xbd] sm:$0xff]
  %v2101 = vld [vmem:[#allocation2 + $0xc5] sm:$0xff]
  %v2102 = vld [vmem:[#allocation2 + $0xcd] sm:$0xff]
  %v2103 = vld [vmem:[#allocation2 + $0xd5] sm:$0xff]
  %v2104 = vld [vmem:[#allocation2 + $0xdd] sm:$0xff]
  %v2105 = vld [vmem:[#allocation2 + $0xe5] sm:$0xff]
  %v2106 = vld [vmem:[#allocation2 + $0xed] sm:$0xff]
  %v2107 = vld [vmem:[#allocation2 + $0xf5] sm:$0xff]
  %v2108 = vld [vmem:[#allocation2 + $0xfd] sm:$0xff]
  %v2109 = vld [vmem:[#allocation2 + $0x105] sm:$0xff]
  %v2110 = vld [vmem:[#allocation2 + $0x10d] sm:$0xff]
  %v2111 = vld [vmem:[#allocation2 + $0x115] sm:$0xff]
  %v2112 = vld [vmem:[#allocation2 + $0x11d] sm:$0xff]
  %v2113 = vld [vmem:[#allocation2 + $0x125] sm:$0xff]
  %v2114 = vld [vmem:[#allocation2 + $0x12d] sm:$0xff]
  %v2115 = vld [vmem:[#allocation2 + $0x135] sm:$0xff]
  %v2116 = vld [vmem:[#allocation2 + $0x13d] sm:$0xff]
  %v2117 = vld [vmem:[#allocation2 + $0x145] sm:$0xff]
  %v2118 = vld [vmem:[#allocation2 + $0x14d] sm:$0xff]
  %v2119 = vld [vmem:[#allocation2 + $0x155] sm:$0xff]
  %v2120 = vld [vmem:[#allocation2 + $0x15d] sm:$0xff]
  %v2121 = vld [vmem:[#allocation2 + $0x165] sm:$0xff]
  %v2122 = vld [vmem:[#allocation2 + $0x16d] sm:$0xff]
  %v2123 = vld [vmem:[#allocation2 + $0x175] sm:$0xff]
  %v2124 = vld [vmem:[#allocation2 + $0x17d] sm:$0xff]
  %v2125 = vld [vmem:[#allocation2 + $0x185] sm:$0xff]
  %v2126 = vld [vmem:[#allocation2 + $0x18d] sm:$0xff]
  %v2127 = vld [vmem:[#allocation2 + $0x195] sm:$0xff]
  %v2128 = vld [vmem:[#allocation2 + $0x19d] sm:$0xff]
  %v2129 = vld [vmem:[#allocation2 + $0x1a5] sm:$0xff]
  %v2130 = vld [vmem:[#allocation2 + $0x1ad] sm:$0xff]
  %v2131 = vld [vmem:[#allocation2 + $0x1b5] sm:$0xff]
  %v2132 = vld [vmem:[#allocation2 + $0x1bd] sm:$0xff]
  %v2133 = vld [vmem:[#allocation2 + $0x1c5] sm:$0xff]
  %v2134 = vld [vmem:[#allocation2 + $0x1cd] sm:$0xff]
  %v2135 = vld [vmem:[#allocation2 + $0x1d5] sm:$0xff]
  %v2136 = vld [vmem:[#allocation2 + $0x1dd] sm:$0xff]
  %v2137 = vld [vmem:[#allocation2 + $0x1e5] sm:$0xff]
  %v2138 = vld [vmem:[#allocation2 + $0x1ed] sm:$0xff]
  %v2139 = vld [vmem:[#allocation2 + $0x1f5] sm:$0xff]
  %v2140 = vld [vmem:[#allocation2 + $0x1fd] sm:$0xff]
  %v2141 = vld [vmem:[#allocation2 + $0x205] sm:$0xff]
  %v2142 = vld [vmem:[#allocation2 + $0x20d] sm:$0xff]
  %v2143 = vld [vmem:[#allocation2 + $0x215] sm:$0xff]
  %v2144 = vld [vmem:[#allocation2 + $0x20e] sm:$0xff]
  %v2145 = vld [vmem:[#allocation2 + $0x216] sm:$0xff]
  %v2146 = vld [vmem:[#allocation2 + $0x20f] sm:$0xff]
  %v2147 = vld [vmem:[#allocation2 + $0x217] sm:$0xff]
  %v2148 = vld [vmem:[#allocation2 + $0x210] sm:$0xff]
  %v2149 = vld [vmem:[#allocation2 + $0x218] sm:$0xff]
  %v2150 = vld [vmem:[#allocation2 + $0x212] sm:$0xff]
  %v2151 = vld [vmem:[#allocation2 + $0x21a] sm:$0xff]
  %v2152 = vld [vmem:[#allocation2 + $0x222] sm:$0xff]
  %v2153 = vld [vmem:[#allocation2 + $0x203] sm:$0xff]
  %v2154 = vld [vmem:[#allocation2 + $0x20b] sm:$0xff]
  %v2155 = vld [vmem:[#allocation2 + $0x213] sm:$0xff]
  %v2156 = vld [vmem:[#allocation2 + $0x21b] sm:$0xff]
  %v2157 = vld [vmem:[#allocation2 + $0x223] sm:$0xff]
  %v2158 = vld [vmem:[#allocation2 + $0x21c] sm:$0xff]
  %v2159 = vld [vmem:[#allocation2 + $0x224] sm:$0xff]
  %v2160 = vld [vmem:[#allocation2 + $0x21d] sm:$0xff]
  %v2161 = vld [vmem:[#allocation2 + $0x225] sm:$0xff]
  %v2162 = vld [vmem:[#allocation2 + $0x21e] sm:$0xff]
  %v2163 = vld [vmem:[#allocation2 + $0x226] sm:$0xff]
  %v2164 = vld [vmem:[#allocation2 + $0x220] sm:$0xff]
  %v2165 = vld [vmem:[#allocation2 + $0x228] sm:$0xff]
  %v2166 = vld [vmem:[#allocation2 + $0x230] sm:$0xff]
  %v2167 = vld [vmem:[#allocation2 + $0x211] sm:$0xff]
  %v2168 = vld [vmem:[#allocation2 + $0x219] sm:$0xff]
  %v2169 = vld [vmem:[#allocation2 + $0x221] sm:$0xff]
  %v2170 = vld [vmem:[#allocation2 + $0x229] sm:$0xff]
  %v2171 = vld [vmem:[#allocation2 + $0x231] sm:$0xff]
  %v2172 = vld [vmem:[#allocation2 + $0x22a] sm:$0xff]
  %v2173 = vld [vmem:[#allocation2 + $0x232] sm:$0xff]
  %v2174 = vld [vmem:[#allocation2 + $0x22b] sm:$0xff]
  %v2175 = vld [vmem:[#allocation2 + $0x233] sm:$0xff]
  %v2176 = vld [vmem:[#allocation2 + $0x22c] sm:$0xff]
  %v2177 = vld [vmem:[#allocation2 + $0x234] sm:$0xff]
  %v2178 = vld [vmem:[%s3] sm:$0xff]
  %v2179 = vld [vmem:[%s3 + $0x8] sm:$0xff]
  %v2180 = vld [vmem:[%s3 + $0x10] sm:$0xff]
  %v2181 = vld [vmem:[%s3 + $0x18] sm:$0xff]
  %v2182 = vld [vmem:[%s3 + $0x20] sm:$0xff]
  %v2183 = vld [vmem:[%s3 + $0x28] sm:$0xff]
  %v2184 = vld [vmem:[%s3 + $0x30] sm:$0xff]
  %v2185 = vld [vmem:[%s3 + $0x38] sm:$0xff]
  %v2186 = vld [vmem:[%s3 + $0x40] sm:$0xff]
  %v2187 = vld [vmem:[%s3 + $0x48] sm:$0xff]
  %v2188 = vld [vmem:[%s3 + $0x50] sm:$0xff]
  %v2189 = vld [vmem:[%s3 + $0x58] sm:$0xff]
  %v2190 = vld [vmem:[%s3 + $0x60] sm:$0xff]
  %v2191 = vld [vmem:[%s3 + $0x68] sm:$0xff]
  %v2192 = vld [vmem:[%s3 + $0x70] sm:$0xff]
  %v2193 = vld [vmem:[%s3 + $0x78] sm:$0xff]
  %v2194 = vld [vmem:[%s3 + $0x80] sm:$0xff]
  %v2195 = vld [vmem:[%s3 + $0x88] sm:$0xff]
  %v2196 = vld [vmem:[%s3 + $0x90] sm:$0xff]
  %v2197 = vld [vmem:[%s3 + $0x98] sm:$0xff]
  %v2198 = vld [vmem:[%s3 + $0xa0] sm:$0xff]
  %v2199 = vld [vmem:[%s3 + $0xa8] sm:$0xff]
  %v2200 = vld [vmem:[%s3 + $0xb0] sm:$0xff]
  %v2201 = vld [vmem:[%s3 + $0xb8] sm:$0xff]
  %v2202 = vld [vmem:[%s3 + $0xc0] sm:$0xff]
  %v2203 = vld [vmem:[%s3 + $0xc8] sm:$0xff]
  %v2204 = vld [vmem:[%s3 + $0xd0] sm:$0xff]
  %v2205 = vld [vmem:[%s3 + $0xd8] sm:$0xff]
  %v2206 = vld [vmem:[%s3 + $0xe0] sm:$0xff]
  %v2207 = vld [vmem:[%s3 + $0xe8] sm:$0xff]
  %v2208 = vld [vmem:[%s3 + $0xf0] sm:$0xff]
  %v2209 = vld [vmem:[%s3 + $0xf8] sm:$0xff]
  %v2210 = vld [vmem:[%s3 + $0x100] sm:$0xff]
  %v2211 = vld [vmem:[%s3 + $0x108] sm:$0xff]
  %v2212 = vld [vmem:[%s3 + $0x110] sm:$0xff]
  %v2213 = vld [vmem:[%s3 + $0x118] sm:$0xff]
  %v2214 = vld [vmem:[%s3 + $0x120] sm:$0xff]
  %v2215 = vld [vmem:[%s3 + $0x128] sm:$0xff]
  %v2216 = vld [vmem:[%s3 + $0x130] sm:$0xff]
  %v2217 = vld [vmem:[%s3 + $0x138] sm:$0xff]
  %v2218 = vld [vmem:[%s3 + $0x140] sm:$0xff]
  %v2219 = vld [vmem:[%s3 + $0x148] sm:$0xff]
  %v2220 = vld [vmem:[%s3 + $0x150] sm:$0xff]
  %v2221 = vld [vmem:[%s3 + $0x158] sm:$0xff]
  %v2222 = vld [vmem:[%s3 + $0x160] sm:$0xff]
  %v2223 = vld [vmem:[%s3 + $0x168] sm:$0xff]
  %v2224 = vld [vmem:[%s3 + $0x170] sm:$0xff]
  %v2225 = vld [vmem:[%s3 + $0x178] sm:$0xff]
  %v2226 = vld [vmem:[%s3 + $0x180] sm:$0xff]
  %v2227 = vld [vmem:[%s3 + $0x188] sm:$0xff]
  %v2228 = vld [vmem:[%s3 + $0x190] sm:$0xff]
  %v2229 = vld [vmem:[%s3 + $0x198] sm:$0xff]
  %v2230 = vld [vmem:[%s3 + $0x1a0] sm:$0xff]
  %v2231 = vld [vmem:[%s3 + $0x1a8] sm:$0xff]
  %v2232 = vld [vmem:[%s3 + $0x1b0] sm:$0xff]
  %v2233 = vld [vmem:[%s3 + $0x1b8] sm:$0xff]
  %v2234 = vld [vmem:[%s3 + $0x1c0] sm:$0xff]
  %v2235 = vld [vmem:[%s3 + $0x1c8] sm:$0xff]
  %v2236 = vld [vmem:[%s3 + $0x1d0] sm:$0xff]
  %v2237 = vld [vmem:[%s3 + $0x1d8] sm:$0xff]
  %v2238 = vld [vmem:[%s3 + $0x1e0] sm:$0xff]
  %v2239 = vld [vmem:[%s3 + $0x1e8] sm:$0xff]
  %v2240 = vld [vmem:[%s3 + $0x1f0] sm:$0xff]
  %v2241 = vld [vmem:[%s3 + $0x1f8] sm:$0xff]
  %v2242 = vld [vmem:[%s3 + $0x200] sm:$0xff]
  %v2243 = vld [vmem:[%s3 + $0x208] sm:$0xff]
  %v2244 = vld [vmem:[%s3 + $0x210] sm:$0xff]
  %v2245 = vld [vmem:[%s3 + $0x218] sm:$0xff]
  %v2246 = vld [vmem:[%s3 + $0x220] sm:$0xff]
  %v2247 = vld [vmem:[%s3 + $0x228] sm:$0xff]
  %v2248 = vld [vmem:[%s3 + $0x230] sm:$0xff]
  %v2249 = vld [vmem:[%s3 + $0x238] sm:$0xff]
  %v2250 = vld [vmem:[%s3 + $0x240] sm:$0xff]
  %v2251 = vld [vmem:[%s3 + $0x248] sm:$0xff]
  %v2252 = vld [vmem:[%s3 + $0x250] sm:$0xff]
  %v2253 = vld [vmem:[%s3 + $0x258] sm:$0xff]
  %v2254 = vld [vmem:[%s3 + $0x260] sm:$0xff]
  %v2255 = vld [vmem:[%s3 + $0x268] sm:$0xff]
  %v2256 = vld [vmem:[%s3 + $0x270] sm:$0xff]
  %v2257 = vld [vmem:[%s3 + $0x278] sm:$0xff]
  %v2258 = vld [vmem:[%s3 + $0x280] sm:$0xff]
  %v2259 = vld [vmem:[%s3 + $0x288] sm:$0xff]
  %v2260 = vld [vmem:[%s3 + $0x290] sm:$0xff]
  %v2261 = vld [vmem:[%s3 + $0x298] sm:$0xff]
  %v2262 = vld [vmem:[%s3 + $0x2a0] sm:$0xff]
  %v2263 = vld [vmem:[%s3 + $0x2a8] sm:$0xff]
  %v2264 = vld [vmem:[%s3 + $0x2b0] sm:$0xff]
  %v2265 = vld [vmem:[%s3 + $0x2b8] sm:$0xff]
  %v2266 = vld [vmem:[%s3 + $0x2c0] sm:$0xff]
  %v2267 = vld [vmem:[%s3 + $0x2c8] sm:$0xff]
  %v2268 = vld [vmem:[%s3 + $0x2d0] sm:$0xff]
  %v2269 = vld [vmem:[%s3 + $0x2d8] sm:$0xff]
  %v2270 = vld [vmem:[%s3 + $0x2e0] sm:$0xff]
  %v2271 = vld [vmem:[%s3 + $0x2e8] sm:$0xff]
  %v2272 = vld [vmem:[%s3 + $0x2f0] sm:$0xff]
  %v2273 = vld [vmem:[%s3 + $0x2f8] sm:$0xff]
  %v2274 = vld [vmem:[%s3 + $0x300] sm:$0xff]
  %v2275 = vld [vmem:[%s3 + $0x308] sm:$0xff]
  %v2276 = vld [vmem:[%s3 + $0x310] sm:$0xff]
  %v2277 = vld [vmem:[%s3 + $0x318] sm:$0xff]
  %v2278 = vld [vmem:[%s3 + $0x320] sm:$0xff]
  %v2279 = vld [vmem:[%s3 + $0x328] sm:$0xff]
  %v2280 = vld [vmem:[%s3 + $0x330] sm:$0xff]
  %v2281 = vld [vmem:[%s3 + $0x338] sm:$0xff]
  %v2282 = vld [vmem:[%s3 + $0x340] sm:$0xff]
  %v2283 = vld [vmem:[%s3 + $0x348] sm:$0xff]
  %v2284 = vld [vmem:[%s3 + $0x350] sm:$0xff]
  %v2285 = vld [vmem:[%s3 + $0x358] sm:$0xff]
  %v2286 = vld [vmem:[%s3 + $0x360] sm:$0xff]
  %v2287 = vld [vmem:[%s3 + $0x368] sm:$0xff]
  %v2288 = vld [vmem:[%s3 + $0x370] sm:$0xff]
  %v2289 = vld [vmem:[%s3 + $0x378] sm:$0xff]
  %v2290 = vld [vmem:[%s3 + $0x380] sm:$0xff]
  %v2291 = vld [vmem:[%s3 + $0x388] sm:$0xff]
  %v2292 = vld [vmem:[%s3 + $0x390] sm:$0xff]
  %v2293 = vld [vmem:[%s3 + $0x398] sm:$0xff]
  %v2294 = vld [vmem:[%s3 + $0x3a0] sm:$0xff]
  %v2295 = vld [vmem:[%s3 + $0x3a8] sm:$0xff]
  %v2296 = vld [vmem:[%s3 + $0x3b0] sm:$0xff]
  %v2297 = vld [vmem:[%s3 + $0x3b8] sm:$0xff]
  %v2298 = vld [vmem:[%s3 + $0x3c0] sm:$0xff]
  %v2299 = vld [vmem:[%s3 + $0x3c8] sm:$0xff]
  %v2300 = vld [vmem:[%s3 + $0x3d0] sm:$0xff]
  %v2301 = vld [vmem:[%s3 + $0x3d8] sm:$0xff]
  %v2302 = vld [vmem:[%s3 + $0x3e0] sm:$0xff]
  %v2303 = vld [vmem:[%s3 + $0x3e8] sm:$0xff]
  %v2304 = vld [vmem:[%s3 + $0x3f0] sm:$0xff]
  %v2305 = vld [vmem:[%s3 + $0x3f8] sm:$0xff]
  %v2306 = vld [vmem:[%s3 + $0x400] sm:$0xff]
  %v2307 = vld [vmem:[%s3 + $0x408] sm:$0xff]
  %v2308 = vld [vmem:[%s3 + $0x410] sm:$0xff]
  %v2309 = vld [vmem:[%s3 + $0x418] sm:$0xff]
  %v2310 = vld [vmem:[%s3 + $0x420] sm:$0xff]
  %v2311 = vld [vmem:[%s3 + $0x428] sm:$0xff]
  %v2312 = vld [vmem:[%s3 + $0x430] sm:$0xff]
  %v2313 = vld [vmem:[%s3 + $0x438] sm:$0xff]
  %v2314 = vld [vmem:[%s3 + $0x440] sm:$0xff]
  %v2315 = vld [vmem:[%s3 + $0x448] sm:$0xff]
  %v2316 = vld [vmem:[%s3 + $0x450] sm:$0xff]
  %v2317 = vld [vmem:[%s3 + $0x458] sm:$0xff]
  %v2318 = vld [vmem:[%s3 + $0x460] sm:$0xff]
  %v2319 = vld [vmem:[%s3 + $0x468] sm:$0xff]
  %v2320 = vld [vmem:[%s3 + $0x470] sm:$0xff]
  %v2321 = vld [vmem:[%s3 + $0x478] sm:$0xff]
  %v2322 = vld [vmem:[%s3 + $0x480] sm:$0xff]
  %v2323 = vld [vmem:[%s3 + $0x488] sm:$0xff]
  %v2324 = vld [vmem:[%s3 + $0x490] sm:$0xff]
  %v2325 = vld [vmem:[%s3 + $0x498] sm:$0xff]
  %v2326 = vld [vmem:[%s3 + $0x4a0] sm:$0xff]
  %v2327 = vld [vmem:[%s3 + $0x4a8] sm:$0xff]
  %v2328 = vld [vmem:[%s3 + $0x4b0] sm:$0xff]
  %v2329 = vld [vmem:[%s3 + $0x4b8] sm:$0xff]
  %v2330 = vld [vmem:[%s3 + $0x4c0] sm:$0xff]
  %v2331 = vld [vmem:[%s3 + $0x4c8] sm:$0xff]
  %v2332 = vld [vmem:[%s3 + $0x4d0] sm:$0xff]
  %v2333 = vld [vmem:[%s3 + $0x4d8] sm:$0xff]
  %v2334 = vld [vmem:[%s3 + $0x4e0] sm:$0xff]
  %v2335 = vld [vmem:[%s3 + $0x4e8] sm:$0xff]
  %v2336 = vld [vmem:[%s3 + $0x4f0] sm:$0xff]
  %v2337 = vld [vmem:[%s3 + $0x4f8] sm:$0xff]
  %v2338 = vld [vmem:[%s3 + $0x500] sm:$0xff]
  %v2339 = vld [vmem:[%s3 + $0x508] sm:$0xff]
  %v2340 = vld [vmem:[%s3 + $0x510] sm:$0xff]
  %v2341 = vld [vmem:[%s3 + $0x518] sm:$0xff]
  %v2342 = vld [vmem:[%s3 + $0x520] sm:$0xff]
  %v2343 = vld [vmem:[%s3 + $0x528] sm:$0xff]
  %v2344 = vld [vmem:[%s3 + $0x530] sm:$0xff]
  %v2345 = vld [vmem:[%s3 + $0x538] sm:$0xff]
  %v2346 = vld [vmem:[%s3 + $0x540] sm:$0xff]
  %v2347 = vld [vmem:[%s3 + $0x548] sm:$0xff]
  %v2348 = vld [vmem:[%s3 + $0x550] sm:$0xff]
  %v2349 = vld [vmem:[%s3 + $0x558] sm:$0xff]
  %v2350 = vld [vmem:[%s3 + $0x560] sm:$0xff]
  %v2351 = vld [vmem:[%s3 + $0x568] sm:$0xff]
  %v2352 = vld [vmem:[%s3 + $0x570] sm:$0xff]
  %v2353 = vld [vmem:[%s3 + $0x578] sm:$0xff]
  %v2354 = vld [vmem:[%s3 + $0x580] sm:$0xff]
  %v2355 = vld [vmem:[%s3 + $0x588] sm:$0xff]
  %v2356 = vld [vmem:[%s3 + $0x590] sm:$0xff]
  %v2357 = vld [vmem:[%s3 + $0x598] sm:$0xff]
  %v2358 = vld [vmem:[%s3 + $0x5a0] sm:$0xff]
  %v2359 = vld [vmem:[%s3 + $0x5a8] sm:$0xff]
  %v2360 = vld [vmem:[%s3 + $0x5b0] sm:$0xff]
  %v2361 = vld [vmem:[%s3 + $0x5b8] sm:$0xff]
  %v2362 = vld [vmem:[%s3 + $0x5c0] sm:$0xff]
  %v2363 = vld [vmem:[%s3 + $0x5c8] sm:$0xff]
  %v2364 = vld [vmem:[%s3 + $0x5d0] sm:$0xff]
  %v2365 = vld [vmem:[%s3 + $0x5d8] sm:$0xff]
  %v2366 = vld [vmem:[%s3 + $0x5e0] sm:$0xff]
  %v2367 = vld [vmem:[%s3 + $0x5e8] sm:$0xff]
  %v2368 = vld [vmem:[%s3 + $0x5f0] sm:$0xff]
  %v2369 = vld [vmem:[%s3 + $0x5f8] sm:$0xff]
  %v2370 = vld [vmem:[%s3 + $0x600] sm:$0xff]
  %v2371 = vld [vmem:[%s3 + $0x608] sm:$0xff]
  %v2372 = vld [vmem:[%s3 + $0x610] sm:$0xff]
  %v2373 = vld [vmem:[%s3 + $0x618] sm:$0xff]
  %v2374 = vld [vmem:[%s3 + $0x620] sm:$0xff]
  %v2375 = vld [vmem:[%s3 + $0x628] sm:$0xff]
  %v2376 = vld [vmem:[%s3 + $0x630] sm:$0xff]
  %v2377 = vld [vmem:[%s3 + $0x638] sm:$0xff]
  %v2378 = vld [vmem:[%s3 + $0x640] sm:$0xff]
  %v2379 = vld [vmem:[%s3 + $0x648] sm:$0xff]
  %v2380 = vld [vmem:[%s3 + $0x650] sm:$0xff]
  %v2381 = vld [vmem:[%s3 + $0x658] sm:$0xff]
  %v2382 = vld [vmem:[%s3 + $0x660] sm:$0xff]
  %v2383 = vld [vmem:[%s3 + $0x668] sm:$0xff]
  %v2384 = vld [vmem:[%s3 + $0x670] sm:$0xff]
  %v2385 = vld [vmem:[%s3 + $0x678] sm:$0xff]
  %v2386 = vld [vmem:[%s3 + $0x680] sm:$0xff]
  %v2387 = vld [vmem:[%s3 + $0x688] sm:$0xff]
  %v2388 = vld [vmem:[%s3 + $0x690] sm:$0xff]
  %v2389 = vld [vmem:[%s3 + $0x698] sm:$0xff]
  %v2390 = vld [vmem:[%s3 + $0x6a0] sm:$0xff]
  %v2391 = vld [vmem:[%s3 + $0x6a8] sm:$0xff]
  %v2392 = vld [vmem:[%s3 + $0x6b0] sm:$0xff]
  %v2393 = vld [vmem:[%s3 + $0x6b8] sm:$0xff]
  %v2394 = vld [vmem:[%s3 + $0x6c0] sm:$0xff]
  %v2395 = vld [vmem:[%s3 + $0x6c8] sm:$0xff]
  %v2396 = vld [vmem:[%s3 + $0x6d0] sm:$0xff]
  %v2397 = vld [vmem:[%s3 + $0x6d8] sm:$0xff]
  %v2398 = vld [vmem:[%s3 + $0x6e0] sm:$0xff]
  %v2399 = vld [vmem:[%s3 + $0x6e8] sm:$0xff]
  %v2400 = vld [vmem:[%s3 + $0x6f0] sm:$0xff]
  %v2401 = vld [vmem:[%s3 + $0x6f8] sm:$0xff]
  %v2402 = vld [vmem:[%s3 + $0x700] sm:$0xff]
  %v2403 = vld [vmem:[%s3 + $0x708] sm:$0xff]
  %v2404 = vld [vmem:[%s3 + $0x710] sm:$0xff]
  %v2405 = vld [vmem:[%s3 + $0x718] sm:$0xff]
  %v2406 = vld [vmem:[%s3 + $0x720] sm:$0xff]
  %v2407 = vld [vmem:[%s3 + $0x728] sm:$0xff]
  %v2408 = vld [vmem:[%s3 + $0x730] sm:$0xff]
  %v2409 = vld [vmem:[%s3 + $0x738] sm:$0xff]
  %v2410 = vld [vmem:[%s3 + $0x740] sm:$0xff]
  %v2411 = vld [vmem:[%s3 + $0x748] sm:$0xff]
  %v2412 = vld [vmem:[%s3 + $0x750] sm:$0xff]
  %v2413 = vld [vmem:[%s3 + $0x758] sm:$0xff]
  %v2414 = vld [vmem:[%s3 + $0x760] sm:$0xff]
  %v2415 = vld [vmem:[%s3 + $0x768] sm:$0xff]
  %v2416 = vld [vmem:[%s3 + $0x770] sm:$0xff]
  %v2417 = vld [vmem:[%s3 + $0x778] sm:$0xff]
  %v2418 = vld [vmem:[%s3 + $0x780] sm:$0xff]
  %v2419 = vld [vmem:[%s3 + $0x788] sm:$0xff]
  %v2420 = vld [vmem:[%s3 + $0x790] sm:$0xff]
  %v2421 = vld [vmem:[%s3 + $0x798] sm:$0xff]
  %v2422 = vld [vmem:[%s3 + $0x7a0] sm:$0xff]
  %v2423 = vld [vmem:[%s3 + $0x7a8] sm:$0xff]
  %v2424 = vld [vmem:[%s3 + $0x7b0] sm:$0xff]
  %v2425 = vld [vmem:[%s3 + $0x7b8] sm:$0xff]
  %v2426 = vld [vmem:[%s3 + $0x7c0] sm:$0xff]
  %v2427 = vld [vmem:[%s3 + $0x7c8] sm:$0xff]
  %v2428 = vld [vmem:[%s3 + $0x7d0] sm:$0xff]
  %v2429 = vld [vmem:[%s3 + $0x7d8] sm:$0xff]
  %v2430 = vld [vmem:[%s3 + $0x7e0] sm:$0xff]
  %v2431 = vld [vmem:[%s3 + $0x7e8] sm:$0xff]
  %v2432 = vld [vmem:[%s3 + $0x7f0] sm:$0xff]
  %v2433 = vld [vmem:[%s3 + $0x7f8] sm:$0xff]
  %v2434 = vld [vmem:[%s3 + $0x800] sm:$0xff]
  %v2435 = vld [vmem:[%s3 + $0x808] sm:$0xff]
  %v2436 = vld [vmem:[%s3 + $0x810] sm:$0xff]
  %v2437 = vld [vmem:[%s3 + $0x818] sm:$0xff]
  %v2438 = vld [vmem:[%s3 + $0x820] sm:$0xff]
  %v2439 = vld [vmem:[%s3 + $0x828] sm:$0xff]
  %v2440 = vld [vmem:[%s3 + $0x830] sm:$0xff]
  %v2441 = vld [vmem:[%s3 + $0x838] sm:$0xff]
  %v2442 = vld [vmem:[%s3 + $0x840] sm:$0xff]
  %v2443 = vld [vmem:[%s3 + $0x848] sm:$0xff]
  %v2444 = vld [vmem:[%s3 + $0x850] sm:$0xff]
  %v2445 = vld [vmem:[%s3 + $0x858] sm:$0xff]
  %v2446 = vld [vmem:[%s3 + $0x860] sm:$0xff]
  %v2447 = vld [vmem:[%s3 + $0x868] sm:$0xff]
  %v2448 = vld [vmem:[%s3 + $0x870] sm:$0xff]
  %v2449 = vld [vmem:[%s3 + $0x878] sm:$0xff]
  %v2450 = vld [vmem:[%s3 + $0x880] sm:$0xff]
  %v2451 = vld [vmem:[%s3 + $0x888] sm:$0xff]
  %v2452 = vld [vmem:[%s3 + $0x890] sm:$0xff]
  %v2453 = vld [vmem:[%s3 + $0x898] sm:$0xff]
  %v2454 = vld [vmem:[%s3 + $0x8a0] sm:$0xff]
  %v2455 = vld [vmem:[%s3 + $0x8a8] sm:$0xff]
  %v2456 = vld [vmem:[%s3 + $0x8b0] sm:$0xff]
  %v2457 = vld [vmem:[%s3 + $0x8b8] sm:$0xff]
  %v2458 = vld [vmem:[%s3 + $0x8c0] sm:$0xff]
  %v2459 = vld [vmem:[%s3 + $0x8c8] sm:$0xff]
  %v2460 = vld [vmem:[%s3 + $0x8d0] sm:$0xff]
  %v2461 = vld [vmem:[%s3 + $0x8d8] sm:$0xff]
  %v2462 = vld [vmem:[%s3 + $0x8e0] sm:$0xff]
  %v2463 = vld [vmem:[%s3 + $0x8e8] sm:$0xff]
  %v2464 = vld [vmem:[%s3 + $0x8f0] sm:$0xff]
  %v2465 = vld [vmem:[%s3 + $0x8f8] sm:$0xff]
  %v2466 = vld [vmem:[%s3 + $0x900] sm:$0xff]
  %v2467 = vld [vmem:[%s3 + $0x908] sm:$0xff]
  %v2468 = vld [vmem:[%s3 + $0x910] sm:$0xff]
  %v2469 = vld [vmem:[%s3 + $0x918] sm:$0xff]
  %v2470 = vld [vmem:[%s3 + $0x920] sm:$0xff]
  %v2471 = vld [vmem:[%s3 + $0x928] sm:$0xff]
  %v2472 = vld [vmem:[%s3 + $0x930] sm:$0xff]
  %v2473 = vld [vmem:[%s3 + $0x938] sm:$0xff]
  %v2474 = vld [vmem:[%s3 + $0x940] sm:$0xff]
  %v2475 = vld [vmem:[%s3 + $0x948] sm:$0xff]
  %v2476 = vld [vmem:[%s3 + $0x950] sm:$0xff]
  %v2477 = vld [vmem:[%s3 + $0x958] sm:$0xff]
  %v2478 = vld [vmem:[%s3 + $0x960] sm:$0xff]
  %v2479 = vld [vmem:[%s3 + $0x968] sm:$0xff]
  %v2480 = vld [vmem:[%s3 + $0x970] sm:$0xff]
  %v2481 = vld [vmem:[%s3 + $0x978] sm:$0xff]
  %v2482 = vld [vmem:[%s3 + $0x980] sm:$0xff]
  %v2483 = vld [vmem:[%s3 + $0x988] sm:$0xff]
  %v2484 = vld [vmem:[%s3 + $0x990] sm:$0xff]
  %v2485 = vld [vmem:[%s3 + $0x998] sm:$0xff]
  %v2486 = vld [vmem:[%s3 + $0x9a0] sm:$0xff]
  %v2487 = vld [vmem:[%s3 + $0x9a8] sm:$0xff]
  %v2488 = vld [vmem:[%s3 + $0x9b0] sm:$0xff]
  %v2489 = vld [vmem:[%s3 + $0x9b8] sm:$0xff]
  %v2490 = vld [vmem:[%s3 + $0x9c0] sm:$0xff]
  %v2491 = vld [vmem:[%s3 + $0x9c8] sm:$0xff]
  %v2492 = vld [vmem:[%s3 + $0x9d0] sm:$0xff]
  %v2493 = vld [vmem:[%s3 + $0x9d8] sm:$0xff]
  %v2494 = vld [vmem:[%s3 + $0x9e0] sm:$0xff]
  %v2495 = vld [vmem:[%s3 + $0x9e8] sm:$0xff]
  %v2496 = vld [vmem:[%s3 + $0x9f0] sm:$0xff]
  %v2497 = vld [vmem:[%s3 + $0x9f8] sm:$0xff]
  %v2498 = vld [vmem:[%s3 + $0xa00] sm:$0xff]
  %v2499 = vld [vmem:[%s3 + $0xa08] sm:$0xff]
  %v2500 = vld [vmem:[%s3 + $0xa10] sm:$0xff]
  %v2501 = vld [vmem:[%s3 + $0xa18] sm:$0xff]
  %v2502 = vld [vmem:[%s3 + $0xa20] sm:$0xff]
  %v2503 = vld [vmem:[%s3 + $0xa28] sm:$0xff]
  %v2504 = vld [vmem:[%s3 + $0xa30] sm:$0xff]
  %v2505 = vld [vmem:[%s3 + $0xa38] sm:$0xff]
  %v2506 = vld [vmem:[%s3 + $0xa40] sm:$0xff]
  %v2507 = vld [vmem:[%s3 + $0xa48] sm:$0xff]
  %v2508 = vld [vmem:[%s3 + $0xa50] sm:$0xff]
  %v2509 = vld [vmem:[%s3 + $0xa58] sm:$0xff]
  %v2510 = vld [vmem:[%s3 + $0xa60] sm:$0xff]
  %v2511 = vld [vmem:[%s3 + $0xa68] sm:$0xff]
  %v2512 = vld [vmem:[%s3 + $0xa70] sm:$0xff]
  %v2513 = vld [vmem:[%s3 + $0xa78] sm:$0xff]
  %v2514 = vld [vmem:[%s3 + $0xa80] sm:$0xff]
  %v2515 = vld [vmem:[%s3 + $0xa88] sm:$0xff]
  %v2516 = vld [vmem:[%s3 + $0xa90] sm:$0xff]
  %v2517 = vld [vmem:[%s3 + $0xa98] sm:$0xff]
  %v2518 = vld [vmem:[%s3 + $0xaa0] sm:$0xff]
  %v2519 = vld [vmem:[%s3 + $0xaa8] sm:$0xff]
  %v2520 = vld [vmem:[%s3 + $0xab0] sm:$0xff]
  %v2521 = vld [vmem:[%s3 + $0xab8] sm:$0xff]
  %v2522 = vld [vmem:[%s3 + $0xac0] sm:$0xff]
  %v2523 = vld [vmem:[%s3 + $0xac8] sm:$0xff]
  %v2524 = vld [vmem:[%s3 + $0xad0] sm:$0xff]
  %v2525 = vld [vmem:[%s3 + $0xad8] sm:$0xff]
  %v2526 = vld [vmem:[%s3 + $0xae0] sm:$0xff]
  %v2527 = vld [vmem:[%s3 + $0xae8] sm:$0xff]
  %v2528 = vld [vmem:[%s3 + $0xaf0] sm:$0xff]
  %v2529 = vld [vmem:[%s3 + $0xaf8] sm:$0xff]
  %v2530 = vld [vmem:[%s3 + $0xb00] sm:$0xff]
  %v2531 = vld [vmem:[%s3 + $0xb08] sm:$0xff]
  %v2532 = vld [vmem:[%s3 + $0xb10] sm:$0xff]
  %v2533 = vld [vmem:[%s3 + $0xb18] sm:$0xff]
  %v2534 = vld [vmem:[%s3 + $0xb20] sm:$0xff]
  %v2535 = vld [vmem:[%s3 + $0xb28] sm:$0xff]
  %v2536 = vld [vmem:[%s3 + $0xb30] sm:$0xff]
  %v2537 = vld [vmem:[%s3 + $0xb38] sm:$0xff]
  %v2538 = vld [vmem:[%s3 + $0xb40] sm:$0xff]
  %v2539 = vld [vmem:[%s3 + $0xb48] sm:$0xff]
  %v2540 = vld [vmem:[%s3 + $0xb50] sm:$0xff]
  %v2541 = vld [vmem:[%s3 + $0xb58] sm:$0xff]
  %v2542 = vld [vmem:[%s3 + $0xb60] sm:$0xff]
  %v2543 = vld [vmem:[%s3 + $0xb68] sm:$0xff]
  %v2544 = vld [vmem:[%s3 + $0xb70] sm:$0xff]
  %v2545 = vld [vmem:[%s3 + $0xb78] sm:$0xff]
  %v2546 = vld [vmem:[%s3 + $0xb80] sm:$0xff]
  %v2547 = vld [vmem:[%s3 + $0xb88] sm:$0xff]
  %v2548 = vld [vmem:[%s3 + $0xb90] sm:$0xff]
  %v2549 = vld [vmem:[%s3 + $0xb98] sm:$0xff]
  %v2550 = vld [vmem:[%s3 + $0xba0] sm:$0xff]
  %v2551 = vld [vmem:[%s3 + $0xba8] sm:$0xff]
  %v2552 = vld [vmem:[%s3 + $0xbb0] sm:$0xff]
  %v2553 = vld [vmem:[%s3 + $0xbb8] sm:$0xff]
  %v2554 = vld [vmem:[%s3 + $0xbc0] sm:$0xff]
  %v2555 = vld [vmem:[%s3 + $0xbc8] sm:$0xff]
  %v2556 = vld [vmem:[%s3 + $0xbd0] sm:$0xff]
  %v2557 = vld [vmem:[%s3 + $0xbd8] sm:$0xff]
  %v2558 = vld [vmem:[%s3 + $0xbe0] sm:$0xff]
  %v2559 = vld [vmem:[%s3 + $0xbe8] sm:$0xff]
  %v2560 = vld [vmem:[%s3 + $0xbf0] sm:$0xff]
  %v2561 = vld [vmem:[%s3 + $0xbf8] sm:$0xff]
  %v2562 = vld [vmem:[%s3 + $0xc00] sm:$0xff]
  %v2563 = vld [vmem:[%s3 + $0xc08] sm:$0xff]
  %v2564 = vld [vmem:[%s3 + $0xc10] sm:$0xff]
  %v2565 = vld [vmem:[%s3 + $0xc18] sm:$0xff]
  %v2566 = vld [vmem:[%s3 + $0xc20] sm:$0xff]
  %v2567 = vld [vmem:[%s3 + $0xc28] sm:$0xff]
  %v2568 = vld [vmem:[%s3 + $0xc30] sm:$0xff]
  %v2569 = vld [vmem:[%s3 + $0xc38] sm:$0xff]
  %v2570 = vld [vmem:[%s3 + $0xc40] sm:$0xff]
  %v2571 = vld [vmem:[%s3 + $0xc48] sm:$0xff]
  %v2572 = vld [vmem:[%s3 + $0xc50] sm:$0xff]
  %v2573 = vld [vmem:[%s3 + $0xc58] sm:$0xff]
  %v2574 = vld [vmem:[%s3 + $0xc60] sm:$0xff]
  %v2575 = vld [vmem:[%s3 + $0xc68] sm:$0xff]
  %v2576 = vld [vmem:[%s3 + $0xc70] sm:$0xff]
  %v2577 = vld [vmem:[%s3 + $0xc78] sm:$0xff]
  %2578 = vmatprep.subr.mxu0 0.0
  %2579 = vmatpush1.msra.mxu0 %v2178
  %2580 = vmatprep.subr.mxu0 0.0
  %2581 = vmatpush1.msra.mxu0 %v2179
  %2582 = vmatprep.subr.mxu0 0.0
  %2583 = vmatpush1.msra.mxu0 %v2180
  %2584 = vmatprep.subr.mxu0 0.0
  %2585 = vmatpush1.msra.mxu0 %v2181
  %2586 = vmatprep.subr.mxu0 0.0
  %2587 = vmatpush1.msra.mxu0 %v2182
  %2588 = vmatprep.subr.mxu0 0.0
  %2589 = vmatpush1.msra.mxu0 %v2183
  %2590 = vmatprep.subr.mxu0 0.0
  %2591 = vmatpush1.msra.mxu0 %v2184
  %2592 = vmatprep.subr.mxu0 0.0
  %2593 = vmatpush1.msra.mxu0 %v2185
  %2594 = vmatprep.subr.mxu0 0.0
  %2595 = vmatpush1.msra.mxu0 %v2186
  %2596 = vmatprep.subr.mxu0 0.0
  %2597 = vmatpush1.msra.mxu0 %v2187
  %2598 = vmatprep.subr.mxu0 0.0
  %2599 = vmatpush1.msra.mxu0 %v2188
  %2600 = vmatprep.subr.mxu0 0.0
  %2601 = vmatpush1.msra.mxu0 %v2189
  %2602 = vmatprep.subr.mxu0 0.0
  %2603 = vmatpush1.msra.mxu0 %v2190
  %2604 = vmatprep.subr.mxu0 0.0
  %2605 = vmatpush1.msra.mxu0 %v2191
  %2606 = vmatprep.subr.mxu0 0.0
  %2607 = vmatpush1.msra.mxu0 %v2192
  %2608 = vmatprep.subr.mxu0 0.0
  %2609 = vmatpush1.msra.mxu0 %v2193
  %2610 = vmatprep.subr.mxu0 0.0
  %2611 = vmatpush1.msra.mxu0 %v2194
  %2612 = vmatprep.subr.mxu0 0.0
  %2613 = vmatpush1.msra.mxu0 %v2195
  %2614 = vmatprep.subr.mxu0 0.0
  %2615 = vmatpush1.msra.mxu0 %v2196
  %2616 = vmatprep.subr.mxu0 0.0
  %2617 = vmatpush1.msra.mxu0 %v2197
  %2618 = vmatprep.subr.mxu0 0.0
  %2619 = vmatpush1.msra.mxu0 %v2198
  %2620 = vmatprep.subr.mxu0 0.0
  %2621 = vmatpush1.msra.mxu0 %v2199
  %2622 = vmatprep.subr.mxu0 0.0
  %2623 = vmatpush1.msra.mxu0 %v2200
  %2624 = vmatprep.subr.mxu0 0.0
  %2625 = vmatpush1.msra.mxu0 %v2201
  %2626 = vmatprep.subr.mxu0 0.0
  %2627 = vmatpush1.msra.mxu0 %v2202
  %2628 = vmatprep.subr.mxu0 0.0
  %2629 = vmatpush1.msra.mxu0 %v2203
  %2630 = vmatprep.subr.mxu0 0.0
  %2631 = vmatpush1.msra.mxu0 %v2204
  %2632 = vmatprep.subr.mxu0 0.0
  %2633 = vmatpush1.msra.mxu0 %v2205
  %2634 = vmatprep.subr.mxu0 0.0
  %2635 = vmatpush1.msra.mxu0 %v2206
  %2636 = vmatprep.subr.mxu0 0.0
  %2637 = vmatpush1.msra.mxu0 %v2207
  %2638 = vmatprep.subr.mxu0 0.0
  %2639 = vmatpush1.msra.mxu0 %v2208
  %2640 = vmatprep.subr.mxu0 0.0
  %2641 = vmatpush1.msra.mxu0 %v2209
  %2642 = vmatprep.mubr.f32.mxu0 %v1687
  %2643 = vmatmul.mubr.f32.gmra.mrb[0].mxu0 %v1623
  %v2644 = vpop.f32.mrb[0].mxu0
  %v2645 = vadd.f32 0.0, %v2644
  %v2646 = vpop.f32.mrb[0].mxu0
  %2647 = vmatprep.mubr.f32.mxu0 %v1688
  %2648 = vmatmul.mubr.f32.gmra.mrb[0].mxu0 %v1624
  %v2649 = vpop.f32.mrb[0].mxu0
  %v2650 = vadd.f32 0.0, %v2649
  %v2651 = vpop.f32.mrb[0].mxu0
  %2652 = vmatprep.mubr.f32.mxu0 %v1689
  %2653 = vmatmul.mubr.f32.gmra.mrb[0].mxu0 %v1625
  %v2654 = vpop.f32.mrb[0].mxu0
  %v2655 = vadd.f32 0.0, %v2654
  %v2656 = vpop.f32.mrb[0].mxu0
  %2657 = vmatprep.mubr.f32.mxu0 %v1690
  %2658 = vmatmul.mubr.f32.gmra.mrb[0].mxu0 %v1626
  %v2659 = vpop.f32.mrb[0].mxu0
  %v2660 = vadd.f32 0.0, %v2659
  %v2661 = vpop.f32.mrb[0].mxu0
  %2662 = vmatprep.mubr.f32.mxu0 %v1691
  %2663 = vmatmul.mubr.f32.gmra.mrb[0].mxu0 %v1627
  %v2664 = vpop.f32.mrb[0].mxu0
  %v2665 = vadd.f32 0.0, %v2664
  %v2666 = vpop.f32.mrb[0].mxu0
  %2667 = vmatprep.mubr.f32.mxu0 %v1692
  %2668 = vmatmul.mubr.f32.gmra.mrb[0].mxu0 %v1628
  %v2669 = vpop.f32.mrb[0].mxu0
  %v2670 = vadd.f32 0.0, %v2669
  %v2671 = vpop.f32.mrb[0].mxu0
  %2672 = vmatprep.mubr.f32.mxu0 %v1693
  %2673 = vmatmul.mubr.f32.gmra.mrb[0].mxu0 %v1629
  %v2674 = vpop.f32.mrb[0].mxu0
  %v2675 = vadd.f32 0.0, %v2674
  %v2676 = vpop.f32.mrb[0].mxu0
  %2677 = vmatprep.mubr.f32.mxu0 %v1694
  %2678 = vmatmul.mubr.f32.gmra.mrb[0].mxu0 %v1630
  %v2679 = vpop.f32.mrb[0].mxu0
  %v2680 = vadd.f32 0.0, %v2679
  %v2681 = vpop.f32.mrb[0].mxu0
  %2682 = vmatprep.mubr.f32.mxu0 %v1695
  %2683 = vmatmul.mubr.f32.gmra.mrb[0].mxu0 %v1631
  %v2684 = vpop.f32.mrb[0].mxu0
  %v2685 = vadd.f32 0.0, %v2684
  %v2686 = vpop.f32.mrb[0].mxu0
  %2687 = vmatprep.mubr.f32.mxu0 %v1696
  %2688 = vmatmul.mubr.f32.gmra.mrb[0].mxu0 %v1632
  %v2689 = vpop.f32.mrb[0].mxu0
  %v2690 = vadd.f32 0.0, %v2689
  %v2691 = vpop.f32.mrb[0].mxu0
  %2692 = vmatprep.mubr.f32.mxu0 %v1697
  %2693 = vmatmul.mubr.f32.gmra.mrb[0].mxu0 %v1633
  %v2694 = vpop.f32.mrb[0].mxu0
  %v2695 = vadd.f32 0.0, %v2694
  %v2696 = vpop.f32.mrb[0].mxu0
  %2697 = vmatprep.mubr.f32.mxu0 %v1698
  %2698 = vmatmul.mubr.f32.gmra.mrb[0].mxu0 %v1634
  %v2699 = vpop.f32.mrb[0].mxu0
  %v2700 = vadd.f32 0.0, %v2699
  %v2701 = vpop.f32.mrb[0].mxu0
  %2702 = vmatprep.mubr.f32.mxu0 %v1699
  %2703 = vmatmul.mubr.f32.gmra.mrb[0].mxu0 %v1635
  %v2704 = vpop.f32.mrb[0].mxu0
  %v2705 = vadd.f32 0.0, %v2704
  %v2706 = vpop.f32.mrb[0].mxu0
  %2707 = vmatprep.mubr.f32.mxu0 %v1700
  %2708 = vmatmul.mubr.f32.gmra.mrb[0].mxu0 %v1636
  %v2709 = vpop.f32.mrb[0].mxu0
  %v2710 = vadd.f32 0.0, %v2709
  %v2711 = vpop.f32.mrb[0].mxu0
  %2712 = vmatprep.mubr.f32.mxu0 %v1701
  %2713 = vmatmul.mubr.f32.gmra.mrb[0].mxu0 %v1637
  %v2714 = vpop.f32.mrb[0].mxu0
  %v2715 = vadd.f32 0.0, %v2714
  %v2716 = vpop.f32.mrb[0].mxu0
  %2717 = vmatprep.mubr.f32.mxu0 %v1702
  %2718 = vmatmul.mubr.f32.gmra.mrb[0].mxu0 %v1638
  %v2719 = vpop.f32.mrb[0].mxu0
  %v2720 = vadd.f32 0.0, %v2719
  %v2721 = vpop.f32.mrb[0].mxu0
  %2722 = vmatprep.mubr.f32.mxu0 %v1703
  %2723 = vmatmul.mubr.f32.gmra.mrb[0].mxu0 %v1639
  %v2724 = vpop.f32.mrb[0].mxu0
  %v2725 = vadd.f32 0.0, %v2724
  %v2726 = vpop.f32.mrb[0].mxu0
  %2727 = vmatprep.mubr.f32.mxu0 %v1704
  %2728 = vmatmul.mubr.f32.gmra.mrb[0].mxu0 %v1640
  %v2729 = vpop.f32.mrb[0].mxu0
  %v2730 = vadd.f32 0.0, %v2729
  %v2731 = vpop.f32.mrb[0].mxu0
  %2732 = vmatprep.mubr.f32.mxu0 %v1705
  %2733 = vmatmul.mubr.f32.gmra.mrb[0].mxu0 %v1641
  %v2734 = vpop.f32.mrb[0].mxu0
  %v2735 = vadd.f32 0.0, %v2734
  %v2736 = vpop.f32.mrb[0].mxu0
  %2737 = vmatprep.mubr.f32.mxu0 %v1706
  %2738 = vmatmul.mubr.f32.gmra.mrb[0].mxu0 %v1642
  %v2739 = vpop.f32.mrb[0].mxu0
  %v2740 = vadd.f32 0.0, %v2739
  %v2741 = vpop.f32.mrb[0].mxu0
  %2742 = vmatprep.mubr.f32.mxu0 %v1707
  %2743 = vmatmul.mubr.f32.gmra.mrb[0].mxu0 %v1643
  %v2744 = vpop.f32.mrb[0].mxu0
  %v2745 = vadd.f32 0.0, %v2744
  %v2746 = vpop.f32.mrb[0].mxu0
  %2747 = vmatprep.mubr.f32.mxu0 %v1708
  %2748 = vmatmul.mubr.f32.gmra.mrb[0].mxu0 %v1644
  %v2749 = vpop.f32.mrb[0].mxu0
  %v2750 = vadd.f32 0.0, %v2749
  %v2751 = vpop.f32.mrb[0].mxu0
  %2752 = vmatprep.mubr.f32.mxu0 %v1709
  %2753 = vmatmul.mubr.f32.gmra.mrb[0].mxu0 %v1645
  %v2754 = vpop.f32.mrb[0].mxu0
  %v2755 = vadd.f32 0.0, %v2754
  %v2756 = vpop.f32.mrb[0].mxu0
  %2757 = vmatprep.mubr.f32.mxu0 %v1710
  %2758 = vmatmul.mubr.f32.gmra.mrb[0].mxu0 %v1646
  %v2759 = vpop.f32.mrb[0].mxu0
  %v2760 = vadd.f32 0.0, %v2759
  %v2761 = vpop.f32.mrb[0].mxu0
  %2762 = vmatprep.mubr.f32.mxu0 %v1711
  %2763 = vmatmul.mubr.f32.gmra.mrb[0].mxu0 %v1647
  %v2764 = vpop.f32.mrb[0].mxu0
  %v2765 = vadd.f32 0.0, %v2764
  %v2766 = vpop.f32.mrb[0].mxu0
  %2767 = vmatprep.mubr.f32.mxu0 %v1712
  %2768 = vmatmul.mubr.f32.gmra.mrb[0].mxu0 %v1648
  %v2769 = vpop.f32.mrb[0].mxu0
  %v2770 = vadd.f32 0.0, %v2769
  %v2771 = vpop.f32.mrb[0].mxu0
  %2772 = vmatprep.mubr.f32.mxu0 %v1713
  %2773 = vmatmul.mubr.f32.gmra.mrb[0].mxu0 %v1649
  %v2774 = vpop.f32.mrb[0].mxu0
  %v2775 = vadd.f32 0.0, %v2774
  %v2776 = vpop.f32.mrb[0].mxu0
  %2777 = vmatprep.mubr.f32.mxu0 %v1714
  %2778 = vmatmul.mubr.f32.gmra.mrb[0].mxu0 %v1650
  %v2779 = vpop.f32.mrb[0].mxu0
  %v2780 = vadd.f32 0.0, %v2779
  %v2781 = vpop.f32.mrb[0].mxu0
  %2782 = vmatprep.mubr.f32.mxu0 %v1715
  %2783 = vmatmul.mubr.f32.gmra.mrb[0].mxu0 %v1651
  %v2784 = vpop.f32.mrb[0].mxu0
  %v2785 = vadd.f32 0.0, %v2784
  %v2786 = vpop.f32.mrb[0].mxu0
  %2787 = vmatprep.mubr.f32.mxu0 %v1716
  %2788 = vmatmul.mubr.f32.gmra.mrb[0].mxu0 %v1652
  %v2789 = vpop.f32.mrb[0].mxu0
  %v2790 = vadd.f32 0.0, %v2789
  %v2791 = vpop.f32.mrb[0].mxu0
  %2792 = vmatprep.mubr.f32.mxu0 %v1717
  %2793 = vmatmul.mubr.f32.gmra.mrb[0].mxu0 %v1653
  %v2794 = vpop.f32.mrb[0].mxu0
  %v2795 = vadd.f32 0.0, %v2794
  %v2796 = vpop.f32.mrb[0].mxu0
  %2797 = vmatprep.mubr.f32.mxu0 %v1718
  %2798 = vmatmul.mubr.f32.gmra.mrb[0].mxu0 %v1654
  %v2799 = vpop.f32.mrb[0].mxu0
  %v2800 = vadd.f32 0.0, %v2799
  %v2801 = vpop.f32.mrb[0].mxu0
  %2802 = vmatprep.mubr.f32.mxu0 %v1719
  %2803 = vmatmul.mubr.f32.gmra.mrb[0].mxu0 %v1655
  %v2804 = vpop.f32.mrb[0].mxu0
  %v2805 = vadd.f32 0.0, %v2804
  %v2806 = vpop.f32.mrb[0].mxu0
  %2807 = vmatprep.mubr.f32.mxu0 %v1720
  %2808 = vmatmul.mubr.f32.gmra.mrb[0].mxu0 %v1656
  %v2809 = vpop.f32.mrb[0].mxu0
  %v2810 = vadd.f32 0.0, %v2809
  %v2811 = vpop.f32.mrb[0].mxu0
  %2812 = vmatprep.mubr.f32.mxu0 %v1721
  %2813 = vmatmul.mubr.f32.gmra.mrb[0].mxu0 %v1657
  %v2814 = vpop.f32.mrb[0].mxu0
  %v2815 = vadd.f32 0.0, %v2814
  %v2816 = vpop.f32.mrb[0].mxu0
  %2817 = vmatprep.mubr.f32.mxu0 %v1722
  %2818 = vmatmul.mubr.f32.gmra.mrb[0].mxu0 %v1658
  %v2819 = vpop.f32.mrb[0].mxu0
  %v2820 = vadd.f32 0.0, %v2819
  %v2821 = vpop.f32.mrb[0].mxu0
  %2822 = vmatprep.mubr.f32.mxu0 %v1723
  %2823 = vmatmul.mubr.f32.gmra.mrb[0].mxu0 %v1659
  %v2824 = vpop.f32.mrb[0].mxu0
  %v2825 = vadd.f32 0.0, %v2824
  %v2826 = vpop.f32.mrb[0].mxu0
  %2827 = vmatprep.mubr.f32.mxu0 %v1724
  %2828 = vmatmul.mubr.f32.gmra.mrb[0].mxu0 %v1660
  %v2829 = vpop.f32.mrb[0].mxu0
  %v2830 = vadd.f32 0.0, %v2829
  %v2831 = vpop.f32.mrb[0].mxu0
  %2832 = vmatprep.mubr.f32.mxu0 %v1725
  %2833 = vmatmul.mubr.f32.gmra.mrb[0].mxu0 %v1661
  %v2834 = vpop.f32.mrb[0].mxu0
  %v2835 = vadd.f32 0.0, %v2834
  %v2836 = vpop.f32.mrb[0].mxu0
  %2837 = vmatprep.mubr.f32.mxu0 %v1726
  %2838 = vmatmul.mubr.f32.gmra.mrb[0].mxu0 %v1662
  %v2839 = vpop.f32.mrb[0].mxu0
  %v2840 = vadd.f32 0.0, %v2839
  %v2841 = vpop.f32.mrb[0].mxu0
  %2842 = vmatprep.mubr.f32.mxu0 %v1727
  %2843 = vmatmul.mubr.f32.gmra.mrb[0].mxu0 %v1663
  %v2844 = vpop.f32.mrb[0].mxu0
  %v2845 = vadd.f32 0.0, %v2844
  %v2846 = vpop.f32.mrb[0].mxu0
  %2847 = vmatprep.mubr.f32.mxu0 %v1728
  %2848 = vmatmul.mubr.f32.gmra.mrb[0].mxu0 %v1664
  %v2849 = vpop.f32.mrb[0].mxu0
  %v2850 = vadd.f32 0.0, %v2849
  %v2851 = vpop.f32.mrb[0].mxu0
  %2852 = vmatprep.mubr.f32.mxu0 %v1729
  %2853 = vmatmul.mubr.f32.gmra.mrb[0].mxu0 %v1665
  %v2854 = vpop.f32.mrb[0].mxu0
  %v2855 = vadd.f32 0.0, %v2854
  %v2856 = vpop.f32.mrb[0].mxu0
  %2857 = vmatprep.mubr.f32.mxu0 %v1730
  %2858 = vmatmul.mubr.f32.gmra.mrb[0].mxu0 %v1666
  %v2859 = vpop.f32.mrb[0].mxu0
  %v2860 = vadd.f32 0.0, %v2859
  %v2861 = vpop.f32.mrb[0].mxu0
  %2862 = vmatprep.mubr.f32.mxu0 %v1731
  %2863 = vmatmul.mubr.f32.gmra.mrb[0].mxu0 %v1667
  %v2864 = vpop.f32.mrb[0].mxu0
  %v2865 = vadd.f32 0.0, %v2864
  %v2866 = vpop.f32.mrb[0].mxu0
  %2867 = vmatprep.mubr.f32.mxu0 %v1732
  %2868 = vmatmul.mubr.f32.gmra.mrb[0].mxu0 %v1668
  %v2869 = vpop.f32.mrb[0].mxu0
  %v2870 = vadd.f32 0.0, %v2869
  %v2871 = vpop.f32.mrb[0].mxu0
  %2872 = vmatprep.mubr.f32.mxu0 %v1733
  %2873 = vmatmul.mubr.f32.gmra.mrb[0].mxu0 %v1669
  %v2874 = vpop.f32.mrb[0].mxu0
  %v2875 = vadd.f32 0.0, %v2874
  %v2876 = vpop.f32.mrb[0].mxu0
  %2877 = vmatprep.mubr.f32.mxu0 %v1734
  %2878 = vmatmul.mubr.f32.gmra.mrb[0].mxu0 %v1670
  %v2879 = vpop.f32.mrb[0].mxu0
  %v2880 = vadd.f32 0.0, %v2879
  %v2881 = vpop.f32.mrb[0].mxu0
  %2882 = vmatprep.mubr.f32.mxu0 %v1735
  %2883 = vmatmul.mubr.f32.gmra.mrb[0].mxu0 %v1671
  %v2884 = vpop.f32.mrb[0].mxu0
  %v2885 = vadd.f32 0.0, %v2884
  %v2886 = vpop.f32.mrb[0].mxu0
  %2887 = vmatprep.mubr.f32.mxu0 %v1736
  %2888 = vmatmul.mubr.f32.gmra.mrb[0].mxu0 %v1672
  %v2889 = vpop.f32.mrb[0].mxu0
  %v2890 = vadd.f32 0.0, %v2889
  %v2891 = vpop.f32.mrb[0].mxu0
  %2892 = vmatprep.mubr.f32.mxu0 %v1737
  %2893 = vmatmul.mubr.f32.gmra.mrb[0].mxu0 %v1673
  %v2894 = vpop.f32.mrb[0].mxu0
  %v2895 = vadd.f32 0.0, %v2894
  %v2896 = vpop.f32.mrb[0].mxu0
  %2897 = vmatprep.mubr.f32.mxu0 %v1738
  %2898 = vmatmul.mubr.f32.gmra.mrb[0].mxu0 %v1674
  %v2899 = vpop.f32.mrb[0].mxu0
  %v2900 = vadd.f32 0.0, %v2899
  %v2901 = vpop.f32.mrb[0].mxu0
  %2902 = vmatprep.mubr.f32.mxu0 %v1739
  %2903 = vmatmul.mubr.f32.gmra.mrb[0].mxu0 %v1675
  %v2904 = vpop.f32.mrb[0].mxu0
  %v2905 = vadd.f32 0.0, %v2904
  %v2906 = vpop.f32.mrb[0].mxu0
  %2907 = vmatprep.mubr.f32.mxu0 %v1740
  %2908 = vmatmul.mubr.f32.gmra.mrb[0].mxu0 %v1676
  %v2909 = vpop.f32.mrb[0].mxu0
  %v2910 = vadd.f32 0.0, %v2909
  %v2911 = vpop.f32.mrb[0].mxu0
  %2912 = vmatprep.mubr.f32.mxu0 %v1741
  %2913 = vmatmul.mubr.f32.gmra.mrb[0].mxu0 %v1677
  %v2914 = vpop.f32.mrb[0].mxu0
  %v2915 = vadd.f32 0.0, %v2914
  %v2916 = vpop.f32.mrb[0].mxu0
  %2917 = vmatprep.mubr.f32.mxu0 %v1742
  %2918 = vmatmul.mubr.f32.gmra.mrb[0].mxu0 %v1678
  %v2919 = vpop.f32.mrb[0].mxu0
  %v2920 = vadd.f32 0.0, %v2919
  %v2921 = vpop.f32.mrb[0].mxu0
  %2922 = vmatprep.mubr.f32.mxu0 %v1743
  %2923 = vmatmul.mubr.f32.gmra.mrb[0].mxu0 %v1679
  %v2924 = vpop.f32.mrb[0].mxu0
  %v2925 = vadd.f32 0.0, %v2924
  %v2926 = vpop.f32.mrb[0].mxu0
  %2927 = vmatprep.mubr.f32.mxu0 %v1744
  %2928 = vmatmul.mubr.f32.gmra.mrb[0].mxu0 %v1680
  %v2929 = vpop.f32.mrb[0].mxu0
  %v2930 = vadd.f32 0.0, %v2929
  %v2931 = vpop.f32.mrb[0].mxu0
  %2932 = vmatprep.mubr.f32.mxu0 %v1745
  %2933 = vmatmul.mubr.f32.gmra.mrb[0].mxu0 %v1681
  %v2934 = vpop.f32.mrb[0].mxu0
  %v2935 = vadd.f32 0.0, %v2934
  %v2936 = vpop.f32.mrb[0].mxu0
  %2937 = vmatprep.mubr.f32.mxu0 %v1746
  %2938 = vmatmul.mubr.f32.gmra.mrb[0].mxu0 %v1682
  %v2939 = vpop.f32.mrb[0].mxu0
  %v2940 = vadd.f32 0.0, %v2939
  %v2941 = vpop.f32.mrb[0].mxu0
  %2942 = vmatprep.mubr.f32.mxu0 %v1747
  %2943 = vmatmul.mubr.f32.gmra.mrb[0].mxu0 %v1683
  %v2944 = vpop.f32.mrb[0].mxu0
  %v2945 = vadd.f32 0.0, %v2944
  %v2946 = vpop.f32.mrb[0].mxu0
  %2947 = vmatprep.mubr.f32.mxu0 %v1748
  %2948 = vmatmul.mubr.f32.gmra.mrb[0].mxu0 %v1684
  %v2949 = vpop.f32.mrb[0].mxu0
  %v2950 = vadd.f32 0.0, %v2949
  %v2951 = vpop.f32.mrb[0].mxu0
  %2952 = vmatprep.mubr.f32.mxu0 %v1749
  %2953 = vmatmul.mubr.f32.gmra.mrb[0].mxu0 %v1685
  %v2954 = vpop.f32.mrb[0].mxu0
  %v2955 = vadd.f32 0.0, %v2954
  %v2956 = vpop.f32.mrb[0].mxu0
  %2957 = vmatprep.mubr.f32.mxu0 %v1750
  %2958 = vmatmul.mubr.f32.gmra.mrb[0].mxu0 %v1686
  %v2959 = vpop.f32.mrb[0].mxu0
  %v2960 = vadd.f32 0.0, %v2959
  %v2961 = vpop.f32.mrb[0].mxu0
  %2962 = vdwg.mxu0
  %2963 = vmatprep.subr.mxu0 0.0
  %2964 = vmatpush1.msra.mxu0 %v2210
  %2965 = vmatprep.subr.mxu0 0.0
  %2966 = vmatpush1.msra.mxu0 %v2211
  %2967 = vmatprep.subr.mxu0 0.0
  %2968 = vmatpush1.msra.mxu0 %v2212
  %2969 = vmatprep.subr.mxu0 0.0
  %2970 = vmatpush1.msra.mxu0 %v2213
  %2971 = vmatprep.subr.mxu0 0.0
  %2972 = vmatpush1.msra.mxu0 %v2214
  %2973 = vmatprep.subr.mxu0 0.0
  %2974 = vmatpush1.msra.mxu0 %v2215
  %2975 = vmatprep.subr.mxu0 0.0
  %2976 = vmatpush1.msra.mxu0 %v2216
  %2977 = vmatprep.subr.mxu0 0.0
  %2978 = vmatpush1.msra.mxu0 %v2217
  %2979 = vmatprep.subr.mxu0 0.0
  %2980 = vmatpush1.msra.mxu0 %v2218
  %2981 = vmatprep.subr.mxu0 0.0
  %2982 = vmatpush1.msra.mxu0 %v2219
  %2983 = vmatprep.subr.mxu0 0.0
  %2984 = vmatpush1.msra.mxu0 %v2220
  %2985 = vmatprep.subr.mxu0 0.0
  %2986 = vmatpush1.msra.mxu0 %v2221
  %2987 = vmatprep.subr.mxu0 0.0
  %2988 = vmatpush1.msra.mxu0 %v2222
  %2989 = vmatprep.subr.mxu0 0.0
  %2990 = vmatpush1.msra.mxu0 %v2223
  %2991 = vmatprep.subr.mxu0 0.0
  %2992 = vmatpush1.msra.mxu0 %v2224
  %2993 = vmatprep.subr.mxu0 0.0
  %2994 = vmatpush1.msra.mxu0 %v2225
  %2995 = vmatprep.subr.mxu0 0.0
  %2996 = vmatpush1.msra.mxu0 %v2226
  %2997 = vmatprep.subr.mxu0 0.0
  %2998 = vmatpush1.msra.mxu0 %v2227
  %2999 = vmatprep.subr.mxu0 0.0
  %3000 = vmatpush1.msra.mxu0 %v2228
  %3001 = vmatprep.subr.mxu0 0.0
  %3002 = vmatpush1.msra.mxu0 %v2229
  %3003 = vmatprep.subr.mxu0 0.0
  %3004 = vmatpush1.msra.mxu0 %v2230
  %3005 = vmatprep.subr.mxu0 0.0
  %3006 = vmatpush1.msra.mxu0 %v2231
  %3007 = vmatprep.subr.mxu0 0.0
  %3008 = vmatpush1.msra.mxu0 %v2232
  %3009 = vmatprep.subr.mxu0 0.0
  %3010 = vmatpush1.msra.mxu0 %v2233
  %3011 = vmatprep.subr.mxu0 0.0
  %3012 = vmatpush1.msra.mxu0 %v2234
  %3013 = vmatprep.subr.mxu0 0.0
  %3014 = vmatpush1.msra.mxu0 %v2235
  %3015 = vmatprep.subr.mxu0 0.0
  %3016 = vmatpush1.msra.mxu0 %v2236
  %3017 = vmatprep.subr.mxu0 0.0
  %3018 = vmatpush1.msra.mxu0 %v2237
  %3019 = vmatprep.subr.mxu0 0.0
  %3020 = vmatpush1.msra.mxu0 %v2238
  %3021 = vmatprep.subr.mxu0 0.0
  %3022 = vmatpush1.msra.mxu0 %v2239
  %3023 = vmatprep.subr.mxu0 0.0
  %3024 = vmatpush1.msra.mxu0 %v2240
  %3025 = vmatprep.subr.mxu0 0.0
  %3026 = vmatpush1.msra.mxu0 %v2241
  %3027 = vmatprep.mubr.f32.mxu0 %v1815
  %3028 = vmatmul.mubr.f32.gmra.mrb[0].mxu0 %v1751
  %v3029 = vpop.f32.mrb[0].mxu0
  %v3030 = vadd.f32 %v2645, %v3029
  %v3031 = vpop.f32.mrb[0].mxu0
  %3032 = vmatprep.mubr.f32.mxu0 %v1816
  %3033 = vmatmul.mubr.f32.gmra.mrb[0].mxu0 %v1752
  %v3034 = vpop.f32.mrb[0].mxu0
  %v3035 = vadd.f32 %v2650, %v3034
  %v3036 = vpop.f32.mrb[0].mxu0
  %3037 = vmatprep.mubr.f32.mxu0 %v1817
  %3038 = vmatmul.mubr.f32.gmra.mrb[0].mxu0 %v1753
  %v3039 = vpop.f32.mrb[0].mxu0
  %v3040 = vadd.f32 %v2655, %v3039
  %v3041 = vpop.f32.mrb[0].mxu0
  %3042 = vmatprep.mubr.f32.mxu0 %v1818
  %3043 = vmatmul.mubr.f32.gmra.mrb[0].mxu0 %v1754
  %v3044 = vpop.f32.mrb[0].mxu0
  %v3045 = vadd.f32 %v2660, %v3044
  %v3046 = vpop.f32.mrb[0].mxu0
  %3047 = vmatprep.mubr.f32.mxu0 %v1819
  %3048 = vmatmul.mubr.f32.gmra.mrb[0].mxu0 %v1755
  %v3049 = vpop.f32.mrb[0].mxu0
  %v3050 = vadd.f32 %v2665, %v3049
  %v3051 = vpop.f32.mrb[0].mxu0
  %3052 = vmatprep.mubr.f32.mxu0 %v1820
  %3053 = vmatmul.mubr.f32.gmra.mrb[0].mxu0 %v1756
  %v3054 = vpop.f32.mrb[0].mxu0
  %v3055 = vadd.f32 %v2670, %v3054
  %v3056 = vpop.f32.mrb[0].mxu0
  %3057 = vmatprep.mubr.f32.mxu0 %v1821
  %3058 = vmatmul.mubr.f32.gmra.mrb[0].mxu0 %v1757
  %v3059 = vpop.f32.mrb[0].mxu0
  %v3060 = vadd.f32 %v2675, %v3059
  %v3061 = vpop.f32.mrb[0].mxu0
  %3062 = vmatprep.mubr.f32.mxu0 %v1822
  %3063 = vmatmul.mubr.f32.gmra.mrb[0].mxu0 %v1758
  %v3064 = vpop.f32.mrb[0].mxu0
  %v3065 = vadd.f32 %v2680, %v3064
  %v3066 = vpop.f32.mrb[0].mxu0
  %3067 = vmatprep.mubr.f32.mxu0 %v1823
  %3068 = vmatmul.mubr.f32.gmra.mrb[0].mxu0 %v1759
  %v3069 = vpop.f32.mrb[0].mxu0
  %v3070 = vadd.f32 %v2685, %v3069
  %v3071 = vpop.f32.mrb[0].mxu0
  %3072 = vmatprep.mubr.f32.mxu0 %v1824
  %3073 = vmatmul.mubr.f32.gmra.mrb[0].mxu0 %v1760
  %v3074 = vpop.f32.mrb[0].mxu0
  %v3075 = vadd.f32 %v2690, %v3074
  %v3076 = vpop.f32.mrb[0].mxu0
  %3077 = vmatprep.mubr.f32.mxu0 %v1825
  %3078 = vmatmul.mubr.f32.gmra.mrb[0].mxu0 %v1761
  %v3079 = vpop.f32.mrb[0].mxu0
  %v3080 = vadd.f32 %v2695, %v3079
  %v3081 = vpop.f32.mrb[0].mxu0
  %3082 = vmatprep.mubr.f32.mxu0 %v1826
  %3083 = vmatmul.mubr.f32.gmra.mrb[0].mxu0 %v1762
  %v3084 = vpop.f32.mrb[0].mxu0
  %v3085 = vadd.f32 %v2700, %v3084
  %v3086 = vpop.f32.mrb[0].mxu0
  %3087 = vmatprep.mubr.f32.mxu0 %v1827
  %3088 = vmatmul.mubr.f32.gmra.mrb[0].mxu0 %v1763
  %v3089 = vpop.f32.mrb[0].mxu0
  %v3090 = vadd.f32 %v2705, %v3089
  %v3091 = vpop.f32.mrb[0].mxu0
  %3092 = vmatprep.mubr.f32.mxu0 %v1828
  %3093 = vmatmul.mubr.f32.gmra.mrb[0].mxu0 %v1764
  %v3094 = vpop.f32.mrb[0].mxu0
  %v3095 = vadd.f32 %v2710, %v3094
  %v3096 = vpop.f32.mrb[0].mxu0
  %3097 = vmatprep.mubr.f32.mxu0 %v1829
  %3098 = vmatmul.mubr.f32.gmra.mrb[0].mxu0 %v1765
  %v3099 = vpop.f32.mrb[0].mxu0
  %v3100 = vadd.f32 %v2715, %v3099
  %v3101 = vpop.f32.mrb[0].mxu0
  %3102 = vmatprep.mubr.f32.mxu0 %v1830
  %3103 = vmatmul.mubr.f32.gmra.mrb[0].mxu0 %v1766
  %v3104 = vpop.f32.mrb[0].mxu0
  %v3105 = vadd.f32 %v2720, %v3104
  %v3106 = vpop.f32.mrb[0].mxu0
  %3107 = vmatprep.mubr.f32.mxu0 %v1831
  %3108 = vmatmul.mubr.f32.gmra.mrb[0].mxu0 %v1767
  %v3109 = vpop.f32.mrb[0].mxu0
  %v3110 = vadd.f32 %v2725, %v3109
  %v3111 = vpop.f32.mrb[0].mxu0
  %3112 = vmatprep.mubr.f32.mxu0 %v1832
  %3113 = vmatmul.mubr.f32.gmra.mrb[0].mxu0 %v1768
  %v3114 = vpop.f32.mrb[0].mxu0
  %v3115 = vadd.f32 %v2730, %v3114
  %v3116 = vpop.f32.mrb[0].mxu0
  %3117 = vmatprep.mubr.f32.mxu0 %v1833
  %3118 = vmatmul.mubr.f32.gmra.mrb[0].mxu0 %v1769
  %v3119 = vpop.f32.mrb[0].mxu0
  %v3120 = vadd.f32 %v2735, %v3119
  %v3121 = vpop.f32.mrb[0].mxu0
  %3122 = vmatprep.mubr.f32.mxu0 %v1834
  %3123 = vmatmul.mubr.f32.gmra.mrb[0].mxu0 %v1770
  %v3124 = vpop.f32.mrb[0].mxu0
  %v3125 = vadd.f32 %v2740, %v3124
  %v3126 = vpop.f32.mrb[0].mxu0
  %3127 = vmatprep.mubr.f32.mxu0 %v1835
  %3128 = vmatmul.mubr.f32.gmra.mrb[0].mxu0 %v1771
  %v3129 = vpop.f32.mrb[0].mxu0
  %v3130 = vadd.f32 %v2745, %v3129
  %v3131 = vpop.f32.mrb[0].mxu0
  %3132 = vmatprep.mubr.f32.mxu0 %v1836
  %3133 = vmatmul.mubr.f32.gmra.mrb[0].mxu0 %v1772
  %v3134 = vpop.f32.mrb[0].mxu0
  %v3135 = vadd.f32 %v2750, %v3134
  %v3136 = vpop.f32.mrb[0].mxu0
  %3137 = vmatprep.mubr.f32.mxu0 %v1837
  %3138 = vmatmul.mubr.f32.gmra.mrb[0].mxu0 %v1773
  %v3139 = vpop.f32.mrb[0].mxu0
  %v3140 = vadd.f32 %v2755, %v3139
  %v3141 = vpop.f32.mrb[0].mxu0
  %3142 = vmatprep.mubr.f32.mxu0 %v1838
  %3143 = vmatmul.mubr.f32.gmra.mrb[0].mxu0 %v1774
  %v3144 = vpop.f32.mrb[0].mxu0
  %v3145 = vadd.f32 %v2760, %v3144
  %v3146 = vpop.f32.mrb[0].mxu0
  %3147 = vmatprep.mubr.f32.mxu0 %v1839
  %3148 = vmatmul.mubr.f32.gmra.mrb[0].mxu0 %v1775
  %v3149 = vpop.f32.mrb[0].mxu0
  %v3150 = vadd.f32 %v2765, %v3149
  %v3151 = vpop.f32.mrb[0].mxu0
  %3152 = vmatprep.mubr.f32.mxu0 %v1840
  %3153 = vmatmul.mubr.f32.gmra.mrb[0].mxu0 %v1776
  %v3154 = vpop.f32.mrb[0].mxu0
  %v3155 = vadd.f32 %v2770, %v3154
  %v3156 = vpop.f32.mrb[0].mxu0
  %3157 = vmatprep.mubr.f32.mxu0 %v1841
  %3158 = vmatmul.mubr.f32.gmra.mrb[0].mxu0 %v1777
  %v3159 = vpop.f32.mrb[0].mxu0
  %v3160 = vadd.f32 %v2775, %v3159
  %v3161 = vpop.f32.mrb[0].mxu0
  %3162 = vmatprep.mubr.f32.mxu0 %v1842
  %3163 = vmatmul.mubr.f32.gmra.mrb[0].mxu0 %v1778
  %v3164 = vpop.f32.mrb[0].mxu0
  %v3165 = vadd.f32 %v2780, %v3164
  %v3166 = vpop.f32.mrb[0].mxu0
  %3167 = vmatprep.mubr.f32.mxu0 %v1843
  %3168 = vmatmul.mubr.f32.gmra.mrb[0].mxu0 %v1779
  %v3169 = vpop.f32.mrb[0].mxu0
  %v3170 = vadd.f32 %v2785, %v3169
  %v3171 = vpop.f32.mrb[0].mxu0
  %3172 = vmatprep.mubr.f32.mxu0 %v1844
  %3173 = vmatmul.mubr.f32.gmra.mrb[0].mxu0 %v1780
  %v3174 = vpop.f32.mrb[0].mxu0
  %v3175 = vadd.f32 %v2790, %v3174
  %v3176 = vpop.f32.mrb[0].mxu0
  %3177 = vmatprep.mubr.f32.mxu0 %v1845
  %3178 = vmatmul.mubr.f32.gmra.mrb[0].mxu0 %v1781
  %v3179 = vpop.f32.mrb[0].mxu0
  %v3180 = vadd.f32 %v2795, %v3179
  %v3181 = vpop.f32.mrb[0].mxu0
  %3182 = vmatprep.mubr.f32.mxu0 %v1846
  %3183 = vmatmul.mubr.f32.gmra.mrb[0].mxu0 %v1782
  %v3184 = vpop.f32.mrb[0].mxu0
  %v3185 = vadd.f32 %v2800, %v3184
  %v3186 = vpop.f32.mrb[0].mxu0
  %3187 = vmatprep.mubr.f32.mxu0 %v1847
  %3188 = vmatmul.mubr.f32.gmra.mrb[0].mxu0 %v1783
  %v3189 = vpop.f32.mrb[0].mxu0
  %v3190 = vadd.f32 %v2805, %v3189
  %v3191 = vpop.f32.mrb[0].mxu0
  %3192 = vmatprep.mubr.f32.mxu0 %v1848
  %3193 = vmatmul.mubr.f32.gmra.mrb[0].mxu0 %v1784
  %v3194 = vpop.f32.mrb[0].mxu0
  %v3195 = vadd.f32 %v2810, %v3194
  %v3196 = vpop.f32.mrb[0].mxu0
  %3197 = vmatprep.mubr.f32.mxu0 %v1849
  %3198 = vmatmul.mubr.f32.gmra.mrb[0].mxu0 %v1785
  %v3199 = vpop.f32.mrb[0].mxu0
  %v3200 = vadd.f32 %v2815, %v3199
  %v3201 = vpop.f32.mrb[0].mxu0
  %3202 = vmatprep.mubr.f32.mxu0 %v1850
  %3203 = vmatmul.mubr.f32.gmra.mrb[0].mxu0 %v1786
  %v3204 = vpop.f32.mrb[0].mxu0
  %v3205 = vadd.f32 %v2820, %v3204
  %v3206 = vpop.f32.mrb[0].mxu0
  %3207 = vmatprep.mubr.f32.mxu0 %v1851
  %3208 = vmatmul.mubr.f32.gmra.mrb[0].mxu0 %v1787
  %v3209 = vpop.f32.mrb[0].mxu0
  %v3210 = vadd.f32 %v2825, %v3209
  %v3211 = vpop.f32.mrb[0].mxu0
  %3212 = vmatprep.mubr.f32.mxu0 %v1852
  %3213 = vmatmul.mubr.f32.gmra.mrb[0].mxu0 %v1788
  %v3214 = vpop.f32.mrb[0].mxu0
  %v3215 = vadd.f32 %v2830, %v3214
  %v3216 = vpop.f32.mrb[0].mxu0
  %3217 = vmatprep.mubr.f32.mxu0 %v1853
  %3218 = vmatmul.mubr.f32.gmra.mrb[0].mxu0 %v1789
  %v3219 = vpop.f32.mrb[0].mxu0
  %v3220 = vadd.f32 %v2835, %v3219
  %v3221 = vpop.f32.mrb[0].mxu0
  %3222 = vmatprep.mubr.f32.mxu0 %v1854
  %3223 = vmatmul.mubr.f32.gmra.mrb[0].mxu0 %v1790
  %v3224 = vpop.f32.mrb[0].mxu0
  %v3225 = vadd.f32 %v2840, %v3224
  %v3226 = vpop.f32.mrb[0].mxu0
  %3227 = vmatprep.mubr.f32.mxu0 %v1855
  %3228 = vmatmul.mubr.f32.gmra.mrb[0].mxu0 %v1791
  %v3229 = vpop.f32.mrb[0].mxu0
  %v3230 = vadd.f32 %v2845, %v3229
  %v3231 = vpop.f32.mrb[0].mxu0
  %3232 = vmatprep.mubr.f32.mxu0 %v1856
  %3233 = vmatmul.mubr.f32.gmra.mrb[0].mxu0 %v1792
  %v3234 = vpop.f32.mrb[0].mxu0
  %v3235 = vadd.f32 %v2850, %v3234
  %v3236 = vpop.f32.mrb[0].mxu0
  %3237 = vmatprep.mubr.f32.mxu0 %v1857
  %3238 = vmatmul.mubr.f32.gmra.mrb[0].mxu0 %v1793
  %v3239 = vpop.f32.mrb[0].mxu0
  %v3240 = vadd.f32 %v2855, %v3239
  %v3241 = vpop.f32.mrb[0].mxu0
  %3242 = vmatprep.mubr.f32.mxu0 %v1858
  %3243 = vmatmul.mubr.f32.gmra.mrb[0].mxu0 %v1794
  %v3244 = vpop.f32.mrb[0].mxu0
  %v3245 = vadd.f32 %v2860, %v3244
  %v3246 = vpop.f32.mrb[0].mxu0
  %3247 = vmatprep.mubr.f32.mxu0 %v1859
  %3248 = vmatmul.mubr.f32.gmra.mrb[0].mxu0 %v1795
  %v3249 = vpop.f32.mrb[0].mxu0
  %v3250 = vadd.f32 %v2865, %v3249
  %v3251 = vpop.f32.mrb[0].mxu0
  %3252 = vmatprep.mubr.f32.mxu0 %v1860
  %3253 = vmatmul.mubr.f32.gmra.mrb[0].mxu0 %v1796
  %v3254 = vpop.f32.mrb[0].mxu0
  %v3255 = vadd.f32 %v2870, %v3254
  %v3256 = vpop.f32.mrb[0].mxu0
  %3257 = vmatprep.mubr.f32.mxu0 %v1861
  %3258 = vmatmul.mubr.f32.gmra.mrb[0].mxu0 %v1797
  %v3259 = vpop.f32.mrb[0].mxu0
  %v3260 = vadd.f32 %v2875, %v3259
  %v3261 = vpop.f32.mrb[0].mxu0
  %3262 = vmatprep.mubr.f32.mxu0 %v1862
  %3263 = vmatmul.mubr.f32.gmra.mrb[0].mxu0 %v1798
  %v3264 = vpop.f32.mrb[0].mxu0
  %v3265 = vadd.f32 %v2880, %v3264
  %v3266 = vpop.f32.mrb[0].mxu0
  %3267 = vmatprep.mubr.f32.mxu0 %v1863
  %3268 = vmatmul.mubr.f32.gmra.mrb[0].mxu0 %v1799
  %v3269 = vpop.f32.mrb[0].mxu0
  %v3270 = vadd.f32 %v2885, %v3269
  %v3271 = vpop.f32.mrb[0].mxu0
  %3272 = vmatprep.mubr.f32.mxu0 %v1864
  %3273 = vmatmul.mubr.f32.gmra.mrb[0].mxu0 %v1800
  %v3274 = vpop.f32.mrb[0].mxu0
  %v3275 = vadd.f32 %v2890, %v3274
  %v3276 = vpop.f32.mrb[0].mxu0
  %3277 = vmatprep.mubr.f32.mxu0 %v1865
  %3278 = vmatmul.mubr.f32.gmra.mrb[0].mxu0 %v1801
  %v3279 = vpop.f32.mrb[0].mxu0
  %v3280 = vadd.f32 %v2895, %v3279
  %v3281 = vpop.f32.mrb[0].mxu0
  %3282 = vmatprep.mubr.f32.mxu0 %v1866
  %3283 = vmatmul.mubr.f32.gmra.mrb[0].mxu0 %v1802
  %v3284 = vpop.f32.mrb[0].mxu0
  %v3285 = vadd.f32 %v2900, %v3284
  %v3286 = vpop.f32.mrb[0].mxu0
  %3287 = vmatprep.mubr.f32.mxu0 %v1867
  %3288 = vmatmul.mubr.f32.gmra.mrb[0].mxu0 %v1803
  %v3289 = vpop.f32.mrb[0].mxu0
  %v3290 = vadd.f32 %v2905, %v3289
  %v3291 = vpop.f32.mrb[0].mxu0
  %3292 = vmatprep.mubr.f32.mxu0 %v1868
  %3293 = vmatmul.mubr.f32.gmra.mrb[0].mxu0 %v1804
  %v3294 = vpop.f32.mrb[0].mxu0
  %v3295 = vadd.f32 %v2910, %v3294
  %v3296 = vpop.f32.mrb[0].mxu0
  %3297 = vmatprep.mubr.f32.mxu0 %v1869
  %3298 = vmatmul.mubr.f32.gmra.mrb[0].mxu0 %v1805
  %v3299 = vpop.f32.mrb[0].mxu0
  %v3300 = vadd.f32 %v2915, %v3299
  %v3301 = vpop.f32.mrb[0].mxu0
  %3302 = vmatprep.mubr.f32.mxu0 %v1870
  %3303 = vmatmul.mubr.f32.gmra.mrb[0].mxu0 %v1806
  %v3304 = vpop.f32.mrb[0].mxu0
  %v3305 = vadd.f32 %v2920, %v3304
  %v3306 = vpop.f32.mrb[0].mxu0
  %3307 = vmatprep.mubr.f32.mxu0 %v1871
  %3308 = vmatmul.mubr.f32.gmra.mrb[0].mxu0 %v1807
  %v3309 = vpop.f32.mrb[0].mxu0
  %v3310 = vadd.f32 %v2925, %v3309
  %v3311 = vpop.f32.mrb[0].mxu0
  %3312 = vmatprep.mubr.f32.mxu0 %v1872
  %3313 = vmatmul.mubr.f32.gmra.mrb[0].mxu0 %v1808
  %v3314 = vpop.f32.mrb[0].mxu0
  %v3315 = vadd.f32 %v2930, %v3314
  %v3316 = vpop.f32.mrb[0].mxu0
  %3317 = vmatprep.mubr.f32.mxu0 %v1873
  %3318 = vmatmul.mubr.f32.gmra.mrb[0].mxu0 %v1809
  %v3319 = vpop.f32.mrb[0].mxu0
  %v3320 = vadd.f32 %v2935, %v3319
  %v3321 = vpop.f32.mrb[0].mxu0
  %3322 = vmatprep.mubr.f32.mxu0 %v1874
  %3323 = vmatmul.mubr.f32.gmra.mrb[0].mxu0 %v1810
  %v3324 = vpop.f32.mrb[0].mxu0
  %v3325 = vadd.f32 %v2940, %v3324
  %v3326 = vpop.f32.mrb[0].mxu0
  %3327 = vmatprep.mubr.f32.mxu0 %v1875
  %3328 = vmatmul.mubr.f32.gmra.mrb[0].mxu0 %v1811
  %v3329 = vpop.f32.mrb[0].mxu0
  %v3330 = vadd.f32 %v2945, %v3329
  %v3331 = vpop.f32.mrb[0].mxu0
  %3332 = vmatprep.mubr.f32.mxu0 %v1876
  %3333 = vmatmul.mubr.f32.gmra.mrb[0].mxu0 %v1812
  %v3334 = vpop.f32.mrb[0].mxu0
  %v3335 = vadd.f32 %v2950, %v3334
  %v3336 = vpop.f32.mrb[0].mxu0
  %3337 = vmatprep.mubr.f32.mxu0 %v1877
  %3338 = vmatmul.mubr.f32.gmra.mrb[0].mxu0 %v1813
  %v3339 = vpop.f32.mrb[0].mxu0
  %v3340 = vadd.f32 %v2955, %v3339
  %v3341 = vpop.f32.mrb[0].mxu0
  %3342 = vmatprep.mubr.f32.mxu0 %v1878
  %3343 = vmatmul.mubr.f32.gmra.mrb[0].mxu0 %v1814
  %v3344 = vpop.f32.mrb[0].mxu0
  %v3345 = vadd.f32 %v2960, %v3344
  %v3346 = vpop.f32.mrb[0].mxu0
  %3347 = vdwg.mxu0
  %3348 = vmatprep.subr.mxu0 0.0
  %3349 = vmatpush1.msra.mxu0 %v2242
  %3350 = vmatprep.subr.mxu0 0.0
  %3351 = vmatpush1.msra.mxu0 %v2243
  %3352 = vmatprep.subr.mxu0 0.0
  %3353 = vmatpush1.msra.mxu0 %v2244
  %3354 = vmatprep.subr.mxu0 0.0
  %3355 = vmatpush1.msra.mxu0 %v2245
  %3356 = vmatprep.subr.mxu0 0.0
  %3357 = vmatpush1.msra.mxu0 %v2246
  %3358 = vmatprep.subr.mxu0 0.0
  %3359 = vmatpush1.msra.mxu0 %v2247
  %3360 = vmatprep.subr.mxu0 0.0
  %3361 = vmatpush1.msra.mxu0 %v2248
  %3362 = vmatprep.subr.mxu0 0.0
  %3363 = vmatpush1.msra.mxu0 %v2249
  %3364 = vmatprep.subr.mxu0 0.0
  %3365 = vmatpush1.msra.mxu0 %v2250
  %3366 = vmatprep.subr.mxu0 0.0
  %3367 = vmatpush1.msra.mxu0 %v2251
  %3368 = vmatprep.subr.mxu0 0.0
  %3369 = vmatpush1.msra.mxu0 %v2252
  %3370 = vmatprep.subr.mxu0 0.0
  %3371 = vmatpush1.msra.mxu0 %v2253
  %3372 = vmatprep.subr.mxu0 0.0
  %3373 = vmatpush1.msra.mxu0 %v2254
  %3374 = vmatprep.subr.mxu0 0.0
  %3375 = vmatpush1.msra.mxu0 %v2255
  %3376 = vmatprep.subr.mxu0 0.0
  %3377 = vmatpush1.msra.mxu0 %v2256
  %3378 = vmatprep.subr.mxu0 0.0
  %3379 = vmatpush1.msra.mxu0 %v2257
  %3380 = vmatprep.subr.mxu0 0.0
  %3381 = vmatpush1.msra.mxu0 %v2258
  %3382 = vmatprep.subr.mxu0 0.0
  %3383 = vmatpush1.msra.mxu0 %v2259
  %3384 = vmatprep.subr.mxu0 0.0
  %3385 = vmatpush1.msra.mxu0 %v2260
  %3386 = vmatprep.subr.mxu0 0.0
  %3387 = vmatpush1.msra.mxu0 %v2261
  %3388 = vmatprep.subr.mxu0 0.0
  %3389 = vmatpush1.msra.mxu0 %v2262
  %3390 = vmatprep.subr.mxu0 0.0
  %3391 = vmatpush1.msra.mxu0 %v2263
  %3392 = vmatprep.subr.mxu0 0.0
  %3393 = vmatpush1.msra.mxu0 %v2264
  %3394 = vmatprep.subr.mxu0 0.0
  %3395 = vmatpush1.msra.mxu0 %v2265
  %3396 = vmatprep.subr.mxu0 0.0
  %3397 = vmatpush1.msra.mxu0 %v2266
  %3398 = vmatprep.subr.mxu0 0.0
  %3399 = vmatpush1.msra.mxu0 %v2267
  %3400 = vmatprep.subr.mxu0 0.0
  %3401 = vmatpush1.msra.mxu0 %v2268
  %3402 = vmatprep.subr.mxu0 0.0
  %3403 = vmatpush1.msra.mxu0 %v2269
  %3404 = vmatprep.subr.mxu0 0.0
  %3405 = vmatpush1.msra.mxu0 %v2270
  %3406 = vmatprep.subr.mxu0 0.0
  %3407 = vmatpush1.msra.mxu0 %v2271
  %3408 = vmatprep.subr.mxu0 0.0
  %3409 = vmatpush1.msra.mxu0 %v2272
  %3410 = vmatprep.subr.mxu0 0.0
  %3411 = vmatpush1.msra.mxu0 %v2273
  %3412 = vmatprep.mubr.f32.mxu0 %v1943
  %3413 = vmatmul.mubr.f32.gmra.mrb[0].mxu0 %v1879
  %v3414 = vpop.f32.mrb[0].mxu0
  %v3415 = vadd.f32 %v3030, %v3414
  %v3416 = vpop.f32.mrb[0].mxu0
  %3417 = vmatprep.mubr.f32.mxu0 %v1944
  %3418 = vmatmul.mubr.f32.gmra.mrb[0].mxu0 %v1880
  %v3419 = vpop.f32.mrb[0].mxu0
  %v3420 = vadd.f32 %v3035, %v3419
  %v3421 = vpop.f32.mrb[0].mxu0
  %3422 = vmatprep.mubr.f32.mxu0 %v1945
  %3423 = vmatmul.mubr.f32.gmra.mrb[0].mxu0 %v1881
  %v3424 = vpop.f32.mrb[0].mxu0
  %v3425 = vadd.f32 %v3040, %v3424
  %v3426 = vpop.f32.mrb[0].mxu0
  %3427 = vmatprep.mubr.f32.mxu0 %v1946
  %3428 = vmatmul.mubr.f32.gmra.mrb[0].mxu0 %v1882
  %v3429 = vpop.f32.mrb[0].mxu0
  %v3430 = vadd.f32 %v3045, %v3429
  %v3431 = vpop.f32.mrb[0].mxu0
  %3432 = vmatprep.mubr.f32.mxu0 %v1947
  %3433 = vmatmul.mubr.f32.gmra.mrb[0].mxu0 %v1883
  %v3434 = vpop.f32.mrb[0].mxu0
  %v3435 = vadd.f32 %v3050, %v3434
  %v3436 = vpop.f32.mrb[0].mxu0
  %3437 = vmatprep.mubr.f32.mxu0 %v1948
  %3438 = vmatmul.mubr.f32.gmra.mrb[0].mxu0 %v1884
  %v3439 = vpop.f32.mrb[0].mxu0
  %v3440 = vadd.f32 %v3055, %v3439
  %v3441 = vpop.f32.mrb[0].mxu0
  %3442 = vmatprep.mubr.f32.mxu0 %v1949
  %3443 = vmatmul.mubr.f32.gmra.mrb[0].mxu0 %v1885
  %v3444 = vpop.f32.mrb[0].mxu0
  %v3445 = vadd.f32 %v3060, %v3444
  %v3446 = vpop.f32.mrb[0].mxu0
  %3447 = vmatprep.mubr.f32.mxu0 %v1950
  %3448 = vmatmul.mubr.f32.gmra.mrb[0].mxu0 %v1886
  %v3449 = vpop.f32.mrb[0].mxu0
  %v3450 = vadd.f32 %v3065, %v3449
  %v3451 = vpop.f32.mrb[0].mxu0
  %3452 = vmatprep.mubr.f32.mxu0 %v1951
  %3453 = vmatmul.mubr.f32.gmra.mrb[0].mxu0 %v1887
  %v3454 = vpop.f32.mrb[0].mxu0
  %v3455 = vadd.f32 %v3070, %v3454
  %v3456 = vpop.f32.mrb[0].mxu0
  %3457 = vmatprep.mubr.f32.mxu0 %v1952
  %3458 = vmatmul.mubr.f32.gmra.mrb[0].mxu0 %v1888
  %v3459 = vpop.f32.mrb[0].mxu0
  %v3460 = vadd.f32 %v3075, %v3459
  %v3461 = vpop.f32.mrb[0].mxu0
  %3462 = vmatprep.mubr.f32.mxu0 %v1953
  %3463 = vmatmul.mubr.f32.gmra.mrb[0].mxu0 %v1889
  %v3464 = vpop.f32.mrb[0].mxu0
  %v3465 = vadd.f32 %v3080, %v3464
  %v3466 = vpop.f32.mrb[0].mxu0
  %3467 = vmatprep.mubr.f32.mxu0 %v1954
  %3468 = vmatmul.mubr.f32.gmra.mrb[0].mxu0 %v1890
  %v3469 = vpop.f32.mrb[0].mxu0
  %v3470 = vadd.f32 %v3085, %v3469
  %v3471 = vpop.f32.mrb[0].mxu0
  %3472 = vmatprep.mubr.f32.mxu0 %v1955
  %3473 = vmatmul.mubr.f32.gmra.mrb[0].mxu0 %v1891
  %v3474 = vpop.f32.mrb[0].mxu0
  %v3475 = vadd.f32 %v3090, %v3474
  %v3476 = vpop.f32.mrb[0].mxu0
  %3477 = vmatprep.mubr.f32.mxu0 %v1956
  %3478 = vmatmul.mubr.f32.gmra.mrb[0].mxu0 %v1892
  %v3479 = vpop.f32.mrb[0].mxu0
  %v3480 = vadd.f32 %v3095, %v3479
  %v3481 = vpop.f32.mrb[0].mxu0
  %3482 = vmatprep.mubr.f32.mxu0 %v1957
  %3483 = vmatmul.mubr.f32.gmra.mrb[0].mxu0 %v1893
  %v3484 = vpop.f32.mrb[0].mxu0
  %v3485 = vadd.f32 %v3100, %v3484
  %v3486 = vpop.f32.mrb[0].mxu0
  %3487 = vmatprep.mubr.f32.mxu0 %v1958
  %3488 = vmatmul.mubr.f32.gmra.mrb[0].mxu0 %v1894
  %v3489 = vpop.f32.mrb[0].mxu0
  %v3490 = vadd.f32 %v3105, %v3489
  %v3491 = vpop.f32.mrb[0].mxu0
  %3492 = vmatprep.mubr.f32.mxu0 %v1959
  %3493 = vmatmul.mubr.f32.gmra.mrb[0].mxu0 %v1895
  %v3494 = vpop.f32.mrb[0].mxu0
  %v3495 = vadd.f32 %v3110, %v3494
  %v3496 = vpop.f32.mrb[0].mxu0
  %3497 = vmatprep.mubr.f32.mxu0 %v1960
  %3498 = vmatmul.mubr.f32.gmra.mrb[0].mxu0 %v1896
  %v3499 = vpop.f32.mrb[0].mxu0
  %v3500 = vadd.f32 %v3115, %v3499
  %v3501 = vpop.f32.mrb[0].mxu0
  %3502 = vmatprep.mubr.f32.mxu0 %v1961
  %3503 = vmatmul.mubr.f32.gmra.mrb[0].mxu0 %v1897
  %v3504 = vpop.f32.mrb[0].mxu0
  %v3505 = vadd.f32 %v3120, %v3504
  %v3506 = vpop.f32.mrb[0].mxu0
  %3507 = vmatprep.mubr.f32.mxu0 %v1962
  %3508 = vmatmul.mubr.f32.gmra.mrb[0].mxu0 %v1898
  %v3509 = vpop.f32.mrb[0].mxu0
  %v3510 = vadd.f32 %v3125, %v3509
  %v3511 = vpop.f32.mrb[0].mxu0
  %3512 = vmatprep.mubr.f32.mxu0 %v1963
  %3513 = vmatmul.mubr.f32.gmra.mrb[0].mxu0 %v1899
  %v3514 = vpop.f32.mrb[0].mxu0
  %v3515 = vadd.f32 %v3130, %v3514
  %v3516 = vpop.f32.mrb[0].mxu0
  %3517 = vmatprep.mubr.f32.mxu0 %v1964
  %3518 = vmatmul.mubr.f32.gmra.mrb[0].mxu0 %v1900
  %v3519 = vpop.f32.mrb[0].mxu0
  %v3520 = vadd.f32 %v3135, %v3519
  %v3521 = vpop.f32.mrb[0].mxu0
  %3522 = vmatprep.mubr.f32.mxu0 %v1965
  %3523 = vmatmul.mubr.f32.gmra.mrb[0].mxu0 %v1901
  %v3524 = vpop.f32.mrb[0].mxu0
  %v3525 = vadd.f32 %v3140, %v3524
  %v3526 = vpop.f32.mrb[0].mxu0
  %3527 = vmatprep.mubr.f32.mxu0 %v1966
  %3528 = vmatmul.mubr.f32.gmra.mrb[0].mxu0 %v1902
  %v3529 = vpop.f32.mrb[0].mxu0
  %v3530 = vadd.f32 %v3145, %v3529
  %v3531 = vpop.f32.mrb[0].mxu0
  %3532 = vmatprep.mubr.f32.mxu0 %v1967
  %3533 = vmatmul.mubr.f32.gmra.mrb[0].mxu0 %v1903
  %v3534 = vpop.f32.mrb[0].mxu0
  %v3535 = vadd.f32 %v3150, %v3534
  %v3536 = vpop.f32.mrb[0].mxu0
  %3537 = vmatprep.mubr.f32.mxu0 %v1968
  %3538 = vmatmul.mubr.f32.gmra.mrb[0].mxu0 %v1904
  %v3539 = vpop.f32.mrb[0].mxu0
  %v3540 = vadd.f32 %v3155, %v3539
  %v3541 = vpop.f32.mrb[0].mxu0
  %3542 = vmatprep.mubr.f32.mxu0 %v1969
  %3543 = vmatmul.mubr.f32.gmra.mrb[0].mxu0 %v1905
  %v3544 = vpop.f32.mrb[0].mxu0
  %v3545 = vadd.f32 %v3160, %v3544
  %v3546 = vpop.f32.mrb[0].mxu0
  %3547 = vmatprep.mubr.f32.mxu0 %v1970
  %3548 = vmatmul.mubr.f32.gmra.mrb[0].mxu0 %v1906
  %v3549 = vpop.f32.mrb[0].mxu0
  %v3550 = vadd.f32 %v3165, %v3549
  %v3551 = vpop.f32.mrb[0].mxu0
  %3552 = vmatprep.mubr.f32.mxu0 %v1971
  %3553 = vmatmul.mubr.f32.gmra.mrb[0].mxu0 %v1907
  %v3554 = vpop.f32.mrb[0].mxu0
  %v3555 = vadd.f32 %v3170, %v3554
  %v3556 = vpop.f32.mrb[0].mxu0
  %3557 = vmatprep.mubr.f32.mxu0 %v1972
  %3558 = vmatmul.mubr.f32.gmra.mrb[0].mxu0 %v1908
  %v3559 = vpop.f32.mrb[0].mxu0
  %v3560 = vadd.f32 %v3175, %v3559
  %v3561 = vpop.f32.mrb[0].mxu0
  %3562 = vmatprep.mubr.f32.mxu0 %v1973
  %3563 = vmatmul.mubr.f32.gmra.mrb[0].mxu0 %v1909
  %v3564 = vpop.f32.mrb[0].mxu0
  %v3565 = vadd.f32 %v3180, %v3564
  %v3566 = vpop.f32.mrb[0].mxu0
  %3567 = vmatprep.mubr.f32.mxu0 %v1974
  %3568 = vmatmul.mubr.f32.gmra.mrb[0].mxu0 %v1910
  %v3569 = vpop.f32.mrb[0].mxu0
  %v3570 = vadd.f32 %v3185, %v3569
  %v3571 = vpop.f32.mrb[0].mxu0
  %3572 = vmatprep.mubr.f32.mxu0 %v1975
  %3573 = vmatmul.mubr.f32.gmra.mrb[0].mxu0 %v1911
  %v3574 = vpop.f32.mrb[0].mxu0
  %v3575 = vadd.f32 %v3190, %v3574
  %v3576 = vpop.f32.mrb[0].mxu0
  %3577 = vmatprep.mubr.f32.mxu0 %v1976
  %3578 = vmatmul.mubr.f32.gmra.mrb[0].mxu0 %v1912
  %v3579 = vpop.f32.mrb[0].mxu0
  %v3580 = vadd.f32 %v3195, %v3579
  %v3581 = vpop.f32.mrb[0].mxu0
  %3582 = vmatprep.mubr.f32.mxu0 %v1977
  %3583 = vmatmul.mubr.f32.gmra.mrb[0].mxu0 %v1913
  %v3584 = vpop.f32.mrb[0].mxu0
  %v3585 = vadd.f32 %v3200, %v3584
  %v3586 = vpop.f32.mrb[0].mxu0
  %3587 = vmatprep.mubr.f32.mxu0 %v1978
  %3588 = vmatmul.mubr.f32.gmra.mrb[0].mxu0 %v1914
  %v3589 = vpop.f32.mrb[0].mxu0
  %v3590 = vadd.f32 %v3205, %v3589
  %v3591 = vpop.f32.mrb[0].mxu0
  %3592 = vmatprep.mubr.f32.mxu0 %v1979
  %3593 = vmatmul.mubr.f32.gmra.mrb[0].mxu0 %v1915
  %v3594 = vpop.f32.mrb[0].mxu0
  %v3595 = vadd.f32 %v3210, %v3594
  %v3596 = vpop.f32.mrb[0].mxu0
  %3597 = vmatprep.mubr.f32.mxu0 %v1980
  %3598 = vmatmul.mubr.f32.gmra.mrb[0].mxu0 %v1916
  %v3599 = vpop.f32.mrb[0].mxu0
  %v3600 = vadd.f32 %v3215, %v3599
  %v3601 = vpop.f32.mrb[0].mxu0
  %3602 = vmatprep.mubr.f32.mxu0 %v1981
  %3603 = vmatmul.mubr.f32.gmra.mrb[0].mxu0 %v1917
  %v3604 = vpop.f32.mrb[0].mxu0
  %v3605 = vadd.f32 %v3220, %v3604
  %v3606 = vpop.f32.mrb[0].mxu0
  %3607 = vmatprep.mubr.f32.mxu0 %v1982
  %3608 = vmatmul.mubr.f32.gmra.mrb[0].mxu0 %v1918
  %v3609 = vpop.f32.mrb[0].mxu0
  %v3610 = vadd.f32 %v3225, %v3609
  %v3611 = vpop.f32.mrb[0].mxu0
  %3612 = vmatprep.mubr.f32.mxu0 %v1983
  %3613 = vmatmul.mubr.f32.gmra.mrb[0].mxu0 %v1919
  %v3614 = vpop.f32.mrb[0].mxu0
  %v3615 = vadd.f32 %v3230, %v3614
  %v3616 = vpop.f32.mrb[0].mxu0
  %3617 = vmatprep.mubr.f32.mxu0 %v1984
  %3618 = vmatmul.mubr.f32.gmra.mrb[0].mxu0 %v1920
  %v3619 = vpop.f32.mrb[0].mxu0
  %v3620 = vadd.f32 %v3235, %v3619
  %v3621 = vpop.f32.mrb[0].mxu0
  %3622 = vmatprep.mubr.f32.mxu0 %v1985
  %3623 = vmatmul.mubr.f32.gmra.mrb[0].mxu0 %v1921
  %v3624 = vpop.f32.mrb[0].mxu0
  %v3625 = vadd.f32 %v3240, %v3624
  %v3626 = vpop.f32.mrb[0].mxu0
  %3627 = vmatprep.mubr.f32.mxu0 %v1986
  %3628 = vmatmul.mubr.f32.gmra.mrb[0].mxu0 %v1922
  %v3629 = vpop.f32.mrb[0].mxu0
  %v3630 = vadd.f32 %v3245, %v3629
  %v3631 = vpop.f32.mrb[0].mxu0
  %3632 = vmatprep.mubr.f32.mxu0 %v1987
  %3633 = vmatmul.mubr.f32.gmra.mrb[0].mxu0 %v1923
  %v3634 = vpop.f32.mrb[0].mxu0
  %v3635 = vadd.f32 %v3250, %v3634
  %v3636 = vpop.f32.mrb[0].mxu0
  %3637 = vmatprep.mubr.f32.mxu0 %v1988
  %3638 = vmatmul.mubr.f32.gmra.mrb[0].mxu0 %v1924
  %v3639 = vpop.f32.mrb[0].mxu0
  %v3640 = vadd.f32 %v3255, %v3639
  %v3641 = vpop.f32.mrb[0].mxu0
  %3642 = vmatprep.mubr.f32.mxu0 %v1989
  %3643 = vmatmul.mubr.f32.gmra.mrb[0].mxu0 %v1925
  %v3644 = vpop.f32.mrb[0].mxu0
  %v3645 = vadd.f32 %v3260, %v3644
  %v3646 = vpop.f32.mrb[0].mxu0
  %3647 = vmatprep.mubr.f32.mxu0 %v1990
  %3648 = vmatmul.mubr.f32.gmra.mrb[0].mxu0 %v1926
  %v3649 = vpop.f32.mrb[0].mxu0
  %v3650 = vadd.f32 %v3265, %v3649
  %v3651 = vpop.f32.mrb[0].mxu0
  %3652 = vmatprep.mubr.f32.mxu0 %v1991
  %3653 = vmatmul.mubr.f32.gmra.mrb[0].mxu0 %v1927
  %v3654 = vpop.f32.mrb[0].mxu0
  %v3655 = vadd.f32 %v3270, %v3654
  %v3656 = vpop.f32.mrb[0].mxu0
  %3657 = vmatprep.mubr.f32.mxu0 %v1992
  %3658 = vmatmul.mubr.f32.gmra.mrb[0].mxu0 %v1928
  %v3659 = vpop.f32.mrb[0].mxu0
  %v3660 = vadd.f32 %v3275, %v3659
  %v3661 = vpop.f32.mrb[0].mxu0
  %3662 = vmatprep.mubr.f32.mxu0 %v1993
  %3663 = vmatmul.mubr.f32.gmra.mrb[0].mxu0 %v1929
  %v3664 = vpop.f32.mrb[0].mxu0
  %v3665 = vadd.f32 %v3280, %v3664
  %v3666 = vpop.f32.mrb[0].mxu0
  %3667 = vmatprep.mubr.f32.mxu0 %v1994
  %3668 = vmatmul.mubr.f32.gmra.mrb[0].mxu0 %v1930
  %v3669 = vpop.f32.mrb[0].mxu0
  %v3670 = vadd.f32 %v3285, %v3669
  %v3671 = vpop.f32.mrb[0].mxu0
  %3672 = vmatprep.mubr.f32.mxu0 %v1995
  %3673 = vmatmul.mubr.f32.gmra.mrb[0].mxu0 %v1931
  %v3674 = vpop.f32.mrb[0].mxu0
  %v3675 = vadd.f32 %v3290, %v3674
  %v3676 = vpop.f32.mrb[0].mxu0
  %3677 = vmatprep.mubr.f32.mxu0 %v1996
  %3678 = vmatmul.mubr.f32.gmra.mrb[0].mxu0 %v1932
  %v3679 = vpop.f32.mrb[0].mxu0
  %v3680 = vadd.f32 %v3295, %v3679
  %v3681 = vpop.f32.mrb[0].mxu0
  %3682 = vmatprep.mubr.f32.mxu0 %v1997
  %3683 = vmatmul.mubr.f32.gmra.mrb[0].mxu0 %v1933
  %v3684 = vpop.f32.mrb[0].mxu0
  %v3685 = vadd.f32 %v3300, %v3684
  %v3686 = vpop.f32.mrb[0].mxu0
  %3687 = vmatprep.mubr.f32.mxu0 %v1998
  %3688 = vmatmul.mubr.f32.gmra.mrb[0].mxu0 %v1934
  %v3689 = vpop.f32.mrb[0].mxu0
  %v3690 = vadd.f32 %v3305, %v3689
  %v3691 = vpop.f32.mrb[0].mxu0
  %3692 = vmatprep.mubr.f32.mxu0 %v1999
  %3693 = vmatmul.mubr.f32.gmra.mrb[0].mxu0 %v1935
  %v3694 = vpop.f32.mrb[0].mxu0
  %v3695 = vadd.f32 %v3310, %v3694
  %v3696 = vpop.f32.mrb[0].mxu0
  %3697 = vmatprep.mubr.f32.mxu0 %v2000
  %3698 = vmatmul.mubr.f32.gmra.mrb[0].mxu0 %v1936
  %v3699 = vpop.f32.mrb[0].mxu0
  %v3700 = vadd.f32 %v3315, %v3699
  %v3701 = vpop.f32.mrb[0].mxu0
  %3702 = vmatprep.mubr.f32.mxu0 %v2001
  %3703 = vmatmul.mubr.f32.gmra.mrb[0].mxu0 %v1937
  %v3704 = vpop.f32.mrb[0].mxu0
  %v3705 = vadd.f32 %v3320, %v3704
  %v3706 = vpop.f32.mrb[0].mxu0
  %3707 = vmatprep.mubr.f32.mxu0 %v2002
  %3708 = vmatmul.mubr.f32.gmra.mrb[0].mxu0 %v1938
  %v3709 = vpop.f32.mrb[0].mxu0
  %v3710 = vadd.f32 %v3325, %v3709
  %v3711 = vpop.f32.mrb[0].mxu0
  %3712 = vmatprep.mubr.f32.mxu0 %v2003
  %3713 = vmatmul.mubr.f32.gmra.mrb[0].mxu0 %v1939
  %v3714 = vpop.f32.mrb[0].mxu0
  %v3715 = vadd.f32 %v3330, %v3714
  %v3716 = vpop.f32.mrb[0].mxu0
  %3717 = vmatprep.mubr.f32.mxu0 %v2004
  %3718 = vmatmul.mubr.f32.gmra.mrb[0].mxu0 %v1940
  %v3719 = vpop.f32.mrb[0].mxu0
  %v3720 = vadd.f32 %v3335, %v3719
  %v3721 = vpop.f32.mrb[0].mxu0
  %3722 = vmatprep.mubr.f32.mxu0 %v2005
  %3723 = vmatmul.mubr.f32.gmra.mrb[0].mxu0 %v1941
  %v3724 = vpop.f32.mrb[0].mxu0
  %v3725 = vadd.f32 %v3340, %v3724
  %v3726 = vpop.f32.mrb[0].mxu0
  %3727 = vmatprep.mubr.f32.mxu0 %v2006
  %3728 = vmatmul.mubr.f32.gmra.mrb[0].mxu0 %v1942
  %v3729 = vpop.f32.mrb[0].mxu0
  %v3730 = vadd.f32 %v3345, %v3729
  %v3731 = vpop.f32.mrb[0].mxu0
  %3732 = vdwg.mxu0
  %3733 = vmatprep.subr.mxu0 0.0
  %3734 = vmatpush1.msra.mxu0 %v2274
  %3735 = vmatprep.subr.mxu0 0.0
  %3736 = vmatpush1.msra.mxu0 %v2275
  %3737 = vmatprep.subr.mxu0 0.0
  %3738 = vmatpush1.msra.mxu0 %v2276
  %3739 = vmatprep.subr.mxu0 0.0
  %3740 = vmatpush1.msra.mxu0 %v2277
  %3741 = vmatprep.subr.mxu0 0.0
  %3742 = vmatpush1.msra.mxu0 %v2278
  %3743 = vmatprep.subr.mxu0 0.0
  %3744 = vmatpush1.msra.mxu0 %v2279
  %3745 = vmatprep.subr.mxu0 0.0
  %3746 = vmatpush1.msra.mxu0 %v2280
  %3747 = vmatprep.subr.mxu0 0.0
  %3748 = vmatpush1.msra.mxu0 %v2281
  %3749 = vmatprep.subr.mxu0 0.0
  %3750 = vmatpush1.msra.mxu0 %v2282
  %3751 = vmatprep.subr.mxu0 0.0
  %3752 = vmatpush1.msra.mxu0 %v2283
  %3753 = vmatprep.subr.mxu0 0.0
  %3754 = vmatpush1.msra.mxu0 %v2284
  %3755 = vmatprep.subr.mxu0 0.0
  %3756 = vmatpush1.msra.mxu0 %v2285
  %3757 = vmatprep.subr.mxu0 0.0
  %3758 = vmatpush1.msra.mxu0 %v2286
  %3759 = vmatprep.subr.mxu0 0.0
  %3760 = vmatpush1.msra.mxu0 %v2287
  %3761 = vmatprep.subr.mxu0 0.0
  %3762 = vmatpush1.msra.mxu0 %v2288
  %3763 = vmatprep.subr.mxu0 0.0
  %3764 = vmatpush1.msra.mxu0 %v2289
  %3765 = vmatprep.subr.mxu0 0.0
  %3766 = vmatpush1.msra.mxu0 %v2290
  %3767 = vmatprep.subr.mxu0 0.0
  %3768 = vmatpush1.msra.mxu0 %v2291
  %3769 = vmatprep.subr.mxu0 0.0
  %3770 = vmatpush1.msra.mxu0 %v2292
  %3771 = vmatprep.subr.mxu0 0.0
  %3772 = vmatpush1.msra.mxu0 %v2293
  %3773 = vmatprep.subr.mxu0 0.0
  %3774 = vmatpush1.msra.mxu0 %v2294
  %3775 = vmatprep.subr.mxu0 0.0
  %3776 = vmatpush1.msra.mxu0 %v2295
  %3777 = vmatprep.subr.mxu0 0.0
  %3778 = vmatpush1.msra.mxu0 %v2296
  %3779 = vmatprep.subr.mxu0 0.0
  %3780 = vmatpush1.msra.mxu0 %v2297
  %3781 = vmatprep.subr.mxu0 0.0
  %3782 = vmatpush1.msra.mxu0 %v2298
  %3783 = vmatprep.subr.mxu0 0.0
  %3784 = vmatpush1.msra.mxu0 %v2299
  %3785 = vmatprep.subr.mxu0 0.0
  %3786 = vmatpush1.msra.mxu0 %v2300
  %3787 = vmatprep.subr.mxu0 0.0
  %3788 = vmatpush1.msra.mxu0 %v2301
  %3789 = vmatprep.subr.mxu0 0.0
  %3790 = vmatpush1.msra.mxu0 %v2302
  %3791 = vmatprep.subr.mxu0 0.0
  %3792 = vmatpush1.msra.mxu0 %v2303
  %3793 = vmatprep.subr.mxu0 0.0
  %3794 = vmatpush1.msra.mxu0 %v2304
  %3795 = vmatprep.subr.mxu0 0.0
  %3796 = vmatpush1.msra.mxu0 %v2305
  %3797 = vmatprep.mubr.f32.mxu0 %v1625
  %3798 = vmatmul.mubr.f32.gmra.mrb[0].mxu0 %v2007
  %v3799 = vpop.f32.mrb[0].mxu0
  %v3800 = vadd.f32 %v3415, %v3799
  %v3801 = vpop.f32.mrb[0].mxu0
  %3802 = vmatprep.mubr.f32.mxu0 %v1626
  %3803 = vmatmul.mubr.f32.gmra.mrb[0].mxu0 %v2008
  %v3804 = vpop.f32.mrb[0].mxu0
  %v3805 = vadd.f32 %v3420, %v3804
  %v3806 = vpop.f32.mrb[0].mxu0
  %3807 = vmatprep.mubr.f32.mxu0 %v1627
  %3808 = vmatmul.mubr.f32.gmra.mrb[0].mxu0 %v2009
  %v3809 = vpop.f32.mrb[0].mxu0
  %v3810 = vadd.f32 %v3425, %v3809
  %v3811 = vpop.f32.mrb[0].mxu0
  %3812 = vmatprep.mubr.f32.mxu0 %v1628
  %3813 = vmatmul.mubr.f32.gmra.mrb[0].mxu0 %v2010
  %v3814 = vpop.f32.mrb[0].mxu0
  %v3815 = vadd.f32 %v3430, %v3814
  %v3816 = vpop.f32.mrb[0].mxu0
  %3817 = vmatprep.mubr.f32.mxu0 %v1629
  %3818 = vmatmul.mubr.f32.gmra.mrb[0].mxu0 %v2011
  %v3819 = vpop.f32.mrb[0].mxu0
  %v3820 = vadd.f32 %v3435, %v3819
  %v3821 = vpop.f32.mrb[0].mxu0
  %3822 = vmatprep.mubr.f32.mxu0 %v1630
  %3823 = vmatmul.mubr.f32.gmra.mrb[0].mxu0 %v2012
  %v3824 = vpop.f32.mrb[0].mxu0
  %v3825 = vadd.f32 %v3440, %v3824
  %v3826 = vpop.f32.mrb[0].mxu0
  %3827 = vmatprep.mubr.f32.mxu0 %v1631
  %3828 = vmatmul.mubr.f32.gmra.mrb[0].mxu0 %v2013
  %v3829 = vpop.f32.mrb[0].mxu0
  %v3830 = vadd.f32 %v3445, %v3829
  %v3831 = vpop.f32.mrb[0].mxu0
  %3832 = vmatprep.mubr.f32.mxu0 %v1632
  %3833 = vmatmul.mubr.f32.gmra.mrb[0].mxu0 %v2014
  %v3834 = vpop.f32.mrb[0].mxu0
  %v3835 = vadd.f32 %v3450, %v3834
  %v3836 = vpop.f32.mrb[0].mxu0
  %3837 = vmatprep.mubr.f32.mxu0 %v1633
  %3838 = vmatmul.mubr.f32.gmra.mrb[0].mxu0 %v2015
  %v3839 = vpop.f32.mrb[0].mxu0
  %v3840 = vadd.f32 %v3455, %v3839
  %v3841 = vpop.f32.mrb[0].mxu0
  %3842 = vmatprep.mubr.f32.mxu0 %v1634
  %3843 = vmatmul.mubr.f32.gmra.mrb[0].mxu0 %v2016
  %v3844 = vpop.f32.mrb[0].mxu0
  %v3845 = vadd.f32 %v3460, %v3844
  %v3846 = vpop.f32.mrb[0].mxu0
  %3847 = vmatprep.mubr.f32.mxu0 %v1635
  %3848 = vmatmul.mubr.f32.gmra.mrb[0].mxu0 %v2017
  %v3849 = vpop.f32.mrb[0].mxu0
  %v3850 = vadd.f32 %v3465, %v3849
  %v3851 = vpop.f32.mrb[0].mxu0
  %3852 = vmatprep.mubr.f32.mxu0 %v1636
  %3853 = vmatmul.mubr.f32.gmra.mrb[0].mxu0 %v2018
  %v3854 = vpop.f32.mrb[0].mxu0
  %v3855 = vadd.f32 %v3470, %v3854
  %v3856 = vpop.f32.mrb[0].mxu0
  %3857 = vmatprep.mubr.f32.mxu0 %v1637
  %3858 = vmatmul.mubr.f32.gmra.mrb[0].mxu0 %v2019
  %v3859 = vpop.f32.mrb[0].mxu0
  %v3860 = vadd.f32 %v3475, %v3859
  %v3861 = vpop.f32.mrb[0].mxu0
  %3862 = vmatprep.mubr.f32.mxu0 %v1638
  %3863 = vmatmul.mubr.f32.gmra.mrb[0].mxu0 %v2020
  %v3864 = vpop.f32.mrb[0].mxu0
  %v3865 = vadd.f32 %v3480, %v3864
  %v3866 = vpop.f32.mrb[0].mxu0
  %3867 = vmatprep.mubr.f32.mxu0 %v1639
  %3868 = vmatmul.mubr.f32.gmra.mrb[0].mxu0 %v2021
  %v3869 = vpop.f32.mrb[0].mxu0
  %v3870 = vadd.f32 %v3485, %v3869
  %v3871 = vpop.f32.mrb[0].mxu0
  %3872 = vmatprep.mubr.f32.mxu0 %v1640
  %3873 = vmatmul.mubr.f32.gmra.mrb[0].mxu0 %v2022
  %v3874 = vpop.f32.mrb[0].mxu0
  %v3875 = vadd.f32 %v3490, %v3874
  %v3876 = vpop.f32.mrb[0].mxu0
  %3877 = vmatprep.mubr.f32.mxu0 %v1641
  %3878 = vmatmul.mubr.f32.gmra.mrb[0].mxu0 %v2023
  %v3879 = vpop.f32.mrb[0].mxu0
  %v3880 = vadd.f32 %v3495, %v3879
  %v3881 = vpop.f32.mrb[0].mxu0
  %3882 = vmatprep.mubr.f32.mxu0 %v1642
  %3883 = vmatmul.mubr.f32.gmra.mrb[0].mxu0 %v2024
  %v3884 = vpop.f32.mrb[0].mxu0
  %v3885 = vadd.f32 %v3500, %v3884
  %v3886 = vpop.f32.mrb[0].mxu0
  %3887 = vmatprep.mubr.f32.mxu0 %v1643
  %3888 = vmatmul.mubr.f32.gmra.mrb[0].mxu0 %v2025
  %v3889 = vpop.f32.mrb[0].mxu0
  %v3890 = vadd.f32 %v3505, %v3889
  %v3891 = vpop.f32.mrb[0].mxu0
  %3892 = vmatprep.mubr.f32.mxu0 %v1644
  %3893 = vmatmul.mubr.f32.gmra.mrb[0].mxu0 %v2026
  %v3894 = vpop.f32.mrb[0].mxu0
  %v3895 = vadd.f32 %v3510, %v3894
  %v3896 = vpop.f32.mrb[0].mxu0
  %3897 = vmatprep.mubr.f32.mxu0 %v1645
  %3898 = vmatmul.mubr.f32.gmra.mrb[0].mxu0 %v2027
  %v3899 = vpop.f32.mrb[0].mxu0
  %v3900 = vadd.f32 %v3515, %v3899
  %v3901 = vpop.f32.mrb[0].mxu0
  %3902 = vmatprep.mubr.f32.mxu0 %v1646
  %3903 = vmatmul.mubr.f32.gmra.mrb[0].mxu0 %v2028
  %v3904 = vpop.f32.mrb[0].mxu0
  %v3905 = vadd.f32 %v3520, %v3904
  %v3906 = vpop.f32.mrb[0].mxu0
  %3907 = vmatprep.mubr.f32.mxu0 %v1647
  %3908 = vmatmul.mubr.f32.gmra.mrb[0].mxu0 %v2029
  %v3909 = vpop.f32.mrb[0].mxu0
  %v3910 = vadd.f32 %v3525, %v3909
  %v3911 = vpop.f32.mrb[0].mxu0
  %3912 = vmatprep.mubr.f32.mxu0 %v1648
  %3913 = vmatmul.mubr.f32.gmra.mrb[0].mxu0 %v2030
  %v3914 = vpop.f32.mrb[0].mxu0
  %v3915 = vadd.f32 %v3530, %v3914
  %v3916 = vpop.f32.mrb[0].mxu0
  %3917 = vmatprep.mubr.f32.mxu0 %v1649
  %3918 = vmatmul.mubr.f32.gmra.mrb[0].mxu0 %v2031
  %v3919 = vpop.f32.mrb[0].mxu0
  %v3920 = vadd.f32 %v3535, %v3919
  %v3921 = vpop.f32.mrb[0].mxu0
  %3922 = vmatprep.mubr.f32.mxu0 %v1650
  %3923 = vmatmul.mubr.f32.gmra.mrb[0].mxu0 %v2032
  %v3924 = vpop.f32.mrb[0].mxu0
  %v3925 = vadd.f32 %v3540, %v3924
  %v3926 = vpop.f32.mrb[0].mxu0
  %3927 = vmatprep.mubr.f32.mxu0 %v1651
  %3928 = vmatmul.mubr.f32.gmra.mrb[0].mxu0 %v2033
  %v3929 = vpop.f32.mrb[0].mxu0
  %v3930 = vadd.f32 %v3545, %v3929
  %v3931 = vpop.f32.mrb[0].mxu0
  %3932 = vmatprep.mubr.f32.mxu0 %v1652
  %3933 = vmatmul.mubr.f32.gmra.mrb[0].mxu0 %v2034
  %v3934 = vpop.f32.mrb[0].mxu0
  %v3935 = vadd.f32 %v3550, %v3934
  %v3936 = vpop.f32.mrb[0].mxu0
  %3937 = vmatprep.mubr.f32.mxu0 %v1653
  %3938 = vmatmul.mubr.f32.gmra.mrb[0].mxu0 %v2035
  %v3939 = vpop.f32.mrb[0].mxu0
  %v3940 = vadd.f32 %v3555, %v3939
  %v3941 = vpop.f32.mrb[0].mxu0
  %3942 = vmatprep.mubr.f32.mxu0 %v1654
  %3943 = vmatmul.mubr.f32.gmra.mrb[0].mxu0 %v2036
  %v3944 = vpop.f32.mrb[0].mxu0
  %v3945 = vadd.f32 %v3560, %v3944
  %v3946 = vpop.f32.mrb[0].mxu0
  %3947 = vmatprep.mubr.f32.mxu0 %v1655
  %3948 = vmatmul.mubr.f32.gmra.mrb[0].mxu0 %v2037
  %v3949 = vpop.f32.mrb[0].mxu0
  %v3950 = vadd.f32 %v3565, %v3949
  %v3951 = vpop.f32.mrb[0].mxu0
  %3952 = vmatprep.mubr.f32.mxu0 %v1656
  %3953 = vmatmul.mubr.f32.gmra.mrb[0].mxu0 %v2038
  %v3954 = vpop.f32.mrb[0].mxu0
  %v3955 = vadd.f32 %v3570, %v3954
  %v3956 = vpop.f32.mrb[0].mxu0
  %3957 = vmatprep.mubr.f32.mxu0 %v1657
  %3958 = vmatmul.mubr.f32.gmra.mrb[0].mxu0 %v2039
  %v3959 = vpop.f32.mrb[0].mxu0
  %v3960 = vadd.f32 %v3575, %v3959
  %v3961 = vpop.f32.mrb[0].mxu0
  %3962 = vmatprep.mubr.f32.mxu0 %v1658
  %3963 = vmatmul.mubr.f32.gmra.mrb[0].mxu0 %v2040
  %v3964 = vpop.f32.mrb[0].mxu0
  %v3965 = vadd.f32 %v3580, %v3964
  %v3966 = vpop.f32.mrb[0].mxu0
  %3967 = vmatprep.mubr.f32.mxu0 %v1659
  %3968 = vmatmul.mubr.f32.gmra.mrb[0].mxu0 %v2041
  %v3969 = vpop.f32.mrb[0].mxu0
  %v3970 = vadd.f32 %v3585, %v3969
  %v3971 = vpop.f32.mrb[0].mxu0
  %3972 = vmatprep.mubr.f32.mxu0 %v1660
  %3973 = vmatmul.mubr.f32.gmra.mrb[0].mxu0 %v2042
  %v3974 = vpop.f32.mrb[0].mxu0
  %v3975 = vadd.f32 %v3590, %v3974
  %v3976 = vpop.f32.mrb[0].mxu0
  %3977 = vmatprep.mubr.f32.mxu0 %v1661
  %3978 = vmatmul.mubr.f32.gmra.mrb[0].mxu0 %v2043
  %v3979 = vpop.f32.mrb[0].mxu0
  %v3980 = vadd.f32 %v3595, %v3979
  %v3981 = vpop.f32.mrb[0].mxu0
  %3982 = vmatprep.mubr.f32.mxu0 %v1662
  %3983 = vmatmul.mubr.f32.gmra.mrb[0].mxu0 %v2044
  %v3984 = vpop.f32.mrb[0].mxu0
  %v3985 = vadd.f32 %v3600, %v3984
  %v3986 = vpop.f32.mrb[0].mxu0
  %3987 = vmatprep.mubr.f32.mxu0 %v1663
  %3988 = vmatmul.mubr.f32.gmra.mrb[0].mxu0 %v2045
  %v3989 = vpop.f32.mrb[0].mxu0
  %v3990 = vadd.f32 %v3605, %v3989
  %v3991 = vpop.f32.mrb[0].mxu0
  %3992 = vmatprep.mubr.f32.mxu0 %v1664
  %3993 = vmatmul.mubr.f32.gmra.mrb[0].mxu0 %v2046
  %v3994 = vpop.f32.mrb[0].mxu0
  %v3995 = vadd.f32 %v3610, %v3994
  %v3996 = vpop.f32.mrb[0].mxu0
  %3997 = vmatprep.mubr.f32.mxu0 %v1665
  %3998 = vmatmul.mubr.f32.gmra.mrb[0].mxu0 %v2047
  %v3999 = vpop.f32.mrb[0].mxu0
  %v4000 = vadd.f32 %v3615, %v3999
  %v4001 = vpop.f32.mrb[0].mxu0
  %4002 = vmatprep.mubr.f32.mxu0 %v1666
  %4003 = vmatmul.mubr.f32.gmra.mrb[0].mxu0 %v2048
  %v4004 = vpop.f32.mrb[0].mxu0
  %v4005 = vadd.f32 %v3620, %v4004
  %v4006 = vpop.f32.mrb[0].mxu0
  %4007 = vmatprep.mubr.f32.mxu0 %v1667
  %4008 = vmatmul.mubr.f32.gmra.mrb[0].mxu0 %v2049
  %v4009 = vpop.f32.mrb[0].mxu0
  %v4010 = vadd.f32 %v3625, %v4009
  %v4011 = vpop.f32.mrb[0].mxu0
  %4012 = vmatprep.mubr.f32.mxu0 %v1668
  %4013 = vmatmul.mubr.f32.gmra.mrb[0].mxu0 %v2050
  %v4014 = vpop.f32.mrb[0].mxu0
  %v4015 = vadd.f32 %v3630, %v4014
  %v4016 = vpop.f32.mrb[0].mxu0
  %4017 = vmatprep.mubr.f32.mxu0 %v1669
  %4018 = vmatmul.mubr.f32.gmra.mrb[0].mxu0 %v2051
  %v4019 = vpop.f32.mrb[0].mxu0
  %v4020 = vadd.f32 %v3635, %v4019
  %v4021 = vpop.f32.mrb[0].mxu0
  %4022 = vmatprep.mubr.f32.mxu0 %v1670
  %4023 = vmatmul.mubr.f32.gmra.mrb[0].mxu0 %v2052
  %v4024 = vpop.f32.mrb[0].mxu0
  %v4025 = vadd.f32 %v3640, %v4024
  %v4026 = vpop.f32.mrb[0].mxu0
  %4027 = vmatprep.mubr.f32.mxu0 %v1671
  %4028 = vmatmul.mubr.f32.gmra.mrb[0].mxu0 %v2053
  %v4029 = vpop.f32.mrb[0].mxu0
  %v4030 = vadd.f32 %v3645, %v4029
  %v4031 = vpop.f32.mrb[0].mxu0
  %4032 = vmatprep.mubr.f32.mxu0 %v1672
  %4033 = vmatmul.mubr.f32.gmra.mrb[0].mxu0 %v2054
  %v4034 = vpop.f32.mrb[0].mxu0
  %v4035 = vadd.f32 %v3650, %v4034
  %v4036 = vpop.f32.mrb[0].mxu0
  %4037 = vmatprep.mubr.f32.mxu0 %v1673
  %4038 = vmatmul.mubr.f32.gmra.mrb[0].mxu0 %v2055
  %v4039 = vpop.f32.mrb[0].mxu0
  %v4040 = vadd.f32 %v3655, %v4039
  %v4041 = vpop.f32.mrb[0].mxu0
  %4042 = vmatprep.mubr.f32.mxu0 %v1674
  %4043 = vmatmul.mubr.f32.gmra.mrb[0].mxu0 %v2056
  %v4044 = vpop.f32.mrb[0].mxu0
  %v4045 = vadd.f32 %v3660, %v4044
  %v4046 = vpop.f32.mrb[0].mxu0
  %4047 = vmatprep.mubr.f32.mxu0 %v1675
  %4048 = vmatmul.mubr.f32.gmra.mrb[0].mxu0 %v2057
  %v4049 = vpop.f32.mrb[0].mxu0
  %v4050 = vadd.f32 %v3665, %v4049
  %v4051 = vpop.f32.mrb[0].mxu0
  %4052 = vmatprep.mubr.f32.mxu0 %v1676
  %4053 = vmatmul.mubr.f32.gmra.mrb[0].mxu0 %v2058
  %v4054 = vpop.f32.mrb[0].mxu0
  %v4055 = vadd.f32 %v3670, %v4054
  %v4056 = vpop.f32.mrb[0].mxu0
  %4057 = vmatprep.mubr.f32.mxu0 %v1677
  %4058 = vmatmul.mubr.f32.gmra.mrb[0].mxu0 %v2059
  %v4059 = vpop.f32.mrb[0].mxu0
  %v4060 = vadd.f32 %v3675, %v4059
  %v4061 = vpop.f32.mrb[0].mxu0
  %4062 = vmatprep.mubr.f32.mxu0 %v1678
  %4063 = vmatmul.mubr.f32.gmra.mrb[0].mxu0 %v2060
  %v4064 = vpop.f32.mrb[0].mxu0
  %v4065 = vadd.f32 %v3680, %v4064
  %v4066 = vpop.f32.mrb[0].mxu0
  %4067 = vmatprep.mubr.f32.mxu0 %v1679
  %4068 = vmatmul.mubr.f32.gmra.mrb[0].mxu0 %v2061
  %v4069 = vpop.f32.mrb[0].mxu0
  %v4070 = vadd.f32 %v3685, %v4069
  %v4071 = vpop.f32.mrb[0].mxu0
  %4072 = vmatprep.mubr.f32.mxu0 %v1680
  %4073 = vmatmul.mubr.f32.gmra.mrb[0].mxu0 %v2062
  %v4074 = vpop.f32.mrb[0].mxu0
  %v4075 = vadd.f32 %v3690, %v4074
  %v4076 = vpop.f32.mrb[0].mxu0
  %4077 = vmatprep.mubr.f32.mxu0 %v1681
  %4078 = vmatmul.mubr.f32.gmra.mrb[0].mxu0 %v2063
  %v4079 = vpop.f32.mrb[0].mxu0
  %v4080 = vadd.f32 %v3695, %v4079
  %v4081 = vpop.f32.mrb[0].mxu0
  %4082 = vmatprep.mubr.f32.mxu0 %v1682
  %4083 = vmatmul.mubr.f32.gmra.mrb[0].mxu0 %v2064
  %v4084 = vpop.f32.mrb[0].mxu0
  %v4085 = vadd.f32 %v3700, %v4084
  %v4086 = vpop.f32.mrb[0].mxu0
  %4087 = vmatprep.mubr.f32.mxu0 %v1683
  %4088 = vmatmul.mubr.f32.gmra.mrb[0].mxu0 %v2065
  %v4089 = vpop.f32.mrb[0].mxu0
  %v4090 = vadd.f32 %v3705, %v4089
  %v4091 = vpop.f32.mrb[0].mxu0
  %4092 = vmatprep.mubr.f32.mxu0 %v1684
  %4093 = vmatmul.mubr.f32.gmra.mrb[0].mxu0 %v2066
  %v4094 = vpop.f32.mrb[0].mxu0
  %v4095 = vadd.f32 %v3710, %v4094
  %v4096 = vpop.f32.mrb[0].mxu0
  %4097 = vmatprep.mubr.f32.mxu0 %v1685
  %4098 = vmatmul.mubr.f32.gmra.mrb[0].mxu0 %v2067
  %v4099 = vpop.f32.mrb[0].mxu0
  %v4100 = vadd.f32 %v3715, %v4099
  %v4101 = vpop.f32.mrb[0].mxu0
  %4102 = vmatprep.mubr.f32.mxu0 %v1686
  %4103 = vmatmul.mubr.f32.gmra.mrb[0].mxu0 %v2068
  %v4104 = vpop.f32.mrb[0].mxu0
  %v4105 = vadd.f32 %v3720, %v4104
  %v4106 = vpop.f32.mrb[0].mxu0
  %4107 = vmatprep.mubr.f32.mxu0 %v2071
  %4108 = vmatmul.mubr.f32.gmra.mrb[0].mxu0 %v2069
  %v4109 = vpop.f32.mrb[0].mxu0
  %v4110 = vadd.f32 %v3725, %v4109
  %v4111 = vpop.f32.mrb[0].mxu0
  %4112 = vmatprep.mubr.f32.mxu0 %v2072
  %4113 = vmatmul.mubr.f32.gmra.mrb[0].mxu0 %v2070
  %v4114 = vpop.f32.mrb[0].mxu0
  %v4115 = vadd.f32 %v3730, %v4114
  %v4116 = vpop.f32.mrb[0].mxu0
  %4117 = vdwg.mxu0
  %4118 = vmatprep.subr.mxu0 0.0
  %4119 = vmatpush1.msra.mxu0 %v2306
  %4120 = vmatprep.subr.mxu0 0.0
  %4121 = vmatpush1.msra.mxu0 %v2307
  %4122 = vmatprep.subr.mxu0 0.0
  %4123 = vmatpush1.msra.mxu0 %v2308
  %4124 = vmatprep.subr.mxu0 0.0
  %4125 = vmatpush1.msra.mxu0 %v2309
  %4126 = vmatprep.subr.mxu0 0.0
  %4127 = vmatpush1.msra.mxu0 %v2310
  %4128 = vmatprep.subr.mxu0 0.0
  %4129 = vmatpush1.msra.mxu0 %v2311
  %4130 = vmatprep.subr.mxu0 0.0
  %4131 = vmatpush1.msra.mxu0 %v2312
  %4132 = vmatprep.subr.mxu0 0.0
  %4133 = vmatpush1.msra.mxu0 %v2313
  %4134 = vmatprep.subr.mxu0 0.0
  %4135 = vmatpush1.msra.mxu0 %v2314
  %4136 = vmatprep.subr.mxu0 0.0
  %4137 = vmatpush1.msra.mxu0 %v2315
  %4138 = vmatprep.subr.mxu0 0.0
  %4139 = vmatpush1.msra.mxu0 %v2316
  %4140 = vmatprep.subr.mxu0 0.0
  %4141 = vmatpush1.msra.mxu0 %v2317
  %4142 = vmatprep.subr.mxu0 0.0
  %4143 = vmatpush1.msra.mxu0 %v2318
  %4144 = vmatprep.subr.mxu0 0.0
  %4145 = vmatpush1.msra.mxu0 %v2319
  %4146 = vmatprep.subr.mxu0 0.0
  %4147 = vmatpush1.msra.mxu0 %v2320
  %4148 = vmatprep.subr.mxu0 0.0
  %4149 = vmatpush1.msra.mxu0 %v2321
  %4150 = vmatprep.subr.mxu0 0.0
  %4151 = vmatpush1.msra.mxu0 %v2322
  %4152 = vmatprep.subr.mxu0 0.0
  %4153 = vmatpush1.msra.mxu0 %v2323
  %4154 = vmatprep.subr.mxu0 0.0
  %4155 = vmatpush1.msra.mxu0 %v2324
  %4156 = vmatprep.subr.mxu0 0.0
  %4157 = vmatpush1.msra.mxu0 %v2325
  %4158 = vmatprep.subr.mxu0 0.0
  %4159 = vmatpush1.msra.mxu0 %v2326
  %4160 = vmatprep.subr.mxu0 0.0
  %4161 = vmatpush1.msra.mxu0 %v2327
  %4162 = vmatprep.subr.mxu0 0.0
  %4163 = vmatpush1.msra.mxu0 %v2328
  %4164 = vmatprep.subr.mxu0 0.0
  %4165 = vmatpush1.msra.mxu0 %v2329
  %4166 = vmatprep.subr.mxu0 0.0
  %4167 = vmatpush1.msra.mxu0 %v2330
  %4168 = vmatprep.subr.mxu0 0.0
  %4169 = vmatpush1.msra.mxu0 %v2331
  %4170 = vmatprep.subr.mxu0 0.0
  %4171 = vmatpush1.msra.mxu0 %v2332
  %4172 = vmatprep.subr.mxu0 0.0
  %4173 = vmatpush1.msra.mxu0 %v2333
  %4174 = vmatprep.subr.mxu0 0.0
  %4175 = vmatpush1.msra.mxu0 %v2334
  %4176 = vmatprep.subr.mxu0 0.0
  %4177 = vmatpush1.msra.mxu0 %v2335
  %4178 = vmatprep.subr.mxu0 0.0
  %4179 = vmatpush1.msra.mxu0 %v2336
  %4180 = vmatprep.subr.mxu0 0.0
  %4181 = vmatpush1.msra.mxu0 %v2337
  %4182 = vmatprep.mubr.f32.mxu0 %v1753
  %4183 = vmatmul.mubr.f32.gmra.mrb[0].mxu0 %v1689
  %v4184 = vpop.f32.mrb[0].mxu0
  %v4185 = vadd.f32 %v3800, %v4184
  %v4186 = vpop.f32.mrb[0].mxu0
  %4187 = vmatprep.mubr.f32.mxu0 %v1754
  %4188 = vmatmul.mubr.f32.gmra.mrb[0].mxu0 %v1690
  %v4189 = vpop.f32.mrb[0].mxu0
  %v4190 = vadd.f32 %v3805, %v4189
  %v4191 = vpop.f32.mrb[0].mxu0
  %4192 = vmatprep.mubr.f32.mxu0 %v1755
  %4193 = vmatmul.mubr.f32.gmra.mrb[0].mxu0 %v1691
  %v4194 = vpop.f32.mrb[0].mxu0
  %v4195 = vadd.f32 %v3810, %v4194
  %v4196 = vpop.f32.mrb[0].mxu0
  %4197 = vmatprep.mubr.f32.mxu0 %v1756
  %4198 = vmatmul.mubr.f32.gmra.mrb[0].mxu0 %v1692
  %v4199 = vpop.f32.mrb[0].mxu0
  %v4200 = vadd.f32 %v3815, %v4199
  %v4201 = vpop.f32.mrb[0].mxu0
  %4202 = vmatprep.mubr.f32.mxu0 %v1757
  %4203 = vmatmul.mubr.f32.gmra.mrb[0].mxu0 %v1693
  %v4204 = vpop.f32.mrb[0].mxu0
  %v4205 = vadd.f32 %v3820, %v4204
  %v4206 = vpop.f32.mrb[0].mxu0
  %4207 = vmatprep.mubr.f32.mxu0 %v1758
  %4208 = vmatmul.mubr.f32.gmra.mrb[0].mxu0 %v1694
  %v4209 = vpop.f32.mrb[0].mxu0
  %v4210 = vadd.f32 %v3825, %v4209
  %v4211 = vpop.f32.mrb[0].mxu0
  %4212 = vmatprep.mubr.f32.mxu0 %v1759
  %4213 = vmatmul.mubr.f32.gmra.mrb[0].mxu0 %v1695
  %v4214 = vpop.f32.mrb[0].mxu0
  %v4215 = vadd.f32 %v3830, %v4214
  %v4216 = vpop.f32.mrb[0].mxu0
  %4217 = vmatprep.mubr.f32.mxu0 %v1760
  %4218 = vmatmul.mubr.f32.gmra.mrb[0].mxu0 %v1696
  %v4219 = vpop.f32.mrb[0].mxu0
  %v4220 = vadd.f32 %v3835, %v4219
  %v4221 = vpop.f32.mrb[0].mxu0
  %4222 = vmatprep.mubr.f32.mxu0 %v1761
  %4223 = vmatmul.mubr.f32.gmra.mrb[0].mxu0 %v1697
  %v4224 = vpop.f32.mrb[0].mxu0
  %v4225 = vadd.f32 %v3840, %v4224
  %v4226 = vpop.f32.mrb[0].mxu0
  %4227 = vmatprep.mubr.f32.mxu0 %v1762
  %4228 = vmatmul.mubr.f32.gmra.mrb[0].mxu0 %v1698
  %v4229 = vpop.f32.mrb[0].mxu0
  %v4230 = vadd.f32 %v3845, %v4229
  %v4231 = vpop.f32.mrb[0].mxu0
  %4232 = vmatprep.mubr.f32.mxu0 %v1763
  %4233 = vmatmul.mubr.f32.gmra.mrb[0].mxu0 %v1699
  %v4234 = vpop.f32.mrb[0].mxu0
  %v4235 = vadd.f32 %v3850, %v4234
  %v4236 = vpop.f32.mrb[0].mxu0
  %4237 = vmatprep.mubr.f32.mxu0 %v1764
  %4238 = vmatmul.mubr.f32.gmra.mrb[0].mxu0 %v1700
  %v4239 = vpop.f32.mrb[0].mxu0
  %v4240 = vadd.f32 %v3855, %v4239
  %v4241 = vpop.f32.mrb[0].mxu0
  %4242 = vmatprep.mubr.f32.mxu0 %v1765
  %4243 = vmatmul.mubr.f32.gmra.mrb[0].mxu0 %v1701
  %v4244 = vpop.f32.mrb[0].mxu0
  %v4245 = vadd.f32 %v3860, %v4244
  %v4246 = vpop.f32.mrb[0].mxu0
  %4247 = vmatprep.mubr.f32.mxu0 %v1766
  %4248 = vmatmul.mubr.f32.gmra.mrb[0].mxu0 %v1702
  %v4249 = vpop.f32.mrb[0].mxu0
  %v4250 = vadd.f32 %v3865, %v4249
  %v4251 = vpop.f32.mrb[0].mxu0
  %4252 = vmatprep.mubr.f32.mxu0 %v1767
  %4253 = vmatmul.mubr.f32.gmra.mrb[0].mxu0 %v1703
  %v4254 = vpop.f32.mrb[0].mxu0
  %v4255 = vadd.f32 %v3870, %v4254
  %v4256 = vpop.f32.mrb[0].mxu0
  %4257 = vmatprep.mubr.f32.mxu0 %v1768
  %4258 = vmatmul.mubr.f32.gmra.mrb[0].mxu0 %v1704
  %v4259 = vpop.f32.mrb[0].mxu0
  %v4260 = vadd.f32 %v3875, %v4259
  %v4261 = vpop.f32.mrb[0].mxu0
  %4262 = vmatprep.mubr.f32.mxu0 %v1769
  %4263 = vmatmul.mubr.f32.gmra.mrb[0].mxu0 %v1705
  %v4264 = vpop.f32.mrb[0].mxu0
  %v4265 = vadd.f32 %v3880, %v4264
  %v4266 = vpop.f32.mrb[0].mxu0
  %4267 = vmatprep.mubr.f32.mxu0 %v1770
  %4268 = vmatmul.mubr.f32.gmra.mrb[0].mxu0 %v1706
  %v4269 = vpop.f32.mrb[0].mxu0
  %v4270 = vadd.f32 %v3885, %v4269
  %v4271 = vpop.f32.mrb[0].mxu0
  %4272 = vmatprep.mubr.f32.mxu0 %v1771
  %4273 = vmatmul.mubr.f32.gmra.mrb[0].mxu0 %v1707
  %v4274 = vpop.f32.mrb[0].mxu0
  %v4275 = vadd.f32 %v3890, %v4274
  %v4276 = vpop.f32.mrb[0].mxu0
  %4277 = vmatprep.mubr.f32.mxu0 %v1772
  %4278 = vmatmul.mubr.f32.gmra.mrb[0].mxu0 %v1708
  %v4279 = vpop.f32.mrb[0].mxu0
  %v4280 = vadd.f32 %v3895, %v4279
  %v4281 = vpop.f32.mrb[0].mxu0
  %4282 = vmatprep.mubr.f32.mxu0 %v1773
  %4283 = vmatmul.mubr.f32.gmra.mrb[0].mxu0 %v1709
  %v4284 = vpop.f32.mrb[0].mxu0
  %v4285 = vadd.f32 %v3900, %v4284
  %v4286 = vpop.f32.mrb[0].mxu0
  %4287 = vmatprep.mubr.f32.mxu0 %v1774
  %4288 = vmatmul.mubr.f32.gmra.mrb[0].mxu0 %v1710
  %v4289 = vpop.f32.mrb[0].mxu0
  %v4290 = vadd.f32 %v3905, %v4289
  %v4291 = vpop.f32.mrb[0].mxu0
  %4292 = vmatprep.mubr.f32.mxu0 %v1775
  %4293 = vmatmul.mubr.f32.gmra.mrb[0].mxu0 %v1711
  %v4294 = vpop.f32.mrb[0].mxu0
  %v4295 = vadd.f32 %v3910, %v4294
  %v4296 = vpop.f32.mrb[0].mxu0
  %4297 = vmatprep.mubr.f32.mxu0 %v1776
  %4298 = vmatmul.mubr.f32.gmra.mrb[0].mxu0 %v1712
  %v4299 = vpop.f32.mrb[0].mxu0
  %v4300 = vadd.f32 %v3915, %v4299
  %v4301 = vpop.f32.mrb[0].mxu0
  %4302 = vmatprep.mubr.f32.mxu0 %v1777
  %4303 = vmatmul.mubr.f32.gmra.mrb[0].mxu0 %v1713
  %v4304 = vpop.f32.mrb[0].mxu0
  %v4305 = vadd.f32 %v3920, %v4304
  %v4306 = vpop.f32.mrb[0].mxu0
  %4307 = vmatprep.mubr.f32.mxu0 %v1778
  %4308 = vmatmul.mubr.f32.gmra.mrb[0].mxu0 %v1714
  %v4309 = vpop.f32.mrb[0].mxu0
  %v4310 = vadd.f32 %v3925, %v4309
  %v4311 = vpop.f32.mrb[0].mxu0
  %4312 = vmatprep.mubr.f32.mxu0 %v1779
  %4313 = vmatmul.mubr.f32.gmra.mrb[0].mxu0 %v1715
  %v4314 = vpop.f32.mrb[0].mxu0
  %v4315 = vadd.f32 %v3930, %v4314
  %v4316 = vpop.f32.mrb[0].mxu0
  %4317 = vmatprep.mubr.f32.mxu0 %v1780
  %4318 = vmatmul.mubr.f32.gmra.mrb[0].mxu0 %v1716
  %v4319 = vpop.f32.mrb[0].mxu0
  %v4320 = vadd.f32 %v3935, %v4319
  %v4321 = vpop.f32.mrb[0].mxu0
  %4322 = vmatprep.mubr.f32.mxu0 %v1781
  %4323 = vmatmul.mubr.f32.gmra.mrb[0].mxu0 %v1717
  %v4324 = vpop.f32.mrb[0].mxu0
  %v4325 = vadd.f32 %v3940, %v4324
  %v4326 = vpop.f32.mrb[0].mxu0
  %4327 = vmatprep.mubr.f32.mxu0 %v1782
  %4328 = vmatmul.mubr.f32.gmra.mrb[0].mxu0 %v1718
  %v4329 = vpop.f32.mrb[0].mxu0
  %v4330 = vadd.f32 %v3945, %v4329
  %v4331 = vpop.f32.mrb[0].mxu0
  %4332 = vmatprep.mubr.f32.mxu0 %v1783
  %4333 = vmatmul.mubr.f32.gmra.mrb[0].mxu0 %v1719
  %v4334 = vpop.f32.mrb[0].mxu0
  %v4335 = vadd.f32 %v3950, %v4334
  %v4336 = vpop.f32.mrb[0].mxu0
  %4337 = vmatprep.mubr.f32.mxu0 %v1784
  %4338 = vmatmul.mubr.f32.gmra.mrb[0].mxu0 %v1720
  %v4339 = vpop.f32.mrb[0].mxu0
  %v4340 = vadd.f32 %v3955, %v4339
  %v4341 = vpop.f32.mrb[0].mxu0
  %4342 = vmatprep.mubr.f32.mxu0 %v1785
  %4343 = vmatmul.mubr.f32.gmra.mrb[0].mxu0 %v1721
  %v4344 = vpop.f32.mrb[0].mxu0
  %v4345 = vadd.f32 %v3960, %v4344
  %v4346 = vpop.f32.mrb[0].mxu0
  %4347 = vmatprep.mubr.f32.mxu0 %v1786
  %4348 = vmatmul.mubr.f32.gmra.mrb[0].mxu0 %v1722
  %v4349 = vpop.f32.mrb[0].mxu0
  %v4350 = vadd.f32 %v3965, %v4349
  %v4351 = vpop.f32.mrb[0].mxu0
  %4352 = vmatprep.mubr.f32.mxu0 %v1787
  %4353 = vmatmul.mubr.f32.gmra.mrb[0].mxu0 %v1723
  %v4354 = vpop.f32.mrb[0].mxu0
  %v4355 = vadd.f32 %v3970, %v4354
  %v4356 = vpop.f32.mrb[0].mxu0
  %4357 = vmatprep.mubr.f32.mxu0 %v1788
  %4358 = vmatmul.mubr.f32.gmra.mrb[0].mxu0 %v1724
  %v4359 = vpop.f32.mrb[0].mxu0
  %v4360 = vadd.f32 %v3975, %v4359
  %v4361 = vpop.f32.mrb[0].mxu0
  %4362 = vmatprep.mubr.f32.mxu0 %v1789
  %4363 = vmatmul.mubr.f32.gmra.mrb[0].mxu0 %v1725
  %v4364 = vpop.f32.mrb[0].mxu0
  %v4365 = vadd.f32 %v3980, %v4364
  %v4366 = vpop.f32.mrb[0].mxu0
  %4367 = vmatprep.mubr.f32.mxu0 %v1790
  %4368 = vmatmul.mubr.f32.gmra.mrb[0].mxu0 %v1726
  %v4369 = vpop.f32.mrb[0].mxu0
  %v4370 = vadd.f32 %v3985, %v4369
  %v4371 = vpop.f32.mrb[0].mxu0
  %4372 = vmatprep.mubr.f32.mxu0 %v1791
  %4373 = vmatmul.mubr.f32.gmra.mrb[0].mxu0 %v1727
  %v4374 = vpop.f32.mrb[0].mxu0
  %v4375 = vadd.f32 %v3990, %v4374
  %v4376 = vpop.f32.mrb[0].mxu0
  %4377 = vmatprep.mubr.f32.mxu0 %v1792
  %4378 = vmatmul.mubr.f32.gmra.mrb[0].mxu0 %v1728
  %v4379 = vpop.f32.mrb[0].mxu0
  %v4380 = vadd.f32 %v3995, %v4379
  %v4381 = vpop.f32.mrb[0].mxu0
  %4382 = vmatprep.mubr.f32.mxu0 %v1793
  %4383 = vmatmul.mubr.f32.gmra.mrb[0].mxu0 %v1729
  %v4384 = vpop.f32.mrb[0].mxu0
  %v4385 = vadd.f32 %v4000, %v4384
  %v4386 = vpop.f32.mrb[0].mxu0
  %4387 = vmatprep.mubr.f32.mxu0 %v1794
  %4388 = vmatmul.mubr.f32.gmra.mrb[0].mxu0 %v1730
  %v4389 = vpop.f32.mrb[0].mxu0
  %v4390 = vadd.f32 %v4005, %v4389
  %v4391 = vpop.f32.mrb[0].mxu0
  %4392 = vmatprep.mubr.f32.mxu0 %v1795
  %4393 = vmatmul.mubr.f32.gmra.mrb[0].mxu0 %v1731
  %v4394 = vpop.f32.mrb[0].mxu0
  %v4395 = vadd.f32 %v4010, %v4394
  %v4396 = vpop.f32.mrb[0].mxu0
  %4397 = vmatprep.mubr.f32.mxu0 %v1796
  %4398 = vmatmul.mubr.f32.gmra.mrb[0].mxu0 %v1732
  %v4399 = vpop.f32.mrb[0].mxu0
  %v4400 = vadd.f32 %v4015, %v4399
  %v4401 = vpop.f32.mrb[0].mxu0
  %4402 = vmatprep.mubr.f32.mxu0 %v1797
  %4403 = vmatmul.mubr.f32.gmra.mrb[0].mxu0 %v1733
  %v4404 = vpop.f32.mrb[0].mxu0
  %v4405 = vadd.f32 %v4020, %v4404
  %v4406 = vpop.f32.mrb[0].mxu0
  %4407 = vmatprep.mubr.f32.mxu0 %v1798
  %4408 = vmatmul.mubr.f32.gmra.mrb[0].mxu0 %v1734
  %v4409 = vpop.f32.mrb[0].mxu0
  %v4410 = vadd.f32 %v4025, %v4409
  %v4411 = vpop.f32.mrb[0].mxu0
  %4412 = vmatprep.mubr.f32.mxu0 %v1799
  %4413 = vmatmul.mubr.f32.gmra.mrb[0].mxu0 %v1735
  %v4414 = vpop.f32.mrb[0].mxu0
  %v4415 = vadd.f32 %v4030, %v4414
  %v4416 = vpop.f32.mrb[0].mxu0
  %4417 = vmatprep.mubr.f32.mxu0 %v1800
  %4418 = vmatmul.mubr.f32.gmra.mrb[0].mxu0 %v1736
  %v4419 = vpop.f32.mrb[0].mxu0
  %v4420 = vadd.f32 %v4035, %v4419
  %v4421 = vpop.f32.mrb[0].mxu0
  %4422 = vmatprep.mubr.f32.mxu0 %v1801
  %4423 = vmatmul.mubr.f32.gmra.mrb[0].mxu0 %v1737
  %v4424 = vpop.f32.mrb[0].mxu0
  %v4425 = vadd.f32 %v4040, %v4424
  %v4426 = vpop.f32.mrb[0].mxu0
  %4427 = vmatprep.mubr.f32.mxu0 %v1802
  %4428 = vmatmul.mubr.f32.gmra.mrb[0].mxu0 %v1738
  %v4429 = vpop.f32.mrb[0].mxu0
  %v4430 = vadd.f32 %v4045, %v4429
  %v4431 = vpop.f32.mrb[0].mxu0
  %4432 = vmatprep.mubr.f32.mxu0 %v1803
  %4433 = vmatmul.mubr.f32.gmra.mrb[0].mxu0 %v1739
  %v4434 = vpop.f32.mrb[0].mxu0
  %v4435 = vadd.f32 %v4050, %v4434
  %v4436 = vpop.f32.mrb[0].mxu0
  %4437 = vmatprep.mubr.f32.mxu0 %v1804
  %4438 = vmatmul.mubr.f32.gmra.mrb[0].mxu0 %v1740
  %v4439 = vpop.f32.mrb[0].mxu0
  %v4440 = vadd.f32 %v4055, %v4439
  %v4441 = vpop.f32.mrb[0].mxu0
  %4442 = vmatprep.mubr.f32.mxu0 %v1805
  %4443 = vmatmul.mubr.f32.gmra.mrb[0].mxu0 %v1741
  %v4444 = vpop.f32.mrb[0].mxu0
  %v4445 = vadd.f32 %v4060, %v4444
  %v4446 = vpop.f32.mrb[0].mxu0
  %4447 = vmatprep.mubr.f32.mxu0 %v1806
  %4448 = vmatmul.mubr.f32.gmra.mrb[0].mxu0 %v1742
  %v4449 = vpop.f32.mrb[0].mxu0
  %v4450 = vadd.f32 %v4065, %v4449
  %v4451 = vpop.f32.mrb[0].mxu0
  %4452 = vmatprep.mubr.f32.mxu0 %v1807
  %4453 = vmatmul.mubr.f32.gmra.mrb[0].mxu0 %v1743
  %v4454 = vpop.f32.mrb[0].mxu0
  %v4455 = vadd.f32 %v4070, %v4454
  %v4456 = vpop.f32.mrb[0].mxu0
  %4457 = vmatprep.mubr.f32.mxu0 %v1808
  %4458 = vmatmul.mubr.f32.gmra.mrb[0].mxu0 %v1744
  %v4459 = vpop.f32.mrb[0].mxu0
  %v4460 = vadd.f32 %v4075, %v4459
  %v4461 = vpop.f32.mrb[0].mxu0
  %4462 = vmatprep.mubr.f32.mxu0 %v1809
  %4463 = vmatmul.mubr.f32.gmra.mrb[0].mxu0 %v1745
  %v4464 = vpop.f32.mrb[0].mxu0
  %v4465 = vadd.f32 %v4080, %v4464
  %v4466 = vpop.f32.mrb[0].mxu0
  %4467 = vmatprep.mubr.f32.mxu0 %v1810
  %4468 = vmatmul.mubr.f32.gmra.mrb[0].mxu0 %v1746
  %v4469 = vpop.f32.mrb[0].mxu0
  %v4470 = vadd.f32 %v4085, %v4469
  %v4471 = vpop.f32.mrb[0].mxu0
  %4472 = vmatprep.mubr.f32.mxu0 %v1811
  %4473 = vmatmul.mubr.f32.gmra.mrb[0].mxu0 %v1747
  %v4474 = vpop.f32.mrb[0].mxu0
  %v4475 = vadd.f32 %v4090, %v4474
  %v4476 = vpop.f32.mrb[0].mxu0
  %4477 = vmatprep.mubr.f32.mxu0 %v1812
  %4478 = vmatmul.mubr.f32.gmra.mrb[0].mxu0 %v1748
  %v4479 = vpop.f32.mrb[0].mxu0
  %v4480 = vadd.f32 %v4095, %v4479
  %v4481 = vpop.f32.mrb[0].mxu0
  %4482 = vmatprep.mubr.f32.mxu0 %v1813
  %4483 = vmatmul.mubr.f32.gmra.mrb[0].mxu0 %v1749
  %v4484 = vpop.f32.mrb[0].mxu0
  %v4485 = vadd.f32 %v4100, %v4484
  %v4486 = vpop.f32.mrb[0].mxu0
  %4487 = vmatprep.mubr.f32.mxu0 %v1814
  %4488 = vmatmul.mubr.f32.gmra.mrb[0].mxu0 %v1750
  %v4489 = vpop.f32.mrb[0].mxu0
  %v4490 = vadd.f32 %v4105, %v4489
  %v4491 = vpop.f32.mrb[0].mxu0
  %4492 = vmatprep.mubr.f32.mxu0 %v2075
  %4493 = vmatmul.mubr.f32.gmra.mrb[0].mxu0 %v2073
  %v4494 = vpop.f32.mrb[0].mxu0
  %v4495 = vadd.f32 %v4110, %v4494
  %v4496 = vpop.f32.mrb[0].mxu0
  %4497 = vmatprep.mubr.f32.mxu0 %v2076
  %4498 = vmatmul.mubr.f32.gmra.mrb[0].mxu0 %v2074
  %v4499 = vpop.f32.mrb[0].mxu0
  %v4500 = vadd.f32 %v4115, %v4499
  %v4501 = vpop.f32.mrb[0].mxu0
  %4502 = vdwg.mxu0
  %4503 = vmatprep.subr.mxu0 0.0
  %4504 = vmatpush1.msra.mxu0 %v2338
  %4505 = vmatprep.subr.mxu0 0.0
  %4506 = vmatpush1.msra.mxu0 %v2339
  %4507 = vmatprep.subr.mxu0 0.0
  %4508 = vmatpush1.msra.mxu0 %v2340
  %4509 = vmatprep.subr.mxu0 0.0
  %4510 = vmatpush1.msra.mxu0 %v2341
  %4511 = vmatprep.subr.mxu0 0.0
  %4512 = vmatpush1.msra.mxu0 %v2342
  %4513 = vmatprep.subr.mxu0 0.0
  %4514 = vmatpush1.msra.mxu0 %v2343
  %4515 = vmatprep.subr.mxu0 0.0
  %4516 = vmatpush1.msra.mxu0 %v2344
  %4517 = vmatprep.subr.mxu0 0.0
  %4518 = vmatpush1.msra.mxu0 %v2345
  %4519 = vmatprep.subr.mxu0 0.0
  %4520 = vmatpush1.msra.mxu0 %v2346
  %4521 = vmatprep.subr.mxu0 0.0
  %4522 = vmatpush1.msra.mxu0 %v2347
  %4523 = vmatprep.subr.mxu0 0.0
  %4524 = vmatpush1.msra.mxu0 %v2348
  %4525 = vmatprep.subr.mxu0 0.0
  %4526 = vmatpush1.msra.mxu0 %v2349
  %4527 = vmatprep.subr.mxu0 0.0
  %4528 = vmatpush1.msra.mxu0 %v2350
  %4529 = vmatprep.subr.mxu0 0.0
  %4530 = vmatpush1.msra.mxu0 %v2351
  %4531 = vmatprep.subr.mxu0 0.0
  %4532 = vmatpush1.msra.mxu0 %v2352
  %4533 = vmatprep.subr.mxu0 0.0
  %4534 = vmatpush1.msra.mxu0 %v2353
  %4535 = vmatprep.subr.mxu0 0.0
  %4536 = vmatpush1.msra.mxu0 %v2354
  %4537 = vmatprep.subr.mxu0 0.0
  %4538 = vmatpush1.msra.mxu0 %v2355
  %4539 = vmatprep.subr.mxu0 0.0
  %4540 = vmatpush1.msra.mxu0 %v2356
  %4541 = vmatprep.subr.mxu0 0.0
  %4542 = vmatpush1.msra.mxu0 %v2357
  %4543 = vmatprep.subr.mxu0 0.0
  %4544 = vmatpush1.msra.mxu0 %v2358
  %4545 = vmatprep.subr.mxu0 0.0
  %4546 = vmatpush1.msra.mxu0 %v2359
  %4547 = vmatprep.subr.mxu0 0.0
  %4548 = vmatpush1.msra.mxu0 %v2360
  %4549 = vmatprep.subr.mxu0 0.0
  %4550 = vmatpush1.msra.mxu0 %v2361
  %4551 = vmatprep.subr.mxu0 0.0
  %4552 = vmatpush1.msra.mxu0 %v2362
  %4553 = vmatprep.subr.mxu0 0.0
  %4554 = vmatpush1.msra.mxu0 %v2363
  %4555 = vmatprep.subr.mxu0 0.0
  %4556 = vmatpush1.msra.mxu0 %v2364
  %4557 = vmatprep.subr.mxu0 0.0
  %4558 = vmatpush1.msra.mxu0 %v2365
  %4559 = vmatprep.subr.mxu0 0.0
  %4560 = vmatpush1.msra.mxu0 %v2366
  %4561 = vmatprep.subr.mxu0 0.0
  %4562 = vmatpush1.msra.mxu0 %v2367
  %4563 = vmatprep.subr.mxu0 0.0
  %4564 = vmatpush1.msra.mxu0 %v2368
  %4565 = vmatprep.subr.mxu0 0.0
  %4566 = vmatpush1.msra.mxu0 %v2369
  %4567 = vmatprep.mubr.f32.mxu0 %v2080
  %4568 = vmatmul.mubr.f32.gmra.mrb[0].mxu0 %v1882
  %v4569 = vpop.f32.mrb[0].mxu0
  %v4570 = vadd.f32 %v4185, %v4569
  %v4571 = vpop.f32.mrb[0].mxu0
  %4572 = vmatprep.mubr.f32.mxu0 %v2081
  %4573 = vmatmul.mubr.f32.gmra.mrb[0].mxu0 %v1883
  %v4574 = vpop.f32.mrb[0].mxu0
  %v4575 = vadd.f32 %v4190, %v4574
  %v4576 = vpop.f32.mrb[0].mxu0
  %4577 = vmatprep.mubr.f32.mxu0 %v2082
  %4578 = vmatmul.mubr.f32.gmra.mrb[0].mxu0 %v1884
  %v4579 = vpop.f32.mrb[0].mxu0
  %v4580 = vadd.f32 %v4195, %v4579
  %v4581 = vpop.f32.mrb[0].mxu0
  %4582 = vmatprep.mubr.f32.mxu0 %v2083
  %4583 = vmatmul.mubr.f32.gmra.mrb[0].mxu0 %v1885
  %v4584 = vpop.f32.mrb[0].mxu0
  %v4585 = vadd.f32 %v4200, %v4584
  %v4586 = vpop.f32.mrb[0].mxu0
  %4587 = vmatprep.mubr.f32.mxu0 %v2084
  %4588 = vmatmul.mubr.f32.gmra.mrb[0].mxu0 %v1886
  %v4589 = vpop.f32.mrb[0].mxu0
  %v4590 = vadd.f32 %v4205, %v4589
  %v4591 = vpop.f32.mrb[0].mxu0
  %4592 = vmatprep.mubr.f32.mxu0 %v2085
  %4593 = vmatmul.mubr.f32.gmra.mrb[0].mxu0 %v1887
  %v4594 = vpop.f32.mrb[0].mxu0
  %v4595 = vadd.f32 %v4210, %v4594
  %v4596 = vpop.f32.mrb[0].mxu0
  %4597 = vmatprep.mubr.f32.mxu0 %v2086
  %4598 = vmatmul.mubr.f32.gmra.mrb[0].mxu0 %v1888
  %v4599 = vpop.f32.mrb[0].mxu0
  %v4600 = vadd.f32 %v4215, %v4599
  %v4601 = vpop.f32.mrb[0].mxu0
  %4602 = vmatprep.mubr.f32.mxu0 %v2087
  %4603 = vmatmul.mubr.f32.gmra.mrb[0].mxu0 %v1889
  %v4604 = vpop.f32.mrb[0].mxu0
  %v4605 = vadd.f32 %v4220, %v4604
  %v4606 = vpop.f32.mrb[0].mxu0
  %4607 = vmatprep.mubr.f32.mxu0 %v2088
  %4608 = vmatmul.mubr.f32.gmra.mrb[0].mxu0 %v1890
  %v4609 = vpop.f32.mrb[0].mxu0
  %v4610 = vadd.f32 %v4225, %v4609
  %v4611 = vpop.f32.mrb[0].mxu0
  %4612 = vmatprep.mubr.f32.mxu0 %v2089
  %4613 = vmatmul.mubr.f32.gmra.mrb[0].mxu0 %v1891
  %v4614 = vpop.f32.mrb[0].mxu0
  %v4615 = vadd.f32 %v4230, %v4614
  %v4616 = vpop.f32.mrb[0].mxu0
  %4617 = vmatprep.mubr.f32.mxu0 %v2090
  %4618 = vmatmul.mubr.f32.gmra.mrb[0].mxu0 %v1892
  %v4619 = vpop.f32.mrb[0].mxu0
  %v4620 = vadd.f32 %v4235, %v4619
  %v4621 = vpop.f32.mrb[0].mxu0
  %4622 = vmatprep.mubr.f32.mxu0 %v2091
  %4623 = vmatmul.mubr.f32.gmra.mrb[0].mxu0 %v1893
  %v4624 = vpop.f32.mrb[0].mxu0
  %v4625 = vadd.f32 %v4240, %v4624
  %v4626 = vpop.f32.mrb[0].mxu0
  %4627 = vmatprep.mubr.f32.mxu0 %v2092
  %4628 = vmatmul.mubr.f32.gmra.mrb[0].mxu0 %v1894
  %v4629 = vpop.f32.mrb[0].mxu0
  %v4630 = vadd.f32 %v4245, %v4629
  %v4631 = vpop.f32.mrb[0].mxu0
  %4632 = vmatprep.mubr.f32.mxu0 %v2093
  %4633 = vmatmul.mubr.f32.gmra.mrb[0].mxu0 %v1895
  %v4634 = vpop.f32.mrb[0].mxu0
  %v4635 = vadd.f32 %v4250, %v4634
  %v4636 = vpop.f32.mrb[0].mxu0
  %4637 = vmatprep.mubr.f32.mxu0 %v2094
  %4638 = vmatmul.mubr.f32.gmra.mrb[0].mxu0 %v1896
  %v4639 = vpop.f32.mrb[0].mxu0
  %v4640 = vadd.f32 %v4255, %v4639
  %v4641 = vpop.f32.mrb[0].mxu0
  %4642 = vmatprep.mubr.f32.mxu0 %v2095
  %4643 = vmatmul.mubr.f32.gmra.mrb[0].mxu0 %v1897
  %v4644 = vpop.f32.mrb[0].mxu0
  %v4645 = vadd.f32 %v4260, %v4644
  %v4646 = vpop.f32.mrb[0].mxu0
  %4647 = vmatprep.mubr.f32.mxu0 %v2096
  %4648 = vmatmul.mubr.f32.gmra.mrb[0].mxu0 %v1898
  %v4649 = vpop.f32.mrb[0].mxu0
  %v4650 = vadd.f32 %v4265, %v4649
  %v4651 = vpop.f32.mrb[0].mxu0
  %4652 = vmatprep.mubr.f32.mxu0 %v2097
  %4653 = vmatmul.mubr.f32.gmra.mrb[0].mxu0 %v1899
  %v4654 = vpop.f32.mrb[0].mxu0
  %v4655 = vadd.f32 %v4270, %v4654
  %v4656 = vpop.f32.mrb[0].mxu0
  %4657 = vmatprep.mubr.f32.mxu0 %v2098
  %4658 = vmatmul.mubr.f32.gmra.mrb[0].mxu0 %v1900
  %v4659 = vpop.f32.mrb[0].mxu0
  %v4660 = vadd.f32 %v4275, %v4659
  %v4661 = vpop.f32.mrb[0].mxu0
  %4662 = vmatprep.mubr.f32.mxu0 %v2099
  %4663 = vmatmul.mubr.f32.gmra.mrb[0].mxu0 %v1901
  %v4664 = vpop.f32.mrb[0].mxu0
  %v4665 = vadd.f32 %v4280, %v4664
  %v4666 = vpop.f32.mrb[0].mxu0
  %4667 = vmatprep.mubr.f32.mxu0 %v2100
  %4668 = vmatmul.mubr.f32.gmra.mrb[0].mxu0 %v1902
  %v4669 = vpop.f32.mrb[0].mxu0
  %v4670 = vadd.f32 %v4285, %v4669
  %v4671 = vpop.f32.mrb[0].mxu0
  %4672 = vmatprep.mubr.f32.mxu0 %v2101
  %4673 = vmatmul.mubr.f32.gmra.mrb[0].mxu0 %v1903
  %v4674 = vpop.f32.mrb[0].mxu0
  %v4675 = vadd.f32 %v4290, %v4674
  %v4676 = vpop.f32.mrb[0].mxu0
  %4677 = vmatprep.mubr.f32.mxu0 %v2102
  %4678 = vmatmul.mubr.f32.gmra.mrb[0].mxu0 %v1904
  %v4679 = vpop.f32.mrb[0].mxu0
  %v4680 = vadd.f32 %v4295, %v4679
  %v4681 = vpop.f32.mrb[0].mxu0
  %4682 = vmatprep.mubr.f32.mxu0 %v2103
  %4683 = vmatmul.mubr.f32.gmra.mrb[0].mxu0 %v1905
  %v4684 = vpop.f32.mrb[0].mxu0
  %v4685 = vadd.f32 %v4300, %v4684
  %v4686 = vpop.f32.mrb[0].mxu0
  %4687 = vmatprep.mubr.f32.mxu0 %v2104
  %4688 = vmatmul.mubr.f32.gmra.mrb[0].mxu0 %v1906
  %v4689 = vpop.f32.mrb[0].mxu0
  %v4690 = vadd.f32 %v4305, %v4689
  %v4691 = vpop.f32.mrb[0].mxu0
  %4692 = vmatprep.mubr.f32.mxu0 %v2105
  %4693 = vmatmul.mubr.f32.gmra.mrb[0].mxu0 %v1907
  %v4694 = vpop.f32.mrb[0].mxu0
  %v4695 = vadd.f32 %v4310, %v4694
  %v4696 = vpop.f32.mrb[0].mxu0
  %4697 = vmatprep.mubr.f32.mxu0 %v2106
  %4698 = vmatmul.mubr.f32.gmra.mrb[0].mxu0 %v1908
  %v4699 = vpop.f32.mrb[0].mxu0
  %v4700 = vadd.f32 %v4315, %v4699
  %v4701 = vpop.f32.mrb[0].mxu0
  %4702 = vmatprep.mubr.f32.mxu0 %v2107
  %4703 = vmatmul.mubr.f32.gmra.mrb[0].mxu0 %v1909
  %v4704 = vpop.f32.mrb[0].mxu0
  %v4705 = vadd.f32 %v4320, %v4704
  %v4706 = vpop.f32.mrb[0].mxu0
  %4707 = vmatprep.mubr.f32.mxu0 %v2108
  %4708 = vmatmul.mubr.f32.gmra.mrb[0].mxu0 %v1910
  %v4709 = vpop.f32.mrb[0].mxu0
  %v4710 = vadd.f32 %v4325, %v4709
  %v4711 = vpop.f32.mrb[0].mxu0
  %4712 = vmatprep.mubr.f32.mxu0 %v2109
  %4713 = vmatmul.mubr.f32.gmra.mrb[0].mxu0 %v1911
  %v4714 = vpop.f32.mrb[0].mxu0
  %v4715 = vadd.f32 %v4330, %v4714
  %v4716 = vpop.f32.mrb[0].mxu0
  %4717 = vmatprep.mubr.f32.mxu0 %v2110
  %4718 = vmatmul.mubr.f32.gmra.mrb[0].mxu0 %v1912
  %v4719 = vpop.f32.mrb[0].mxu0
  %v4720 = vadd.f32 %v4335, %v4719
  %v4721 = vpop.f32.mrb[0].mxu0
  %4722 = vmatprep.mubr.f32.mxu0 %v2111
  %4723 = vmatmul.mubr.f32.gmra.mrb[0].mxu0 %v1913
  %v4724 = vpop.f32.mrb[0].mxu0
  %v4725 = vadd.f32 %v4340, %v4724
  %v4726 = vpop.f32.mrb[0].mxu0
  %4727 = vmatprep.mubr.f32.mxu0 %v2112
  %4728 = vmatmul.mubr.f32.gmra.mrb[0].mxu0 %v1914
  %v4729 = vpop.f32.mrb[0].mxu0
  %v4730 = vadd.f32 %v4345, %v4729
  %v4731 = vpop.f32.mrb[0].mxu0
  %4732 = vmatprep.mubr.f32.mxu0 %v2113
  %4733 = vmatmul.mubr.f32.gmra.mrb[0].mxu0 %v1915
  %v4734 = vpop.f32.mrb[0].mxu0
  %v4735 = vadd.f32 %v4350, %v4734
  %v4736 = vpop.f32.mrb[0].mxu0
  %4737 = vmatprep.mubr.f32.mxu0 %v2114
  %4738 = vmatmul.mubr.f32.gmra.mrb[0].mxu0 %v1916
  %v4739 = vpop.f32.mrb[0].mxu0
  %v4740 = vadd.f32 %v4355, %v4739
  %v4741 = vpop.f32.mrb[0].mxu0
  %4742 = vmatprep.mubr.f32.mxu0 %v2115
  %4743 = vmatmul.mubr.f32.gmra.mrb[0].mxu0 %v1917
  %v4744 = vpop.f32.mrb[0].mxu0
  %v4745 = vadd.f32 %v4360, %v4744
  %v4746 = vpop.f32.mrb[0].mxu0
  %4747 = vmatprep.mubr.f32.mxu0 %v2116
  %4748 = vmatmul.mubr.f32.gmra.mrb[0].mxu0 %v1918
  %v4749 = vpop.f32.mrb[0].mxu0
  %v4750 = vadd.f32 %v4365, %v4749
  %v4751 = vpop.f32.mrb[0].mxu0
  %4752 = vmatprep.mubr.f32.mxu0 %v2117
  %4753 = vmatmul.mubr.f32.gmra.mrb[0].mxu0 %v1919
  %v4754 = vpop.f32.mrb[0].mxu0
  %v4755 = vadd.f32 %v4370, %v4754
  %v4756 = vpop.f32.mrb[0].mxu0
  %4757 = vmatprep.mubr.f32.mxu0 %v2118
  %4758 = vmatmul.mubr.f32.gmra.mrb[0].mxu0 %v1920
  %v4759 = vpop.f32.mrb[0].mxu0
  %v4760 = vadd.f32 %v4375, %v4759
  %v4761 = vpop.f32.mrb[0].mxu0
  %4762 = vmatprep.mubr.f32.mxu0 %v2119
  %4763 = vmatmul.mubr.f32.gmra.mrb[0].mxu0 %v1921
  %v4764 = vpop.f32.mrb[0].mxu0
  %v4765 = vadd.f32 %v4380, %v4764
  %v4766 = vpop.f32.mrb[0].mxu0
  %4767 = vmatprep.mubr.f32.mxu0 %v2120
  %4768 = vmatmul.mubr.f32.gmra.mrb[0].mxu0 %v1922
  %v4769 = vpop.f32.mrb[0].mxu0
  %v4770 = vadd.f32 %v4385, %v4769
  %v4771 = vpop.f32.mrb[0].mxu0
  %4772 = vmatprep.mubr.f32.mxu0 %v2121
  %4773 = vmatmul.mubr.f32.gmra.mrb[0].mxu0 %v1923
  %v4774 = vpop.f32.mrb[0].mxu0
  %v4775 = vadd.f32 %v4390, %v4774
  %v4776 = vpop.f32.mrb[0].mxu0
  %4777 = vmatprep.mubr.f32.mxu0 %v2122
  %4778 = vmatmul.mubr.f32.gmra.mrb[0].mxu0 %v1924
  %v4779 = vpop.f32.mrb[0].mxu0
  %v4780 = vadd.f32 %v4395, %v4779
  %v4781 = vpop.f32.mrb[0].mxu0
  %4782 = vmatprep.mubr.f32.mxu0 %v2123
  %4783 = vmatmul.mubr.f32.gmra.mrb[0].mxu0 %v1925
  %v4784 = vpop.f32.mrb[0].mxu0
  %v4785 = vadd.f32 %v4400, %v4784
  %v4786 = vpop.f32.mrb[0].mxu0
  %4787 = vmatprep.mubr.f32.mxu0 %v2124
  %4788 = vmatmul.mubr.f32.gmra.mrb[0].mxu0 %v1926
  %v4789 = vpop.f32.mrb[0].mxu0
  %v4790 = vadd.f32 %v4405, %v4789
  %v4791 = vpop.f32.mrb[0].mxu0
  %4792 = vmatprep.mubr.f32.mxu0 %v2125
  %4793 = vmatmul.mubr.f32.gmra.mrb[0].mxu0 %v1927
  %v4794 = vpop.f32.mrb[0].mxu0
  %v4795 = vadd.f32 %v4410, %v4794
  %v4796 = vpop.f32.mrb[0].mxu0
  %4797 = vmatprep.mubr.f32.mxu0 %v2126
  %4798 = vmatmul.mubr.f32.gmra.mrb[0].mxu0 %v1928
  %v4799 = vpop.f32.mrb[0].mxu0
  %v4800 = vadd.f32 %v4415, %v4799
  %v4801 = vpop.f32.mrb[0].mxu0
  %4802 = vmatprep.mubr.f32.mxu0 %v2127
  %4803 = vmatmul.mubr.f32.gmra.mrb[0].mxu0 %v1929
  %v4804 = vpop.f32.mrb[0].mxu0
  %v4805 = vadd.f32 %v4420, %v4804
  %v4806 = vpop.f32.mrb[0].mxu0
  %4807 = vmatprep.mubr.f32.mxu0 %v2128
  %4808 = vmatmul.mubr.f32.gmra.mrb[0].mxu0 %v1930
  %v4809 = vpop.f32.mrb[0].mxu0
  %v4810 = vadd.f32 %v4425, %v4809
  %v4811 = vpop.f32.mrb[0].mxu0
  %4812 = vmatprep.mubr.f32.mxu0 %v2129
  %4813 = vmatmul.mubr.f32.gmra.mrb[0].mxu0 %v1931
  %v4814 = vpop.f32.mrb[0].mxu0
  %v4815 = vadd.f32 %v4430, %v4814
  %v4816 = vpop.f32.mrb[0].mxu0
  %4817 = vmatprep.mubr.f32.mxu0 %v2130
  %4818 = vmatmul.mubr.f32.gmra.mrb[0].mxu0 %v1932
  %v4819 = vpop.f32.mrb[0].mxu0
  %v4820 = vadd.f32 %v4435, %v4819
  %v4821 = vpop.f32.mrb[0].mxu0
  %4822 = vmatprep.mubr.f32.mxu0 %v2131
  %4823 = vmatmul.mubr.f32.gmra.mrb[0].mxu0 %v1933
  %v4824 = vpop.f32.mrb[0].mxu0
  %v4825 = vadd.f32 %v4440, %v4824
  %v4826 = vpop.f32.mrb[0].mxu0
  %4827 = vmatprep.mubr.f32.mxu0 %v2132
  %4828 = vmatmul.mubr.f32.gmra.mrb[0].mxu0 %v1934
  %v4829 = vpop.f32.mrb[0].mxu0
  %v4830 = vadd.f32 %v4445, %v4829
  %v4831 = vpop.f32.mrb[0].mxu0
  %4832 = vmatprep.mubr.f32.mxu0 %v2133
  %4833 = vmatmul.mubr.f32.gmra.mrb[0].mxu0 %v1935
  %v4834 = vpop.f32.mrb[0].mxu0
  %v4835 = vadd.f32 %v4450, %v4834
  %v4836 = vpop.f32.mrb[0].mxu0
  %4837 = vmatprep.mubr.f32.mxu0 %v2134
  %4838 = vmatmul.mubr.f32.gmra.mrb[0].mxu0 %v1936
  %v4839 = vpop.f32.mrb[0].mxu0
  %v4840 = vadd.f32 %v4455, %v4839
  %v4841 = vpop.f32.mrb[0].mxu0
  %4842 = vmatprep.mubr.f32.mxu0 %v2135
  %4843 = vmatmul.mubr.f32.gmra.mrb[0].mxu0 %v1937
  %v4844 = vpop.f32.mrb[0].mxu0
  %v4845 = vadd.f32 %v4460, %v4844
  %v4846 = vpop.f32.mrb[0].mxu0
  %4847 = vmatprep.mubr.f32.mxu0 %v2136
  %4848 = vmatmul.mubr.f32.gmra.mrb[0].mxu0 %v1938
  %v4849 = vpop.f32.mrb[0].mxu0
  %v4850 = vadd.f32 %v4465, %v4849
  %v4851 = vpop.f32.mrb[0].mxu0
  %4852 = vmatprep.mubr.f32.mxu0 %v2137
  %4853 = vmatmul.mubr.f32.gmra.mrb[0].mxu0 %v1939
  %v4854 = vpop.f32.mrb[0].mxu0
  %v4855 = vadd.f32 %v4470, %v4854
  %v4856 = vpop.f32.mrb[0].mxu0
  %4857 = vmatprep.mubr.f32.mxu0 %v2138
  %4858 = vmatmul.mubr.f32.gmra.mrb[0].mxu0 %v1940
  %v4859 = vpop.f32.mrb[0].mxu0
  %v4860 = vadd.f32 %v4475, %v4859
  %v4861 = vpop.f32.mrb[0].mxu0
  %4862 = vmatprep.mubr.f32.mxu0 %v2139
  %4863 = vmatmul.mubr.f32.gmra.mrb[0].mxu0 %v1941
  %v4864 = vpop.f32.mrb[0].mxu0
  %v4865 = vadd.f32 %v4480, %v4864
  %v4866 = vpop.f32.mrb[0].mxu0
  %4867 = vmatprep.mubr.f32.mxu0 %v2140
  %4868 = vmatmul.mubr.f32.gmra.mrb[0].mxu0 %v1942
  %v4869 = vpop.f32.mrb[0].mxu0
  %v4870 = vadd.f32 %v4485, %v4869
  %v4871 = vpop.f32.mrb[0].mxu0
  %4872 = vmatprep.mubr.f32.mxu0 %v2141
  %4873 = vmatmul.mubr.f32.gmra.mrb[0].mxu0 %v2077
  %v4874 = vpop.f32.mrb[0].mxu0
  %v4875 = vadd.f32 %v4490, %v4874
  %v4876 = vpop.f32.mrb[0].mxu0
  %4877 = vmatprep.mubr.f32.mxu0 %v2142
  %4878 = vmatmul.mubr.f32.gmra.mrb[0].mxu0 %v2078
  %v4879 = vpop.f32.mrb[0].mxu0
  %v4880 = vadd.f32 %v4495, %v4879
  %v4881 = vpop.f32.mrb[0].mxu0
  %4882 = vmatprep.mubr.f32.mxu0 %v2143
  %4883 = vmatmul.mubr.f32.gmra.mrb[0].mxu0 %v2079
  %v4884 = vpop.f32.mrb[0].mxu0
  %v4885 = vadd.f32 %v4500, %v4884
  %v4886 = vpop.f32.mrb[0].mxu0
  %4887 = vdwg.mxu0
  %4888 = vmatprep.subr.mxu0 0.0
  %4889 = vmatpush1.msra.mxu0 %v2370
  %4890 = vmatprep.subr.mxu0 0.0
  %4891 = vmatpush1.msra.mxu0 %v2371
  %4892 = vmatprep.subr.mxu0 0.0
  %4893 = vmatpush1.msra.mxu0 %v2372
  %4894 = vmatprep.subr.mxu0 0.0
  %4895 = vmatpush1.msra.mxu0 %v2373
  %4896 = vmatprep.subr.mxu0 0.0
  %4897 = vmatpush1.msra.mxu0 %v2374
  %4898 = vmatprep.subr.mxu0 0.0
  %4899 = vmatpush1.msra.mxu0 %v2375
  %4900 = vmatprep.subr.mxu0 0.0
  %4901 = vmatpush1.msra.mxu0 %v2376
  %4902 = vmatprep.subr.mxu0 0.0
  %4903 = vmatpush1.msra.mxu0 %v2377
  %4904 = vmatprep.subr.mxu0 0.0
  %4905 = vmatpush1.msra.mxu0 %v2378
  %4906 = vmatprep.subr.mxu0 0.0
  %4907 = vmatpush1.msra.mxu0 %v2379
  %4908 = vmatprep.subr.mxu0 0.0
  %4909 = vmatpush1.msra.mxu0 %v2380
  %4910 = vmatprep.subr.mxu0 0.0
  %4911 = vmatpush1.msra.mxu0 %v2381
  %4912 = vmatprep.subr.mxu0 0.0
  %4913 = vmatpush1.msra.mxu0 %v2382
  %4914 = vmatprep.subr.mxu0 0.0
  %4915 = vmatpush1.msra.mxu0 %v2383
  %4916 = vmatprep.subr.mxu0 0.0
  %4917 = vmatpush1.msra.mxu0 %v2384
  %4918 = vmatprep.subr.mxu0 0.0
  %4919 = vmatpush1.msra.mxu0 %v2385
  %4920 = vmatprep.subr.mxu0 0.0
  %4921 = vmatpush1.msra.mxu0 %v2386
  %4922 = vmatprep.subr.mxu0 0.0
  %4923 = vmatpush1.msra.mxu0 %v2387
  %4924 = vmatprep.subr.mxu0 0.0
  %4925 = vmatpush1.msra.mxu0 %v2388
  %4926 = vmatprep.subr.mxu0 0.0
  %4927 = vmatpush1.msra.mxu0 %v2389
  %4928 = vmatprep.subr.mxu0 0.0
  %4929 = vmatpush1.msra.mxu0 %v2390
  %4930 = vmatprep.subr.mxu0 0.0
  %4931 = vmatpush1.msra.mxu0 %v2391
  %4932 = vmatprep.subr.mxu0 0.0
  %4933 = vmatpush1.msra.mxu0 %v2392
  %4934 = vmatprep.subr.mxu0 0.0
  %4935 = vmatpush1.msra.mxu0 %v2393
  %4936 = vmatprep.subr.mxu0 0.0
  %4937 = vmatpush1.msra.mxu0 %v2394
  %4938 = vmatprep.subr.mxu0 0.0
  %4939 = vmatpush1.msra.mxu0 %v2395
  %4940 = vmatprep.subr.mxu0 0.0
  %4941 = vmatpush1.msra.mxu0 %v2396
  %4942 = vmatprep.subr.mxu0 0.0
  %4943 = vmatpush1.msra.mxu0 %v2397
  %4944 = vmatprep.subr.mxu0 0.0
  %4945 = vmatpush1.msra.mxu0 %v2398
  %4946 = vmatprep.subr.mxu0 0.0
  %4947 = vmatpush1.msra.mxu0 %v2399
  %4948 = vmatprep.subr.mxu0 0.0
  %4949 = vmatpush1.msra.mxu0 %v2400
  %4950 = vmatprep.subr.mxu0 0.0
  %4951 = vmatpush1.msra.mxu0 %v2401
  %4952 = vmatprep.mubr.f32.mxu0 %v2009
  %4953 = vmatmul.mubr.f32.gmra.mrb[0].mxu0 %v1945
  %v4954 = vpop.f32.mrb[0].mxu0
  %v4955 = vadd.f32 %v4570, %v4954
  %v4956 = vpop.f32.mrb[0].mxu0
  %4957 = vmatprep.mubr.f32.mxu0 %v2010
  %4958 = vmatmul.mubr.f32.gmra.mrb[0].mxu0 %v1946
  %v4959 = vpop.f32.mrb[0].mxu0
  %v4960 = vadd.f32 %v4575, %v4959
  %v4961 = vpop.f32.mrb[0].mxu0
  %4962 = vmatprep.mubr.f32.mxu0 %v2011
  %4963 = vmatmul.mubr.f32.gmra.mrb[0].mxu0 %v1947
  %v4964 = vpop.f32.mrb[0].mxu0
  %v4965 = vadd.f32 %v4580, %v4964
  %v4966 = vpop.f32.mrb[0].mxu0
  %4967 = vmatprep.mubr.f32.mxu0 %v2012
  %4968 = vmatmul.mubr.f32.gmra.mrb[0].mxu0 %v1948
  %v4969 = vpop.f32.mrb[0].mxu0
  %v4970 = vadd.f32 %v4585, %v4969
  %v4971 = vpop.f32.mrb[0].mxu0
  %4972 = vmatprep.mubr.f32.mxu0 %v2013
  %4973 = vmatmul.mubr.f32.gmra.mrb[0].mxu0 %v1949
  %v4974 = vpop.f32.mrb[0].mxu0
  %v4975 = vadd.f32 %v4590, %v4974
  %v4976 = vpop.f32.mrb[0].mxu0
  %4977 = vmatprep.mubr.f32.mxu0 %v2014
  %4978 = vmatmul.mubr.f32.gmra.mrb[0].mxu0 %v1950
  %v4979 = vpop.f32.mrb[0].mxu0
  %v4980 = vadd.f32 %v4595, %v4979
  %v4981 = vpop.f32.mrb[0].mxu0
  %4982 = vmatprep.mubr.f32.mxu0 %v2015
  %4983 = vmatmul.mubr.f32.gmra.mrb[0].mxu0 %v1951
  %v4984 = vpop.f32.mrb[0].mxu0
  %v4985 = vadd.f32 %v4600, %v4984
  %v4986 = vpop.f32.mrb[0].mxu0
  %4987 = vmatprep.mubr.f32.mxu0 %v2016
  %4988 = vmatmul.mubr.f32.gmra.mrb[0].mxu0 %v1952
  %v4989 = vpop.f32.mrb[0].mxu0
  %v4990 = vadd.f32 %v4605, %v4989
  %v4991 = vpop.f32.mrb[0].mxu0
  %4992 = vmatprep.mubr.f32.mxu0 %v2017
  %4993 = vmatmul.mubr.f32.gmra.mrb[0].mxu0 %v1953
  %v4994 = vpop.f32.mrb[0].mxu0
  %v4995 = vadd.f32 %v4610, %v4994
  %v4996 = vpop.f32.mrb[0].mxu0
  %4997 = vmatprep.mubr.f32.mxu0 %v2018
  %4998 = vmatmul.mubr.f32.gmra.mrb[0].mxu0 %v1954
  %v4999 = vpop.f32.mrb[0].mxu0
  %v5000 = vadd.f32 %v4615, %v4999
  %v5001 = vpop.f32.mrb[0].mxu0
  %5002 = vmatprep.mubr.f32.mxu0 %v2019
  %5003 = vmatmul.mubr.f32.gmra.mrb[0].mxu0 %v1955
  %v5004 = vpop.f32.mrb[0].mxu0
  %v5005 = vadd.f32 %v4620, %v5004
  %v5006 = vpop.f32.mrb[0].mxu0
  %5007 = vmatprep.mubr.f32.mxu0 %v2020
  %5008 = vmatmul.mubr.f32.gmra.mrb[0].mxu0 %v1956
  %v5009 = vpop.f32.mrb[0].mxu0
  %v5010 = vadd.f32 %v4625, %v5009
  %v5011 = vpop.f32.mrb[0].mxu0
  %5012 = vmatprep.mubr.f32.mxu0 %v2021
  %5013 = vmatmul.mubr.f32.gmra.mrb[0].mxu0 %v1957
  %v5014 = vpop.f32.mrb[0].mxu0
  %v5015 = vadd.f32 %v4630, %v5014
  %v5016 = vpop.f32.mrb[0].mxu0
  %5017 = vmatprep.mubr.f32.mxu0 %v2022
  %5018 = vmatmul.mubr.f32.gmra.mrb[0].mxu0 %v1958
  %v5019 = vpop.f32.mrb[0].mxu0
  %v5020 = vadd.f32 %v4635, %v5019
  %v5021 = vpop.f32.mrb[0].mxu0
  %5022 = vmatprep.mubr.f32.mxu0 %v2023
  %5023 = vmatmul.mubr.f32.gmra.mrb[0].mxu0 %v1959
  %v5024 = vpop.f32.mrb[0].mxu0
  %v5025 = vadd.f32 %v4640, %v5024
  %v5026 = vpop.f32.mrb[0].mxu0
  %5027 = vmatprep.mubr.f32.mxu0 %v2024
  %5028 = vmatmul.mubr.f32.gmra.mrb[0].mxu0 %v1960
  %v5029 = vpop.f32.mrb[0].mxu0
  %v5030 = vadd.f32 %v4645, %v5029
  %v5031 = vpop.f32.mrb[0].mxu0
  %5032 = vmatprep.mubr.f32.mxu0 %v2025
  %5033 = vmatmul.mubr.f32.gmra.mrb[0].mxu0 %v1961
  %v5034 = vpop.f32.mrb[0].mxu0
  %v5035 = vadd.f32 %v4650, %v5034
  %v5036 = vpop.f32.mrb[0].mxu0
  %5037 = vmatprep.mubr.f32.mxu0 %v2026
  %5038 = vmatmul.mubr.f32.gmra.mrb[0].mxu0 %v1962
  %v5039 = vpop.f32.mrb[0].mxu0
  %v5040 = vadd.f32 %v4655, %v5039
  %v5041 = vpop.f32.mrb[0].mxu0
  %5042 = vmatprep.mubr.f32.mxu0 %v2027
  %5043 = vmatmul.mubr.f32.gmra.mrb[0].mxu0 %v1963
  %v5044 = vpop.f32.mrb[0].mxu0
  %v5045 = vadd.f32 %v4660, %v5044
  %v5046 = vpop.f32.mrb[0].mxu0
  %5047 = vmatprep.mubr.f32.mxu0 %v2028
  %5048 = vmatmul.mubr.f32.gmra.mrb[0].mxu0 %v1964
  %v5049 = vpop.f32.mrb[0].mxu0
  %v5050 = vadd.f32 %v4665, %v5049
  %v5051 = vpop.f32.mrb[0].mxu0
  %5052 = vmatprep.mubr.f32.mxu0 %v2029
  %5053 = vmatmul.mubr.f32.gmra.mrb[0].mxu0 %v1965
  %v5054 = vpop.f32.mrb[0].mxu0
  %v5055 = vadd.f32 %v4670, %v5054
  %v5056 = vpop.f32.mrb[0].mxu0
  %5057 = vmatprep.mubr.f32.mxu0 %v2030
  %5058 = vmatmul.mubr.f32.gmra.mrb[0].mxu0 %v1966
  %v5059 = vpop.f32.mrb[0].mxu0
  %v5060 = vadd.f32 %v4675, %v5059
  %v5061 = vpop.f32.mrb[0].mxu0
  %5062 = vmatprep.mubr.f32.mxu0 %v2031
  %5063 = vmatmul.mubr.f32.gmra.mrb[0].mxu0 %v1967
  %v5064 = vpop.f32.mrb[0].mxu0
  %v5065 = vadd.f32 %v4680, %v5064
  %v5066 = vpop.f32.mrb[0].mxu0
  %5067 = vmatprep.mubr.f32.mxu0 %v2032
  %5068 = vmatmul.mubr.f32.gmra.mrb[0].mxu0 %v1968
  %v5069 = vpop.f32.mrb[0].mxu0
  %v5070 = vadd.f32 %v4685, %v5069
  %v5071 = vpop.f32.mrb[0].mxu0
  %5072 = vmatprep.mubr.f32.mxu0 %v2033
  %5073 = vmatmul.mubr.f32.gmra.mrb[0].mxu0 %v1969
  %v5074 = vpop.f32.mrb[0].mxu0
  %v5075 = vadd.f32 %v4690, %v5074
  %v5076 = vpop.f32.mrb[0].mxu0
  %5077 = vmatprep.mubr.f32.mxu0 %v2034
  %5078 = vmatmul.mubr.f32.gmra.mrb[0].mxu0 %v1970
  %v5079 = vpop.f32.mrb[0].mxu0
  %v5080 = vadd.f32 %v4695, %v5079
  %v5081 = vpop.f32.mrb[0].mxu0
  %5082 = vmatprep.mubr.f32.mxu0 %v2035
  %5083 = vmatmul.mubr.f32.gmra.mrb[0].mxu0 %v1971
  %v5084 = vpop.f32.mrb[0].mxu0
  %v5085 = vadd.f32 %v4700, %v5084
  %v5086 = vpop.f32.mrb[0].mxu0
  %5087 = vmatprep.mubr.f32.mxu0 %v2036
  %5088 = vmatmul.mubr.f32.gmra.mrb[0].mxu0 %v1972
  %v5089 = vpop.f32.mrb[0].mxu0
  %v5090 = vadd.f32 %v4705, %v5089
  %v5091 = vpop.f32.mrb[0].mxu0
  %5092 = vmatprep.mubr.f32.mxu0 %v2037
  %5093 = vmatmul.mubr.f32.gmra.mrb[0].mxu0 %v1973
  %v5094 = vpop.f32.mrb[0].mxu0
  %v5095 = vadd.f32 %v4710, %v5094
  %v5096 = vpop.f32.mrb[0].mxu0
  %5097 = vmatprep.mubr.f32.mxu0 %v2038
  %5098 = vmatmul.mubr.f32.gmra.mrb[0].mxu0 %v1974
  %v5099 = vpop.f32.mrb[0].mxu0
  %v5100 = vadd.f32 %v4715, %v5099
  %v5101 = vpop.f32.mrb[0].mxu0
  %5102 = vmatprep.mubr.f32.mxu0 %v2039
  %5103 = vmatmul.mubr.f32.gmra.mrb[0].mxu0 %v1975
  %v5104 = vpop.f32.mrb[0].mxu0
  %v5105 = vadd.f32 %v4720, %v5104
  %v5106 = vpop.f32.mrb[0].mxu0
  %5107 = vmatprep.mubr.f32.mxu0 %v2040
  %5108 = vmatmul.mubr.f32.gmra.mrb[0].mxu0 %v1976
  %v5109 = vpop.f32.mrb[0].mxu0
  %v5110 = vadd.f32 %v4725, %v5109
  %v5111 = vpop.f32.mrb[0].mxu0
  %5112 = vmatprep.mubr.f32.mxu0 %v2041
  %5113 = vmatmul.mubr.f32.gmra.mrb[0].mxu0 %v1977
  %v5114 = vpop.f32.mrb[0].mxu0
  %v5115 = vadd.f32 %v4730, %v5114
  %v5116 = vpop.f32.mrb[0].mxu0
  %5117 = vmatprep.mubr.f32.mxu0 %v2042
  %5118 = vmatmul.mubr.f32.gmra.mrb[0].mxu0 %v1978
  %v5119 = vpop.f32.mrb[0].mxu0
  %v5120 = vadd.f32 %v4735, %v5119
  %v5121 = vpop.f32.mrb[0].mxu0
  %5122 = vmatprep.mubr.f32.mxu0 %v2043
  %5123 = vmatmul.mubr.f32.gmra.mrb[0].mxu0 %v1979
  %v5124 = vpop.f32.mrb[0].mxu0
  %v5125 = vadd.f32 %v4740, %v5124
  %v5126 = vpop.f32.mrb[0].mxu0
  %5127 = vmatprep.mubr.f32.mxu0 %v2044
  %5128 = vmatmul.mubr.f32.gmra.mrb[0].mxu0 %v1980
  %v5129 = vpop.f32.mrb[0].mxu0
  %v5130 = vadd.f32 %v4745, %v5129
  %v5131 = vpop.f32.mrb[0].mxu0
  %5132 = vmatprep.mubr.f32.mxu0 %v2045
  %5133 = vmatmul.mubr.f32.gmra.mrb[0].mxu0 %v1981
  %v5134 = vpop.f32.mrb[0].mxu0
  %v5135 = vadd.f32 %v4750, %v5134
  %v5136 = vpop.f32.mrb[0].mxu0
  %5137 = vmatprep.mubr.f32.mxu0 %v2046
  %5138 = vmatmul.mubr.f32.gmra.mrb[0].mxu0 %v1982
  %v5139 = vpop.f32.mrb[0].mxu0
  %v5140 = vadd.f32 %v4755, %v5139
  %v5141 = vpop.f32.mrb[0].mxu0
  %5142 = vmatprep.mubr.f32.mxu0 %v2047
  %5143 = vmatmul.mubr.f32.gmra.mrb[0].mxu0 %v1983
  %v5144 = vpop.f32.mrb[0].mxu0
  %v5145 = vadd.f32 %v4760, %v5144
  %v5146 = vpop.f32.mrb[0].mxu0
  %5147 = vmatprep.mubr.f32.mxu0 %v2048
  %5148 = vmatmul.mubr.f32.gmra.mrb[0].mxu0 %v1984
  %v5149 = vpop.f32.mrb[0].mxu0
  %v5150 = vadd.f32 %v4765, %v5149
  %v5151 = vpop.f32.mrb[0].mxu0
  %5152 = vmatprep.mubr.f32.mxu0 %v2049
  %5153 = vmatmul.mubr.f32.gmra.mrb[0].mxu0 %v1985
  %v5154 = vpop.f32.mrb[0].mxu0
  %v5155 = vadd.f32 %v4770, %v5154
  %v5156 = vpop.f32.mrb[0].mxu0
  %5157 = vmatprep.mubr.f32.mxu0 %v2050
  %5158 = vmatmul.mubr.f32.gmra.mrb[0].mxu0 %v1986
  %v5159 = vpop.f32.mrb[0].mxu0
  %v5160 = vadd.f32 %v4775, %v5159
  %v5161 = vpop.f32.mrb[0].mxu0
  %5162 = vmatprep.mubr.f32.mxu0 %v2051
  %5163 = vmatmul.mubr.f32.gmra.mrb[0].mxu0 %v1987
  %v5164 = vpop.f32.mrb[0].mxu0
  %v5165 = vadd.f32 %v4780, %v5164
  %v5166 = vpop.f32.mrb[0].mxu0
  %5167 = vmatprep.mubr.f32.mxu0 %v2052
  %5168 = vmatmul.mubr.f32.gmra.mrb[0].mxu0 %v1988
  %v5169 = vpop.f32.mrb[0].mxu0
  %v5170 = vadd.f32 %v4785, %v5169
  %v5171 = vpop.f32.mrb[0].mxu0
  %5172 = vmatprep.mubr.f32.mxu0 %v2053
  %5173 = vmatmul.mubr.f32.gmra.mrb[0].mxu0 %v1989
  %v5174 = vpop.f32.mrb[0].mxu0
  %v5175 = vadd.f32 %v4790, %v5174
  %v5176 = vpop.f32.mrb[0].mxu0
  %5177 = vmatprep.mubr.f32.mxu0 %v2054
  %5178 = vmatmul.mubr.f32.gmra.mrb[0].mxu0 %v1990
  %v5179 = vpop.f32.mrb[0].mxu0
  %v5180 = vadd.f32 %v4795, %v5179
  %v5181 = vpop.f32.mrb[0].mxu0
  %5182 = vmatprep.mubr.f32.mxu0 %v2055
  %5183 = vmatmul.mubr.f32.gmra.mrb[0].mxu0 %v1991
  %v5184 = vpop.f32.mrb[0].mxu0
  %v5185 = vadd.f32 %v4800, %v5184
  %v5186 = vpop.f32.mrb[0].mxu0
  %5187 = vmatprep.mubr.f32.mxu0 %v2056
  %5188 = vmatmul.mubr.f32.gmra.mrb[0].mxu0 %v1992
  %v5189 = vpop.f32.mrb[0].mxu0
  %v5190 = vadd.f32 %v4805, %v5189
  %v5191 = vpop.f32.mrb[0].mxu0
  %5192 = vmatprep.mubr.f32.mxu0 %v2057
  %5193 = vmatmul.mubr.f32.gmra.mrb[0].mxu0 %v1993
  %v5194 = vpop.f32.mrb[0].mxu0
  %v5195 = vadd.f32 %v4810, %v5194
  %v5196 = vpop.f32.mrb[0].mxu0
  %5197 = vmatprep.mubr.f32.mxu0 %v2058
  %5198 = vmatmul.mubr.f32.gmra.mrb[0].mxu0 %v1994
  %v5199 = vpop.f32.mrb[0].mxu0
  %v5200 = vadd.f32 %v4815, %v5199
  %v5201 = vpop.f32.mrb[0].mxu0
  %5202 = vmatprep.mubr.f32.mxu0 %v2059
  %5203 = vmatmul.mubr.f32.gmra.mrb[0].mxu0 %v1995
  %v5204 = vpop.f32.mrb[0].mxu0
  %v5205 = vadd.f32 %v4820, %v5204
  %v5206 = vpop.f32.mrb[0].mxu0
  %5207 = vmatprep.mubr.f32.mxu0 %v2060
  %5208 = vmatmul.mubr.f32.gmra.mrb[0].mxu0 %v1996
  %v5209 = vpop.f32.mrb[0].mxu0
  %v5210 = vadd.f32 %v4825, %v5209
  %v5211 = vpop.f32.mrb[0].mxu0
  %5212 = vmatprep.mubr.f32.mxu0 %v2061
  %5213 = vmatmul.mubr.f32.gmra.mrb[0].mxu0 %v1997
  %v5214 = vpop.f32.mrb[0].mxu0
  %v5215 = vadd.f32 %v4830, %v5214
  %v5216 = vpop.f32.mrb[0].mxu0
  %5217 = vmatprep.mubr.f32.mxu0 %v2062
  %5218 = vmatmul.mubr.f32.gmra.mrb[0].mxu0 %v1998
  %v5219 = vpop.f32.mrb[0].mxu0
  %v5220 = vadd.f32 %v4835, %v5219
  %v5221 = vpop.f32.mrb[0].mxu0
  %5222 = vmatprep.mubr.f32.mxu0 %v2063
  %5223 = vmatmul.mubr.f32.gmra.mrb[0].mxu0 %v1999
  %v5224 = vpop.f32.mrb[0].mxu0
  %v5225 = vadd.f32 %v4840, %v5224
  %v5226 = vpop.f32.mrb[0].mxu0
  %5227 = vmatprep.mubr.f32.mxu0 %v2064
  %5228 = vmatmul.mubr.f32.gmra.mrb[0].mxu0 %v2000
  %v5229 = vpop.f32.mrb[0].mxu0
  %v5230 = vadd.f32 %v4845, %v5229
  %v5231 = vpop.f32.mrb[0].mxu0
  %5232 = vmatprep.mubr.f32.mxu0 %v2065
  %5233 = vmatmul.mubr.f32.gmra.mrb[0].mxu0 %v2001
  %v5234 = vpop.f32.mrb[0].mxu0
  %v5235 = vadd.f32 %v4850, %v5234
  %v5236 = vpop.f32.mrb[0].mxu0
  %5237 = vmatprep.mubr.f32.mxu0 %v2066
  %5238 = vmatmul.mubr.f32.gmra.mrb[0].mxu0 %v2002
  %v5239 = vpop.f32.mrb[0].mxu0
  %v5240 = vadd.f32 %v4855, %v5239
  %v5241 = vpop.f32.mrb[0].mxu0
  %5242 = vmatprep.mubr.f32.mxu0 %v2067
  %5243 = vmatmul.mubr.f32.gmra.mrb[0].mxu0 %v2003
  %v5244 = vpop.f32.mrb[0].mxu0
  %v5245 = vadd.f32 %v4860, %v5244
  %v5246 = vpop.f32.mrb[0].mxu0
  %5247 = vmatprep.mubr.f32.mxu0 %v2068
  %5248 = vmatmul.mubr.f32.gmra.mrb[0].mxu0 %v2004
  %v5249 = vpop.f32.mrb[0].mxu0
  %v5250 = vadd.f32 %v4865, %v5249
  %v5251 = vpop.f32.mrb[0].mxu0
  %5252 = vmatprep.mubr.f32.mxu0 %v2069
  %5253 = vmatmul.mubr.f32.gmra.mrb[0].mxu0 %v2005
  %v5254 = vpop.f32.mrb[0].mxu0
  %v5255 = vadd.f32 %v4870, %v5254
  %v5256 = vpop.f32.mrb[0].mxu0
  %5257 = vmatprep.mubr.f32.mxu0 %v2070
  %5258 = vmatmul.mubr.f32.gmra.mrb[0].mxu0 %v2006
  %v5259 = vpop.f32.mrb[0].mxu0
  %v5260 = vadd.f32 %v4875, %v5259
  %v5261 = vpop.f32.mrb[0].mxu0
  %5262 = vmatprep.mubr.f32.mxu0 %v2146
  %5263 = vmatmul.mubr.f32.gmra.mrb[0].mxu0 %v2144
  %v5264 = vpop.f32.mrb[0].mxu0
  %v5265 = vadd.f32 %v4880, %v5264
  %v5266 = vpop.f32.mrb[0].mxu0
  %5267 = vmatprep.mubr.f32.mxu0 %v2147
  %5268 = vmatmul.mubr.f32.gmra.mrb[0].mxu0 %v2145
  %v5269 = vpop.f32.mrb[0].mxu0
  %v5270 = vadd.f32 %v4885, %v5269
  %v5271 = vpop.f32.mrb[0].mxu0
  %5272 = vdwg.mxu0
  %5273 = vmatprep.subr.mxu0 0.0
  %5274 = vmatpush1.msra.mxu0 %v2402
  %5275 = vmatprep.subr.mxu0 0.0
  %5276 = vmatpush1.msra.mxu0 %v2403
  %5277 = vmatprep.subr.mxu0 0.0
  %5278 = vmatpush1.msra.mxu0 %v2404
  %5279 = vmatprep.subr.mxu0 0.0
  %5280 = vmatpush1.msra.mxu0 %v2405
  %5281 = vmatprep.subr.mxu0 0.0
  %5282 = vmatpush1.msra.mxu0 %v2406
  %5283 = vmatprep.subr.mxu0 0.0
  %5284 = vmatpush1.msra.mxu0 %v2407
  %5285 = vmatprep.subr.mxu0 0.0
  %5286 = vmatpush1.msra.mxu0 %v2408
  %5287 = vmatprep.subr.mxu0 0.0
  %5288 = vmatpush1.msra.mxu0 %v2409
  %5289 = vmatprep.subr.mxu0 0.0
  %5290 = vmatpush1.msra.mxu0 %v2410
  %5291 = vmatprep.subr.mxu0 0.0
  %5292 = vmatpush1.msra.mxu0 %v2411
  %5293 = vmatprep.subr.mxu0 0.0
  %5294 = vmatpush1.msra.mxu0 %v2412
  %5295 = vmatprep.subr.mxu0 0.0
  %5296 = vmatpush1.msra.mxu0 %v2413
  %5297 = vmatprep.subr.mxu0 0.0
  %5298 = vmatpush1.msra.mxu0 %v2414
  %5299 = vmatprep.subr.mxu0 0.0
  %5300 = vmatpush1.msra.mxu0 %v2415
  %5301 = vmatprep.subr.mxu0 0.0
  %5302 = vmatpush1.msra.mxu0 %v2416
  %5303 = vmatprep.subr.mxu0 0.0
  %5304 = vmatpush1.msra.mxu0 %v2417
  %5305 = vmatprep.subr.mxu0 0.0
  %5306 = vmatpush1.msra.mxu0 %v2418
  %5307 = vmatprep.subr.mxu0 0.0
  %5308 = vmatpush1.msra.mxu0 %v2419
  %5309 = vmatprep.subr.mxu0 0.0
  %5310 = vmatpush1.msra.mxu0 %v2420
  %5311 = vmatprep.subr.mxu0 0.0
  %5312 = vmatpush1.msra.mxu0 %v2421
  %5313 = vmatprep.subr.mxu0 0.0
  %5314 = vmatpush1.msra.mxu0 %v2422
  %5315 = vmatprep.subr.mxu0 0.0
  %5316 = vmatpush1.msra.mxu0 %v2423
  %5317 = vmatprep.subr.mxu0 0.0
  %5318 = vmatpush1.msra.mxu0 %v2424
  %5319 = vmatprep.subr.mxu0 0.0
  %5320 = vmatpush1.msra.mxu0 %v2425
  %5321 = vmatprep.subr.mxu0 0.0
  %5322 = vmatpush1.msra.mxu0 %v2426
  %5323 = vmatprep.subr.mxu0 0.0
  %5324 = vmatpush1.msra.mxu0 %v2427
  %5325 = vmatprep.subr.mxu0 0.0
  %5326 = vmatpush1.msra.mxu0 %v2428
  %5327 = vmatprep.subr.mxu0 0.0
  %5328 = vmatpush1.msra.mxu0 %v2429
  %5329 = vmatprep.subr.mxu0 0.0
  %5330 = vmatpush1.msra.mxu0 %v2430
  %5331 = vmatprep.subr.mxu0 0.0
  %5332 = vmatpush1.msra.mxu0 %v2431
  %5333 = vmatprep.subr.mxu0 0.0
  %5334 = vmatpush1.msra.mxu0 %v2432
  %5335 = vmatprep.subr.mxu0 0.0
  %5336 = vmatpush1.msra.mxu0 %v2433
  %5337 = vmatprep.mubr.f32.mxu0 %v1756
  %5338 = vmatmul.mubr.f32.gmra.mrb[0].mxu0 %v1627
  %v5339 = vpop.f32.mrb[0].mxu0
  %v5340 = vadd.f32 %v4955, %v5339
  %v5341 = vpop.f32.mrb[0].mxu0
  %5342 = vmatprep.mubr.f32.mxu0 %v1757
  %5343 = vmatmul.mubr.f32.gmra.mrb[0].mxu0 %v1628
  %v5344 = vpop.f32.mrb[0].mxu0
  %v5345 = vadd.f32 %v4960, %v5344
  %v5346 = vpop.f32.mrb[0].mxu0
  %5347 = vmatprep.mubr.f32.mxu0 %v1758
  %5348 = vmatmul.mubr.f32.gmra.mrb[0].mxu0 %v1629
  %v5349 = vpop.f32.mrb[0].mxu0
  %v5350 = vadd.f32 %v4965, %v5349
  %v5351 = vpop.f32.mrb[0].mxu0
  %5352 = vmatprep.mubr.f32.mxu0 %v1759
  %5353 = vmatmul.mubr.f32.gmra.mrb[0].mxu0 %v1630
  %v5354 = vpop.f32.mrb[0].mxu0
  %v5355 = vadd.f32 %v4970, %v5354
  %v5356 = vpop.f32.mrb[0].mxu0
  %5357 = vmatprep.mubr.f32.mxu0 %v1760
  %5358 = vmatmul.mubr.f32.gmra.mrb[0].mxu0 %v1631
  %v5359 = vpop.f32.mrb[0].mxu0
  %v5360 = vadd.f32 %v4975, %v5359
  %v5361 = vpop.f32.mrb[0].mxu0
  %5362 = vmatprep.mubr.f32.mxu0 %v1761
  %5363 = vmatmul.mubr.f32.gmra.mrb[0].mxu0 %v1632
  %v5364 = vpop.f32.mrb[0].mxu0
  %v5365 = vadd.f32 %v4980, %v5364
  %v5366 = vpop.f32.mrb[0].mxu0
  %5367 = vmatprep.mubr.f32.mxu0 %v1762
  %5368 = vmatmul.mubr.f32.gmra.mrb[0].mxu0 %v1633
  %v5369 = vpop.f32.mrb[0].mxu0
  %v5370 = vadd.f32 %v4985, %v5369
  %v5371 = vpop.f32.mrb[0].mxu0
  %5372 = vmatprep.mubr.f32.mxu0 %v1763
  %5373 = vmatmul.mubr.f32.gmra.mrb[0].mxu0 %v1634
  %v5374 = vpop.f32.mrb[0].mxu0
  %v5375 = vadd.f32 %v4990, %v5374
  %v5376 = vpop.f32.mrb[0].mxu0
  %5377 = vmatprep.mubr.f32.mxu0 %v1764
  %5378 = vmatmul.mubr.f32.gmra.mrb[0].mxu0 %v1635
  %v5379 = vpop.f32.mrb[0].mxu0
  %v5380 = vadd.f32 %v4995, %v5379
  %v5381 = vpop.f32.mrb[0].mxu0
  %5382 = vmatprep.mubr.f32.mxu0 %v1765
  %5383 = vmatmul.mubr.f32.gmra.mrb[0].mxu0 %v1636
  %v5384 = vpop.f32.mrb[0].mxu0
  %v5385 = vadd.f32 %v5000, %v5384
  %v5386 = vpop.f32.mrb[0].mxu0
  %5387 = vmatprep.mubr.f32.mxu0 %v1766
  %5388 = vmatmul.mubr.f32.gmra.mrb[0].mxu0 %v1637
  %v5389 = vpop.f32.mrb[0].mxu0
  %v5390 = vadd.f32 %v5005, %v5389
  %v5391 = vpop.f32.mrb[0].mxu0
  %5392 = vmatprep.mubr.f32.mxu0 %v1767
  %5393 = vmatmul.mubr.f32.gmra.mrb[0].mxu0 %v1638
  %v5394 = vpop.f32.mrb[0].mxu0
  %v5395 = vadd.f32 %v5010, %v5394
  %v5396 = vpop.f32.mrb[0].mxu0
  %5397 = vmatprep.mubr.f32.mxu0 %v1768
  %5398 = vmatmul.mubr.f32.gmra.mrb[0].mxu0 %v1639
  %v5399 = vpop.f32.mrb[0].mxu0
  %v5400 = vadd.f32 %v5015, %v5399
  %v5401 = vpop.f32.mrb[0].mxu0
  %5402 = vmatprep.mubr.f32.mxu0 %v1769
  %5403 = vmatmul.mubr.f32.gmra.mrb[0].mxu0 %v1640
  %v5404 = vpop.f32.mrb[0].mxu0
  %v5405 = vadd.f32 %v5020, %v5404
  %v5406 = vpop.f32.mrb[0].mxu0
  %5407 = vmatprep.mubr.f32.mxu0 %v1770
  %5408 = vmatmul.mubr.f32.gmra.mrb[0].mxu0 %v1641
  %v5409 = vpop.f32.mrb[0].mxu0
  %v5410 = vadd.f32 %v5025, %v5409
  %v5411 = vpop.f32.mrb[0].mxu0
  %5412 = vmatprep.mubr.f32.mxu0 %v1771
  %5413 = vmatmul.mubr.f32.gmra.mrb[0].mxu0 %v1642
  %v5414 = vpop.f32.mrb[0].mxu0
  %v5415 = vadd.f32 %v5030, %v5414
  %v5416 = vpop.f32.mrb[0].mxu0
  %5417 = vmatprep.mubr.f32.mxu0 %v1772
  %5418 = vmatmul.mubr.f32.gmra.mrb[0].mxu0 %v1643
  %v5419 = vpop.f32.mrb[0].mxu0
  %v5420 = vadd.f32 %v5035, %v5419
  %v5421 = vpop.f32.mrb[0].mxu0
  %5422 = vmatprep.mubr.f32.mxu0 %v1773
  %5423 = vmatmul.mubr.f32.gmra.mrb[0].mxu0 %v1644
  %v5424 = vpop.f32.mrb[0].mxu0
  %v5425 = vadd.f32 %v5040, %v5424
  %v5426 = vpop.f32.mrb[0].mxu0
  %5427 = vmatprep.mubr.f32.mxu0 %v1774
  %5428 = vmatmul.mubr.f32.gmra.mrb[0].mxu0 %v1645
  %v5429 = vpop.f32.mrb[0].mxu0
  %v5430 = vadd.f32 %v5045, %v5429
  %v5431 = vpop.f32.mrb[0].mxu0
  %5432 = vmatprep.mubr.f32.mxu0 %v1775
  %5433 = vmatmul.mubr.f32.gmra.mrb[0].mxu0 %v1646
  %v5434 = vpop.f32.mrb[0].mxu0
  %v5435 = vadd.f32 %v5050, %v5434
  %v5436 = vpop.f32.mrb[0].mxu0
  %5437 = vmatprep.mubr.f32.mxu0 %v1776
  %5438 = vmatmul.mubr.f32.gmra.mrb[0].mxu0 %v1647
  %v5439 = vpop.f32.mrb[0].mxu0
  %v5440 = vadd.f32 %v5055, %v5439
  %v5441 = vpop.f32.mrb[0].mxu0
  %5442 = vmatprep.mubr.f32.mxu0 %v1777
  %5443 = vmatmul.mubr.f32.gmra.mrb[0].mxu0 %v1648
  %v5444 = vpop.f32.mrb[0].mxu0
  %v5445 = vadd.f32 %v5060, %v5444
  %v5446 = vpop.f32.mrb[0].mxu0
  %5447 = vmatprep.mubr.f32.mxu0 %v1778
  %5448 = vmatmul.mubr.f32.gmra.mrb[0].mxu0 %v1649
  %v5449 = vpop.f32.mrb[0].mxu0
  %v5450 = vadd.f32 %v5065, %v5449
  %v5451 = vpop.f32.mrb[0].mxu0
  %5452 = vmatprep.mubr.f32.mxu0 %v1779
  %5453 = vmatmul.mubr.f32.gmra.mrb[0].mxu0 %v1650
  %v5454 = vpop.f32.mrb[0].mxu0
  %v5455 = vadd.f32 %v5070, %v5454
  %v5456 = vpop.f32.mrb[0].mxu0
  %5457 = vmatprep.mubr.f32.mxu0 %v1780
  %5458 = vmatmul.mubr.f32.gmra.mrb[0].mxu0 %v1651
  %v5459 = vpop.f32.mrb[0].mxu0
  %v5460 = vadd.f32 %v5075, %v5459
  %v5461 = vpop.f32.mrb[0].mxu0
  %5462 = vmatprep.mubr.f32.mxu0 %v1781
  %5463 = vmatmul.mubr.f32.gmra.mrb[0].mxu0 %v1652
  %v5464 = vpop.f32.mrb[0].mxu0
  %v5465 = vadd.f32 %v5080, %v5464
  %v5466 = vpop.f32.mrb[0].mxu0
  %5467 = vmatprep.mubr.f32.mxu0 %v1782
  %5468 = vmatmul.mubr.f32.gmra.mrb[0].mxu0 %v1653
  %v5469 = vpop.f32.mrb[0].mxu0
  %v5470 = vadd.f32 %v5085, %v5469
  %v5471 = vpop.f32.mrb[0].mxu0
  %5472 = vmatprep.mubr.f32.mxu0 %v1783
  %5473 = vmatmul.mubr.f32.gmra.mrb[0].mxu0 %v1654
  %v5474 = vpop.f32.mrb[0].mxu0
  %v5475 = vadd.f32 %v5090, %v5474
  %v5476 = vpop.f32.mrb[0].mxu0
  %5477 = vmatprep.mubr.f32.mxu0 %v1784
  %5478 = vmatmul.mubr.f32.gmra.mrb[0].mxu0 %v1655
  %v5479 = vpop.f32.mrb[0].mxu0
  %v5480 = vadd.f32 %v5095, %v5479
  %v5481 = vpop.f32.mrb[0].mxu0
  %5482 = vmatprep.mubr.f32.mxu0 %v1785
  %5483 = vmatmul.mubr.f32.gmra.mrb[0].mxu0 %v1656
  %v5484 = vpop.f32.mrb[0].mxu0
  %v5485 = vadd.f32 %v5100, %v5484
  %v5486 = vpop.f32.mrb[0].mxu0
  %5487 = vmatprep.mubr.f32.mxu0 %v1786
  %5488 = vmatmul.mubr.f32.gmra.mrb[0].mxu0 %v1657
  %v5489 = vpop.f32.mrb[0].mxu0
  %v5490 = vadd.f32 %v5105, %v5489
  %v5491 = vpop.f32.mrb[0].mxu0
  %5492 = vmatprep.mubr.f32.mxu0 %v1787
  %5493 = vmatmul.mubr.f32.gmra.mrb[0].mxu0 %v1658
  %v5494 = vpop.f32.mrb[0].mxu0
  %v5495 = vadd.f32 %v5110, %v5494
  %v5496 = vpop.f32.mrb[0].mxu0
  %5497 = vmatprep.mubr.f32.mxu0 %v1788
  %5498 = vmatmul.mubr.f32.gmra.mrb[0].mxu0 %v1659
  %v5499 = vpop.f32.mrb[0].mxu0
  %v5500 = vadd.f32 %v5115, %v5499
  %v5501 = vpop.f32.mrb[0].mxu0
  %5502 = vmatprep.mubr.f32.mxu0 %v1789
  %5503 = vmatmul.mubr.f32.gmra.mrb[0].mxu0 %v1660
  %v5504 = vpop.f32.mrb[0].mxu0
  %v5505 = vadd.f32 %v5120, %v5504
  %v5506 = vpop.f32.mrb[0].mxu0
  %5507 = vmatprep.mubr.f32.mxu0 %v1790
  %5508 = vmatmul.mubr.f32.gmra.mrb[0].mxu0 %v1661
  %v5509 = vpop.f32.mrb[0].mxu0
  %v5510 = vadd.f32 %v5125, %v5509
  %v5511 = vpop.f32.mrb[0].mxu0
  %5512 = vmatprep.mubr.f32.mxu0 %v1791
  %5513 = vmatmul.mubr.f32.gmra.mrb[0].mxu0 %v1662
  %v5514 = vpop.f32.mrb[0].mxu0
  %v5515 = vadd.f32 %v5130, %v5514
  %v5516 = vpop.f32.mrb[0].mxu0
  %5517 = vmatprep.mubr.f32.mxu0 %v1792
  %5518 = vmatmul.mubr.f32.gmra.mrb[0].mxu0 %v1663
  %v5519 = vpop.f32.mrb[0].mxu0
  %v5520 = vadd.f32 %v5135, %v5519
  %v5521 = vpop.f32.mrb[0].mxu0
  %5522 = vmatprep.mubr.f32.mxu0 %v1793
  %5523 = vmatmul.mubr.f32.gmra.mrb[0].mxu0 %v1664
  %v5524 = vpop.f32.mrb[0].mxu0
  %v5525 = vadd.f32 %v5140, %v5524
  %v5526 = vpop.f32.mrb[0].mxu0
  %5527 = vmatprep.mubr.f32.mxu0 %v1794
  %5528 = vmatmul.mubr.f32.gmra.mrb[0].mxu0 %v1665
  %v5529 = vpop.f32.mrb[0].mxu0
  %v5530 = vadd.f32 %v5145, %v5529
  %v5531 = vpop.f32.mrb[0].mxu0
  %5532 = vmatprep.mubr.f32.mxu0 %v1795
  %5533 = vmatmul.mubr.f32.gmra.mrb[0].mxu0 %v1666
  %v5534 = vpop.f32.mrb[0].mxu0
  %v5535 = vadd.f32 %v5150, %v5534
  %v5536 = vpop.f32.mrb[0].mxu0
  %5537 = vmatprep.mubr.f32.mxu0 %v1796
  %5538 = vmatmul.mubr.f32.gmra.mrb[0].mxu0 %v1667
  %v5539 = vpop.f32.mrb[0].mxu0
  %v5540 = vadd.f32 %v5155, %v5539
  %v5541 = vpop.f32.mrb[0].mxu0
  %5542 = vmatprep.mubr.f32.mxu0 %v1797
  %5543 = vmatmul.mubr.f32.gmra.mrb[0].mxu0 %v1668
  %v5544 = vpop.f32.mrb[0].mxu0
  %v5545 = vadd.f32 %v5160, %v5544
  %v5546 = vpop.f32.mrb[0].mxu0
  %5547 = vmatprep.mubr.f32.mxu0 %v1798
  %5548 = vmatmul.mubr.f32.gmra.mrb[0].mxu0 %v1669
  %v5549 = vpop.f32.mrb[0].mxu0
  %v5550 = vadd.f32 %v5165, %v5549
  %v5551 = vpop.f32.mrb[0].mxu0
  %5552 = vmatprep.mubr.f32.mxu0 %v1799
  %5553 = vmatmul.mubr.f32.gmra.mrb[0].mxu0 %v1670
  %v5554 = vpop.f32.mrb[0].mxu0
  %v5555 = vadd.f32 %v5170, %v5554
  %v5556 = vpop.f32.mrb[0].mxu0
  %5557 = vmatprep.mubr.f32.mxu0 %v1800
  %5558 = vmatmul.mubr.f32.gmra.mrb[0].mxu0 %v1671
  %v5559 = vpop.f32.mrb[0].mxu0
  %v5560 = vadd.f32 %v5175, %v5559
  %v5561 = vpop.f32.mrb[0].mxu0
  %5562 = vmatprep.mubr.f32.mxu0 %v1801
  %5563 = vmatmul.mubr.f32.gmra.mrb[0].mxu0 %v1672
  %v5564 = vpop.f32.mrb[0].mxu0
  %v5565 = vadd.f32 %v5180, %v5564
  %v5566 = vpop.f32.mrb[0].mxu0
  %5567 = vmatprep.mubr.f32.mxu0 %v1802
  %5568 = vmatmul.mubr.f32.gmra.mrb[0].mxu0 %v1673
  %v5569 = vpop.f32.mrb[0].mxu0
  %v5570 = vadd.f32 %v5185, %v5569
  %v5571 = vpop.f32.mrb[0].mxu0
  %5572 = vmatprep.mubr.f32.mxu0 %v1803
  %5573 = vmatmul.mubr.f32.gmra.mrb[0].mxu0 %v1674
  %v5574 = vpop.f32.mrb[0].mxu0
  %v5575 = vadd.f32 %v5190, %v5574
  %v5576 = vpop.f32.mrb[0].mxu0
  %5577 = vmatprep.mubr.f32.mxu0 %v1804
  %5578 = vmatmul.mubr.f32.gmra.mrb[0].mxu0 %v1675
  %v5579 = vpop.f32.mrb[0].mxu0
  %v5580 = vadd.f32 %v5195, %v5579
  %v5581 = vpop.f32.mrb[0].mxu0
  %5582 = vmatprep.mubr.f32.mxu0 %v1805
  %5583 = vmatmul.mubr.f32.gmra.mrb[0].mxu0 %v1676
  %v5584 = vpop.f32.mrb[0].mxu0
  %v5585 = vadd.f32 %v5200, %v5584
  %v5586 = vpop.f32.mrb[0].mxu0
  %5587 = vmatprep.mubr.f32.mxu0 %v1806
  %5588 = vmatmul.mubr.f32.gmra.mrb[0].mxu0 %v1677
  %v5589 = vpop.f32.mrb[0].mxu0
  %v5590 = vadd.f32 %v5205, %v5589
  %v5591 = vpop.f32.mrb[0].mxu0
  %5592 = vmatprep.mubr.f32.mxu0 %v1807
  %5593 = vmatmul.mubr.f32.gmra.mrb[0].mxu0 %v1678
  %v5594 = vpop.f32.mrb[0].mxu0
  %v5595 = vadd.f32 %v5210, %v5594
  %v5596 = vpop.f32.mrb[0].mxu0
  %5597 = vmatprep.mubr.f32.mxu0 %v1808
  %5598 = vmatmul.mubr.f32.gmra.mrb[0].mxu0 %v1679
  %v5599 = vpop.f32.mrb[0].mxu0
  %v5600 = vadd.f32 %v5215, %v5599
  %v5601 = vpop.f32.mrb[0].mxu0
  %5602 = vmatprep.mubr.f32.mxu0 %v1809
  %5603 = vmatmul.mubr.f32.gmra.mrb[0].mxu0 %v1680
  %v5604 = vpop.f32.mrb[0].mxu0
  %v5605 = vadd.f32 %v5220, %v5604
  %v5606 = vpop.f32.mrb[0].mxu0
  %5607 = vmatprep.mubr.f32.mxu0 %v1810
  %5608 = vmatmul.mubr.f32.gmra.mrb[0].mxu0 %v1681
  %v5609 = vpop.f32.mrb[0].mxu0
  %v5610 = vadd.f32 %v5225, %v5609
  %v5611 = vpop.f32.mrb[0].mxu0
  %5612 = vmatprep.mubr.f32.mxu0 %v1811
  %5613 = vmatmul.mubr.f32.gmra.mrb[0].mxu0 %v1682
  %v5614 = vpop.f32.mrb[0].mxu0
  %v5615 = vadd.f32 %v5230, %v5614
  %v5616 = vpop.f32.mrb[0].mxu0
  %5617 = vmatprep.mubr.f32.mxu0 %v1812
  %5618 = vmatmul.mubr.f32.gmra.mrb[0].mxu0 %v1683
  %v5619 = vpop.f32.mrb[0].mxu0
  %v5620 = vadd.f32 %v5235, %v5619
  %v5621 = vpop.f32.mrb[0].mxu0
  %5622 = vmatprep.mubr.f32.mxu0 %v1813
  %5623 = vmatmul.mubr.f32.gmra.mrb[0].mxu0 %v1684
  %v5624 = vpop.f32.mrb[0].mxu0
  %v5625 = vadd.f32 %v5240, %v5624
  %v5626 = vpop.f32.mrb[0].mxu0
  %5627 = vmatprep.mubr.f32.mxu0 %v1814
  %5628 = vmatmul.mubr.f32.gmra.mrb[0].mxu0 %v1685
  %v5629 = vpop.f32.mrb[0].mxu0
  %v5630 = vadd.f32 %v5245, %v5629
  %v5631 = vpop.f32.mrb[0].mxu0
  %5632 = vmatprep.mubr.f32.mxu0 %v2075
  %5633 = vmatmul.mubr.f32.gmra.mrb[0].mxu0 %v1686
  %v5634 = vpop.f32.mrb[0].mxu0
  %v5635 = vadd.f32 %v5250, %v5634
  %v5636 = vpop.f32.mrb[0].mxu0
  %5637 = vmatprep.mubr.f32.mxu0 %v2076
  %5638 = vmatmul.mubr.f32.gmra.mrb[0].mxu0 %v2071
  %v5639 = vpop.f32.mrb[0].mxu0
  %v5640 = vadd.f32 %v5255, %v5639
  %v5641 = vpop.f32.mrb[0].mxu0
  %5642 = vmatprep.mubr.f32.mxu0 %v2150
  %5643 = vmatmul.mubr.f32.gmra.mrb[0].mxu0 %v2072
  %v5644 = vpop.f32.mrb[0].mxu0
  %v5645 = vadd.f32 %v5260, %v5644
  %v5646 = vpop.f32.mrb[0].mxu0
  %5647 = vmatprep.mubr.f32.mxu0 %v2151
  %5648 = vmatmul.mubr.f32.gmra.mrb[0].mxu0 %v2148
  %v5649 = vpop.f32.mrb[0].mxu0
  %v5650 = vadd.f32 %v5265, %v5649
  %v5651 = vpop.f32.mrb[0].mxu0
  %5652 = vmatprep.mubr.f32.mxu0 %v2152
  %5653 = vmatmul.mubr.f32.gmra.mrb[0].mxu0 %v2149
  %v5654 = vpop.f32.mrb[0].mxu0
  %v5655 = vadd.f32 %v5270, %v5654
  %v5656 = vpop.f32.mrb[0].mxu0
  %5657 = vdwg.mxu0
  %5658 = vmatprep.subr.mxu0 0.0
  %5659 = vmatpush1.msra.mxu0 %v2434
  %5660 = vmatprep.subr.mxu0 0.0
  %5661 = vmatpush1.msra.mxu0 %v2435
  %5662 = vmatprep.subr.mxu0 0.0
  %5663 = vmatpush1.msra.mxu0 %v2436
  %5664 = vmatprep.subr.mxu0 0.0
  %5665 = vmatpush1.msra.mxu0 %v2437
  %5666 = vmatprep.subr.mxu0 0.0
  %5667 = vmatpush1.msra.mxu0 %v2438
  %5668 = vmatprep.subr.mxu0 0.0
  %5669 = vmatpush1.msra.mxu0 %v2439
  %5670 = vmatprep.subr.mxu0 0.0
  %5671 = vmatpush1.msra.mxu0 %v2440
  %5672 = vmatprep.subr.mxu0 0.0
  %5673 = vmatpush1.msra.mxu0 %v2441
  %5674 = vmatprep.subr.mxu0 0.0
  %5675 = vmatpush1.msra.mxu0 %v2442
  %5676 = vmatprep.subr.mxu0 0.0
  %5677 = vmatpush1.msra.mxu0 %v2443
  %5678 = vmatprep.subr.mxu0 0.0
  %5679 = vmatpush1.msra.mxu0 %v2444
  %5680 = vmatprep.subr.mxu0 0.0
  %5681 = vmatpush1.msra.mxu0 %v2445
  %5682 = vmatprep.subr.mxu0 0.0
  %5683 = vmatpush1.msra.mxu0 %v2446
  %5684 = vmatprep.subr.mxu0 0.0
  %5685 = vmatpush1.msra.mxu0 %v2447
  %5686 = vmatprep.subr.mxu0 0.0
  %5687 = vmatpush1.msra.mxu0 %v2448
  %5688 = vmatprep.subr.mxu0 0.0
  %5689 = vmatpush1.msra.mxu0 %v2449
  %5690 = vmatprep.subr.mxu0 0.0
  %5691 = vmatpush1.msra.mxu0 %v2450
  %5692 = vmatprep.subr.mxu0 0.0
  %5693 = vmatpush1.msra.mxu0 %v2451
  %5694 = vmatprep.subr.mxu0 0.0
  %5695 = vmatpush1.msra.mxu0 %v2452
  %5696 = vmatprep.subr.mxu0 0.0
  %5697 = vmatpush1.msra.mxu0 %v2453
  %5698 = vmatprep.subr.mxu0 0.0
  %5699 = vmatpush1.msra.mxu0 %v2454
  %5700 = vmatprep.subr.mxu0 0.0
  %5701 = vmatpush1.msra.mxu0 %v2455
  %5702 = vmatprep.subr.mxu0 0.0
  %5703 = vmatpush1.msra.mxu0 %v2456
  %5704 = vmatprep.subr.mxu0 0.0
  %5705 = vmatpush1.msra.mxu0 %v2457
  %5706 = vmatprep.subr.mxu0 0.0
  %5707 = vmatpush1.msra.mxu0 %v2458
  %5708 = vmatprep.subr.mxu0 0.0
  %5709 = vmatpush1.msra.mxu0 %v2459
  %5710 = vmatprep.subr.mxu0 0.0
  %5711 = vmatpush1.msra.mxu0 %v2460
  %5712 = vmatprep.subr.mxu0 0.0
  %5713 = vmatpush1.msra.mxu0 %v2461
  %5714 = vmatprep.subr.mxu0 0.0
  %5715 = vmatpush1.msra.mxu0 %v2462
  %5716 = vmatprep.subr.mxu0 0.0
  %5717 = vmatpush1.msra.mxu0 %v2463
  %5718 = vmatprep.subr.mxu0 0.0
  %5719 = vmatpush1.msra.mxu0 %v2464
  %5720 = vmatprep.subr.mxu0 0.0
  %5721 = vmatpush1.msra.mxu0 %v2465
  %5722 = vmatprep.mubr.f32.mxu0 %v1884
  %5723 = vmatmul.mubr.f32.gmra.mrb[0].mxu0 %v1820
  %v5724 = vpop.f32.mrb[0].mxu0
  %v5725 = vadd.f32 %v5340, %v5724
  %v5726 = vpop.f32.mrb[0].mxu0
  %5727 = vmatprep.mubr.f32.mxu0 %v1885
  %5728 = vmatmul.mubr.f32.gmra.mrb[0].mxu0 %v1821
  %v5729 = vpop.f32.mrb[0].mxu0
  %v5730 = vadd.f32 %v5345, %v5729
  %v5731 = vpop.f32.mrb[0].mxu0
  %5732 = vmatprep.mubr.f32.mxu0 %v1886
  %5733 = vmatmul.mubr.f32.gmra.mrb[0].mxu0 %v1822
  %v5734 = vpop.f32.mrb[0].mxu0
  %v5735 = vadd.f32 %v5350, %v5734
  %v5736 = vpop.f32.mrb[0].mxu0
  %5737 = vmatprep.mubr.f32.mxu0 %v1887
  %5738 = vmatmul.mubr.f32.gmra.mrb[0].mxu0 %v1823
  %v5739 = vpop.f32.mrb[0].mxu0
  %v5740 = vadd.f32 %v5355, %v5739
  %v5741 = vpop.f32.mrb[0].mxu0
  %5742 = vmatprep.mubr.f32.mxu0 %v1888
  %5743 = vmatmul.mubr.f32.gmra.mrb[0].mxu0 %v1824
  %v5744 = vpop.f32.mrb[0].mxu0
  %v5745 = vadd.f32 %v5360, %v5744
  %v5746 = vpop.f32.mrb[0].mxu0
  %5747 = vmatprep.mubr.f32.mxu0 %v1889
  %5748 = vmatmul.mubr.f32.gmra.mrb[0].mxu0 %v1825
  %v5749 = vpop.f32.mrb[0].mxu0
  %v5750 = vadd.f32 %v5365, %v5749
  %v5751 = vpop.f32.mrb[0].mxu0
  %5752 = vmatprep.mubr.f32.mxu0 %v1890
  %5753 = vmatmul.mubr.f32.gmra.mrb[0].mxu0 %v1826
  %v5754 = vpop.f32.mrb[0].mxu0
  %v5755 = vadd.f32 %v5370, %v5754
  %v5756 = vpop.f32.mrb[0].mxu0
  %5757 = vmatprep.mubr.f32.mxu0 %v1891
  %5758 = vmatmul.mubr.f32.gmra.mrb[0].mxu0 %v1827
  %v5759 = vpop.f32.mrb[0].mxu0
  %v5760 = vadd.f32 %v5375, %v5759
  %v5761 = vpop.f32.mrb[0].mxu0
  %5762 = vmatprep.mubr.f32.mxu0 %v1892
  %5763 = vmatmul.mubr.f32.gmra.mrb[0].mxu0 %v1828
  %v5764 = vpop.f32.mrb[0].mxu0
  %v5765 = vadd.f32 %v5380, %v5764
  %v5766 = vpop.f32.mrb[0].mxu0
  %5767 = vmatprep.mubr.f32.mxu0 %v1893
  %5768 = vmatmul.mubr.f32.gmra.mrb[0].mxu0 %v1829
  %v5769 = vpop.f32.mrb[0].mxu0
  %v5770 = vadd.f32 %v5385, %v5769
  %v5771 = vpop.f32.mrb[0].mxu0
  %5772 = vmatprep.mubr.f32.mxu0 %v1894
  %5773 = vmatmul.mubr.f32.gmra.mrb[0].mxu0 %v1830
  %v5774 = vpop.f32.mrb[0].mxu0
  %v5775 = vadd.f32 %v5390, %v5774
  %v5776 = vpop.f32.mrb[0].mxu0
  %5777 = vmatprep.mubr.f32.mxu0 %v1895
  %5778 = vmatmul.mubr.f32.gmra.mrb[0].mxu0 %v1831
  %v5779 = vpop.f32.mrb[0].mxu0
  %v5780 = vadd.f32 %v5395, %v5779
  %v5781 = vpop.f32.mrb[0].mxu0
  %5782 = vmatprep.mubr.f32.mxu0 %v1896
  %5783 = vmatmul.mubr.f32.gmra.mrb[0].mxu0 %v1832
  %v5784 = vpop.f32.mrb[0].mxu0
  %v5785 = vadd.f32 %v5400, %v5784
  %v5786 = vpop.f32.mrb[0].mxu0
  %5787 = vmatprep.mubr.f32.mxu0 %v1897
  %5788 = vmatmul.mubr.f32.gmra.mrb[0].mxu0 %v1833
  %v5789 = vpop.f32.mrb[0].mxu0
  %v5790 = vadd.f32 %v5405, %v5789
  %v5791 = vpop.f32.mrb[0].mxu0
  %5792 = vmatprep.mubr.f32.mxu0 %v1898
  %5793 = vmatmul.mubr.f32.gmra.mrb[0].mxu0 %v1834
  %v5794 = vpop.f32.mrb[0].mxu0
  %v5795 = vadd.f32 %v5410, %v5794
  %v5796 = vpop.f32.mrb[0].mxu0
  %5797 = vmatprep.mubr.f32.mxu0 %v1899
  %5798 = vmatmul.mubr.f32.gmra.mrb[0].mxu0 %v1835
  %v5799 = vpop.f32.mrb[0].mxu0
  %v5800 = vadd.f32 %v5415, %v5799
  %v5801 = vpop.f32.mrb[0].mxu0
  %5802 = vmatprep.mubr.f32.mxu0 %v1900
  %5803 = vmatmul.mubr.f32.gmra.mrb[0].mxu0 %v1836
  %v5804 = vpop.f32.mrb[0].mxu0
  %v5805 = vadd.f32 %v5420, %v5804
  %v5806 = vpop.f32.mrb[0].mxu0
  %5807 = vmatprep.mubr.f32.mxu0 %v1901
  %5808 = vmatmul.mubr.f32.gmra.mrb[0].mxu0 %v1837
  %v5809 = vpop.f32.mrb[0].mxu0
  %v5810 = vadd.f32 %v5425, %v5809
  %v5811 = vpop.f32.mrb[0].mxu0
  %5812 = vmatprep.mubr.f32.mxu0 %v1902
  %5813 = vmatmul.mubr.f32.gmra.mrb[0].mxu0 %v1838
  %v5814 = vpop.f32.mrb[0].mxu0
  %v5815 = vadd.f32 %v5430, %v5814
  %v5816 = vpop.f32.mrb[0].mxu0
  %5817 = vmatprep.mubr.f32.mxu0 %v1903
  %5818 = vmatmul.mubr.f32.gmra.mrb[0].mxu0 %v1839
  %v5819 = vpop.f32.mrb[0].mxu0
  %v5820 = vadd.f32 %v5435, %v5819
  %v5821 = vpop.f32.mrb[0].mxu0
  %5822 = vmatprep.mubr.f32.mxu0 %v1904
  %5823 = vmatmul.mubr.f32.gmra.mrb[0].mxu0 %v1840
  %v5824 = vpop.f32.mrb[0].mxu0
  %v5825 = vadd.f32 %v5440, %v5824
  %v5826 = vpop.f32.mrb[0].mxu0
  %5827 = vmatprep.mubr.f32.mxu0 %v1905
  %5828 = vmatmul.mubr.f32.gmra.mrb[0].mxu0 %v1841
  %v5829 = vpop.f32.mrb[0].mxu0
  %v5830 = vadd.f32 %v5445, %v5829
  %v5831 = vpop.f32.mrb[0].mxu0
  %5832 = vmatprep.mubr.f32.mxu0 %v1906
  %5833 = vmatmul.mubr.f32.gmra.mrb[0].mxu0 %v1842
  %v5834 = vpop.f32.mrb[0].mxu0
  %v5835 = vadd.f32 %v5450, %v5834
  %v5836 = vpop.f32.mrb[0].mxu0
  %5837 = vmatprep.mubr.f32.mxu0 %v1907
  %5838 = vmatmul.mubr.f32.gmra.mrb[0].mxu0 %v1843
  %v5839 = vpop.f32.mrb[0].mxu0
  %v5840 = vadd.f32 %v5455, %v5839
  %v5841 = vpop.f32.mrb[0].mxu0
  %5842 = vmatprep.mubr.f32.mxu0 %v1908
  %5843 = vmatmul.mubr.f32.gmra.mrb[0].mxu0 %v1844
  %v5844 = vpop.f32.mrb[0].mxu0
  %v5845 = vadd.f32 %v5460, %v5844
  %v5846 = vpop.f32.mrb[0].mxu0
  %5847 = vmatprep.mubr.f32.mxu0 %v1909
  %5848 = vmatmul.mubr.f32.gmra.mrb[0].mxu0 %v1845
  %v5849 = vpop.f32.mrb[0].mxu0
  %v5850 = vadd.f32 %v5465, %v5849
  %v5851 = vpop.f32.mrb[0].mxu0
  %5852 = vmatprep.mubr.f32.mxu0 %v1910
  %5853 = vmatmul.mubr.f32.gmra.mrb[0].mxu0 %v1846
  %v5854 = vpop.f32.mrb[0].mxu0
  %v5855 = vadd.f32 %v5470, %v5854
  %v5856 = vpop.f32.mrb[0].mxu0
  %5857 = vmatprep.mubr.f32.mxu0 %v1911
  %5858 = vmatmul.mubr.f32.gmra.mrb[0].mxu0 %v1847
  %v5859 = vpop.f32.mrb[0].mxu0
  %v5860 = vadd.f32 %v5475, %v5859
  %v5861 = vpop.f32.mrb[0].mxu0
  %5862 = vmatprep.mubr.f32.mxu0 %v1912
  %5863 = vmatmul.mubr.f32.gmra.mrb[0].mxu0 %v1848
  %v5864 = vpop.f32.mrb[0].mxu0
  %v5865 = vadd.f32 %v5480, %v5864
  %v5866 = vpop.f32.mrb[0].mxu0
  %5867 = vmatprep.mubr.f32.mxu0 %v1913
  %5868 = vmatmul.mubr.f32.gmra.mrb[0].mxu0 %v1849
  %v5869 = vpop.f32.mrb[0].mxu0
  %v5870 = vadd.f32 %v5485, %v5869
  %v5871 = vpop.f32.mrb[0].mxu0
  %5872 = vmatprep.mubr.f32.mxu0 %v1914
  %5873 = vmatmul.mubr.f32.gmra.mrb[0].mxu0 %v1850
  %v5874 = vpop.f32.mrb[0].mxu0
  %v5875 = vadd.f32 %v5490, %v5874
  %v5876 = vpop.f32.mrb[0].mxu0
  %5877 = vmatprep.mubr.f32.mxu0 %v1915
  %5878 = vmatmul.mubr.f32.gmra.mrb[0].mxu0 %v1851
  %v5879 = vpop.f32.mrb[0].mxu0
  %v5880 = vadd.f32 %v5495, %v5879
  %v5881 = vpop.f32.mrb[0].mxu0
  %5882 = vmatprep.mubr.f32.mxu0 %v1916
  %5883 = vmatmul.mubr.f32.gmra.mrb[0].mxu0 %v1852
  %v5884 = vpop.f32.mrb[0].mxu0
  %v5885 = vadd.f32 %v5500, %v5884
  %v5886 = vpop.f32.mrb[0].mxu0
  %5887 = vmatprep.mubr.f32.mxu0 %v1917
  %5888 = vmatmul.mubr.f32.gmra.mrb[0].mxu0 %v1853
  %v5889 = vpop.f32.mrb[0].mxu0
  %v5890 = vadd.f32 %v5505, %v5889
  %v5891 = vpop.f32.mrb[0].mxu0
  %5892 = vmatprep.mubr.f32.mxu0 %v1918
  %5893 = vmatmul.mubr.f32.gmra.mrb[0].mxu0 %v1854
  %v5894 = vpop.f32.mrb[0].mxu0
  %v5895 = vadd.f32 %v5510, %v5894
  %v5896 = vpop.f32.mrb[0].mxu0
  %5897 = vmatprep.mubr.f32.mxu0 %v1919
  %5898 = vmatmul.mubr.f32.gmra.mrb[0].mxu0 %v1855
  %v5899 = vpop.f32.mrb[0].mxu0
  %v5900 = vadd.f32 %v5515, %v5899
  %v5901 = vpop.f32.mrb[0].mxu0
  %5902 = vmatprep.mubr.f32.mxu0 %v1920
  %5903 = vmatmul.mubr.f32.gmra.mrb[0].mxu0 %v1856
  %v5904 = vpop.f32.mrb[0].mxu0
  %v5905 = vadd.f32 %v5520, %v5904
  %v5906 = vpop.f32.mrb[0].mxu0
  %5907 = vmatprep.mubr.f32.mxu0 %v1921
  %5908 = vmatmul.mubr.f32.gmra.mrb[0].mxu0 %v1857
  %v5909 = vpop.f32.mrb[0].mxu0
  %v5910 = vadd.f32 %v5525, %v5909
  %v5911 = vpop.f32.mrb[0].mxu0
  %5912 = vmatprep.mubr.f32.mxu0 %v1922
  %5913 = vmatmul.mubr.f32.gmra.mrb[0].mxu0 %v1858
  %v5914 = vpop.f32.mrb[0].mxu0
  %v5915 = vadd.f32 %v5530, %v5914
  %v5916 = vpop.f32.mrb[0].mxu0
  %5917 = vmatprep.mubr.f32.mxu0 %v1923
  %5918 = vmatmul.mubr.f32.gmra.mrb[0].mxu0 %v1859
  %v5919 = vpop.f32.mrb[0].mxu0
  %v5920 = vadd.f32 %v5535, %v5919
  %v5921 = vpop.f32.mrb[0].mxu0
  %5922 = vmatprep.mubr.f32.mxu0 %v1924
  %5923 = vmatmul.mubr.f32.gmra.mrb[0].mxu0 %v1860
  %v5924 = vpop.f32.mrb[0].mxu0
  %v5925 = vadd.f32 %v5540, %v5924
  %v5926 = vpop.f32.mrb[0].mxu0
  %5927 = vmatprep.mubr.f32.mxu0 %v1925
  %5928 = vmatmul.mubr.f32.gmra.mrb[0].mxu0 %v1861
  %v5929 = vpop.f32.mrb[0].mxu0
  %v5930 = vadd.f32 %v5545, %v5929
  %v5931 = vpop.f32.mrb[0].mxu0
  %5932 = vmatprep.mubr.f32.mxu0 %v1926
  %5933 = vmatmul.mubr.f32.gmra.mrb[0].mxu0 %v1862
  %v5934 = vpop.f32.mrb[0].mxu0
  %v5935 = vadd.f32 %v5550, %v5934
  %v5936 = vpop.f32.mrb[0].mxu0
  %5937 = vmatprep.mubr.f32.mxu0 %v1927
  %5938 = vmatmul.mubr.f32.gmra.mrb[0].mxu0 %v1863
  %v5939 = vpop.f32.mrb[0].mxu0
  %v5940 = vadd.f32 %v5555, %v5939
  %v5941 = vpop.f32.mrb[0].mxu0
  %5942 = vmatprep.mubr.f32.mxu0 %v1928
  %5943 = vmatmul.mubr.f32.gmra.mrb[0].mxu0 %v1864
  %v5944 = vpop.f32.mrb[0].mxu0
  %v5945 = vadd.f32 %v5560, %v5944
  %v5946 = vpop.f32.mrb[0].mxu0
  %5947 = vmatprep.mubr.f32.mxu0 %v1929
  %5948 = vmatmul.mubr.f32.gmra.mrb[0].mxu0 %v1865
  %v5949 = vpop.f32.mrb[0].mxu0
  %v5950 = vadd.f32 %v5565, %v5949
  %v5951 = vpop.f32.mrb[0].mxu0
  %5952 = vmatprep.mubr.f32.mxu0 %v1930
  %5953 = vmatmul.mubr.f32.gmra.mrb[0].mxu0 %v1866
  %v5954 = vpop.f32.mrb[0].mxu0
  %v5955 = vadd.f32 %v5570, %v5954
  %v5956 = vpop.f32.mrb[0].mxu0
  %5957 = vmatprep.mubr.f32.mxu0 %v1931
  %5958 = vmatmul.mubr.f32.gmra.mrb[0].mxu0 %v1867
  %v5959 = vpop.f32.mrb[0].mxu0
  %v5960 = vadd.f32 %v5575, %v5959
  %v5961 = vpop.f32.mrb[0].mxu0
  %5962 = vmatprep.mubr.f32.mxu0 %v1932
  %5963 = vmatmul.mubr.f32.gmra.mrb[0].mxu0 %v1868
  %v5964 = vpop.f32.mrb[0].mxu0
  %v5965 = vadd.f32 %v5580, %v5964
  %v5966 = vpop.f32.mrb[0].mxu0
  %5967 = vmatprep.mubr.f32.mxu0 %v1933
  %5968 = vmatmul.mubr.f32.gmra.mrb[0].mxu0 %v1869
  %v5969 = vpop.f32.mrb[0].mxu0
  %v5970 = vadd.f32 %v5585, %v5969
  %v5971 = vpop.f32.mrb[0].mxu0
  %5972 = vmatprep.mubr.f32.mxu0 %v1934
  %5973 = vmatmul.mubr.f32.gmra.mrb[0].mxu0 %v1870
  %v5974 = vpop.f32.mrb[0].mxu0
  %v5975 = vadd.f32 %v5590, %v5974
  %v5976 = vpop.f32.mrb[0].mxu0
  %5977 = vmatprep.mubr.f32.mxu0 %v1935
  %5978 = vmatmul.mubr.f32.gmra.mrb[0].mxu0 %v1871
  %v5979 = vpop.f32.mrb[0].mxu0
  %v5980 = vadd.f32 %v5595, %v5979
  %v5981 = vpop.f32.mrb[0].mxu0
  %5982 = vmatprep.mubr.f32.mxu0 %v1936
  %5983 = vmatmul.mubr.f32.gmra.mrb[0].mxu0 %v1872
  %v5984 = vpop.f32.mrb[0].mxu0
  %v5985 = vadd.f32 %v5600, %v5984
  %v5986 = vpop.f32.mrb[0].mxu0
  %5987 = vmatprep.mubr.f32.mxu0 %v1937
  %5988 = vmatmul.mubr.f32.gmra.mrb[0].mxu0 %v1873
  %v5989 = vpop.f32.mrb[0].mxu0
  %v5990 = vadd.f32 %v5605, %v5989
  %v5991 = vpop.f32.mrb[0].mxu0
  %5992 = vmatprep.mubr.f32.mxu0 %v1938
  %5993 = vmatmul.mubr.f32.gmra.mrb[0].mxu0 %v1874
  %v5994 = vpop.f32.mrb[0].mxu0
  %v5995 = vadd.f32 %v5610, %v5994
  %v5996 = vpop.f32.mrb[0].mxu0
  %5997 = vmatprep.mubr.f32.mxu0 %v1939
  %5998 = vmatmul.mubr.f32.gmra.mrb[0].mxu0 %v1875
  %v5999 = vpop.f32.mrb[0].mxu0
  %v6000 = vadd.f32 %v5615, %v5999
  %v6001 = vpop.f32.mrb[0].mxu0
  %6002 = vmatprep.mubr.f32.mxu0 %v1940
  %6003 = vmatmul.mubr.f32.gmra.mrb[0].mxu0 %v1876
  %v6004 = vpop.f32.mrb[0].mxu0
  %v6005 = vadd.f32 %v5620, %v6004
  %v6006 = vpop.f32.mrb[0].mxu0
  %6007 = vmatprep.mubr.f32.mxu0 %v1941
  %6008 = vmatmul.mubr.f32.gmra.mrb[0].mxu0 %v1877
  %v6009 = vpop.f32.mrb[0].mxu0
  %v6010 = vadd.f32 %v5625, %v6009
  %v6011 = vpop.f32.mrb[0].mxu0
  %6012 = vmatprep.mubr.f32.mxu0 %v1942
  %6013 = vmatmul.mubr.f32.gmra.mrb[0].mxu0 %v1878
  %v6014 = vpop.f32.mrb[0].mxu0
  %v6015 = vadd.f32 %v5630, %v6014
  %v6016 = vpop.f32.mrb[0].mxu0
  %6017 = vmatprep.mubr.f32.mxu0 %v2077
  %6018 = vmatmul.mubr.f32.gmra.mrb[0].mxu0 %v2153
  %v6019 = vpop.f32.mrb[0].mxu0
  %v6020 = vadd.f32 %v5635, %v6019
  %v6021 = vpop.f32.mrb[0].mxu0
  %6022 = vmatprep.mubr.f32.mxu0 %v2078
  %6023 = vmatmul.mubr.f32.gmra.mrb[0].mxu0 %v2154
  %v6024 = vpop.f32.mrb[0].mxu0
  %v6025 = vadd.f32 %v5640, %v6024
  %v6026 = vpop.f32.mrb[0].mxu0
  %6027 = vmatprep.mubr.f32.mxu0 %v2079
  %6028 = vmatmul.mubr.f32.gmra.mrb[0].mxu0 %v2155
  %v6029 = vpop.f32.mrb[0].mxu0
  %v6030 = vadd.f32 %v5645, %v6029
  %v6031 = vpop.f32.mrb[0].mxu0
  %6032 = vmatprep.mubr.f32.mxu0 %v2158
  %6033 = vmatmul.mubr.f32.gmra.mrb[0].mxu0 %v2156
  %v6034 = vpop.f32.mrb[0].mxu0
  %v6035 = vadd.f32 %v5650, %v6034
  %v6036 = vpop.f32.mrb[0].mxu0
  %6037 = vmatprep.mubr.f32.mxu0 %v2159
  %6038 = vmatmul.mubr.f32.gmra.mrb[0].mxu0 %v2157
  %v6039 = vpop.f32.mrb[0].mxu0
  %v6040 = vadd.f32 %v5655, %v6039
  %v6041 = vpop.f32.mrb[0].mxu0
  %6042 = vdwg.mxu0
  %6043 = vmatprep.subr.mxu0 0.0
  %6044 = vmatpush1.msra.mxu0 %v2466
  %6045 = vmatprep.subr.mxu0 0.0
  %6046 = vmatpush1.msra.mxu0 %v2467
  %6047 = vmatprep.subr.mxu0 0.0
  %6048 = vmatpush1.msra.mxu0 %v2468
  %6049 = vmatprep.subr.mxu0 0.0
  %6050 = vmatpush1.msra.mxu0 %v2469
  %6051 = vmatprep.subr.mxu0 0.0
  %6052 = vmatpush1.msra.mxu0 %v2470
  %6053 = vmatprep.subr.mxu0 0.0
  %6054 = vmatpush1.msra.mxu0 %v2471
  %6055 = vmatprep.subr.mxu0 0.0
  %6056 = vmatpush1.msra.mxu0 %v2472
  %6057 = vmatprep.subr.mxu0 0.0
  %6058 = vmatpush1.msra.mxu0 %v2473
  %6059 = vmatprep.subr.mxu0 0.0
  %6060 = vmatpush1.msra.mxu0 %v2474
  %6061 = vmatprep.subr.mxu0 0.0
  %6062 = vmatpush1.msra.mxu0 %v2475
  %6063 = vmatprep.subr.mxu0 0.0
  %6064 = vmatpush1.msra.mxu0 %v2476
  %6065 = vmatprep.subr.mxu0 0.0
  %6066 = vmatpush1.msra.mxu0 %v2477
  %6067 = vmatprep.subr.mxu0 0.0
  %6068 = vmatpush1.msra.mxu0 %v2478
  %6069 = vmatprep.subr.mxu0 0.0
  %6070 = vmatpush1.msra.mxu0 %v2479
  %6071 = vmatprep.subr.mxu0 0.0
  %6072 = vmatpush1.msra.mxu0 %v2480
  %6073 = vmatprep.subr.mxu0 0.0
  %6074 = vmatpush1.msra.mxu0 %v2481
  %6075 = vmatprep.subr.mxu0 0.0
  %6076 = vmatpush1.msra.mxu0 %v2482
  %6077 = vmatprep.subr.mxu0 0.0
  %6078 = vmatpush1.msra.mxu0 %v2483
  %6079 = vmatprep.subr.mxu0 0.0
  %6080 = vmatpush1.msra.mxu0 %v2484
  %6081 = vmatprep.subr.mxu0 0.0
  %6082 = vmatpush1.msra.mxu0 %v2485
  %6083 = vmatprep.subr.mxu0 0.0
  %6084 = vmatpush1.msra.mxu0 %v2486
  %6085 = vmatprep.subr.mxu0 0.0
  %6086 = vmatpush1.msra.mxu0 %v2487
  %6087 = vmatprep.subr.mxu0 0.0
  %6088 = vmatpush1.msra.mxu0 %v2488
  %6089 = vmatprep.subr.mxu0 0.0
  %6090 = vmatpush1.msra.mxu0 %v2489
  %6091 = vmatprep.subr.mxu0 0.0
  %6092 = vmatpush1.msra.mxu0 %v2490
  %6093 = vmatprep.subr.mxu0 0.0
  %6094 = vmatpush1.msra.mxu0 %v2491
  %6095 = vmatprep.subr.mxu0 0.0
  %6096 = vmatpush1.msra.mxu0 %v2492
  %6097 = vmatprep.subr.mxu0 0.0
  %6098 = vmatpush1.msra.mxu0 %v2493
  %6099 = vmatprep.subr.mxu0 0.0
  %6100 = vmatpush1.msra.mxu0 %v2494
  %6101 = vmatprep.subr.mxu0 0.0
  %6102 = vmatpush1.msra.mxu0 %v2495
  %6103 = vmatprep.subr.mxu0 0.0
  %6104 = vmatpush1.msra.mxu0 %v2496
  %6105 = vmatprep.subr.mxu0 0.0
  %6106 = vmatpush1.msra.mxu0 %v2497
  %6107 = vmatprep.mubr.f32.mxu0 %v1947
  %6108 = vmatmul.mubr.f32.gmra.mrb[0].mxu0 %v2082
  %v6109 = vpop.f32.mrb[0].mxu0
  %v6110 = vadd.f32 %v5725, %v6109
  %v6111 = vpop.f32.mrb[0].mxu0
  %6112 = vmatprep.mubr.f32.mxu0 %v1948
  %6113 = vmatmul.mubr.f32.gmra.mrb[0].mxu0 %v2083
  %v6114 = vpop.f32.mrb[0].mxu0
  %v6115 = vadd.f32 %v5730, %v6114
  %v6116 = vpop.f32.mrb[0].mxu0
  %6117 = vmatprep.mubr.f32.mxu0 %v1949
  %6118 = vmatmul.mubr.f32.gmra.mrb[0].mxu0 %v2084
  %v6119 = vpop.f32.mrb[0].mxu0
  %v6120 = vadd.f32 %v5735, %v6119
  %v6121 = vpop.f32.mrb[0].mxu0
  %6122 = vmatprep.mubr.f32.mxu0 %v1950
  %6123 = vmatmul.mubr.f32.gmra.mrb[0].mxu0 %v2085
  %v6124 = vpop.f32.mrb[0].mxu0
  %v6125 = vadd.f32 %v5740, %v6124
  %v6126 = vpop.f32.mrb[0].mxu0
  %6127 = vmatprep.mubr.f32.mxu0 %v1951
  %6128 = vmatmul.mubr.f32.gmra.mrb[0].mxu0 %v2086
  %v6129 = vpop.f32.mrb[0].mxu0
  %v6130 = vadd.f32 %v5745, %v6129
  %v6131 = vpop.f32.mrb[0].mxu0
  %6132 = vmatprep.mubr.f32.mxu0 %v1952
  %6133 = vmatmul.mubr.f32.gmra.mrb[0].mxu0 %v2087
  %v6134 = vpop.f32.mrb[0].mxu0
  %v6135 = vadd.f32 %v5750, %v6134
  %v6136 = vpop.f32.mrb[0].mxu0
  %6137 = vmatprep.mubr.f32.mxu0 %v1953
  %6138 = vmatmul.mubr.f32.gmra.mrb[0].mxu0 %v2088
  %v6139 = vpop.f32.mrb[0].mxu0
  %v6140 = vadd.f32 %v5755, %v6139
  %v6141 = vpop.f32.mrb[0].mxu0
  %6142 = vmatprep.mubr.f32.mxu0 %v1954
  %6143 = vmatmul.mubr.f32.gmra.mrb[0].mxu0 %v2089
  %v6144 = vpop.f32.mrb[0].mxu0
  %v6145 = vadd.f32 %v5760, %v6144
  %v6146 = vpop.f32.mrb[0].mxu0
  %6147 = vmatprep.mubr.f32.mxu0 %v1955
  %6148 = vmatmul.mubr.f32.gmra.mrb[0].mxu0 %v2090
  %v6149 = vpop.f32.mrb[0].mxu0
  %v6150 = vadd.f32 %v5765, %v6149
  %v6151 = vpop.f32.mrb[0].mxu0
  %6152 = vmatprep.mubr.f32.mxu0 %v1956
  %6153 = vmatmul.mubr.f32.gmra.mrb[0].mxu0 %v2091
  %v6154 = vpop.f32.mrb[0].mxu0
  %v6155 = vadd.f32 %v5770, %v6154
  %v6156 = vpop.f32.mrb[0].mxu0
  %6157 = vmatprep.mubr.f32.mxu0 %v1957
  %6158 = vmatmul.mubr.f32.gmra.mrb[0].mxu0 %v2092
  %v6159 = vpop.f32.mrb[0].mxu0
  %v6160 = vadd.f32 %v5775, %v6159
  %v6161 = vpop.f32.mrb[0].mxu0
  %6162 = vmatprep.mubr.f32.mxu0 %v1958
  %6163 = vmatmul.mubr.f32.gmra.mrb[0].mxu0 %v2093
  %v6164 = vpop.f32.mrb[0].mxu0
  %v6165 = vadd.f32 %v5780, %v6164
  %v6166 = vpop.f32.mrb[0].mxu0
  %6167 = vmatprep.mubr.f32.mxu0 %v1959
  %6168 = vmatmul.mubr.f32.gmra.mrb[0].mxu0 %v2094
  %v6169 = vpop.f32.mrb[0].mxu0
  %v6170 = vadd.f32 %v5785, %v6169
  %v6171 = vpop.f32.mrb[0].mxu0
  %6172 = vmatprep.mubr.f32.mxu0 %v1960
  %6173 = vmatmul.mubr.f32.gmra.mrb[0].mxu0 %v2095
  %v6174 = vpop.f32.mrb[0].mxu0
  %v6175 = vadd.f32 %v5790, %v6174
  %v6176 = vpop.f32.mrb[0].mxu0
  %6177 = vmatprep.mubr.f32.mxu0 %v1961
  %6178 = vmatmul.mubr.f32.gmra.mrb[0].mxu0 %v2096
  %v6179 = vpop.f32.mrb[0].mxu0
  %v6180 = vadd.f32 %v5795, %v6179
  %v6181 = vpop.f32.mrb[0].mxu0
  %6182 = vmatprep.mubr.f32.mxu0 %v1962
  %6183 = vmatmul.mubr.f32.gmra.mrb[0].mxu0 %v2097
  %v6184 = vpop.f32.mrb[0].mxu0
  %v6185 = vadd.f32 %v5800, %v6184
  %v6186 = vpop.f32.mrb[0].mxu0
  %6187 = vmatprep.mubr.f32.mxu0 %v1963
  %6188 = vmatmul.mubr.f32.gmra.mrb[0].mxu0 %v2098
  %v6189 = vpop.f32.mrb[0].mxu0
  %v6190 = vadd.f32 %v5805, %v6189
  %v6191 = vpop.f32.mrb[0].mxu0
  %6192 = vmatprep.mubr.f32.mxu0 %v1964
  %6193 = vmatmul.mubr.f32.gmra.mrb[0].mxu0 %v2099
  %v6194 = vpop.f32.mrb[0].mxu0
  %v6195 = vadd.f32 %v5810, %v6194
  %v6196 = vpop.f32.mrb[0].mxu0
  %6197 = vmatprep.mubr.f32.mxu0 %v1965
  %6198 = vmatmul.mubr.f32.gmra.mrb[0].mxu0 %v2100
  %v6199 = vpop.f32.mrb[0].mxu0
  %v6200 = vadd.f32 %v5815, %v6199
  %v6201 = vpop.f32.mrb[0].mxu0
  %6202 = vmatprep.mubr.f32.mxu0 %v1966
  %6203 = vmatmul.mubr.f32.gmra.mrb[0].mxu0 %v2101
  %v6204 = vpop.f32.mrb[0].mxu0
  %v6205 = vadd.f32 %v5820, %v6204
  %v6206 = vpop.f32.mrb[0].mxu0
  %6207 = vmatprep.mubr.f32.mxu0 %v1967
  %6208 = vmatmul.mubr.f32.gmra.mrb[0].mxu0 %v2102
  %v6209 = vpop.f32.mrb[0].mxu0
  %v6210 = vadd.f32 %v5825, %v6209
  %v6211 = vpop.f32.mrb[0].mxu0
  %6212 = vmatprep.mubr.f32.mxu0 %v1968
  %6213 = vmatmul.mubr.f32.gmra.mrb[0].mxu0 %v2103
  %v6214 = vpop.f32.mrb[0].mxu0
  %v6215 = vadd.f32 %v5830, %v6214
  %v6216 = vpop.f32.mrb[0].mxu0
  %6217 = vmatprep.mubr.f32.mxu0 %v1969
  %6218 = vmatmul.mubr.f32.gmra.mrb[0].mxu0 %v2104
  %v6219 = vpop.f32.mrb[0].mxu0
  %v6220 = vadd.f32 %v5835, %v6219
  %v6221 = vpop.f32.mrb[0].mxu0
  %6222 = vmatprep.mubr.f32.mxu0 %v1970
  %6223 = vmatmul.mubr.f32.gmra.mrb[0].mxu0 %v2105
  %v6224 = vpop.f32.mrb[0].mxu0
  %v6225 = vadd.f32 %v5840, %v6224
  %v6226 = vpop.f32.mrb[0].mxu0
  %6227 = vmatprep.mubr.f32.mxu0 %v1971
  %6228 = vmatmul.mubr.f32.gmra.mrb[0].mxu0 %v2106
  %v6229 = vpop.f32.mrb[0].mxu0
  %v6230 = vadd.f32 %v5845, %v6229
  %v6231 = vpop.f32.mrb[0].mxu0
  %6232 = vmatprep.mubr.f32.mxu0 %v1972
  %6233 = vmatmul.mubr.f32.gmra.mrb[0].mxu0 %v2107
  %v6234 = vpop.f32.mrb[0].mxu0
  %v6235 = vadd.f32 %v5850, %v6234
  %v6236 = vpop.f32.mrb[0].mxu0
  %6237 = vmatprep.mubr.f32.mxu0 %v1973
  %6238 = vmatmul.mubr.f32.gmra.mrb[0].mxu0 %v2108
  %v6239 = vpop.f32.mrb[0].mxu0
  %v6240 = vadd.f32 %v5855, %v6239
  %v6241 = vpop.f32.mrb[0].mxu0
  %6242 = vmatprep.mubr.f32.mxu0 %v1974
  %6243 = vmatmul.mubr.f32.gmra.mrb[0].mxu0 %v2109
  %v6244 = vpop.f32.mrb[0].mxu0
  %v6245 = vadd.f32 %v5860, %v6244
  %v6246 = vpop.f32.mrb[0].mxu0
  %6247 = vmatprep.mubr.f32.mxu0 %v1975
  %6248 = vmatmul.mubr.f32.gmra.mrb[0].mxu0 %v2110
  %v6249 = vpop.f32.mrb[0].mxu0
  %v6250 = vadd.f32 %v5865, %v6249
  %v6251 = vpop.f32.mrb[0].mxu0
  %6252 = vmatprep.mubr.f32.mxu0 %v1976
  %6253 = vmatmul.mubr.f32.gmra.mrb[0].mxu0 %v2111
  %v6254 = vpop.f32.mrb[0].mxu0
  %v6255 = vadd.f32 %v5870, %v6254
  %v6256 = vpop.f32.mrb[0].mxu0
  %6257 = vmatprep.mubr.f32.mxu0 %v1977
  %6258 = vmatmul.mubr.f32.gmra.mrb[0].mxu0 %v2112
  %v6259 = vpop.f32.mrb[0].mxu0
  %v6260 = vadd.f32 %v5875, %v6259
  %v6261 = vpop.f32.mrb[0].mxu0
  %6262 = vmatprep.mubr.f32.mxu0 %v1978
  %6263 = vmatmul.mubr.f32.gmra.mrb[0].mxu0 %v2113
  %v6264 = vpop.f32.mrb[0].mxu0
  %v6265 = vadd.f32 %v5880, %v6264
  %v6266 = vpop.f32.mrb[0].mxu0
  %6267 = vmatprep.mubr.f32.mxu0 %v1979
  %6268 = vmatmul.mubr.f32.gmra.mrb[0].mxu0 %v2114
  %v6269 = vpop.f32.mrb[0].mxu0
  %v6270 = vadd.f32 %v5885, %v6269
  %v6271 = vpop.f32.mrb[0].mxu0
  %6272 = vmatprep.mubr.f32.mxu0 %v1980
  %6273 = vmatmul.mubr.f32.gmra.mrb[0].mxu0 %v2115
  %v6274 = vpop.f32.mrb[0].mxu0
  %v6275 = vadd.f32 %v5890, %v6274
  %v6276 = vpop.f32.mrb[0].mxu0
  %6277 = vmatprep.mubr.f32.mxu0 %v1981
  %6278 = vmatmul.mubr.f32.gmra.mrb[0].mxu0 %v2116
  %v6279 = vpop.f32.mrb[0].mxu0
  %v6280 = vadd.f32 %v5895, %v6279
  %v6281 = vpop.f32.mrb[0].mxu0
  %6282 = vmatprep.mubr.f32.mxu0 %v1982
  %6283 = vmatmul.mubr.f32.gmra.mrb[0].mxu0 %v2117
  %v6284 = vpop.f32.mrb[0].mxu0
  %v6285 = vadd.f32 %v5900, %v6284
  %v6286 = vpop.f32.mrb[0].mxu0
  %6287 = vmatprep.mubr.f32.mxu0 %v1983
  %6288 = vmatmul.mubr.f32.gmra.mrb[0].mxu0 %v2118
  %v6289 = vpop.f32.mrb[0].mxu0
  %v6290 = vadd.f32 %v5905, %v6289
  %v6291 = vpop.f32.mrb[0].mxu0
  %6292 = vmatprep.mubr.f32.mxu0 %v1984
  %6293 = vmatmul.mubr.f32.gmra.mrb[0].mxu0 %v2119
  %v6294 = vpop.f32.mrb[0].mxu0
  %v6295 = vadd.f32 %v5910, %v6294
  %v6296 = vpop.f32.mrb[0].mxu0
  %6297 = vmatprep.mubr.f32.mxu0 %v1985
  %6298 = vmatmul.mubr.f32.gmra.mrb[0].mxu0 %v2120
  %v6299 = vpop.f32.mrb[0].mxu0
  %v6300 = vadd.f32 %v5915, %v6299
  %v6301 = vpop.f32.mrb[0].mxu0
  %6302 = vmatprep.mubr.f32.mxu0 %v1986
  %6303 = vmatmul.mubr.f32.gmra.mrb[0].mxu0 %v2121
  %v6304 = vpop.f32.mrb[0].mxu0
  %v6305 = vadd.f32 %v5920, %v6304
  %v6306 = vpop.f32.mrb[0].mxu0
  %6307 = vmatprep.mubr.f32.mxu0 %v1987
  %6308 = vmatmul.mubr.f32.gmra.mrb[0].mxu0 %v2122
  %v6309 = vpop.f32.mrb[0].mxu0
  %v6310 = vadd.f32 %v5925, %v6309
  %v6311 = vpop.f32.mrb[0].mxu0
  %6312 = vmatprep.mubr.f32.mxu0 %v1988
  %6313 = vmatmul.mubr.f32.gmra.mrb[0].mxu0 %v2123
  %v6314 = vpop.f32.mrb[0].mxu0
  %v6315 = vadd.f32 %v5930, %v6314
  %v6316 = vpop.f32.mrb[0].mxu0
  %6317 = vmatprep.mubr.f32.mxu0 %v1989
  %6318 = vmatmul.mubr.f32.gmra.mrb[0].mxu0 %v2124
  %v6319 = vpop.f32.mrb[0].mxu0
  %v6320 = vadd.f32 %v5935, %v6319
  %v6321 = vpop.f32.mrb[0].mxu0
  %6322 = vmatprep.mubr.f32.mxu0 %v1990
  %6323 = vmatmul.mubr.f32.gmra.mrb[0].mxu0 %v2125
  %v6324 = vpop.f32.mrb[0].mxu0
  %v6325 = vadd.f32 %v5940, %v6324
  %v6326 = vpop.f32.mrb[0].mxu0
  %6327 = vmatprep.mubr.f32.mxu0 %v1991
  %6328 = vmatmul.mubr.f32.gmra.mrb[0].mxu0 %v2126
  %v6329 = vpop.f32.mrb[0].mxu0
  %v6330 = vadd.f32 %v5945, %v6329
  %v6331 = vpop.f32.mrb[0].mxu0
  %6332 = vmatprep.mubr.f32.mxu0 %v1992
  %6333 = vmatmul.mubr.f32.gmra.mrb[0].mxu0 %v2127
  %v6334 = vpop.f32.mrb[0].mxu0
  %v6335 = vadd.f32 %v5950, %v6334
  %v6336 = vpop.f32.mrb[0].mxu0
  %6337 = vmatprep.mubr.f32.mxu0 %v1993
  %6338 = vmatmul.mubr.f32.gmra.mrb[0].mxu0 %v2128
  %v6339 = vpop.f32.mrb[0].mxu0
  %v6340 = vadd.f32 %v5955, %v6339
  %v6341 = vpop.f32.mrb[0].mxu0
  %6342 = vmatprep.mubr.f32.mxu0 %v1994
  %6343 = vmatmul.mubr.f32.gmra.mrb[0].mxu0 %v2129
  %v6344 = vpop.f32.mrb[0].mxu0
  %v6345 = vadd.f32 %v5960, %v6344
  %v6346 = vpop.f32.mrb[0].mxu0
  %6347 = vmatprep.mubr.f32.mxu0 %v1995
  %6348 = vmatmul.mubr.f32.gmra.mrb[0].mxu0 %v2130
  %v6349 = vpop.f32.mrb[0].mxu0
  %v6350 = vadd.f32 %v5965, %v6349
  %v6351 = vpop.f32.mrb[0].mxu0
  %6352 = vmatprep.mubr.f32.mxu0 %v1996
  %6353 = vmatmul.mubr.f32.gmra.mrb[0].mxu0 %v2131
  %v6354 = vpop.f32.mrb[0].mxu0
  %v6355 = vadd.f32 %v5970, %v6354
  %v6356 = vpop.f32.mrb[0].mxu0
  %6357 = vmatprep.mubr.f32.mxu0 %v1997
  %6358 = vmatmul.mubr.f32.gmra.mrb[0].mxu0 %v2132
  %v6359 = vpop.f32.mrb[0].mxu0
  %v6360 = vadd.f32 %v5975, %v6359
  %v6361 = vpop.f32.mrb[0].mxu0
  %6362 = vmatprep.mubr.f32.mxu0 %v1998
  %6363 = vmatmul.mubr.f32.gmra.mrb[0].mxu0 %v2133
  %v6364 = vpop.f32.mrb[0].mxu0
  %v6365 = vadd.f32 %v5980, %v6364
  %v6366 = vpop.f32.mrb[0].mxu0
  %6367 = vmatprep.mubr.f32.mxu0 %v1999
  %6368 = vmatmul.mubr.f32.gmra.mrb[0].mxu0 %v2134
  %v6369 = vpop.f32.mrb[0].mxu0
  %v6370 = vadd.f32 %v5985, %v6369
  %v6371 = vpop.f32.mrb[0].mxu0
  %6372 = vmatprep.mubr.f32.mxu0 %v2000
  %6373 = vmatmul.mubr.f32.gmra.mrb[0].mxu0 %v2135
  %v6374 = vpop.f32.mrb[0].mxu0
  %v6375 = vadd.f32 %v5990, %v6374
  %v6376 = vpop.f32.mrb[0].mxu0
  %6377 = vmatprep.mubr.f32.mxu0 %v2001
  %6378 = vmatmul.mubr.f32.gmra.mrb[0].mxu0 %v2136
  %v6379 = vpop.f32.mrb[0].mxu0
  %v6380 = vadd.f32 %v5995, %v6379
  %v6381 = vpop.f32.mrb[0].mxu0
  %6382 = vmatprep.mubr.f32.mxu0 %v2002
  %6383 = vmatmul.mubr.f32.gmra.mrb[0].mxu0 %v2137
  %v6384 = vpop.f32.mrb[0].mxu0
  %v6385 = vadd.f32 %v6000, %v6384
  %v6386 = vpop.f32.mrb[0].mxu0
  %6387 = vmatprep.mubr.f32.mxu0 %v2003
  %6388 = vmatmul.mubr.f32.gmra.mrb[0].mxu0 %v2138
  %v6389 = vpop.f32.mrb[0].mxu0
  %v6390 = vadd.f32 %v6005, %v6389
  %v6391 = vpop.f32.mrb[0].mxu0
  %6392 = vmatprep.mubr.f32.mxu0 %v2004
  %6393 = vmatmul.mubr.f32.gmra.mrb[0].mxu0 %v2139
  %v6394 = vpop.f32.mrb[0].mxu0
  %v6395 = vadd.f32 %v6010, %v6394
  %v6396 = vpop.f32.mrb[0].mxu0
  %6397 = vmatprep.mubr.f32.mxu0 %v2005
  %6398 = vmatmul.mubr.f32.gmra.mrb[0].mxu0 %v2140
  %v6399 = vpop.f32.mrb[0].mxu0
  %v6400 = vadd.f32 %v6015, %v6399
  %v6401 = vpop.f32.mrb[0].mxu0
  %6402 = vmatprep.mubr.f32.mxu0 %v2006
  %6403 = vmatmul.mubr.f32.gmra.mrb[0].mxu0 %v2141
  %v6404 = vpop.f32.mrb[0].mxu0
  %v6405 = vadd.f32 %v6020, %v6404
  %v6406 = vpop.f32.mrb[0].mxu0
  %6407 = vmatprep.mubr.f32.mxu0 %v2144
  %6408 = vmatmul.mubr.f32.gmra.mrb[0].mxu0 %v2142
  %v6409 = vpop.f32.mrb[0].mxu0
  %v6410 = vadd.f32 %v6025, %v6409
  %v6411 = vpop.f32.mrb[0].mxu0
  %6412 = vmatprep.mubr.f32.mxu0 %v2145
  %6413 = vmatmul.mubr.f32.gmra.mrb[0].mxu0 %v2143
  %v6414 = vpop.f32.mrb[0].mxu0
  %v6415 = vadd.f32 %v6030, %v6414
  %v6416 = vpop.f32.mrb[0].mxu0
  %6417 = vmatprep.mubr.f32.mxu0 %v2162
  %6418 = vmatmul.mubr.f32.gmra.mrb[0].mxu0 %v2160
  %v6419 = vpop.f32.mrb[0].mxu0
  %v6420 = vadd.f32 %v6035, %v6419
  %v6421 = vpop.f32.mrb[0].mxu0
  %6422 = vmatprep.mubr.f32.mxu0 %v2163
  %6423 = vmatmul.mubr.f32.gmra.mrb[0].mxu0 %v2161
  %v6424 = vpop.f32.mrb[0].mxu0
  %v6425 = vadd.f32 %v6040, %v6424
  %v6426 = vpop.f32.mrb[0].mxu0
  %6427 = vdwg.mxu0
  %6428 = vmatprep.subr.mxu0 0.0
  %6429 = vmatpush1.msra.mxu0 %v2498
  %6430 = vmatprep.subr.mxu0 0.0
  %6431 = vmatpush1.msra.mxu0 %v2499
  %6432 = vmatprep.subr.mxu0 0.0
  %6433 = vmatpush1.msra.mxu0 %v2500
  %6434 = vmatprep.subr.mxu0 0.0
  %6435 = vmatpush1.msra.mxu0 %v2501
  %6436 = vmatprep.subr.mxu0 0.0
  %6437 = vmatpush1.msra.mxu0 %v2502
  %6438 = vmatprep.subr.mxu0 0.0
  %6439 = vmatpush1.msra.mxu0 %v2503
  %6440 = vmatprep.subr.mxu0 0.0
  %6441 = vmatpush1.msra.mxu0 %v2504
  %6442 = vmatprep.subr.mxu0 0.0
  %6443 = vmatpush1.msra.mxu0 %v2505
  %6444 = vmatprep.subr.mxu0 0.0
  %6445 = vmatpush1.msra.mxu0 %v2506
  %6446 = vmatprep.subr.mxu0 0.0
  %6447 = vmatpush1.msra.mxu0 %v2507
  %6448 = vmatprep.subr.mxu0 0.0
  %6449 = vmatpush1.msra.mxu0 %v2508
  %6450 = vmatprep.subr.mxu0 0.0
  %6451 = vmatpush1.msra.mxu0 %v2509
  %6452 = vmatprep.subr.mxu0 0.0
  %6453 = vmatpush1.msra.mxu0 %v2510
  %6454 = vmatprep.subr.mxu0 0.0
  %6455 = vmatpush1.msra.mxu0 %v2511
  %6456 = vmatprep.subr.mxu0 0.0
  %6457 = vmatpush1.msra.mxu0 %v2512
  %6458 = vmatprep.subr.mxu0 0.0
  %6459 = vmatpush1.msra.mxu0 %v2513
  %6460 = vmatprep.subr.mxu0 0.0
  %6461 = vmatpush1.msra.mxu0 %v2514
  %6462 = vmatprep.subr.mxu0 0.0
  %6463 = vmatpush1.msra.mxu0 %v2515
  %6464 = vmatprep.subr.mxu0 0.0
  %6465 = vmatpush1.msra.mxu0 %v2516
  %6466 = vmatprep.subr.mxu0 0.0
  %6467 = vmatpush1.msra.mxu0 %v2517
  %6468 = vmatprep.subr.mxu0 0.0
  %6469 = vmatpush1.msra.mxu0 %v2518
  %6470 = vmatprep.subr.mxu0 0.0
  %6471 = vmatpush1.msra.mxu0 %v2519
  %6472 = vmatprep.subr.mxu0 0.0
  %6473 = vmatpush1.msra.mxu0 %v2520
  %6474 = vmatprep.subr.mxu0 0.0
  %6475 = vmatpush1.msra.mxu0 %v2521
  %6476 = vmatprep.subr.mxu0 0.0
  %6477 = vmatpush1.msra.mxu0 %v2522
  %6478 = vmatprep.subr.mxu0 0.0
  %6479 = vmatpush1.msra.mxu0 %v2523
  %6480 = vmatprep.subr.mxu0 0.0
  %6481 = vmatpush1.msra.mxu0 %v2524
  %6482 = vmatprep.subr.mxu0 0.0
  %6483 = vmatpush1.msra.mxu0 %v2525
  %6484 = vmatprep.subr.mxu0 0.0
  %6485 = vmatpush1.msra.mxu0 %v2526
  %6486 = vmatprep.subr.mxu0 0.0
  %6487 = vmatpush1.msra.mxu0 %v2527
  %6488 = vmatprep.subr.mxu0 0.0
  %6489 = vmatpush1.msra.mxu0 %v2528
  %6490 = vmatprep.subr.mxu0 0.0
  %6491 = vmatpush1.msra.mxu0 %v2529
  %6492 = vmatprep.mubr.f32.mxu0 %v1694
  %6493 = vmatmul.mubr.f32.gmra.mrb[0].mxu0 %v1630
  %v6494 = vpop.f32.mrb[0].mxu0
  %v6495 = vadd.f32 %v6110, %v6494
  %v6496 = vpop.f32.mrb[0].mxu0
  %6497 = vmatprep.mubr.f32.mxu0 %v1695
  %6498 = vmatmul.mubr.f32.gmra.mrb[0].mxu0 %v1631
  %v6499 = vpop.f32.mrb[0].mxu0
  %v6500 = vadd.f32 %v6115, %v6499
  %v6501 = vpop.f32.mrb[0].mxu0
  %6502 = vmatprep.mubr.f32.mxu0 %v1696
  %6503 = vmatmul.mubr.f32.gmra.mrb[0].mxu0 %v1632
  %v6504 = vpop.f32.mrb[0].mxu0
  %v6505 = vadd.f32 %v6120, %v6504
  %v6506 = vpop.f32.mrb[0].mxu0
  %6507 = vmatprep.mubr.f32.mxu0 %v1697
  %6508 = vmatmul.mubr.f32.gmra.mrb[0].mxu0 %v1633
  %v6509 = vpop.f32.mrb[0].mxu0
  %v6510 = vadd.f32 %v6125, %v6509
  %v6511 = vpop.f32.mrb[0].mxu0
  %6512 = vmatprep.mubr.f32.mxu0 %v1698
  %6513 = vmatmul.mubr.f32.gmra.mrb[0].mxu0 %v1634
  %v6514 = vpop.f32.mrb[0].mxu0
  %v6515 = vadd.f32 %v6130, %v6514
  %v6516 = vpop.f32.mrb[0].mxu0
  %6517 = vmatprep.mubr.f32.mxu0 %v1699
  %6518 = vmatmul.mubr.f32.gmra.mrb[0].mxu0 %v1635
  %v6519 = vpop.f32.mrb[0].mxu0
  %v6520 = vadd.f32 %v6135, %v6519
  %v6521 = vpop.f32.mrb[0].mxu0
  %6522 = vmatprep.mubr.f32.mxu0 %v1700
  %6523 = vmatmul.mubr.f32.gmra.mrb[0].mxu0 %v1636
  %v6524 = vpop.f32.mrb[0].mxu0
  %v6525 = vadd.f32 %v6140, %v6524
  %v6526 = vpop.f32.mrb[0].mxu0
  %6527 = vmatprep.mubr.f32.mxu0 %v1701
  %6528 = vmatmul.mubr.f32.gmra.mrb[0].mxu0 %v1637
  %v6529 = vpop.f32.mrb[0].mxu0
  %v6530 = vadd.f32 %v6145, %v6529
  %v6531 = vpop.f32.mrb[0].mxu0
  %6532 = vmatprep.mubr.f32.mxu0 %v1702
  %6533 = vmatmul.mubr.f32.gmra.mrb[0].mxu0 %v1638
  %v6534 = vpop.f32.mrb[0].mxu0
  %v6535 = vadd.f32 %v6150, %v6534
  %v6536 = vpop.f32.mrb[0].mxu0
  %6537 = vmatprep.mubr.f32.mxu0 %v1703
  %6538 = vmatmul.mubr.f32.gmra.mrb[0].mxu0 %v1639
  %v6539 = vpop.f32.mrb[0].mxu0
  %v6540 = vadd.f32 %v6155, %v6539
  %v6541 = vpop.f32.mrb[0].mxu0
  %6542 = vmatprep.mubr.f32.mxu0 %v1704
  %6543 = vmatmul.mubr.f32.gmra.mrb[0].mxu0 %v1640
  %v6544 = vpop.f32.mrb[0].mxu0
  %v6545 = vadd.f32 %v6160, %v6544
  %v6546 = vpop.f32.mrb[0].mxu0
  %6547 = vmatprep.mubr.f32.mxu0 %v1705
  %6548 = vmatmul.mubr.f32.gmra.mrb[0].mxu0 %v1641
  %v6549 = vpop.f32.mrb[0].mxu0
  %v6550 = vadd.f32 %v6165, %v6549
  %v6551 = vpop.f32.mrb[0].mxu0
  %6552 = vmatprep.mubr.f32.mxu0 %v1706
  %6553 = vmatmul.mubr.f32.gmra.mrb[0].mxu0 %v1642
  %v6554 = vpop.f32.mrb[0].mxu0
  %v6555 = vadd.f32 %v6170, %v6554
  %v6556 = vpop.f32.mrb[0].mxu0
  %6557 = vmatprep.mubr.f32.mxu0 %v1707
  %6558 = vmatmul.mubr.f32.gmra.mrb[0].mxu0 %v1643
  %v6559 = vpop.f32.mrb[0].mxu0
  %v6560 = vadd.f32 %v6175, %v6559
  %v6561 = vpop.f32.mrb[0].mxu0
  %6562 = vmatprep.mubr.f32.mxu0 %v1708
  %6563 = vmatmul.mubr.f32.gmra.mrb[0].mxu0 %v1644
  %v6564 = vpop.f32.mrb[0].mxu0
  %v6565 = vadd.f32 %v6180, %v6564
  %v6566 = vpop.f32.mrb[0].mxu0
  %6567 = vmatprep.mubr.f32.mxu0 %v1709
  %6568 = vmatmul.mubr.f32.gmra.mrb[0].mxu0 %v1645
  %v6569 = vpop.f32.mrb[0].mxu0
  %v6570 = vadd.f32 %v6185, %v6569
  %v6571 = vpop.f32.mrb[0].mxu0
  %6572 = vmatprep.mubr.f32.mxu0 %v1710
  %6573 = vmatmul.mubr.f32.gmra.mrb[0].mxu0 %v1646
  %v6574 = vpop.f32.mrb[0].mxu0
  %v6575 = vadd.f32 %v6190, %v6574
  %v6576 = vpop.f32.mrb[0].mxu0
  %6577 = vmatprep.mubr.f32.mxu0 %v1711
  %6578 = vmatmul.mubr.f32.gmra.mrb[0].mxu0 %v1647
  %v6579 = vpop.f32.mrb[0].mxu0
  %v6580 = vadd.f32 %v6195, %v6579
  %v6581 = vpop.f32.mrb[0].mxu0
  %6582 = vmatprep.mubr.f32.mxu0 %v1712
  %6583 = vmatmul.mubr.f32.gmra.mrb[0].mxu0 %v1648
  %v6584 = vpop.f32.mrb[0].mxu0
  %v6585 = vadd.f32 %v6200, %v6584
  %v6586 = vpop.f32.mrb[0].mxu0
  %6587 = vmatprep.mubr.f32.mxu0 %v1713
  %6588 = vmatmul.mubr.f32.gmra.mrb[0].mxu0 %v1649
  %v6589 = vpop.f32.mrb[0].mxu0
  %v6590 = vadd.f32 %v6205, %v6589
  %v6591 = vpop.f32.mrb[0].mxu0
  %6592 = vmatprep.mubr.f32.mxu0 %v1714
  %6593 = vmatmul.mubr.f32.gmra.mrb[0].mxu0 %v1650
  %v6594 = vpop.f32.mrb[0].mxu0
  %v6595 = vadd.f32 %v6210, %v6594
  %v6596 = vpop.f32.mrb[0].mxu0
  %6597 = vmatprep.mubr.f32.mxu0 %v1715
  %6598 = vmatmul.mubr.f32.gmra.mrb[0].mxu0 %v1651
  %v6599 = vpop.f32.mrb[0].mxu0
  %v6600 = vadd.f32 %v6215, %v6599
  %v6601 = vpop.f32.mrb[0].mxu0
  %6602 = vmatprep.mubr.f32.mxu0 %v1716
  %6603 = vmatmul.mubr.f32.gmra.mrb[0].mxu0 %v1652
  %v6604 = vpop.f32.mrb[0].mxu0
  %v6605 = vadd.f32 %v6220, %v6604
  %v6606 = vpop.f32.mrb[0].mxu0
  %6607 = vmatprep.mubr.f32.mxu0 %v1717
  %6608 = vmatmul.mubr.f32.gmra.mrb[0].mxu0 %v1653
  %v6609 = vpop.f32.mrb[0].mxu0
  %v6610 = vadd.f32 %v6225, %v6609
  %v6611 = vpop.f32.mrb[0].mxu0
  %6612 = vmatprep.mubr.f32.mxu0 %v1718
  %6613 = vmatmul.mubr.f32.gmra.mrb[0].mxu0 %v1654
  %v6614 = vpop.f32.mrb[0].mxu0
  %v6615 = vadd.f32 %v6230, %v6614
  %v6616 = vpop.f32.mrb[0].mxu0
  %6617 = vmatprep.mubr.f32.mxu0 %v1719
  %6618 = vmatmul.mubr.f32.gmra.mrb[0].mxu0 %v1655
  %v6619 = vpop.f32.mrb[0].mxu0
  %v6620 = vadd.f32 %v6235, %v6619
  %v6621 = vpop.f32.mrb[0].mxu0
  %6622 = vmatprep.mubr.f32.mxu0 %v1720
  %6623 = vmatmul.mubr.f32.gmra.mrb[0].mxu0 %v1656
  %v6624 = vpop.f32.mrb[0].mxu0
  %v6625 = vadd.f32 %v6240, %v6624
  %v6626 = vpop.f32.mrb[0].mxu0
  %6627 = vmatprep.mubr.f32.mxu0 %v1721
  %6628 = vmatmul.mubr.f32.gmra.mrb[0].mxu0 %v1657
  %v6629 = vpop.f32.mrb[0].mxu0
  %v6630 = vadd.f32 %v6245, %v6629
  %v6631 = vpop.f32.mrb[0].mxu0
  %6632 = vmatprep.mubr.f32.mxu0 %v1722
  %6633 = vmatmul.mubr.f32.gmra.mrb[0].mxu0 %v1658
  %v6634 = vpop.f32.mrb[0].mxu0
  %v6635 = vadd.f32 %v6250, %v6634
  %v6636 = vpop.f32.mrb[0].mxu0
  %6637 = vmatprep.mubr.f32.mxu0 %v1723
  %6638 = vmatmul.mubr.f32.gmra.mrb[0].mxu0 %v1659
  %v6639 = vpop.f32.mrb[0].mxu0
  %v6640 = vadd.f32 %v6255, %v6639
  %v6641 = vpop.f32.mrb[0].mxu0
  %6642 = vmatprep.mubr.f32.mxu0 %v1724
  %6643 = vmatmul.mubr.f32.gmra.mrb[0].mxu0 %v1660
  %v6644 = vpop.f32.mrb[0].mxu0
  %v6645 = vadd.f32 %v6260, %v6644
  %v6646 = vpop.f32.mrb[0].mxu0
  %6647 = vmatprep.mubr.f32.mxu0 %v1725
  %6648 = vmatmul.mubr.f32.gmra.mrb[0].mxu0 %v1661
  %v6649 = vpop.f32.mrb[0].mxu0
  %v6650 = vadd.f32 %v6265, %v6649
  %v6651 = vpop.f32.mrb[0].mxu0
  %6652 = vmatprep.mubr.f32.mxu0 %v1726
  %6653 = vmatmul.mubr.f32.gmra.mrb[0].mxu0 %v1662
  %v6654 = vpop.f32.mrb[0].mxu0
  %v6655 = vadd.f32 %v6270, %v6654
  %v6656 = vpop.f32.mrb[0].mxu0
  %6657 = vmatprep.mubr.f32.mxu0 %v1727
  %6658 = vmatmul.mubr.f32.gmra.mrb[0].mxu0 %v1663
  %v6659 = vpop.f32.mrb[0].mxu0
  %v6660 = vadd.f32 %v6275, %v6659
  %v6661 = vpop.f32.mrb[0].mxu0
  %6662 = vmatprep.mubr.f32.mxu0 %v1728
  %6663 = vmatmul.mubr.f32.gmra.mrb[0].mxu0 %v1664
  %v6664 = vpop.f32.mrb[0].mxu0
  %v6665 = vadd.f32 %v6280, %v6664
  %v6666 = vpop.f32.mrb[0].mxu0
  %6667 = vmatprep.mubr.f32.mxu0 %v1729
  %6668 = vmatmul.mubr.f32.gmra.mrb[0].mxu0 %v1665
  %v6669 = vpop.f32.mrb[0].mxu0
  %v6670 = vadd.f32 %v6285, %v6669
  %v6671 = vpop.f32.mrb[0].mxu0
  %6672 = vmatprep.mubr.f32.mxu0 %v1730
  %6673 = vmatmul.mubr.f32.gmra.mrb[0].mxu0 %v1666
  %v6674 = vpop.f32.mrb[0].mxu0
  %v6675 = vadd.f32 %v6290, %v6674
  %v6676 = vpop.f32.mrb[0].mxu0
  %6677 = vmatprep.mubr.f32.mxu0 %v1731
  %6678 = vmatmul.mubr.f32.gmra.mrb[0].mxu0 %v1667
  %v6679 = vpop.f32.mrb[0].mxu0
  %v6680 = vadd.f32 %v6295, %v6679
  %v6681 = vpop.f32.mrb[0].mxu0
  %6682 = vmatprep.mubr.f32.mxu0 %v1732
  %6683 = vmatmul.mubr.f32.gmra.mrb[0].mxu0 %v1668
  %v6684 = vpop.f32.mrb[0].mxu0
  %v6685 = vadd.f32 %v6300, %v6684
  %v6686 = vpop.f32.mrb[0].mxu0
  %6687 = vmatprep.mubr.f32.mxu0 %v1733
  %6688 = vmatmul.mubr.f32.gmra.mrb[0].mxu0 %v1669
  %v6689 = vpop.f32.mrb[0].mxu0
  %v6690 = vadd.f32 %v6305, %v6689
  %v6691 = vpop.f32.mrb[0].mxu0
  %6692 = vmatprep.mubr.f32.mxu0 %v1734
  %6693 = vmatmul.mubr.f32.gmra.mrb[0].mxu0 %v1670
  %v6694 = vpop.f32.mrb[0].mxu0
  %v6695 = vadd.f32 %v6310, %v6694
  %v6696 = vpop.f32.mrb[0].mxu0
  %6697 = vmatprep.mubr.f32.mxu0 %v1735
  %6698 = vmatmul.mubr.f32.gmra.mrb[0].mxu0 %v1671
  %v6699 = vpop.f32.mrb[0].mxu0
  %v6700 = vadd.f32 %v6315, %v6699
  %v6701 = vpop.f32.mrb[0].mxu0
  %6702 = vmatprep.mubr.f32.mxu0 %v1736
  %6703 = vmatmul.mubr.f32.gmra.mrb[0].mxu0 %v1672
  %v6704 = vpop.f32.mrb[0].mxu0
  %v6705 = vadd.f32 %v6320, %v6704
  %v6706 = vpop.f32.mrb[0].mxu0
  %6707 = vmatprep.mubr.f32.mxu0 %v1737
  %6708 = vmatmul.mubr.f32.gmra.mrb[0].mxu0 %v1673
  %v6709 = vpop.f32.mrb[0].mxu0
  %v6710 = vadd.f32 %v6325, %v6709
  %v6711 = vpop.f32.mrb[0].mxu0
  %6712 = vmatprep.mubr.f32.mxu0 %v1738
  %6713 = vmatmul.mubr.f32.gmra.mrb[0].mxu0 %v1674
  %v6714 = vpop.f32.mrb[0].mxu0
  %v6715 = vadd.f32 %v6330, %v6714
  %v6716 = vpop.f32.mrb[0].mxu0
  %6717 = vmatprep.mubr.f32.mxu0 %v1739
  %6718 = vmatmul.mubr.f32.gmra.mrb[0].mxu0 %v1675
  %v6719 = vpop.f32.mrb[0].mxu0
  %v6720 = vadd.f32 %v6335, %v6719
  %v6721 = vpop.f32.mrb[0].mxu0
  %6722 = vmatprep.mubr.f32.mxu0 %v1740
  %6723 = vmatmul.mubr.f32.gmra.mrb[0].mxu0 %v1676
  %v6724 = vpop.f32.mrb[0].mxu0
  %v6725 = vadd.f32 %v6340, %v6724
  %v6726 = vpop.f32.mrb[0].mxu0
  %6727 = vmatprep.mubr.f32.mxu0 %v1741
  %6728 = vmatmul.mubr.f32.gmra.mrb[0].mxu0 %v1677
  %v6729 = vpop.f32.mrb[0].mxu0
  %v6730 = vadd.f32 %v6345, %v6729
  %v6731 = vpop.f32.mrb[0].mxu0
  %6732 = vmatprep.mubr.f32.mxu0 %v1742
  %6733 = vmatmul.mubr.f32.gmra.mrb[0].mxu0 %v1678
  %v6734 = vpop.f32.mrb[0].mxu0
  %v6735 = vadd.f32 %v6350, %v6734
  %v6736 = vpop.f32.mrb[0].mxu0
  %6737 = vmatprep.mubr.f32.mxu0 %v1743
  %6738 = vmatmul.mubr.f32.gmra.mrb[0].mxu0 %v1679
  %v6739 = vpop.f32.mrb[0].mxu0
  %v6740 = vadd.f32 %v6355, %v6739
  %v6741 = vpop.f32.mrb[0].mxu0
  %6742 = vmatprep.mubr.f32.mxu0 %v1744
  %6743 = vmatmul.mubr.f32.gmra.mrb[0].mxu0 %v1680
  %v6744 = vpop.f32.mrb[0].mxu0
  %v6745 = vadd.f32 %v6360, %v6744
  %v6746 = vpop.f32.mrb[0].mxu0
  %6747 = vmatprep.mubr.f32.mxu0 %v1745
  %6748 = vmatmul.mubr.f32.gmra.mrb[0].mxu0 %v1681
  %v6749 = vpop.f32.mrb[0].mxu0
  %v6750 = vadd.f32 %v6365, %v6749
  %v6751 = vpop.f32.mrb[0].mxu0
  %6752 = vmatprep.mubr.f32.mxu0 %v1746
  %6753 = vmatmul.mubr.f32.gmra.mrb[0].mxu0 %v1682
  %v6754 = vpop.f32.mrb[0].mxu0
  %v6755 = vadd.f32 %v6370, %v6754
  %v6756 = vpop.f32.mrb[0].mxu0
  %6757 = vmatprep.mubr.f32.mxu0 %v1747
  %6758 = vmatmul.mubr.f32.gmra.mrb[0].mxu0 %v1683
  %v6759 = vpop.f32.mrb[0].mxu0
  %v6760 = vadd.f32 %v6375, %v6759
  %v6761 = vpop.f32.mrb[0].mxu0
  %6762 = vmatprep.mubr.f32.mxu0 %v1748
  %6763 = vmatmul.mubr.f32.gmra.mrb[0].mxu0 %v1684
  %v6764 = vpop.f32.mrb[0].mxu0
  %v6765 = vadd.f32 %v6380, %v6764
  %v6766 = vpop.f32.mrb[0].mxu0
  %6767 = vmatprep.mubr.f32.mxu0 %v1749
  %6768 = vmatmul.mubr.f32.gmra.mrb[0].mxu0 %v1685
  %v6769 = vpop.f32.mrb[0].mxu0
  %v6770 = vadd.f32 %v6385, %v6769
  %v6771 = vpop.f32.mrb[0].mxu0
  %6772 = vmatprep.mubr.f32.mxu0 %v1750
  %6773 = vmatmul.mubr.f32.gmra.mrb[0].mxu0 %v1686
  %v6774 = vpop.f32.mrb[0].mxu0
  %v6775 = vadd.f32 %v6390, %v6774
  %v6776 = vpop.f32.mrb[0].mxu0
  %6777 = vmatprep.mubr.f32.mxu0 %v2073
  %6778 = vmatmul.mubr.f32.gmra.mrb[0].mxu0 %v2071
  %v6779 = vpop.f32.mrb[0].mxu0
  %v6780 = vadd.f32 %v6395, %v6779
  %v6781 = vpop.f32.mrb[0].mxu0
  %6782 = vmatprep.mubr.f32.mxu0 %v2074
  %6783 = vmatmul.mubr.f32.gmra.mrb[0].mxu0 %v2072
  %v6784 = vpop.f32.mrb[0].mxu0
  %v6785 = vadd.f32 %v6400, %v6784
  %v6786 = vpop.f32.mrb[0].mxu0
  %6787 = vmatprep.mubr.f32.mxu0 %v2167
  %6788 = vmatmul.mubr.f32.gmra.mrb[0].mxu0 %v2148
  %v6789 = vpop.f32.mrb[0].mxu0
  %v6790 = vadd.f32 %v6405, %v6789
  %v6791 = vpop.f32.mrb[0].mxu0
  %6792 = vmatprep.mubr.f32.mxu0 %v2168
  %6793 = vmatmul.mubr.f32.gmra.mrb[0].mxu0 %v2149
  %v6794 = vpop.f32.mrb[0].mxu0
  %v6795 = vadd.f32 %v6410, %v6794
  %v6796 = vpop.f32.mrb[0].mxu0
  %6797 = vmatprep.mubr.f32.mxu0 %v2169
  %6798 = vmatmul.mubr.f32.gmra.mrb[0].mxu0 %v2164
  %v6799 = vpop.f32.mrb[0].mxu0
  %v6800 = vadd.f32 %v6415, %v6799
  %v6801 = vpop.f32.mrb[0].mxu0
  %6802 = vmatprep.mubr.f32.mxu0 %v2170
  %6803 = vmatmul.mubr.f32.gmra.mrb[0].mxu0 %v2165
  %v6804 = vpop.f32.mrb[0].mxu0
  %v6805 = vadd.f32 %v6420, %v6804
  %v6806 = vpop.f32.mrb[0].mxu0
  %6807 = vmatprep.mubr.f32.mxu0 %v2171
  %6808 = vmatmul.mubr.f32.gmra.mrb[0].mxu0 %v2166
  %v6809 = vpop.f32.mrb[0].mxu0
  %v6810 = vadd.f32 %v6425, %v6809
  %v6811 = vpop.f32.mrb[0].mxu0
  %6812 = vdwg.mxu0
  %6813 = vmatprep.subr.mxu0 0.0
  %6814 = vmatpush1.msra.mxu0 %v2530
  %6815 = vmatprep.subr.mxu0 0.0
  %6816 = vmatpush1.msra.mxu0 %v2531
  %6817 = vmatprep.subr.mxu0 0.0
  %6818 = vmatpush1.msra.mxu0 %v2532
  %6819 = vmatprep.subr.mxu0 0.0
  %6820 = vmatpush1.msra.mxu0 %v2533
  %6821 = vmatprep.subr.mxu0 0.0
  %6822 = vmatpush1.msra.mxu0 %v2534
  %6823 = vmatprep.subr.mxu0 0.0
  %6824 = vmatpush1.msra.mxu0 %v2535
  %6825 = vmatprep.subr.mxu0 0.0
  %6826 = vmatpush1.msra.mxu0 %v2536
  %6827 = vmatprep.subr.mxu0 0.0
  %6828 = vmatpush1.msra.mxu0 %v2537
  %6829 = vmatprep.subr.mxu0 0.0
  %6830 = vmatpush1.msra.mxu0 %v2538
  %6831 = vmatprep.subr.mxu0 0.0
  %6832 = vmatpush1.msra.mxu0 %v2539
  %6833 = vmatprep.subr.mxu0 0.0
  %6834 = vmatpush1.msra.mxu0 %v2540
  %6835 = vmatprep.subr.mxu0 0.0
  %6836 = vmatpush1.msra.mxu0 %v2541
  %6837 = vmatprep.subr.mxu0 0.0
  %6838 = vmatpush1.msra.mxu0 %v2542
  %6839 = vmatprep.subr.mxu0 0.0
  %6840 = vmatpush1.msra.mxu0 %v2543
  %6841 = vmatprep.subr.mxu0 0.0
  %6842 = vmatpush1.msra.mxu0 %v2544
  %6843 = vmatprep.subr.mxu0 0.0
  %6844 = vmatpush1.msra.mxu0 %v2545
  %6845 = vmatprep.subr.mxu0 0.0
  %6846 = vmatpush1.msra.mxu0 %v2546
  %6847 = vmatprep.subr.mxu0 0.0
  %6848 = vmatpush1.msra.mxu0 %v2547
  %6849 = vmatprep.subr.mxu0 0.0
  %6850 = vmatpush1.msra.mxu0 %v2548
  %6851 = vmatprep.subr.mxu0 0.0
  %6852 = vmatpush1.msra.mxu0 %v2549
  %6853 = vmatprep.subr.mxu0 0.0
  %6854 = vmatpush1.msra.mxu0 %v2550
  %6855 = vmatprep.subr.mxu0 0.0
  %6856 = vmatpush1.msra.mxu0 %v2551
  %6857 = vmatprep.subr.mxu0 0.0
  %6858 = vmatpush1.msra.mxu0 %v2552
  %6859 = vmatprep.subr.mxu0 0.0
  %6860 = vmatpush1.msra.mxu0 %v2553
  %6861 = vmatprep.subr.mxu0 0.0
  %6862 = vmatpush1.msra.mxu0 %v2554
  %6863 = vmatprep.subr.mxu0 0.0
  %6864 = vmatpush1.msra.mxu0 %v2555
  %6865 = vmatprep.subr.mxu0 0.0
  %6866 = vmatpush1.msra.mxu0 %v2556
  %6867 = vmatprep.subr.mxu0 0.0
  %6868 = vmatpush1.msra.mxu0 %v2557
  %6869 = vmatprep.subr.mxu0 0.0
  %6870 = vmatpush1.msra.mxu0 %v2558
  %6871 = vmatprep.subr.mxu0 0.0
  %6872 = vmatpush1.msra.mxu0 %v2559
  %6873 = vmatprep.subr.mxu0 0.0
  %6874 = vmatpush1.msra.mxu0 %v2560
  %6875 = vmatprep.subr.mxu0 0.0
  %6876 = vmatpush1.msra.mxu0 %v2561
  %6877 = vmatprep.mubr.f32.mxu0 %v1822
  %6878 = vmatmul.mubr.f32.gmra.mrb[0].mxu0 %v1758
  %v6879 = vpop.f32.mrb[0].mxu0
  %v6880 = vadd.f32 %v6495, %v6879
  %v6881 = vpop.f32.mrb[0].mxu0
  %6882 = vmatprep.mubr.f32.mxu0 %v1823
  %6883 = vmatmul.mubr.f32.gmra.mrb[0].mxu0 %v1759
  %v6884 = vpop.f32.mrb[0].mxu0
  %v6885 = vadd.f32 %v6500, %v6884
  %v6886 = vpop.f32.mrb[0].mxu0
  %6887 = vmatprep.mubr.f32.mxu0 %v1824
  %6888 = vmatmul.mubr.f32.gmra.mrb[0].mxu0 %v1760
  %v6889 = vpop.f32.mrb[0].mxu0
  %v6890 = vadd.f32 %v6505, %v6889
  %v6891 = vpop.f32.mrb[0].mxu0
  %6892 = vmatprep.mubr.f32.mxu0 %v1825
  %6893 = vmatmul.mubr.f32.gmra.mrb[0].mxu0 %v1761
  %v6894 = vpop.f32.mrb[0].mxu0
  %v6895 = vadd.f32 %v6510, %v6894
  %v6896 = vpop.f32.mrb[0].mxu0
  %6897 = vmatprep.mubr.f32.mxu0 %v1826
  %6898 = vmatmul.mubr.f32.gmra.mrb[0].mxu0 %v1762
  %v6899 = vpop.f32.mrb[0].mxu0
  %v6900 = vadd.f32 %v6515, %v6899
  %v6901 = vpop.f32.mrb[0].mxu0
  %6902 = vmatprep.mubr.f32.mxu0 %v1827
  %6903 = vmatmul.mubr.f32.gmra.mrb[0].mxu0 %v1763
  %v6904 = vpop.f32.mrb[0].mxu0
  %v6905 = vadd.f32 %v6520, %v6904
  %v6906 = vpop.f32.mrb[0].mxu0
  %6907 = vmatprep.mubr.f32.mxu0 %v1828
  %6908 = vmatmul.mubr.f32.gmra.mrb[0].mxu0 %v1764
  %v6909 = vpop.f32.mrb[0].mxu0
  %v6910 = vadd.f32 %v6525, %v6909
  %v6911 = vpop.f32.mrb[0].mxu0
  %6912 = vmatprep.mubr.f32.mxu0 %v1829
  %6913 = vmatmul.mubr.f32.gmra.mrb[0].mxu0 %v1765
  %v6914 = vpop.f32.mrb[0].mxu0
  %v6915 = vadd.f32 %v6530, %v6914
  %v6916 = vpop.f32.mrb[0].mxu0
  %6917 = vmatprep.mubr.f32.mxu0 %v1830
  %6918 = vmatmul.mubr.f32.gmra.mrb[0].mxu0 %v1766
  %v6919 = vpop.f32.mrb[0].mxu0
  %v6920 = vadd.f32 %v6535, %v6919
  %v6921 = vpop.f32.mrb[0].mxu0
  %6922 = vmatprep.mubr.f32.mxu0 %v1831
  %6923 = vmatmul.mubr.f32.gmra.mrb[0].mxu0 %v1767
  %v6924 = vpop.f32.mrb[0].mxu0
  %v6925 = vadd.f32 %v6540, %v6924
  %v6926 = vpop.f32.mrb[0].mxu0
  %6927 = vmatprep.mubr.f32.mxu0 %v1832
  %6928 = vmatmul.mubr.f32.gmra.mrb[0].mxu0 %v1768
  %v6929 = vpop.f32.mrb[0].mxu0
  %v6930 = vadd.f32 %v6545, %v6929
  %v6931 = vpop.f32.mrb[0].mxu0
  %6932 = vmatprep.mubr.f32.mxu0 %v1833
  %6933 = vmatmul.mubr.f32.gmra.mrb[0].mxu0 %v1769
  %v6934 = vpop.f32.mrb[0].mxu0
  %v6935 = vadd.f32 %v6550, %v6934
  %v6936 = vpop.f32.mrb[0].mxu0
  %6937 = vmatprep.mubr.f32.mxu0 %v1834
  %6938 = vmatmul.mubr.f32.gmra.mrb[0].mxu0 %v1770
  %v6939 = vpop.f32.mrb[0].mxu0
  %v6940 = vadd.f32 %v6555, %v6939
  %v6941 = vpop.f32.mrb[0].mxu0
  %6942 = vmatprep.mubr.f32.mxu0 %v1835
  %6943 = vmatmul.mubr.f32.gmra.mrb[0].mxu0 %v1771
  %v6944 = vpop.f32.mrb[0].mxu0
  %v6945 = vadd.f32 %v6560, %v6944
  %v6946 = vpop.f32.mrb[0].mxu0
  %6947 = vmatprep.mubr.f32.mxu0 %v1836
  %6948 = vmatmul.mubr.f32.gmra.mrb[0].mxu0 %v1772
  %v6949 = vpop.f32.mrb[0].mxu0
  %v6950 = vadd.f32 %v6565, %v6949
  %v6951 = vpop.f32.mrb[0].mxu0
  %6952 = vmatprep.mubr.f32.mxu0 %v1837
  %6953 = vmatmul.mubr.f32.gmra.mrb[0].mxu0 %v1773
  %v6954 = vpop.f32.mrb[0].mxu0
  %v6955 = vadd.f32 %v6570, %v6954
  %v6956 = vpop.f32.mrb[0].mxu0
  %6957 = vmatprep.mubr.f32.mxu0 %v1838
  %6958 = vmatmul.mubr.f32.gmra.mrb[0].mxu0 %v1774
  %v6959 = vpop.f32.mrb[0].mxu0
  %v6960 = vadd.f32 %v6575, %v6959
  %v6961 = vpop.f32.mrb[0].mxu0
  %6962 = vmatprep.mubr.f32.mxu0 %v1839
  %6963 = vmatmul.mubr.f32.gmra.mrb[0].mxu0 %v1775
  %v6964 = vpop.f32.mrb[0].mxu0
  %v6965 = vadd.f32 %v6580, %v6964
  %v6966 = vpop.f32.mrb[0].mxu0
  %6967 = vmatprep.mubr.f32.mxu0 %v1840
  %6968 = vmatmul.mubr.f32.gmra.mrb[0].mxu0 %v1776
  %v6969 = vpop.f32.mrb[0].mxu0
  %v6970 = vadd.f32 %v6585, %v6969
  %v6971 = vpop.f32.mrb[0].mxu0
  %6972 = vmatprep.mubr.f32.mxu0 %v1841
  %6973 = vmatmul.mubr.f32.gmra.mrb[0].mxu0 %v1777
  %v6974 = vpop.f32.mrb[0].mxu0
  %v6975 = vadd.f32 %v6590, %v6974
  %v6976 = vpop.f32.mrb[0].mxu0
  %6977 = vmatprep.mubr.f32.mxu0 %v1842
  %6978 = vmatmul.mubr.f32.gmra.mrb[0].mxu0 %v1778
  %v6979 = vpop.f32.mrb[0].mxu0
  %v6980 = vadd.f32 %v6595, %v6979
  %v6981 = vpop.f32.mrb[0].mxu0
  %6982 = vmatprep.mubr.f32.mxu0 %v1843
  %6983 = vmatmul.mubr.f32.gmra.mrb[0].mxu0 %v1779
  %v6984 = vpop.f32.mrb[0].mxu0
  %v6985 = vadd.f32 %v6600, %v6984
  %v6986 = vpop.f32.mrb[0].mxu0
  %6987 = vmatprep.mubr.f32.mxu0 %v1844
  %6988 = vmatmul.mubr.f32.gmra.mrb[0].mxu0 %v1780
  %v6989 = vpop.f32.mrb[0].mxu0
  %v6990 = vadd.f32 %v6605, %v6989
  %v6991 = vpop.f32.mrb[0].mxu0
  %6992 = vmatprep.mubr.f32.mxu0 %v1845
  %6993 = vmatmul.mubr.f32.gmra.mrb[0].mxu0 %v1781
  %v6994 = vpop.f32.mrb[0].mxu0
  %v6995 = vadd.f32 %v6610, %v6994
  %v6996 = vpop.f32.mrb[0].mxu0
  %6997 = vmatprep.mubr.f32.mxu0 %v1846
  %6998 = vmatmul.mubr.f32.gmra.mrb[0].mxu0 %v1782
  %v6999 = vpop.f32.mrb[0].mxu0
  %v7000 = vadd.f32 %v6615, %v6999
  %v7001 = vpop.f32.mrb[0].mxu0
  %7002 = vmatprep.mubr.f32.mxu0 %v1847
  %7003 = vmatmul.mubr.f32.gmra.mrb[0].mxu0 %v1783
  %v7004 = vpop.f32.mrb[0].mxu0
  %v7005 = vadd.f32 %v6620, %v7004
  %v7006 = vpop.f32.mrb[0].mxu0
  %7007 = vmatprep.mubr.f32.mxu0 %v1848
  %7008 = vmatmul.mubr.f32.gmra.mrb[0].mxu0 %v1784
  %v7009 = vpop.f32.mrb[0].mxu0
  %v7010 = vadd.f32 %v6625, %v7009
  %v7011 = vpop.f32.mrb[0].mxu0
  %7012 = vmatprep.mubr.f32.mxu0 %v1849
  %7013 = vmatmul.mubr.f32.gmra.mrb[0].mxu0 %v1785
  %v7014 = vpop.f32.mrb[0].mxu0
  %v7015 = vadd.f32 %v6630, %v7014
  %v7016 = vpop.f32.mrb[0].mxu0
  %7017 = vmatprep.mubr.f32.mxu0 %v1850
  %7018 = vmatmul.mubr.f32.gmra.mrb[0].mxu0 %v1786
  %v7019 = vpop.f32.mrb[0].mxu0
  %v7020 = vadd.f32 %v6635, %v7019
  %v7021 = vpop.f32.mrb[0].mxu0
  %7022 = vmatprep.mubr.f32.mxu0 %v1851
  %7023 = vmatmul.mubr.f32.gmra.mrb[0].mxu0 %v1787
  %v7024 = vpop.f32.mrb[0].mxu0
  %v7025 = vadd.f32 %v6640, %v7024
  %v7026 = vpop.f32.mrb[0].mxu0
  %7027 = vmatprep.mubr.f32.mxu0 %v1852
  %7028 = vmatmul.mubr.f32.gmra.mrb[0].mxu0 %v1788
  %v7029 = vpop.f32.mrb[0].mxu0
  %v7030 = vadd.f32 %v6645, %v7029
  %v7031 = vpop.f32.mrb[0].mxu0
  %7032 = vmatprep.mubr.f32.mxu0 %v1853
  %7033 = vmatmul.mubr.f32.gmra.mrb[0].mxu0 %v1789
  %v7034 = vpop.f32.mrb[0].mxu0
  %v7035 = vadd.f32 %v6650, %v7034
  %v7036 = vpop.f32.mrb[0].mxu0
  %7037 = vmatprep.mubr.f32.mxu0 %v1854
  %7038 = vmatmul.mubr.f32.gmra.mrb[0].mxu0 %v1790
  %v7039 = vpop.f32.mrb[0].mxu0
  %v7040 = vadd.f32 %v6655, %v7039
  %v7041 = vpop.f32.mrb[0].mxu0
  %7042 = vmatprep.mubr.f32.mxu0 %v1855
  %7043 = vmatmul.mubr.f32.gmra.mrb[0].mxu0 %v1791
  %v7044 = vpop.f32.mrb[0].mxu0
  %v7045 = vadd.f32 %v6660, %v7044
  %v7046 = vpop.f32.mrb[0].mxu0
  %7047 = vmatprep.mubr.f32.mxu0 %v1856
  %7048 = vmatmul.mubr.f32.gmra.mrb[0].mxu0 %v1792
  %v7049 = vpop.f32.mrb[0].mxu0
  %v7050 = vadd.f32 %v6665, %v7049
  %v7051 = vpop.f32.mrb[0].mxu0
  %7052 = vmatprep.mubr.f32.mxu0 %v1857
  %7053 = vmatmul.mubr.f32.gmra.mrb[0].mxu0 %v1793
  %v7054 = vpop.f32.mrb[0].mxu0
  %v7055 = vadd.f32 %v6670, %v7054
  %v7056 = vpop.f32.mrb[0].mxu0
  %7057 = vmatprep.mubr.f32.mxu0 %v1858
  %7058 = vmatmul.mubr.f32.gmra.mrb[0].mxu0 %v1794
  %v7059 = vpop.f32.mrb[0].mxu0
  %v7060 = vadd.f32 %v6675, %v7059
  %v7061 = vpop.f32.mrb[0].mxu0
  %7062 = vmatprep.mubr.f32.mxu0 %v1859
  %7063 = vmatmul.mubr.f32.gmra.mrb[0].mxu0 %v1795
  %v7064 = vpop.f32.mrb[0].mxu0
  %v7065 = vadd.f32 %v6680, %v7064
  %v7066 = vpop.f32.mrb[0].mxu0
  %7067 = vmatprep.mubr.f32.mxu0 %v1860
  %7068 = vmatmul.mubr.f32.gmra.mrb[0].mxu0 %v1796
  %v7069 = vpop.f32.mrb[0].mxu0
  %v7070 = vadd.f32 %v6685, %v7069
  %v7071 = vpop.f32.mrb[0].mxu0
  %7072 = vmatprep.mubr.f32.mxu0 %v1861
  %7073 = vmatmul.mubr.f32.gmra.mrb[0].mxu0 %v1797
  %v7074 = vpop.f32.mrb[0].mxu0
  %v7075 = vadd.f32 %v6690, %v7074
  %v7076 = vpop.f32.mrb[0].mxu0
  %7077 = vmatprep.mubr.f32.mxu0 %v1862
  %7078 = vmatmul.mubr.f32.gmra.mrb[0].mxu0 %v1798
  %v7079 = vpop.f32.mrb[0].mxu0
  %v7080 = vadd.f32 %v6695, %v7079
  %v7081 = vpop.f32.mrb[0].mxu0
  %7082 = vmatprep.mubr.f32.mxu0 %v1863
  %7083 = vmatmul.mubr.f32.gmra.mrb[0].mxu0 %v1799
  %v7084 = vpop.f32.mrb[0].mxu0
  %v7085 = vadd.f32 %v6700, %v7084
  %v7086 = vpop.f32.mrb[0].mxu0
  %7087 = vmatprep.mubr.f32.mxu0 %v1864
  %7088 = vmatmul.mubr.f32.gmra.mrb[0].mxu0 %v1800
  %v7089 = vpop.f32.mrb[0].mxu0
  %v7090 = vadd.f32 %v6705, %v7089
  %v7091 = vpop.f32.mrb[0].mxu0
  %7092 = vmatprep.mubr.f32.mxu0 %v1865
  %7093 = vmatmul.mubr.f32.gmra.mrb[0].mxu0 %v1801
  %v7094 = vpop.f32.mrb[0].mxu0
  %v7095 = vadd.f32 %v6710, %v7094
  %v7096 = vpop.f32.mrb[0].mxu0
  %7097 = vmatprep.mubr.f32.mxu0 %v1866
  %7098 = vmatmul.mubr.f32.gmra.mrb[0].mxu0 %v1802
  %v7099 = vpop.f32.mrb[0].mxu0
  %v7100 = vadd.f32 %v6715, %v7099
  %v7101 = vpop.f32.mrb[0].mxu0
  %7102 = vmatprep.mubr.f32.mxu0 %v1867
  %7103 = vmatmul.mubr.f32.gmra.mrb[0].mxu0 %v1803
  %v7104 = vpop.f32.mrb[0].mxu0
  %v7105 = vadd.f32 %v6720, %v7104
  %v7106 = vpop.f32.mrb[0].mxu0
  %7107 = vmatprep.mubr.f32.mxu0 %v1868
  %7108 = vmatmul.mubr.f32.gmra.mrb[0].mxu0 %v1804
  %v7109 = vpop.f32.mrb[0].mxu0
  %v7110 = vadd.f32 %v6725, %v7109
  %v7111 = vpop.f32.mrb[0].mxu0
  %7112 = vmatprep.mubr.f32.mxu0 %v1869
  %7113 = vmatmul.mubr.f32.gmra.mrb[0].mxu0 %v1805
  %v7114 = vpop.f32.mrb[0].mxu0
  %v7115 = vadd.f32 %v6730, %v7114
  %v7116 = vpop.f32.mrb[0].mxu0
  %7117 = vmatprep.mubr.f32.mxu0 %v1870
  %7118 = vmatmul.mubr.f32.gmra.mrb[0].mxu0 %v1806
  %v7119 = vpop.f32.mrb[0].mxu0
  %v7120 = vadd.f32 %v6735, %v7119
  %v7121 = vpop.f32.mrb[0].mxu0
  %7122 = vmatprep.mubr.f32.mxu0 %v1871
  %7123 = vmatmul.mubr.f32.gmra.mrb[0].mxu0 %v1807
  %v7124 = vpop.f32.mrb[0].mxu0
  %v7125 = vadd.f32 %v6740, %v7124
  %v7126 = vpop.f32.mrb[0].mxu0
  %7127 = vmatprep.mubr.f32.mxu0 %v1872
  %7128 = vmatmul.mubr.f32.gmra.mrb[0].mxu0 %v1808
  %v7129 = vpop.f32.mrb[0].mxu0
  %v7130 = vadd.f32 %v6745, %v7129
  %v7131 = vpop.f32.mrb[0].mxu0
  %7132 = vmatprep.mubr.f32.mxu0 %v1873
  %7133 = vmatmul.mubr.f32.gmra.mrb[0].mxu0 %v1809
  %v7134 = vpop.f32.mrb[0].mxu0
  %v7135 = vadd.f32 %v6750, %v7134
  %v7136 = vpop.f32.mrb[0].mxu0
  %7137 = vmatprep.mubr.f32.mxu0 %v1874
  %7138 = vmatmul.mubr.f32.gmra.mrb[0].mxu0 %v1810
  %v7139 = vpop.f32.mrb[0].mxu0
  %v7140 = vadd.f32 %v6755, %v7139
  %v7141 = vpop.f32.mrb[0].mxu0
  %7142 = vmatprep.mubr.f32.mxu0 %v1875
  %7143 = vmatmul.mubr.f32.gmra.mrb[0].mxu0 %v1811
  %v7144 = vpop.f32.mrb[0].mxu0
  %v7145 = vadd.f32 %v6760, %v7144
  %v7146 = vpop.f32.mrb[0].mxu0
  %7147 = vmatprep.mubr.f32.mxu0 %v1876
  %7148 = vmatmul.mubr.f32.gmra.mrb[0].mxu0 %v1812
  %v7149 = vpop.f32.mrb[0].mxu0
  %v7150 = vadd.f32 %v6765, %v7149
  %v7151 = vpop.f32.mrb[0].mxu0
  %7152 = vmatprep.mubr.f32.mxu0 %v1877
  %7153 = vmatmul.mubr.f32.gmra.mrb[0].mxu0 %v1813
  %v7154 = vpop.f32.mrb[0].mxu0
  %v7155 = vadd.f32 %v6770, %v7154
  %v7156 = vpop.f32.mrb[0].mxu0
  %7157 = vmatprep.mubr.f32.mxu0 %v1878
  %7158 = vmatmul.mubr.f32.gmra.mrb[0].mxu0 %v1814
  %v7159 = vpop.f32.mrb[0].mxu0
  %v7160 = vadd.f32 %v6775, %v7159
  %v7161 = vpop.f32.mrb[0].mxu0
  %7162 = vmatprep.mubr.f32.mxu0 %v2153
  %7163 = vmatmul.mubr.f32.gmra.mrb[0].mxu0 %v2075
  %v7164 = vpop.f32.mrb[0].mxu0
  %v7165 = vadd.f32 %v6780, %v7164
  %v7166 = vpop.f32.mrb[0].mxu0
  %7167 = vmatprep.mubr.f32.mxu0 %v2154
  %7168 = vmatmul.mubr.f32.gmra.mrb[0].mxu0 %v2076
  %v7169 = vpop.f32.mrb[0].mxu0
  %v7170 = vadd.f32 %v6785, %v7169
  %v7171 = vpop.f32.mrb[0].mxu0
  %7172 = vmatprep.mubr.f32.mxu0 %v2155
  %7173 = vmatmul.mubr.f32.gmra.mrb[0].mxu0 %v2150
  %v7174 = vpop.f32.mrb[0].mxu0
  %v7175 = vadd.f32 %v6790, %v7174
  %v7176 = vpop.f32.mrb[0].mxu0
  %7177 = vmatprep.mubr.f32.mxu0 %v2156
  %7178 = vmatmul.mubr.f32.gmra.mrb[0].mxu0 %v2151
  %v7179 = vpop.f32.mrb[0].mxu0
  %v7180 = vadd.f32 %v6795, %v7179
  %v7181 = vpop.f32.mrb[0].mxu0
  %7182 = vmatprep.mubr.f32.mxu0 %v2157
  %7183 = vmatmul.mubr.f32.gmra.mrb[0].mxu0 %v2152
  %v7184 = vpop.f32.mrb[0].mxu0
  %v7185 = vadd.f32 %v6800, %v7184
  %v7186 = vpop.f32.mrb[0].mxu0
  %7187 = vmatprep.mubr.f32.mxu0 %v2174
  %7188 = vmatmul.mubr.f32.gmra.mrb[0].mxu0 %v2172
  %v7189 = vpop.f32.mrb[0].mxu0
  %v7190 = vadd.f32 %v6805, %v7189
  %v7191 = vpop.f32.mrb[0].mxu0
  %7192 = vmatprep.mubr.f32.mxu0 %v2175
  %7193 = vmatmul.mubr.f32.gmra.mrb[0].mxu0 %v2173
  %v7194 = vpop.f32.mrb[0].mxu0
  %v7195 = vadd.f32 %v6810, %v7194
  %v7196 = vpop.f32.mrb[0].mxu0
  %7197 = vdwg.mxu0
  %7198 = vmatprep.subr.mxu0 0.0
  %7199 = vmatpush1.msra.mxu0 %v2562
  %7200 = vmatprep.subr.mxu0 0.0
  %7201 = vmatpush1.msra.mxu0 %v2563
  %7202 = vmatprep.subr.mxu0 0.0
  %7203 = vmatpush1.msra.mxu0 %v2564
  %7204 = vmatprep.subr.mxu0 0.0
  %7205 = vmatpush1.msra.mxu0 %v2565
  %7206 = vmatprep.subr.mxu0 0.0
  %7207 = vmatpush1.msra.mxu0 %v2566
  %7208 = vmatprep.subr.mxu0 0.0
  %7209 = vmatpush1.msra.mxu0 %v2567
  %7210 = vmatprep.subr.mxu0 0.0
  %7211 = vmatpush1.msra.mxu0 %v2568
  %7212 = vmatprep.subr.mxu0 0.0
  %7213 = vmatpush1.msra.mxu0 %v2569
  %7214 = vmatprep.subr.mxu0 0.0
  %7215 = vmatpush1.msra.mxu0 %v2570
  %7216 = vmatprep.subr.mxu0 0.0
  %7217 = vmatpush1.msra.mxu0 %v2571
  %7218 = vmatprep.subr.mxu0 0.0
  %7219 = vmatpush1.msra.mxu0 %v2572
  %7220 = vmatprep.subr.mxu0 0.0
  %7221 = vmatpush1.msra.mxu0 %v2573
  %7222 = vmatprep.subr.mxu0 0.0
  %7223 = vmatpush1.msra.mxu0 %v2574
  %7224 = vmatprep.subr.mxu0 0.0
  %7225 = vmatpush1.msra.mxu0 %v2575
  %7226 = vmatprep.subr.mxu0 0.0
  %7227 = vmatpush1.msra.mxu0 %v2576
  %7228 = vmatprep.subr.mxu0 0.0
  %7229 = vmatpush1.msra.mxu0 %v2577
  %7230 = vmatprep.subr.mxu0 0.0
  %7231 = vmatpush1.msra.mxu0 0.0
  %7232 = vmatprep.subr.mxu0 0.0
  %7233 = vmatpush1.msra.mxu0 0.0
  %7234 = vmatprep.subr.mxu0 0.0
  %7235 = vmatpush1.msra.mxu0 0.0
  %7236 = vmatprep.subr.mxu0 0.0
  %7237 = vmatpush1.msra.mxu0 0.0
  %7238 = vmatprep.subr.mxu0 0.0
  %7239 = vmatpush1.msra.mxu0 0.0
  %7240 = vmatprep.subr.mxu0 0.0
  %7241 = vmatpush1.msra.mxu0 0.0
  %7242 = vmatprep.subr.mxu0 0.0
  %7243 = vmatpush1.msra.mxu0 0.0
  %7244 = vmatprep.subr.mxu0 0.0
  %7245 = vmatpush1.msra.mxu0 0.0
  %7246 = vmatprep.subr.mxu0 0.0
  %7247 = vmatpush1.msra.mxu0 0.0
  %7248 = vmatprep.subr.mxu0 0.0
  %7249 = vmatpush1.msra.mxu0 0.0
  %7250 = vmatprep.subr.mxu0 0.0
  %7251 = vmatpush1.msra.mxu0 0.0
  %7252 = vmatprep.subr.mxu0 0.0
  %7253 = vmatpush1.msra.mxu0 0.0
  %7254 = vmatprep.subr.mxu0 0.0
  %7255 = vmatpush1.msra.mxu0 0.0
  %7256 = vmatprep.subr.mxu0 0.0
  %7257 = vmatpush1.msra.mxu0 0.0
  %7258 = vmatprep.subr.mxu0 0.0
  %7259 = vmatpush1.msra.mxu0 0.0
  %7260 = vmatprep.subr.mxu0 0.0
  %7261 = vmatpush1.msra.mxu0 0.0
  %7262 = vmatprep.mubr.f32.mxu0 0.0
  %7263 = vmatmul.mubr.f32.gmra.mrb[0].mxu0 %v1886
  %v7264 = vpop.f32.mrb[0].mxu0
  %v7265 = vadd.f32 %v6880, %v7264
  %v7266 = vpop.f32.mrb[0].mxu0
  %7267 = vmatprep.mubr.f32.mxu0 0.0
  %7268 = vmatmul.mubr.f32.gmra.mrb[0].mxu0 %v1887
  %v7269 = vpop.f32.mrb[0].mxu0
  %v7270 = vadd.f32 %v6885, %v7269
  %v7271 = vpop.f32.mrb[0].mxu0
  %7272 = vmatprep.mubr.f32.mxu0 0.0
  %7273 = vmatmul.mubr.f32.gmra.mrb[0].mxu0 %v1888
  %v7274 = vpop.f32.mrb[0].mxu0
  %v7275 = vadd.f32 %v6890, %v7274
  %v7276 = vpop.f32.mrb[0].mxu0
  %7277 = vmatprep.mubr.f32.mxu0 0.0
  %7278 = vmatmul.mubr.f32.gmra.mrb[0].mxu0 %v1889
  %v7279 = vpop.f32.mrb[0].mxu0
  %v7280 = vadd.f32 %v6895, %v7279
  %v7281 = vpop.f32.mrb[0].mxu0
  %7282 = vmatprep.mubr.f32.mxu0 0.0
  %7283 = vmatmul.mubr.f32.gmra.mrb[0].mxu0 %v1890
  %v7284 = vpop.f32.mrb[0].mxu0
  %v7285 = vadd.f32 %v6900, %v7284
  %v7286 = vpop.f32.mrb[0].mxu0
  %7287 = vmatprep.mubr.f32.mxu0 0.0
  %7288 = vmatmul.mubr.f32.gmra.mrb[0].mxu0 %v1891
  %v7289 = vpop.f32.mrb[0].mxu0
  %v7290 = vadd.f32 %v6905, %v7289
  %v7291 = vpop.f32.mrb[0].mxu0
  %7292 = vmatprep.mubr.f32.mxu0 0.0
  %7293 = vmatmul.mubr.f32.gmra.mrb[0].mxu0 %v1892
  %v7294 = vpop.f32.mrb[0].mxu0
  %v7295 = vadd.f32 %v6910, %v7294
  %v7296 = vpop.f32.mrb[0].mxu0
  %7297 = vmatprep.mubr.f32.mxu0 0.0
  %7298 = vmatmul.mubr.f32.gmra.mrb[0].mxu0 %v1893
  %v7299 = vpop.f32.mrb[0].mxu0
  %v7300 = vadd.f32 %v6915, %v7299
  %v7301 = vpop.f32.mrb[0].mxu0
  %7302 = vmatprep.mubr.f32.mxu0 0.0
  %7303 = vmatmul.mubr.f32.gmra.mrb[0].mxu0 %v1894
  %v7304 = vpop.f32.mrb[0].mxu0
  %v7305 = vadd.f32 %v6920, %v7304
  %v7306 = vpop.f32.mrb[0].mxu0
  %7307 = vmatprep.mubr.f32.mxu0 0.0
  %7308 = vmatmul.mubr.f32.gmra.mrb[0].mxu0 %v1895
  %v7309 = vpop.f32.mrb[0].mxu0
  %v7310 = vadd.f32 %v6925, %v7309
  %v7311 = vpop.f32.mrb[0].mxu0
  %7312 = vmatprep.mubr.f32.mxu0 0.0
  %7313 = vmatmul.mubr.f32.gmra.mrb[0].mxu0 %v1896
  %v7314 = vpop.f32.mrb[0].mxu0
  %v7315 = vadd.f32 %v6930, %v7314
  %v7316 = vpop.f32.mrb[0].mxu0
  %7317 = vmatprep.mubr.f32.mxu0 0.0
  %7318 = vmatmul.mubr.f32.gmra.mrb[0].mxu0 %v1897
  %v7319 = vpop.f32.mrb[0].mxu0
  %v7320 = vadd.f32 %v6935, %v7319
  %v7321 = vpop.f32.mrb[0].mxu0
  %7322 = vmatprep.mubr.f32.mxu0 0.0
  %7323 = vmatmul.mubr.f32.gmra.mrb[0].mxu0 %v1898
  %v7324 = vpop.f32.mrb[0].mxu0
  %v7325 = vadd.f32 %v6940, %v7324
  %v7326 = vpop.f32.mrb[0].mxu0
  %7327 = vmatprep.mubr.f32.mxu0 0.0
  %7328 = vmatmul.mubr.f32.gmra.mrb[0].mxu0 %v1899
  %v7329 = vpop.f32.mrb[0].mxu0
  %v7330 = vadd.f32 %v6945, %v7329
  %v7331 = vpop.f32.mrb[0].mxu0
  %7332 = vmatprep.mubr.f32.mxu0 0.0
  %7333 = vmatmul.mubr.f32.gmra.mrb[0].mxu0 %v1900
  %v7334 = vpop.f32.mrb[0].mxu0
  %v7335 = vadd.f32 %v6950, %v7334
  %v7336 = vpop.f32.mrb[0].mxu0
  %7337 = vmatprep.mubr.f32.mxu0 0.0
  %7338 = vmatmul.mubr.f32.gmra.mrb[0].mxu0 %v1901
  %v7339 = vpop.f32.mrb[0].mxu0
  %v7340 = vadd.f32 %v6955, %v7339
  %v7341 = vpop.f32.mrb[0].mxu0
  %7342 = vmatprep.mubr.f32.mxu0 0.0
  %7343 = vmatmul.mubr.f32.gmra.mrb[0].mxu0 %v1902
  %v7344 = vpop.f32.mrb[0].mxu0
  %v7345 = vadd.f32 %v6960, %v7344
  %v7346 = vpop.f32.mrb[0].mxu0
  %7347 = vmatprep.mubr.f32.mxu0 0.0
  %7348 = vmatmul.mubr.f32.gmra.mrb[0].mxu0 %v1903
  %v7349 = vpop.f32.mrb[0].mxu0
  %v7350 = vadd.f32 %v6965, %v7349
  %v7351 = vpop.f32.mrb[0].mxu0
  %7352 = vmatprep.mubr.f32.mxu0 0.0
  %7353 = vmatmul.mubr.f32.gmra.mrb[0].mxu0 %v1904
  %v7354 = vpop.f32.mrb[0].mxu0
  %v7355 = vadd.f32 %v6970, %v7354
  %v7356 = vpop.f32.mrb[0].mxu0
  %7357 = vmatprep.mubr.f32.mxu0 0.0
  %7358 = vmatmul.mubr.f32.gmra.mrb[0].mxu0 %v1905
  %v7359 = vpop.f32.mrb[0].mxu0
  %v7360 = vadd.f32 %v6975, %v7359
  %v7361 = vpop.f32.mrb[0].mxu0
  %7362 = vmatprep.mubr.f32.mxu0 0.0
  %7363 = vmatmul.mubr.f32.gmra.mrb[0].mxu0 %v1906
  %v7364 = vpop.f32.mrb[0].mxu0
  %v7365 = vadd.f32 %v6980, %v7364
  %v7366 = vpop.f32.mrb[0].mxu0
  %7367 = vmatprep.mubr.f32.mxu0 0.0
  %7368 = vmatmul.mubr.f32.gmra.mrb[0].mxu0 %v1907
  %v7369 = vpop.f32.mrb[0].mxu0
  %v7370 = vadd.f32 %v6985, %v7369
  %v7371 = vpop.f32.mrb[0].mxu0
  %7372 = vmatprep.mubr.f32.mxu0 0.0
  %7373 = vmatmul.mubr.f32.gmra.mrb[0].mxu0 %v1908
  %v7374 = vpop.f32.mrb[0].mxu0
  %v7375 = vadd.f32 %v6990, %v7374
  %v7376 = vpop.f32.mrb[0].mxu0
  %7377 = vmatprep.mubr.f32.mxu0 0.0
  %7378 = vmatmul.mubr.f32.gmra.mrb[0].mxu0 %v1909
  %v7379 = vpop.f32.mrb[0].mxu0
  %v7380 = vadd.f32 %v6995, %v7379
  %v7381 = vpop.f32.mrb[0].mxu0
  %7382 = vmatprep.mubr.f32.mxu0 0.0
  %7383 = vmatmul.mubr.f32.gmra.mrb[0].mxu0 %v1910
  %v7384 = vpop.f32.mrb[0].mxu0
  %v7385 = vadd.f32 %v7000, %v7384
  %v7386 = vpop.f32.mrb[0].mxu0
  %7387 = vmatprep.mubr.f32.mxu0 0.0
  %7388 = vmatmul.mubr.f32.gmra.mrb[0].mxu0 %v1911
  %v7389 = vpop.f32.mrb[0].mxu0
  %v7390 = vadd.f32 %v7005, %v7389
  %v7391 = vpop.f32.mrb[0].mxu0
  %7392 = vmatprep.mubr.f32.mxu0 0.0
  %7393 = vmatmul.mubr.f32.gmra.mrb[0].mxu0 %v1912
  %v7394 = vpop.f32.mrb[0].mxu0
  %v7395 = vadd.f32 %v7010, %v7394
  %v7396 = vpop.f32.mrb[0].mxu0
  %7397 = vmatprep.mubr.f32.mxu0 0.0
  %7398 = vmatmul.mubr.f32.gmra.mrb[0].mxu0 %v1913
  %v7399 = vpop.f32.mrb[0].mxu0
  %v7400 = vadd.f32 %v7015, %v7399
  %v7401 = vpop.f32.mrb[0].mxu0
  %7402 = vmatprep.mubr.f32.mxu0 0.0
  %7403 = vmatmul.mubr.f32.gmra.mrb[0].mxu0 %v1914
  %v7404 = vpop.f32.mrb[0].mxu0
  %v7405 = vadd.f32 %v7020, %v7404
  %v7406 = vpop.f32.mrb[0].mxu0
  %7407 = vmatprep.mubr.f32.mxu0 0.0
  %7408 = vmatmul.mubr.f32.gmra.mrb[0].mxu0 %v1915
  %v7409 = vpop.f32.mrb[0].mxu0
  %v7410 = vadd.f32 %v7025, %v7409
  %v7411 = vpop.f32.mrb[0].mxu0
  %7412 = vmatprep.mubr.f32.mxu0 0.0
  %7413 = vmatmul.mubr.f32.gmra.mrb[0].mxu0 %v1916
  %v7414 = vpop.f32.mrb[0].mxu0
  %v7415 = vadd.f32 %v7030, %v7414
  %v7416 = vpop.f32.mrb[0].mxu0
  %7417 = vmatprep.mubr.f32.mxu0 0.0
  %7418 = vmatmul.mubr.f32.gmra.mrb[0].mxu0 %v1917
  %v7419 = vpop.f32.mrb[0].mxu0
  %v7420 = vadd.f32 %v7035, %v7419
  %v7421 = vpop.f32.mrb[0].mxu0
  %7422 = vmatprep.mubr.f32.mxu0 0.0
  %7423 = vmatmul.mubr.f32.gmra.mrb[0].mxu0 %v1918
  %v7424 = vpop.f32.mrb[0].mxu0
  %v7425 = vadd.f32 %v7040, %v7424
  %v7426 = vpop.f32.mrb[0].mxu0
  %7427 = vmatprep.mubr.f32.mxu0 0.0
  %7428 = vmatmul.mubr.f32.gmra.mrb[0].mxu0 %v1919
  %v7429 = vpop.f32.mrb[0].mxu0
  %v7430 = vadd.f32 %v7045, %v7429
  %v7431 = vpop.f32.mrb[0].mxu0
  %7432 = vmatprep.mubr.f32.mxu0 0.0
  %7433 = vmatmul.mubr.f32.gmra.mrb[0].mxu0 %v1920
  %v7434 = vpop.f32.mrb[0].mxu0
  %v7435 = vadd.f32 %v7050, %v7434
  %v7436 = vpop.f32.mrb[0].mxu0
  %7437 = vmatprep.mubr.f32.mxu0 0.0
  %7438 = vmatmul.mubr.f32.gmra.mrb[0].mxu0 %v1921
  %v7439 = vpop.f32.mrb[0].mxu0
  %v7440 = vadd.f32 %v7055, %v7439
  %v7441 = vpop.f32.mrb[0].mxu0
  %7442 = vmatprep.mubr.f32.mxu0 0.0
  %7443 = vmatmul.mubr.f32.gmra.mrb[0].mxu0 %v1922
  %v7444 = vpop.f32.mrb[0].mxu0
  %v7445 = vadd.f32 %v7060, %v7444
  %v7446 = vpop.f32.mrb[0].mxu0
  %7447 = vmatprep.mubr.f32.mxu0 0.0
  %7448 = vmatmul.mubr.f32.gmra.mrb[0].mxu0 %v1923
  %v7449 = vpop.f32.mrb[0].mxu0
  %v7450 = vadd.f32 %v7065, %v7449
  %v7451 = vpop.f32.mrb[0].mxu0
  %7452 = vmatprep.mubr.f32.mxu0 0.0
  %7453 = vmatmul.mubr.f32.gmra.mrb[0].mxu0 %v1924
  %v7454 = vpop.f32.mrb[0].mxu0
  %v7455 = vadd.f32 %v7070, %v7454
  %v7456 = vpop.f32.mrb[0].mxu0
  %7457 = vmatprep.mubr.f32.mxu0 0.0
  %7458 = vmatmul.mubr.f32.gmra.mrb[0].mxu0 %v1925
  %v7459 = vpop.f32.mrb[0].mxu0
  %v7460 = vadd.f32 %v7075, %v7459
  %v7461 = vpop.f32.mrb[0].mxu0
  %7462 = vmatprep.mubr.f32.mxu0 0.0
  %7463 = vmatmul.mubr.f32.gmra.mrb[0].mxu0 %v1926
  %v7464 = vpop.f32.mrb[0].mxu0
  %v7465 = vadd.f32 %v7080, %v7464
  %v7466 = vpop.f32.mrb[0].mxu0
  %7467 = vmatprep.mubr.f32.mxu0 0.0
  %7468 = vmatmul.mubr.f32.gmra.mrb[0].mxu0 %v1927
  %v7469 = vpop.f32.mrb[0].mxu0
  %v7470 = vadd.f32 %v7085, %v7469
  %v7471 = vpop.f32.mrb[0].mxu0
  %7472 = vmatprep.mubr.f32.mxu0 0.0
  %7473 = vmatmul.mubr.f32.gmra.mrb[0].mxu0 %v1928
  %v7474 = vpop.f32.mrb[0].mxu0
  %v7475 = vadd.f32 %v7090, %v7474
  %v7476 = vpop.f32.mrb[0].mxu0
  %7477 = vmatprep.mubr.f32.mxu0 0.0
  %7478 = vmatmul.mubr.f32.gmra.mrb[0].mxu0 %v1929
  %v7479 = vpop.f32.mrb[0].mxu0
  %v7480 = vadd.f32 %v7095, %v7479
  %v7481 = vpop.f32.mrb[0].mxu0
  %7482 = vmatprep.mubr.f32.mxu0 0.0
  %7483 = vmatmul.mubr.f32.gmra.mrb[0].mxu0 %v1930
  %v7484 = vpop.f32.mrb[0].mxu0
  %v7485 = vadd.f32 %v7100, %v7484
  %v7486 = vpop.f32.mrb[0].mxu0
  %7487 = vmatprep.mubr.f32.mxu0 0.0
  %7488 = vmatmul.mubr.f32.gmra.mrb[0].mxu0 %v1931
  %v7489 = vpop.f32.mrb[0].mxu0
  %v7490 = vadd.f32 %v7105, %v7489
  %v7491 = vpop.f32.mrb[0].mxu0
  %7492 = vmatprep.mubr.f32.mxu0 0.0
  %7493 = vmatmul.mubr.f32.gmra.mrb[0].mxu0 %v1932
  %v7494 = vpop.f32.mrb[0].mxu0
  %v7495 = vadd.f32 %v7110, %v7494
  %v7496 = vpop.f32.mrb[0].mxu0
  %7497 = vmatprep.mubr.f32.mxu0 0.0
  %7498 = vmatmul.mubr.f32.gmra.mrb[0].mxu0 %v1933
  %v7499 = vpop.f32.mrb[0].mxu0
  %v7500 = vadd.f32 %v7115, %v7499
  %v7501 = vpop.f32.mrb[0].mxu0
  %7502 = vmatprep.mubr.f32.mxu0 0.0
  %7503 = vmatmul.mubr.f32.gmra.mrb[0].mxu0 %v1934
  %v7504 = vpop.f32.mrb[0].mxu0
  %v7505 = vadd.f32 %v7120, %v7504
  %v7506 = vpop.f32.mrb[0].mxu0
  %7507 = vmatprep.mubr.f32.mxu0 0.0
  %7508 = vmatmul.mubr.f32.gmra.mrb[0].mxu0 %v1935
  %v7509 = vpop.f32.mrb[0].mxu0
  %v7510 = vadd.f32 %v7125, %v7509
  %v7511 = vpop.f32.mrb[0].mxu0
  %7512 = vmatprep.mubr.f32.mxu0 0.0
  %7513 = vmatmul.mubr.f32.gmra.mrb[0].mxu0 %v1936
  %v7514 = vpop.f32.mrb[0].mxu0
  %v7515 = vadd.f32 %v7130, %v7514
  %v7516 = vpop.f32.mrb[0].mxu0
  %7517 = vmatprep.mubr.f32.mxu0 0.0
  %7518 = vmatmul.mubr.f32.gmra.mrb[0].mxu0 %v1937
  %v7519 = vpop.f32.mrb[0].mxu0
  %v7520 = vadd.f32 %v7135, %v7519
  %v7521 = vpop.f32.mrb[0].mxu0
  %7522 = vmatprep.mubr.f32.mxu0 0.0
  %7523 = vmatmul.mubr.f32.gmra.mrb[0].mxu0 %v1938
  %v7524 = vpop.f32.mrb[0].mxu0
  %v7525 = vadd.f32 %v7140, %v7524
  %v7526 = vpop.f32.mrb[0].mxu0
  %7527 = vmatprep.mubr.f32.mxu0 0.0
  %7528 = vmatmul.mubr.f32.gmra.mrb[0].mxu0 %v1939
  %v7529 = vpop.f32.mrb[0].mxu0
  %v7530 = vadd.f32 %v7145, %v7529
  %v7531 = vpop.f32.mrb[0].mxu0
  %7532 = vmatprep.mubr.f32.mxu0 0.0
  %7533 = vmatmul.mubr.f32.gmra.mrb[0].mxu0 %v1940
  %v7534 = vpop.f32.mrb[0].mxu0
  %v7535 = vadd.f32 %v7150, %v7534
  %v7536 = vpop.f32.mrb[0].mxu0
  %7537 = vmatprep.mubr.f32.mxu0 0.0
  %7538 = vmatmul.mubr.f32.gmra.mrb[0].mxu0 %v1941
  %v7539 = vpop.f32.mrb[0].mxu0
  %v7540 = vadd.f32 %v7155, %v7539
  %v7541 = vpop.f32.mrb[0].mxu0
  %7542 = vmatprep.mubr.f32.mxu0 0.0
  %7543 = vmatmul.mubr.f32.gmra.mrb[0].mxu0 %v1942
  %v7544 = vpop.f32.mrb[0].mxu0
  %v7545 = vadd.f32 %v7160, %v7544
  %v7546 = vpop.f32.mrb[0].mxu0
  %7547 = vmatprep.mubr.f32.mxu0 0.0
  %7548 = vmatmul.mubr.f32.gmra.mrb[0].mxu0 %v2077
  %v7549 = vpop.f32.mrb[0].mxu0
  %v7550 = vadd.f32 %v7165, %v7549
  %v7551 = vpop.f32.mrb[0].mxu0
  %7552 = vmatprep.mubr.f32.mxu0 0.0
  %7553 = vmatmul.mubr.f32.gmra.mrb[0].mxu0 %v2078
  %v7554 = vpop.f32.mrb[0].mxu0
  %v7555 = vadd.f32 %v7170, %v7554
  %v7556 = vpop.f32.mrb[0].mxu0
  %7557 = vmatprep.mubr.f32.mxu0 0.0
  %7558 = vmatmul.mubr.f32.gmra.mrb[0].mxu0 %v2079
  %v7559 = vpop.f32.mrb[0].mxu0
  %v7560 = vadd.f32 %v7175, %v7559
  %v7561 = vpop.f32.mrb[0].mxu0
  %7562 = vmatprep.mubr.f32.mxu0 0.0
  %7563 = vmatmul.mubr.f32.gmra.mrb[0].mxu0 %v2158
  %v7564 = vpop.f32.mrb[0].mxu0
  %v7565 = vadd.f32 %v7180, %v7564
  %v7566 = vpop.f32.mrb[0].mxu0
  %7567 = vmatprep.mubr.f32.mxu0 0.0
  %7568 = vmatmul.mubr.f32.gmra.mrb[0].mxu0 %v2159
  %v7569 = vpop.f32.mrb[0].mxu0
  %v7570 = vadd.f32 %v7185, %v7569
  %v7571 = vpop.f32.mrb[0].mxu0
  %7572 = vmatprep.mubr.f32.mxu0 0.0
  %7573 = vmatmul.mubr.f32.gmra.mrb[0].mxu0 %v2176
  %v7574 = vpop.f32.mrb[0].mxu0
  %v7575 = vadd.f32 %v7190, %v7574
  %v7576 = vpop.f32.mrb[0].mxu0
  %7577 = vmatprep.mubr.f32.mxu0 0.0
  %7578 = vmatmul.mubr.f32.gmra.mrb[0].mxu0 %v2177
  %v7579 = vpop.f32.mrb[0].mxu0
  %v7580 = vadd.f32 %v7195, %v7579
  %v7581 = vpop.f32.mrb[0].mxu0
  %7582 = vdwg.mxu0
  %v7583 = vld [vmem:[%s5] sm:$0xff]
  %v7584 = vld [vmem:[%s5 + $0x8] sm:$0xff]
  %v7585 = vld [vmem:[%s5 + $0x10] sm:$0xff]
  %v7586 = vld [vmem:[%s5 + $0x18] sm:$0xff]
  %v7587 = vld [vmem:[%s5 + $0x20] sm:$0xff]
  %v7588 = vld [vmem:[%s5 + $0x28] sm:$0xff]
  %v7589 = vld [vmem:[%s5 + $0x30] sm:$0xff]
  %v7590 = vld [vmem:[%s5 + $0x38] sm:$0xff]
  %v7591 = vld [vmem:[%s5 + $0x40] sm:$0xff]
  %v7592 = vld [vmem:[%s5 + $0x48] sm:$0xff]
  %v7593 = vld [vmem:[%s5 + $0x50] sm:$0xff]
  %v7594 = vld [vmem:[%s5 + $0x58] sm:$0xff]
  %v7595 = vld [vmem:[%s5 + $0x60] sm:$0xff]
  %v7596 = vld [vmem:[%s5 + $0x68] sm:$0xff]
  %v7597 = vld [vmem:[%s5 + $0x70] sm:$0xff]
  %v7598 = vld [vmem:[%s5 + $0x78] sm:$0xff]
  %v7599 = vld [vmem:[%s5 + $0x80] sm:$0xff]
  %v7600 = vld [vmem:[%s5 + $0x88] sm:$0xff]
  %v7601 = vld [vmem:[%s5 + $0x90] sm:$0xff]
  %v7602 = vld [vmem:[%s5 + $0x98] sm:$0xff]
  %v7603 = vld [vmem:[%s5 + $0xa0] sm:$0xff]
  %v7604 = vld [vmem:[%s5 + $0xa8] sm:$0xff]
  %v7605 = vld [vmem:[%s5 + $0xb0] sm:$0xff]
  %v7606 = vld [vmem:[%s5 + $0xb8] sm:$0xff]
  %v7607 = vld [vmem:[%s5 + $0xc0] sm:$0xff]
  %v7608 = vld [vmem:[%s5 + $0xc8] sm:$0xff]
  %v7609 = vld [vmem:[%s5 + $0xd0] sm:$0xff]
  %v7610 = vld [vmem:[%s5 + $0xd8] sm:$0xff]
  %v7611 = vld [vmem:[%s5 + $0xe0] sm:$0xff]
  %v7612 = vld [vmem:[%s5 + $0xe8] sm:$0xff]
  %v7613 = vld [vmem:[%s5 + $0xf0] sm:$0xff]
  %v7614 = vld [vmem:[%s5 + $0xf8] sm:$0xff]
  %v7615 = vld [vmem:[%s5 + $0x100] sm:$0xff]
  %v7616 = vld [vmem:[%s5 + $0x108] sm:$0xff]
  %v7617 = vld [vmem:[%s5 + $0x110] sm:$0xff]
  %v7618 = vld [vmem:[%s5 + $0x118] sm:$0xff]
  %v7619 = vld [vmem:[%s5 + $0x120] sm:$0xff]
  %v7620 = vld [vmem:[%s5 + $0x128] sm:$0xff]
  %v7621 = vld [vmem:[%s5 + $0x130] sm:$0xff]
  %v7622 = vld [vmem:[%s5 + $0x138] sm:$0xff]
  %v7623 = vld [vmem:[%s5 + $0x140] sm:$0xff]
  %v7624 = vld [vmem:[%s5 + $0x148] sm:$0xff]
  %v7625 = vld [vmem:[%s5 + $0x150] sm:$0xff]
  %v7626 = vld [vmem:[%s5 + $0x158] sm:$0xff]
  %v7627 = vld [vmem:[%s5 + $0x160] sm:$0xff]
  %v7628 = vld [vmem:[%s5 + $0x168] sm:$0xff]
  %v7629 = vld [vmem:[%s5 + $0x170] sm:$0xff]
  %v7630 = vld [vmem:[%s5 + $0x178] sm:$0xff]
  %v7631 = vld [vmem:[%s5 + $0x180] sm:$0xff]
  %v7632 = vld [vmem:[%s5 + $0x188] sm:$0xff]
  %v7633 = vld [vmem:[%s5 + $0x190] sm:$0xff]
  %v7634 = vld [vmem:[%s5 + $0x198] sm:$0xff]
  %v7635 = vld [vmem:[%s5 + $0x1a0] sm:$0xff]
  %v7636 = vld [vmem:[%s5 + $0x1a8] sm:$0xff]
  %v7637 = vld [vmem:[%s5 + $0x1b0] sm:$0xff]
  %v7638 = vld [vmem:[%s5 + $0x1b8] sm:$0xff]
  %v7639 = vld [vmem:[%s5 + $0x1c0] sm:$0xff]
  %v7640 = vld [vmem:[%s5 + $0x1c8] sm:$0xff]
  %v7641 = vld [vmem:[%s5 + $0x1d0] sm:$0xff]
  %v7642 = vld [vmem:[%s5 + $0x1d8] sm:$0xff]
  %v7643 = vld [vmem:[%s5 + $0x1e0] sm:$0xff]
  %v7644 = vld [vmem:[%s5 + $0x1e8] sm:$0xff]
  %v7645 = vld [vmem:[%s5 + $0x1f0] sm:$0xff]
  %v7646 = vld [vmem:[%s5 + $0x1f8] sm:$0xff]
  %v7647 = vld [vmem:[%s5 + $0x200] sm:$0xff]
  %v7648 = vld [vmem:[%s5 + $0x208] sm:$0xff]
  %v7649 = vld [vmem:[%s5 + $0x210] sm:$0xff]
  %v7650 = vld [vmem:[%s5 + $0x218] sm:$0xff]
  %v7651 = vld [vmem:[%s5 + $0x220] sm:$0xff]
  %v7652 = vld [vmem:[%s5 + $0x228] sm:$0xff]
  %v7653 = vld [vmem:[%s5 + $0x230] sm:$0xff]
  %v7654 = vld [vmem:[%s5 + $0x238] sm:$0xff]
  %v7655 = vld [vmem:[%s5 + $0x240] sm:$0xff]
  %v7656 = vld [vmem:[%s5 + $0x248] sm:$0xff]
  %v7657 = vld [vmem:[%s5 + $0x250] sm:$0xff]
  %v7658 = vld [vmem:[%s5 + $0x258] sm:$0xff]
  %v7659 = vld [vmem:[%s5 + $0x260] sm:$0xff]
  %v7660 = vld [vmem:[%s5 + $0x268] sm:$0xff]
  %v7661 = vld [vmem:[%s5 + $0x270] sm:$0xff]
  %v7662 = vld [vmem:[%s5 + $0x278] sm:$0xff]
  %v7663 = vld [vmem:[%s5 + $0x280] sm:$0xff]
  %v7664 = vld [vmem:[%s5 + $0x288] sm:$0xff]
  %v7665 = vld [vmem:[%s5 + $0x290] sm:$0xff]
  %v7666 = vld [vmem:[%s5 + $0x298] sm:$0xff]
  %v7667 = vld [vmem:[%s5 + $0x2a0] sm:$0xff]
  %v7668 = vld [vmem:[%s5 + $0x2a8] sm:$0xff]
  %v7669 = vld [vmem:[%s5 + $0x2b0] sm:$0xff]
  %v7670 = vld [vmem:[%s5 + $0x2b8] sm:$0xff]
  %v7671 = vld [vmem:[%s5 + $0x2c0] sm:$0xff]
  %v7672 = vld [vmem:[%s5 + $0x2c8] sm:$0xff]
  %v7673 = vld [vmem:[%s5 + $0x2d0] sm:$0xff]
  %v7674 = vld [vmem:[%s5 + $0x2d8] sm:$0xff]
  %v7675 = vld [vmem:[%s5 + $0x2e0] sm:$0xff]
  %v7676 = vld [vmem:[%s5 + $0x2e8] sm:$0xff]
  %v7677 = vld [vmem:[%s5 + $0x2f0] sm:$0xff]
  %v7678 = vld [vmem:[%s5 + $0x2f8] sm:$0xff]
  %v7679 = vld [vmem:[%s5 + $0x300] sm:$0xff]
  %v7680 = vld [vmem:[%s5 + $0x308] sm:$0xff]
  %v7681 = vld [vmem:[%s5 + $0x310] sm:$0xff]
  %v7682 = vld [vmem:[%s5 + $0x318] sm:$0xff]
  %7683 = vmatprep.subr.mxu0 0.0
  %7684 = vmatpush1.msra.mxu0 %v7265
  %7685 = vmatprep.subr.mxu0 0.0
  %7686 = vmatpush1.msra.mxu0 %v7270
  %7687 = vmatprep.subr.mxu0 0.0
  %7688 = vmatpush1.msra.mxu0 %v7275
  %7689 = vmatprep.subr.mxu0 0.0
  %7690 = vmatpush1.msra.mxu0 %v7280
  %7691 = vmatprep.subr.mxu0 0.0
  %7692 = vmatpush1.msra.mxu0 %v7285
  %7693 = vmatprep.subr.mxu0 0.0
  %7694 = vmatpush1.msra.mxu0 %v7290
  %7695 = vmatprep.subr.mxu0 0.0
  %7696 = vmatpush1.msra.mxu0 %v7295
  %7697 = vmatprep.subr.mxu0 0.0
  %7698 = vmatpush1.msra.mxu0 %v7300
  %7699 = vmatprep.subr.mxu0 0.0
  %7700 = vmatpush1.msra.mxu0 %v7305
  %7701 = vmatprep.subr.mxu0 0.0
  %7702 = vmatpush1.msra.mxu0 %v7310
  %7703 = vmatprep.subr.mxu0 0.0
  %7704 = vmatpush1.msra.mxu0 %v7315
  %7705 = vmatprep.subr.mxu0 0.0
  %7706 = vmatpush1.msra.mxu0 %v7320
  %7707 = vmatprep.subr.mxu0 0.0
  %7708 = vmatpush1.msra.mxu0 %v7325
  %7709 = vmatprep.subr.mxu0 0.0
  %7710 = vmatpush1.msra.mxu0 %v7330
  %7711 = vmatprep.subr.mxu0 0.0
  %7712 = vmatpush1.msra.mxu0 %v7335
  %7713 = vmatprep.subr.mxu0 0.0
  %7714 = vmatpush1.msra.mxu0 %v7340
  %7715 = vmatprep.subr.mxu0 0.0
  %7716 = vmatpush1.msra.mxu0 %v7345
  %7717 = vmatprep.subr.mxu0 0.0
  %7718 = vmatpush1.msra.mxu0 %v7350
  %7719 = vmatprep.subr.mxu0 0.0
  %7720 = vmatpush1.msra.mxu0 %v7355
  %7721 = vmatprep.subr.mxu0 0.0
  %7722 = vmatpush1.msra.mxu0 %v7360
  %7723 = vmatprep.subr.mxu0 0.0
  %7724 = vmatpush1.msra.mxu0 %v7365
  %7725 = vmatprep.subr.mxu0 0.0
  %7726 = vmatpush1.msra.mxu0 %v7370
  %7727 = vmatprep.subr.mxu0 0.0
  %7728 = vmatpush1.msra.mxu0 %v7375
  %7729 = vmatprep.subr.mxu0 0.0
  %7730 = vmatpush1.msra.mxu0 %v7380
  %7731 = vmatprep.subr.mxu0 0.0
  %7732 = vmatpush1.msra.mxu0 %v7385
  %7733 = vmatprep.subr.mxu0 0.0
  %7734 = vmatpush1.msra.mxu0 %v7390
  %7735 = vmatprep.subr.mxu0 0.0
  %7736 = vmatpush1.msra.mxu0 %v7395
  %7737 = vmatprep.subr.mxu0 0.0
  %7738 = vmatpush1.msra.mxu0 %v7400
  %7739 = vmatprep.subr.mxu0 0.0
  %7740 = vmatpush1.msra.mxu0 %v7405
  %7741 = vmatprep.subr.mxu0 0.0
  %7742 = vmatpush1.msra.mxu0 %v7410
  %7743 = vmatprep.subr.mxu0 0.0
  %7744 = vmatpush1.msra.mxu0 %v7415
  %7745 = vmatprep.subr.mxu0 0.0
  %7746 = vmatpush1.msra.mxu0 %v7420
  %7747 = vmatprep.mubr.f32.mxu0 %v7584
  %7748 = vmatmul.mubr.f32.gmra.mrb[0].mxu0 %v7583
  %v7749 = vpop.f32.mrb[0].mxu0
  %v7750 = vadd.f32 0.0, %v7749
  %v7751 = vpop.f32.mrb[0].mxu0
  %7752 = vmatprep.mubr.f32.mxu0 %v7588
  %7753 = vmatmul.mubr.f32.gmra.mrb[0].mxu0 %v7587
  %v7754 = vpop.f32.mrb[0].mxu0
  %v7755 = vadd.f32 0.0, %v7754
  %v7756 = vpop.f32.mrb[0].mxu0
  %7757 = vmatprep.mubr.f32.mxu0 %v7592
  %7758 = vmatmul.mubr.f32.gmra.mrb[0].mxu0 %v7591
  %v7759 = vpop.f32.mrb[0].mxu0
  %v7760 = vadd.f32 0.0, %v7759
  %v7761 = vpop.f32.mrb[0].mxu0
  %7762 = vmatprep.mubr.f32.mxu0 %v7596
  %7763 = vmatmul.mubr.f32.gmra.mrb[0].mxu0 %v7595
  %v7764 = vpop.f32.mrb[0].mxu0
  %v7765 = vadd.f32 0.0, %v7764
  %v7766 = vpop.f32.mrb[0].mxu0
  %7767 = vmatprep.mubr.f32.mxu0 %v7600
  %7768 = vmatmul.mubr.f32.gmra.mrb[0].mxu0 %v7599
  %v7769 = vpop.f32.mrb[0].mxu0
  %v7770 = vadd.f32 0.0, %v7769
  %v7771 = vpop.f32.mrb[0].mxu0
  %7772 = vmatprep.mubr.f32.mxu0 %v7604
  %7773 = vmatmul.mubr.f32.gmra.mrb[0].mxu0 %v7603
  %v7774 = vpop.f32.mrb[0].mxu0
  %v7775 = vadd.f32 0.0, %v7774
  %v7776 = vpop.f32.mrb[0].mxu0
  %7777 = vmatprep.mubr.f32.mxu0 %v7608
  %7778 = vmatmul.mubr.f32.gmra.mrb[0].mxu0 %v7607
  %v7779 = vpop.f32.mrb[0].mxu0
  %v7780 = vadd.f32 0.0, %v7779
  %v7781 = vpop.f32.mrb[0].mxu0
  %7782 = vmatprep.mubr.f32.mxu0 %v7612
  %7783 = vmatmul.mubr.f32.gmra.mrb[0].mxu0 %v7611
  %v7784 = vpop.f32.mrb[0].mxu0
  %v7785 = vadd.f32 0.0, %v7784
  %v7786 = vpop.f32.mrb[0].mxu0
  %7787 = vmatprep.mubr.f32.mxu0 %v7616
  %7788 = vmatmul.mubr.f32.gmra.mrb[0].mxu0 %v7615
  %v7789 = vpop.f32.mrb[0].mxu0
  %v7790 = vadd.f32 0.0, %v7789
  %v7791 = vpop.f32.mrb[0].mxu0
  %7792 = vmatprep.mubr.f32.mxu0 %v7620
  %7793 = vmatmul.mubr.f32.gmra.mrb[0].mxu0 %v7619
  %v7794 = vpop.f32.mrb[0].mxu0
  %v7795 = vadd.f32 0.0, %v7794
  %v7796 = vpop.f32.mrb[0].mxu0
  %7797 = vmatprep.mubr.f32.mxu0 %v7624
  %7798 = vmatmul.mubr.f32.gmra.mrb[0].mxu0 %v7623
  %v7799 = vpop.f32.mrb[0].mxu0
  %v7800 = vadd.f32 0.0, %v7799
  %v7801 = vpop.f32.mrb[0].mxu0
  %7802 = vmatprep.mubr.f32.mxu0 %v7628
  %7803 = vmatmul.mubr.f32.gmra.mrb[0].mxu0 %v7627
  %v7804 = vpop.f32.mrb[0].mxu0
  %v7805 = vadd.f32 0.0, %v7804
  %v7806 = vpop.f32.mrb[0].mxu0
  %7807 = vmatprep.mubr.f32.mxu0 %v7632
  %7808 = vmatmul.mubr.f32.gmra.mrb[0].mxu0 %v7631
  %v7809 = vpop.f32.mrb[0].mxu0
  %v7810 = vadd.f32 0.0, %v7809
  %v7811 = vpop.f32.mrb[0].mxu0
  %7812 = vmatprep.mubr.f32.mxu0 %v7636
  %7813 = vmatmul.mubr.f32.gmra.mrb[0].mxu0 %v7635
  %v7814 = vpop.f32.mrb[0].mxu0
  %v7815 = vadd.f32 0.0, %v7814
  %v7816 = vpop.f32.mrb[0].mxu0
  %7817 = vmatprep.mubr.f32.mxu0 %v7640
  %7818 = vmatmul.mubr.f32.gmra.mrb[0].mxu0 %v7639
  %v7819 = vpop.f32.mrb[0].mxu0
  %v7820 = vadd.f32 0.0, %v7819
  %v7821 = vpop.f32.mrb[0].mxu0
  %7822 = vmatprep.mubr.f32.mxu0 %v7644
  %7823 = vmatmul.mubr.f32.gmra.mrb[0].mxu0 %v7643
  %v7824 = vpop.f32.mrb[0].mxu0
  %v7825 = vadd.f32 0.0, %v7824
  %v7826 = vpop.f32.mrb[0].mxu0
  %7827 = vmatprep.mubr.f32.mxu0 %v7648
  %7828 = vmatmul.mubr.f32.gmra.mrb[0].mxu0 %v7647
  %v7829 = vpop.f32.mrb[0].mxu0
  %v7830 = vadd.f32 0.0, %v7829
  %v7831 = vpop.f32.mrb[0].mxu0
  %7832 = vmatprep.mubr.f32.mxu0 %v7652
  %7833 = vmatmul.mubr.f32.gmra.mrb[0].mxu0 %v7651
  %v7834 = vpop.f32.mrb[0].mxu0
  %v7835 = vadd.f32 0.0, %v7834
  %v7836 = vpop.f32.mrb[0].mxu0
  %7837 = vmatprep.mubr.f32.mxu0 %v7656
  %7838 = vmatmul.mubr.f32.gmra.mrb[0].mxu0 %v7655
  %v7839 = vpop.f32.mrb[0].mxu0
  %v7840 = vadd.f32 0.0, %v7839
  %v7841 = vpop.f32.mrb[0].mxu0
  %7842 = vmatprep.mubr.f32.mxu0 %v7660
  %7843 = vmatmul.mubr.f32.gmra.mrb[0].mxu0 %v7659
  %v7844 = vpop.f32.mrb[0].mxu0
  %v7845 = vadd.f32 0.0, %v7844
  %v7846 = vpop.f32.mrb[0].mxu0
  %7847 = vmatprep.mubr.f32.mxu0 %v7664
  %7848 = vmatmul.mubr.f32.gmra.mrb[0].mxu0 %v7663
  %v7849 = vpop.f32.mrb[0].mxu0
  %v7850 = vadd.f32 0.0, %v7849
  %v7851 = vpop.f32.mrb[0].mxu0
  %7852 = vmatprep.mubr.f32.mxu0 %v7668
  %7853 = vmatmul.mubr.f32.gmra.mrb[0].mxu0 %v7667
  %v7854 = vpop.f32.mrb[0].mxu0
  %v7855 = vadd.f32 0.0, %v7854
  %v7856 = vpop.f32.mrb[0].mxu0
  %7857 = vmatprep.mubr.f32.mxu0 %v7672
  %7858 = vmatmul.mubr.f32.gmra.mrb[0].mxu0 %v7671
  %v7859 = vpop.f32.mrb[0].mxu0
  %v7860 = vadd.f32 0.0, %v7859
  %v7861 = vpop.f32.mrb[0].mxu0
  %7862 = vmatprep.mubr.f32.mxu0 %v7676
  %7863 = vmatmul.mubr.f32.gmra.mrb[0].mxu0 %v7675
  %v7864 = vpop.f32.mrb[0].mxu0
  %v7865 = vadd.f32 0.0, %v7864
  %v7866 = vpop.f32.mrb[0].mxu0
  %7867 = vmatprep.mubr.f32.mxu0 %v7680
  %7868 = vmatmul.mubr.f32.gmra.mrb[0].mxu0 %v7679
  %v7869 = vpop.f32.mrb[0].mxu0
  %v7870 = vadd.f32 0.0, %v7869
  %v7871 = vpop.f32.mrb[0].mxu0
  %7872 = vdwg.mxu0
  %7873 = vmatprep.subr.mxu0 0.0
  %7874 = vmatpush1.msra.mxu0 %v7425
  %7875 = vmatprep.subr.mxu0 0.0
  %7876 = vmatpush1.msra.mxu0 %v7430
  %7877 = vmatprep.subr.mxu0 0.0
  %7878 = vmatpush1.msra.mxu0 %v7435
  %7879 = vmatprep.subr.mxu0 0.0
  %7880 = vmatpush1.msra.mxu0 %v7440
  %7881 = vmatprep.subr.mxu0 0.0
  %7882 = vmatpush1.msra.mxu0 %v7445
  %7883 = vmatprep.subr.mxu0 0.0
  %7884 = vmatpush1.msra.mxu0 %v7450
  %7885 = vmatprep.subr.mxu0 0.0
  %7886 = vmatpush1.msra.mxu0 %v7455
  %7887 = vmatprep.subr.mxu0 0.0
  %7888 = vmatpush1.msra.mxu0 %v7460
  %7889 = vmatprep.subr.mxu0 0.0
  %7890 = vmatpush1.msra.mxu0 %v7465
  %7891 = vmatprep.subr.mxu0 0.0
  %7892 = vmatpush1.msra.mxu0 %v7470
  %7893 = vmatprep.subr.mxu0 0.0
  %7894 = vmatpush1.msra.mxu0 %v7475
  %7895 = vmatprep.subr.mxu0 0.0
  %7896 = vmatpush1.msra.mxu0 %v7480
  %7897 = vmatprep.subr.mxu0 0.0
  %7898 = vmatpush1.msra.mxu0 %v7485
  %7899 = vmatprep.subr.mxu0 0.0
  %7900 = vmatpush1.msra.mxu0 %v7490
  %7901 = vmatprep.subr.mxu0 0.0
  %7902 = vmatpush1.msra.mxu0 %v7495
  %7903 = vmatprep.subr.mxu0 0.0
  %7904 = vmatpush1.msra.mxu0 %v7500
  %7905 = vmatprep.subr.mxu0 0.0
  %7906 = vmatpush1.msra.mxu0 %v7505
  %7907 = vmatprep.subr.mxu0 0.0
  %7908 = vmatpush1.msra.mxu0 %v7510
  %7909 = vmatprep.subr.mxu0 0.0
  %7910 = vmatpush1.msra.mxu0 %v7515
  %7911 = vmatprep.subr.mxu0 0.0
  %7912 = vmatpush1.msra.mxu0 %v7520
  %7913 = vmatprep.subr.mxu0 0.0
  %7914 = vmatpush1.msra.mxu0 %v7525
  %7915 = vmatprep.subr.mxu0 0.0
  %7916 = vmatpush1.msra.mxu0 %v7530
  %7917 = vmatprep.subr.mxu0 0.0
  %7918 = vmatpush1.msra.mxu0 %v7535
  %7919 = vmatprep.subr.mxu0 0.0
  %7920 = vmatpush1.msra.mxu0 %v7540
  %7921 = vmatprep.subr.mxu0 0.0
  %7922 = vmatpush1.msra.mxu0 %v7545
  %7923 = vmatprep.subr.mxu0 0.0
  %7924 = vmatpush1.msra.mxu0 %v7550
  %7925 = vmatprep.subr.mxu0 0.0
  %7926 = vmatpush1.msra.mxu0 %v7555
  %7927 = vmatprep.subr.mxu0 0.0
  %7928 = vmatpush1.msra.mxu0 %v7560
  %7929 = vmatprep.subr.mxu0 0.0
  %7930 = vmatpush1.msra.mxu0 %v7565
  %7931 = vmatprep.subr.mxu0 0.0
  %7932 = vmatpush1.msra.mxu0 %v7570
  %7933 = vmatprep.subr.mxu0 0.0
  %7934 = vmatpush1.msra.mxu0 %v7575
  %7935 = vmatprep.subr.mxu0 0.0
  %7936 = vmatpush1.msra.mxu0 %v7580
  %7937 = vmatprep.mubr.f32.mxu0 %v7586
  %7938 = vmatmul.mubr.f32.gmra.mrb[0].mxu0 %v7585
  %v7939 = vpop.f32.mrb[0].mxu0
  %v7940 = vadd.f32 %v7750, %v7939
  %v7941 = vpop.f32.mrb[0].mxu0
  %7942 = vmatprep.mubr.f32.mxu0 %v7590
  %7943 = vmatmul.mubr.f32.gmra.mrb[0].mxu0 %v7589
  %v7944 = vpop.f32.mrb[0].mxu0
  %v7945 = vadd.f32 %v7755, %v7944
  %v7946 = vpop.f32.mrb[0].mxu0
  %7947 = vmatprep.mubr.f32.mxu0 %v7594
  %7948 = vmatmul.mubr.f32.gmra.mrb[0].mxu0 %v7593
  %v7949 = vpop.f32.mrb[0].mxu0
  %v7950 = vadd.f32 %v7760, %v7949
  %v7951 = vpop.f32.mrb[0].mxu0
  %7952 = vmatprep.mubr.f32.mxu0 %v7598
  %7953 = vmatmul.mubr.f32.gmra.mrb[0].mxu0 %v7597
  %v7954 = vpop.f32.mrb[0].mxu0
  %v7955 = vadd.f32 %v7765, %v7954
  %v7956 = vpop.f32.mrb[0].mxu0
  %7957 = vmatprep.mubr.f32.mxu0 %v7602
  %7958 = vmatmul.mubr.f32.gmra.mrb[0].mxu0 %v7601
  %v7959 = vpop.f32.mrb[0].mxu0
  %v7960 = vadd.f32 %v7770, %v7959
  %v7961 = vpop.f32.mrb[0].mxu0
  %7962 = vmatprep.mubr.f32.mxu0 %v7606
  %7963 = vmatmul.mubr.f32.gmra.mrb[0].mxu0 %v7605
  %v7964 = vpop.f32.mrb[0].mxu0
  %v7965 = vadd.f32 %v7775, %v7964
  %v7966 = vpop.f32.mrb[0].mxu0
  %7967 = vmatprep.mubr.f32.mxu0 %v7610
  %7968 = vmatmul.mubr.f32.gmra.mrb[0].mxu0 %v7609
  %v7969 = vpop.f32.mrb[0].mxu0
  %v7970 = vadd.f32 %v7780, %v7969
  %v7971 = vpop.f32.mrb[0].mxu0
  %7972 = vmatprep.mubr.f32.mxu0 %v7614
  %7973 = vmatmul.mubr.f32.gmra.mrb[0].mxu0 %v7613
  %v7974 = vpop.f32.mrb[0].mxu0
  %v7975 = vadd.f32 %v7785, %v7974
  %v7976 = vpop.f32.mrb[0].mxu0
  %7977 = vmatprep.mubr.f32.mxu0 %v7618
  %7978 = vmatmul.mubr.f32.gmra.mrb[0].mxu0 %v7617
  %v7979 = vpop.f32.mrb[0].mxu0
  %v7980 = vadd.f32 %v7790, %v7979
  %v7981 = vpop.f32.mrb[0].mxu0
  %7982 = vmatprep.mubr.f32.mxu0 %v7622
  %7983 = vmatmul.mubr.f32.gmra.mrb[0].mxu0 %v7621
  %v7984 = vpop.f32.mrb[0].mxu0
  %v7985 = vadd.f32 %v7795, %v7984
  %v7986 = vpop.f32.mrb[0].mxu0
  %7987 = vmatprep.mubr.f32.mxu0 %v7626
  %7988 = vmatmul.mubr.f32.gmra.mrb[0].mxu0 %v7625
  %v7989 = vpop.f32.mrb[0].mxu0
  %v7990 = vadd.f32 %v7800, %v7989
  %v7991 = vpop.f32.mrb[0].mxu0
  %7992 = vmatprep.mubr.f32.mxu0 %v7630
  %7993 = vmatmul.mubr.f32.gmra.mrb[0].mxu0 %v7629
  %v7994 = vpop.f32.mrb[0].mxu0
  %v7995 = vadd.f32 %v7805, %v7994
  %v7996 = vpop.f32.mrb[0].mxu0
  %7997 = vmatprep.mubr.f32.mxu0 %v7634
  %7998 = vmatmul.mubr.f32.gmra.mrb[0].mxu0 %v7633
  %v7999 = vpop.f32.mrb[0].mxu0
  %v8000 = vadd.f32 %v7810, %v7999
  %v8001 = vpop.f32.mrb[0].mxu0
  %8002 = vmatprep.mubr.f32.mxu0 %v7638
  %8003 = vmatmul.mubr.f32.gmra.mrb[0].mxu0 %v7637
  %v8004 = vpop.f32.mrb[0].mxu0
  %v8005 = vadd.f32 %v7815, %v8004
  %v8006 = vpop.f32.mrb[0].mxu0
  %8007 = vmatprep.mubr.f32.mxu0 %v7642
  %8008 = vmatmul.mubr.f32.gmra.mrb[0].mxu0 %v7641
  %v8009 = vpop.f32.mrb[0].mxu0
  %v8010 = vadd.f32 %v7820, %v8009
  %v8011 = vpop.f32.mrb[0].mxu0
  %8012 = vmatprep.mubr.f32.mxu0 %v7646
  %8013 = vmatmul.mubr.f32.gmra.mrb[0].mxu0 %v7645
  %v8014 = vpop.f32.mrb[0].mxu0
  %v8015 = vadd.f32 %v7825, %v8014
  %v8016 = vpop.f32.mrb[0].mxu0
  %8017 = vmatprep.mubr.f32.mxu0 %v7650
  %8018 = vmatmul.mubr.f32.gmra.mrb[0].mxu0 %v7649
  %v8019 = vpop.f32.mrb[0].mxu0
  %v8020 = vadd.f32 %v7830, %v8019
  %v8021 = vpop.f32.mrb[0].mxu0
  %8022 = vmatprep.mubr.f32.mxu0 %v7654
  %8023 = vmatmul.mubr.f32.gmra.mrb[0].mxu0 %v7653
  %v8024 = vpop.f32.mrb[0].mxu0
  %v8025 = vadd.f32 %v7835, %v8024
  %v8026 = vpop.f32.mrb[0].mxu0
  %8027 = vmatprep.mubr.f32.mxu0 %v7658
  %8028 = vmatmul.mubr.f32.gmra.mrb[0].mxu0 %v7657
  %v8029 = vpop.f32.mrb[0].mxu0
  %v8030 = vadd.f32 %v7840, %v8029
  %v8031 = vpop.f32.mrb[0].mxu0
  %8032 = vmatprep.mubr.f32.mxu0 %v7662
  %8033 = vmatmul.mubr.f32.gmra.mrb[0].mxu0 %v7661
  %v8034 = vpop.f32.mrb[0].mxu0
  %v8035 = vadd.f32 %v7845, %v8034
  %v8036 = vpop.f32.mrb[0].mxu0
  %8037 = vmatprep.mubr.f32.mxu0 %v7666
  %8038 = vmatmul.mubr.f32.gmra.mrb[0].mxu0 %v7665
  %v8039 = vpop.f32.mrb[0].mxu0
  %v8040 = vadd.f32 %v7850, %v8039
  %v8041 = vpop.f32.mrb[0].mxu0
  %8042 = vmatprep.mubr.f32.mxu0 %v7670
  %8043 = vmatmul.mubr.f32.gmra.mrb[0].mxu0 %v7669
  %v8044 = vpop.f32.mrb[0].mxu0
  %v8045 = vadd.f32 %v7855, %v8044
  %v8046 = vpop.f32.mrb[0].mxu0
  %8047 = vmatprep.mubr.f32.mxu0 %v7674
  %8048 = vmatmul.mubr.f32.gmra.mrb[0].mxu0 %v7673
  %v8049 = vpop.f32.mrb[0].mxu0
  %v8050 = vadd.f32 %v7860, %v8049
  %v8051 = vpop.f32.mrb[0].mxu0
  %8052 = vmatprep.mubr.f32.mxu0 %v7678
  %8053 = vmatmul.mubr.f32.gmra.mrb[0].mxu0 %v7677
  %v8054 = vpop.f32.mrb[0].mxu0
  %v8055 = vadd.f32 %v7865, %v8054
  %v8056 = vpop.f32.mrb[0].mxu0
  %8057 = vmatprep.mubr.f32.mxu0 %v7682
  %8058 = vmatmul.mubr.f32.gmra.mrb[0].mxu0 %v7681
  %v8059 = vpop.f32.mrb[0].mxu0
  %v8060 = vadd.f32 %v7870, %v8059
  %v8061 = vpop.f32.mrb[0].mxu0
  %8062 = vdwg.mxu0
  %s8063 = scalar_lea.vmem %s5, 800
  %v8064 = vld [vmem:[%s8063] sm:$0xff]
  %v8065 = vld [vmem:[%s8063 + $0x8] sm:$0xff]
  %v8066 = vld [vmem:[%s8063 + $0x10] sm:$0xff]
  %v8067 = vld [vmem:[%s8063 + $0x18] sm:$0xff]
  %v8068 = vld [vmem:[%s8063 + $0x20] sm:$0xff]
  %v8069 = vld [vmem:[%s8063 + $0x28] sm:$0xff]
  %v8070 = vld [vmem:[%s8063 + $0x30] sm:$0xff]
  %v8071 = vld [vmem:[%s8063 + $0x38] sm:$0xff]
  %v8072 = vld [vmem:[%s8063 + $0x40] sm:$0xff]
  %v8073 = vld [vmem:[%s8063 + $0x48] sm:$0xff]
  %v8074 = vld [vmem:[%s8063 + $0x50] sm:$0xff]
  %v8075 = vld [vmem:[%s8063 + $0x58] sm:$0xff]
  %v8076 = vld [vmem:[%s8063 + $0x60] sm:$0xff]
  %v8077 = vld [vmem:[%s8063 + $0x68] sm:$0xff]
  %v8078 = vld [vmem:[%s8063 + $0x70] sm:$0xff]
  %v8079 = vld [vmem:[%s8063 + $0x78] sm:$0xff]
  %v8080 = vld [vmem:[%s8063 + $0x80] sm:$0xff]
  %v8081 = vld [vmem:[%s8063 + $0x88] sm:$0xff]
  %v8082 = vld [vmem:[%s8063 + $0x90] sm:$0xff]
  %v8083 = vld [vmem:[%s8063 + $0x98] sm:$0xff]
  %v8084 = vld [vmem:[%s8063 + $0xa0] sm:$0xff]
  %v8085 = vld [vmem:[%s8063 + $0xa8] sm:$0xff]
  %v8086 = vld [vmem:[%s8063 + $0xb0] sm:$0xff]
  %v8087 = vld [vmem:[%s8063 + $0xb8] sm:$0xff]
  %v8088 = vld [vmem:[%s8063 + $0xc0] sm:$0xff]
  %v8089 = vld [vmem:[%s8063 + $0xc8] sm:$0xff]
  %v8090 = vld [vmem:[%s8063 + $0xd0] sm:$0xff]
  %v8091 = vld [vmem:[%s8063 + $0xd8] sm:$0xff]
  %v8092 = vld [vmem:[%s8063 + $0xe0] sm:$0xff]
  %v8093 = vld [vmem:[%s8063 + $0xe8] sm:$0xff]
  %v8094 = vld [vmem:[%s8063 + $0xf0] sm:$0xff]
  %v8095 = vld [vmem:[%s8063 + $0xf8] sm:$0xff]
  %v8096 = vld [vmem:[%s8063 + $0x100] sm:$0xff]
  %v8097 = vld [vmem:[%s8063 + $0x108] sm:$0xff]
  %v8098 = vld [vmem:[%s8063 + $0x110] sm:$0xff]
  %v8099 = vld [vmem:[%s8063 + $0x118] sm:$0xff]
  %v8100 = vld [vmem:[%s8063 + $0x120] sm:$0xff]
  %v8101 = vld [vmem:[%s8063 + $0x128] sm:$0xff]
  %v8102 = vld [vmem:[%s8063 + $0x130] sm:$0xff]
  %v8103 = vld [vmem:[%s8063 + $0x138] sm:$0xff]
  %v8104 = vld [vmem:[%s8063 + $0x140] sm:$0xff]
  %v8105 = vld [vmem:[%s8063 + $0x148] sm:$0xff]
  %v8106 = vld [vmem:[%s8063 + $0x150] sm:$0xff]
  %v8107 = vld [vmem:[%s8063 + $0x158] sm:$0xff]
  %v8108 = vld [vmem:[%s8063 + $0x160] sm:$0xff]
  %v8109 = vld [vmem:[%s8063 + $0x168] sm:$0xff]
  %v8110 = vld [vmem:[%s8063 + $0x170] sm:$0xff]
  %v8111 = vld [vmem:[%s8063 + $0x178] sm:$0xff]
  %v8112 = vld [vmem:[%s8063 + $0x180] sm:$0xff]
  %v8113 = vld [vmem:[%s8063 + $0x188] sm:$0xff]
  %v8114 = vld [vmem:[%s8063 + $0x190] sm:$0xff]
  %v8115 = vld [vmem:[%s8063 + $0x198] sm:$0xff]
  %v8116 = vld [vmem:[%s8063 + $0x1a0] sm:$0xff]
  %v8117 = vld [vmem:[%s8063 + $0x1a8] sm:$0xff]
  %v8118 = vld [vmem:[%s8063 + $0x1b0] sm:$0xff]
  %v8119 = vld [vmem:[%s8063 + $0x1b8] sm:$0xff]
  %v8120 = vld [vmem:[%s8063 + $0x1c0] sm:$0xff]
  %v8121 = vld [vmem:[%s8063 + $0x1c8] sm:$0xff]
  %v8122 = vld [vmem:[%s8063 + $0x1d0] sm:$0xff]
  %v8123 = vld [vmem:[%s8063 + $0x1d8] sm:$0xff]
  %v8124 = vld [vmem:[%s8063 + $0x1e0] sm:$0xff]
  %v8125 = vld [vmem:[%s8063 + $0x1e8] sm:$0xff]
  %v8126 = vld [vmem:[%s8063 + $0x1f0] sm:$0xff]
  %v8127 = vld [vmem:[%s8063 + $0x1f8] sm:$0xff]
  %v8128 = vld [vmem:[%s8063 + $0x200] sm:$0xff]
  %v8129 = vld [vmem:[%s8063 + $0x208] sm:$0xff]
  %v8130 = vld [vmem:[%s8063 + $0x210] sm:$0xff]
  %v8131 = vld [vmem:[%s8063 + $0x218] sm:$0xff]
  %v8132 = vld [vmem:[%s8063 + $0x220] sm:$0xff]
  %v8133 = vld [vmem:[%s8063 + $0x228] sm:$0xff]
  %v8134 = vld [vmem:[%s8063 + $0x230] sm:$0xff]
  %v8135 = vld [vmem:[%s8063 + $0x238] sm:$0xff]
  %v8136 = vld [vmem:[%s8063 + $0x240] sm:$0xff]
  %v8137 = vld [vmem:[%s8063 + $0x248] sm:$0xff]
  %v8138 = vld [vmem:[%s8063 + $0x250] sm:$0xff]
  %v8139 = vld [vmem:[%s8063 + $0x258] sm:$0xff]
  %v8140 = vld [vmem:[%s8063 + $0x260] sm:$0xff]
  %v8141 = vld [vmem:[%s8063 + $0x268] sm:$0xff]
  %v8142 = vld [vmem:[%s8063 + $0x270] sm:$0xff]
  %v8143 = vld [vmem:[%s8063 + $0x278] sm:$0xff]
  %v8144 = vld [vmem:[%s8063 + $0x280] sm:$0xff]
  %v8145 = vld [vmem:[%s8063 + $0x288] sm:$0xff]
  %v8146 = vld [vmem:[%s8063 + $0x290] sm:$0xff]
  %v8147 = vld [vmem:[%s8063 + $0x298] sm:$0xff]
  %v8148 = vld [vmem:[%s8063 + $0x2a0] sm:$0xff]
  %v8149 = vld [vmem:[%s8063 + $0x2a8] sm:$0xff]
  %v8150 = vld [vmem:[%s8063 + $0x2b0] sm:$0xff]
  %v8151 = vld [vmem:[%s8063 + $0x2b8] sm:$0xff]
  %v8152 = vld [vmem:[%s8063 + $0x2c0] sm:$0xff]
  %v8153 = vld [vmem:[%s8063 + $0x2c8] sm:$0xff]
  %v8154 = vld [vmem:[%s8063 + $0x2d0] sm:$0xff]
  %v8155 = vld [vmem:[%s8063 + $0x2d8] sm:$0xff]
  %v8156 = vld [vmem:[%s8063 + $0x2e0] sm:$0xff]
  %v8157 = vld [vmem:[%s8063 + $0x2e8] sm:$0xff]
  %v8158 = vld [vmem:[%s8063 + $0x2f0] sm:$0xff]
  %v8159 = vld [vmem:[%s8063 + $0x2f8] sm:$0xff]
  %v8160 = vld [vmem:[%s8063 + $0x300] sm:$0xff]
  %v8161 = vld [vmem:[%s8063 + $0x308] sm:$0xff]
  %v8162 = vld [vmem:[%s8063 + $0x310] sm:$0xff]
  %v8163 = vld [vmem:[%s8063 + $0x318] sm:$0xff]
  %8164 = vmatprep.subr.mxu0 0.0
  %8165 = vmatpush1.msra.mxu0 %v7265
  %8166 = vmatprep.subr.mxu0 0.0
  %8167 = vmatpush1.msra.mxu0 %v7270
  %8168 = vmatprep.subr.mxu0 0.0
  %8169 = vmatpush1.msra.mxu0 %v7275
  %8170 = vmatprep.subr.mxu0 0.0
  %8171 = vmatpush1.msra.mxu0 %v7280
  %8172 = vmatprep.subr.mxu0 0.0
  %8173 = vmatpush1.msra.mxu0 %v7285
  %8174 = vmatprep.subr.mxu0 0.0
  %8175 = vmatpush1.msra.mxu0 %v7290
  %8176 = vmatprep.subr.mxu0 0.0
  %8177 = vmatpush1.msra.mxu0 %v7295
  %8178 = vmatprep.subr.mxu0 0.0
  %8179 = vmatpush1.msra.mxu0 %v7300
  %8180 = vmatprep.subr.mxu0 0.0
  %8181 = vmatpush1.msra.mxu0 %v7305
  %8182 = vmatprep.subr.mxu0 0.0
  %8183 = vmatpush1.msra.mxu0 %v7310
  %8184 = vmatprep.subr.mxu0 0.0
  %8185 = vmatpush1.msra.mxu0 %v7315
  %8186 = vmatprep.subr.mxu0 0.0
  %8187 = vmatpush1.msra.mxu0 %v7320
  %8188 = vmatprep.subr.mxu0 0.0
  %8189 = vmatpush1.msra.mxu0 %v7325
  %8190 = vmatprep.subr.mxu0 0.0
  %8191 = vmatpush1.msra.mxu0 %v7330
  %8192 = vmatprep.subr.mxu0 0.0
  %8193 = vmatpush1.msra.mxu0 %v7335
  %8194 = vmatprep.subr.mxu0 0.0
  %8195 = vmatpush1.msra.mxu0 %v7340
  %8196 = vmatprep.subr.mxu0 0.0
  %8197 = vmatpush1.msra.mxu0 %v7345
  %8198 = vmatprep.subr.mxu0 0.0
  %8199 = vmatpush1.msra.mxu0 %v7350
  %8200 = vmatprep.subr.mxu0 0.0
  %8201 = vmatpush1.msra.mxu0 %v7355
  %8202 = vmatprep.subr.mxu0 0.0
  %8203 = vmatpush1.msra.mxu0 %v7360
  %8204 = vmatprep.subr.mxu0 0.0
  %8205 = vmatpush1.msra.mxu0 %v7365
  %8206 = vmatprep.subr.mxu0 0.0
  %8207 = vmatpush1.msra.mxu0 %v7370
  %8208 = vmatprep.subr.mxu0 0.0
  %8209 = vmatpush1.msra.mxu0 %v7375
  %8210 = vmatprep.subr.mxu0 0.0
  %8211 = vmatpush1.msra.mxu0 %v7380
  %8212 = vmatprep.subr.mxu0 0.0
  %8213 = vmatpush1.msra.mxu0 %v7385
  %8214 = vmatprep.subr.mxu0 0.0
  %8215 = vmatpush1.msra.mxu0 %v7390
  %8216 = vmatprep.subr.mxu0 0.0
  %8217 = vmatpush1.msra.mxu0 %v7395
  %8218 = vmatprep.subr.mxu0 0.0
  %8219 = vmatpush1.msra.mxu0 %v7400
  %8220 = vmatprep.subr.mxu0 0.0
  %8221 = vmatpush1.msra.mxu0 %v7405
  %8222 = vmatprep.subr.mxu0 0.0
  %8223 = vmatpush1.msra.mxu0 %v7410
  %8224 = vmatprep.subr.mxu0 0.0
  %8225 = vmatpush1.msra.mxu0 %v7415
  %8226 = vmatprep.subr.mxu0 0.0
  %8227 = vmatpush1.msra.mxu0 %v7420
  %8228 = vmatprep.mubr.f32.mxu0 %v8065
  %8229 = vmatmul.mubr.f32.gmra.mrb[0].mxu0 %v8064
  %v8230 = vpop.f32.mrb[0].mxu0
  %v8231 = vadd.f32 0.0, %v8230
  %v8232 = vpop.f32.mrb[0].mxu0
  %8233 = vmatprep.mubr.f32.mxu0 %v8069
  %8234 = vmatmul.mubr.f32.gmra.mrb[0].mxu0 %v8068
  %v8235 = vpop.f32.mrb[0].mxu0
  %v8236 = vadd.f32 0.0, %v8235
  %v8237 = vpop.f32.mrb[0].mxu0
  %8238 = vmatprep.mubr.f32.mxu0 %v8073
  %8239 = vmatmul.mubr.f32.gmra.mrb[0].mxu0 %v8072
  %v8240 = vpop.f32.mrb[0].mxu0
  %v8241 = vadd.f32 0.0, %v8240
  %v8242 = vpop.f32.mrb[0].mxu0
  %8243 = vmatprep.mubr.f32.mxu0 %v8077
  %8244 = vmatmul.mubr.f32.gmra.mrb[0].mxu0 %v8076
  %v8245 = vpop.f32.mrb[0].mxu0
  %v8246 = vadd.f32 0.0, %v8245
  %v8247 = vpop.f32.mrb[0].mxu0
  %8248 = vmatprep.mubr.f32.mxu0 %v8081
  %8249 = vmatmul.mubr.f32.gmra.mrb[0].mxu0 %v8080
  %v8250 = vpop.f32.mrb[0].mxu0
  %v8251 = vadd.f32 0.0, %v8250
  %v8252 = vpop.f32.mrb[0].mxu0
  %8253 = vmatprep.mubr.f32.mxu0 %v8085
  %8254 = vmatmul.mubr.f32.gmra.mrb[0].mxu0 %v8084
  %v8255 = vpop.f32.mrb[0].mxu0
  %v8256 = vadd.f32 0.0, %v8255
  %v8257 = vpop.f32.mrb[0].mxu0
  %8258 = vmatprep.mubr.f32.mxu0 %v8089
  %8259 = vmatmul.mubr.f32.gmra.mrb[0].mxu0 %v8088
  %v8260 = vpop.f32.mrb[0].mxu0
  %v8261 = vadd.f32 0.0, %v8260
  %v8262 = vpop.f32.mrb[0].mxu0
  %8263 = vmatprep.mubr.f32.mxu0 %v8093
  %8264 = vmatmul.mubr.f32.gmra.mrb[0].mxu0 %v8092
  %v8265 = vpop.f32.mrb[0].mxu0
  %v8266 = vadd.f32 0.0, %v8265
  %v8267 = vpop.f32.mrb[0].mxu0
  %8268 = vmatprep.mubr.f32.mxu0 %v8097
  %8269 = vmatmul.mubr.f32.gmra.mrb[0].mxu0 %v8096
  %v8270 = vpop.f32.mrb[0].mxu0
  %v8271 = vadd.f32 0.0, %v8270
  %v8272 = vpop.f32.mrb[0].mxu0
  %8273 = vmatprep.mubr.f32.mxu0 %v8101
  %8274 = vmatmul.mubr.f32.gmra.mrb[0].mxu0 %v8100
  %v8275 = vpop.f32.mrb[0].mxu0
  %v8276 = vadd.f32 0.0, %v8275
  %v8277 = vpop.f32.mrb[0].mxu0
  %8278 = vmatprep.mubr.f32.mxu0 %v8105
  %8279 = vmatmul.mubr.f32.gmra.mrb[0].mxu0 %v8104
  %v8280 = vpop.f32.mrb[0].mxu0
  %v8281 = vadd.f32 0.0, %v8280
  %v8282 = vpop.f32.mrb[0].mxu0
  %8283 = vmatprep.mubr.f32.mxu0 %v8109
  %8284 = vmatmul.mubr.f32.gmra.mrb[0].mxu0 %v8108
  %v8285 = vpop.f32.mrb[0].mxu0
  %v8286 = vadd.f32 0.0, %v8285
  %v8287 = vpop.f32.mrb[0].mxu0
  %8288 = vmatprep.mubr.f32.mxu0 %v8113
  %8289 = vmatmul.mubr.f32.gmra.mrb[0].mxu0 %v8112
  %v8290 = vpop.f32.mrb[0].mxu0
  %v8291 = vadd.f32 0.0, %v8290
  %v8292 = vpop.f32.mrb[0].mxu0
  %8293 = vmatprep.mubr.f32.mxu0 %v8117
  %8294 = vmatmul.mubr.f32.gmra.mrb[0].mxu0 %v8116
  %v8295 = vpop.f32.mrb[0].mxu0
  %v8296 = vadd.f32 0.0, %v8295
  %v8297 = vpop.f32.mrb[0].mxu0
  %8298 = vmatprep.mubr.f32.mxu0 %v8121
  %8299 = vmatmul.mubr.f32.gmra.mrb[0].mxu0 %v8120
  %v8300 = vpop.f32.mrb[0].mxu0
  %v8301 = vadd.f32 0.0, %v8300
  %v8302 = vpop.f32.mrb[0].mxu0
  %8303 = vmatprep.mubr.f32.mxu0 %v8125
  %8304 = vmatmul.mubr.f32.gmra.mrb[0].mxu0 %v8124
  %v8305 = vpop.f32.mrb[0].mxu0
  %v8306 = vadd.f32 0.0, %v8305
  %v8307 = vpop.f32.mrb[0].mxu0
  %8308 = vmatprep.mubr.f32.mxu0 %v8129
  %8309 = vmatmul.mubr.f32.gmra.mrb[0].mxu0 %v8128
  %v8310 = vpop.f32.mrb[0].mxu0
  %v8311 = vadd.f32 0.0, %v8310
  %v8312 = vpop.f32.mrb[0].mxu0
  %8313 = vmatprep.mubr.f32.mxu0 %v8133
  %8314 = vmatmul.mubr.f32.gmra.mrb[0].mxu0 %v8132
  %v8315 = vpop.f32.mrb[0].mxu0
  %v8316 = vadd.f32 0.0, %v8315
  %v8317 = vpop.f32.mrb[0].mxu0
  %8318 = vmatprep.mubr.f32.mxu0 %v8137
  %8319 = vmatmul.mubr.f32.gmra.mrb[0].mxu0 %v8136
  %v8320 = vpop.f32.mrb[0].mxu0
  %v8321 = vadd.f32 0.0, %v8320
  %v8322 = vpop.f32.mrb[0].mxu0
  %8323 = vmatprep.mubr.f32.mxu0 %v8141
  %8324 = vmatmul.mubr.f32.gmra.mrb[0].mxu0 %v8140
  %v8325 = vpop.f32.mrb[0].mxu0
  %v8326 = vadd.f32 0.0, %v8325
  %v8327 = vpop.f32.mrb[0].mxu0
  %8328 = vmatprep.mubr.f32.mxu0 %v8145
  %8329 = vmatmul.mubr.f32.gmra.mrb[0].mxu0 %v8144
  %v8330 = vpop.f32.mrb[0].mxu0
  %v8331 = vadd.f32 0.0, %v8330
  %v8332 = vpop.f32.mrb[0].mxu0
  %8333 = vmatprep.mubr.f32.mxu0 %v8149
  %8334 = vmatmul.mubr.f32.gmra.mrb[0].mxu0 %v8148
  %v8335 = vpop.f32.mrb[0].mxu0
  %v8336 = vadd.f32 0.0, %v8335
  %v8337 = vpop.f32.mrb[0].mxu0
  %8338 = vmatprep.mubr.f32.mxu0 %v8153
  %8339 = vmatmul.mubr.f32.gmra.mrb[0].mxu0 %v8152
  %v8340 = vpop.f32.mrb[0].mxu0
  %v8341 = vadd.f32 0.0, %v8340
  %v8342 = vpop.f32.mrb[0].mxu0
  %8343 = vmatprep.mubr.f32.mxu0 %v8157
  %8344 = vmatmul.mubr.f32.gmra.mrb[0].mxu0 %v8156
  %v8345 = vpop.f32.mrb[0].mxu0
  %v8346 = vadd.f32 0.0, %v8345
  %v8347 = vpop.f32.mrb[0].mxu0
  %8348 = vmatprep.mubr.f32.mxu0 %v8161
  %8349 = vmatmul.mubr.f32.gmra.mrb[0].mxu0 %v8160
  %v8350 = vpop.f32.mrb[0].mxu0
  %v8351 = vadd.f32 0.0, %v8350
  %v8352 = vpop.f32.mrb[0].mxu0
  %8353 = vdwg.mxu0
  %8354 = vmatprep.subr.mxu0 0.0
  %8355 = vmatpush1.msra.mxu0 %v7425
  %8356 = vmatprep.subr.mxu0 0.0
  %8357 = vmatpush1.msra.mxu0 %v7430
  %8358 = vmatprep.subr.mxu0 0.0
  %8359 = vmatpush1.msra.mxu0 %v7435
  %8360 = vmatprep.subr.mxu0 0.0
  %8361 = vmatpush1.msra.mxu0 %v7440
  %8362 = vmatprep.subr.mxu0 0.0
  %8363 = vmatpush1.msra.mxu0 %v7445
  %8364 = vmatprep.subr.mxu0 0.0
  %8365 = vmatpush1.msra.mxu0 %v7450
  %8366 = vmatprep.subr.mxu0 0.0
  %8367 = vmatpush1.msra.mxu0 %v7455
  %8368 = vmatprep.subr.mxu0 0.0
  %8369 = vmatpush1.msra.mxu0 %v7460
  %8370 = vmatprep.subr.mxu0 0.0
  %8371 = vmatpush1.msra.mxu0 %v7465
  %8372 = vmatprep.subr.mxu0 0.0
  %8373 = vmatpush1.msra.mxu0 %v7470
  %8374 = vmatprep.subr.mxu0 0.0
  %8375 = vmatpush1.msra.mxu0 %v7475
  %8376 = vmatprep.subr.mxu0 0.0
  %8377 = vmatpush1.msra.mxu0 %v7480
  %8378 = vmatprep.subr.mxu0 0.0
  %8379 = vmatpush1.msra.mxu0 %v7485
  %8380 = vmatprep.subr.mxu0 0.0
  %8381 = vmatpush1.msra.mxu0 %v7490
  %8382 = vmatprep.subr.mxu0 0.0
  %8383 = vmatpush1.msra.mxu0 %v7495
  %8384 = vmatprep.subr.mxu0 0.0
  %8385 = vmatpush1.msra.mxu0 %v7500
  %8386 = vmatprep.subr.mxu0 0.0
  %8387 = vmatpush1.msra.mxu0 %v7505
  %8388 = vmatprep.subr.mxu0 0.0
  %8389 = vmatpush1.msra.mxu0 %v7510
  %8390 = vmatprep.subr.mxu0 0.0
  %8391 = vmatpush1.msra.mxu0 %v7515
  %8392 = vmatprep.subr.mxu0 0.0
  %8393 = vmatpush1.msra.mxu0 %v7520
  %8394 = vmatprep.subr.mxu0 0.0
  %8395 = vmatpush1.msra.mxu0 %v7525
  %8396 = vmatprep.subr.mxu0 0.0
  %8397 = vmatpush1.msra.mxu0 %v7530
  %8398 = vmatprep.subr.mxu0 0.0
  %8399 = vmatpush1.msra.mxu0 %v7535
  %8400 = vmatprep.subr.mxu0 0.0
  %8401 = vmatpush1.msra.mxu0 %v7540
  %8402 = vmatprep.subr.mxu0 0.0
  %8403 = vmatpush1.msra.mxu0 %v7545
  %8404 = vmatprep.subr.mxu0 0.0
  %8405 = vmatpush1.msra.mxu0 %v7550
  %8406 = vmatprep.subr.mxu0 0.0
  %8407 = vmatpush1.msra.mxu0 %v7555
  %8408 = vmatprep.subr.mxu0 0.0
  %8409 = vmatpush1.msra.mxu0 %v7560
  %8410 = vmatprep.subr.mxu0 0.0
  %8411 = vmatpush1.msra.mxu0 %v7565
  %8412 = vmatprep.subr.mxu0 0.0
  %8413 = vmatpush1.msra.mxu0 %v7570
  %8414 = vmatprep.subr.mxu0 0.0
  %8415 = vmatpush1.msra.mxu0 %v7575
  %8416 = vmatprep.subr.mxu0 0.0
  %8417 = vmatpush1.msra.mxu0 %v7580
  %8418 = vmatprep.mubr.f32.mxu0 %v8067
  %8419 = vmatmul.mubr.f32.gmra.mrb[0].mxu0 %v8066
  %v8420 = vpop.f32.mrb[0].mxu0
  %v8421 = vadd.f32 %v8231, %v8420
  %v8422 = vpop.f32.mrb[0].mxu0
  %8423 = vmatprep.mubr.f32.mxu0 %v8071
  %8424 = vmatmul.mubr.f32.gmra.mrb[0].mxu0 %v8070
  %v8425 = vpop.f32.mrb[0].mxu0
  %v8426 = vadd.f32 %v8236, %v8425
  %v8427 = vpop.f32.mrb[0].mxu0
  %8428 = vmatprep.mubr.f32.mxu0 %v8075
  %8429 = vmatmul.mubr.f32.gmra.mrb[0].mxu0 %v8074
  %v8430 = vpop.f32.mrb[0].mxu0
  %v8431 = vadd.f32 %v8241, %v8430
  %v8432 = vpop.f32.mrb[0].mxu0
  %8433 = vmatprep.mubr.f32.mxu0 %v8079
  %8434 = vmatmul.mubr.f32.gmra.mrb[0].mxu0 %v8078
  %v8435 = vpop.f32.mrb[0].mxu0
  %v8436 = vadd.f32 %v8246, %v8435
  %v8437 = vpop.f32.mrb[0].mxu0
  %8438 = vmatprep.mubr.f32.mxu0 %v8083
  %8439 = vmatmul.mubr.f32.gmra.mrb[0].mxu0 %v8082
  %v8440 = vpop.f32.mrb[0].mxu0
  %v8441 = vadd.f32 %v8251, %v8440
  %v8442 = vpop.f32.mrb[0].mxu0
  %8443 = vmatprep.mubr.f32.mxu0 %v8087
  %8444 = vmatmul.mubr.f32.gmra.mrb[0].mxu0 %v8086
  %v8445 = vpop.f32.mrb[0].mxu0
  %v8446 = vadd.f32 %v8256, %v8445
  %v8447 = vpop.f32.mrb[0].mxu0
  %8448 = vmatprep.mubr.f32.mxu0 %v8091
  %8449 = vmatmul.mubr.f32.gmra.mrb[0].mxu0 %v8090
  %v8450 = vpop.f32.mrb[0].mxu0
  %v8451 = vadd.f32 %v8261, %v8450
  %v8452 = vpop.f32.mrb[0].mxu0
  %8453 = vmatprep.mubr.f32.mxu0 %v8095
  %8454 = vmatmul.mubr.f32.gmra.mrb[0].mxu0 %v8094
  %v8455 = vpop.f32.mrb[0].mxu0
  %v8456 = vadd.f32 %v8266, %v8455
  %v8457 = vpop.f32.mrb[0].mxu0
  %8458 = vmatprep.mubr.f32.mxu0 %v8099
  %8459 = vmatmul.mubr.f32.gmra.mrb[0].mxu0 %v8098
  %v8460 = vpop.f32.mrb[0].mxu0
  %v8461 = vadd.f32 %v8271, %v8460
  %v8462 = vpop.f32.mrb[0].mxu0
  %8463 = vmatprep.mubr.f32.mxu0 %v8103
  %8464 = vmatmul.mubr.f32.gmra.mrb[0].mxu0 %v8102
  %v8465 = vpop.f32.mrb[0].mxu0
  %v8466 = vadd.f32 %v8276, %v8465
  %v8467 = vpop.f32.mrb[0].mxu0
  %8468 = vmatprep.mubr.f32.mxu0 %v8107
  %8469 = vmatmul.mubr.f32.gmra.mrb[0].mxu0 %v8106
  %v8470 = vpop.f32.mrb[0].mxu0
  %v8471 = vadd.f32 %v8281, %v8470
  %v8472 = vpop.f32.mrb[0].mxu0
  %8473 = vmatprep.mubr.f32.mxu0 %v8111
  %8474 = vmatmul.mubr.f32.gmra.mrb[0].mxu0 %v8110
  %v8475 = vpop.f32.mrb[0].mxu0
  %v8476 = vadd.f32 %v8286, %v8475
  %v8477 = vpop.f32.mrb[0].mxu0
  %8478 = vmatprep.mubr.f32.mxu0 %v8115
  %8479 = vmatmul.mubr.f32.gmra.mrb[0].mxu0 %v8114
  %v8480 = vpop.f32.mrb[0].mxu0
  %v8481 = vadd.f32 %v8291, %v8480
  %v8482 = vpop.f32.mrb[0].mxu0
  %8483 = vmatprep.mubr.f32.mxu0 %v8119
  %8484 = vmatmul.mubr.f32.gmra.mrb[0].mxu0 %v8118
  %v8485 = vpop.f32.mrb[0].mxu0
  %v8486 = vadd.f32 %v8296, %v8485
  %v8487 = vpop.f32.mrb[0].mxu0
  %8488 = vmatprep.mubr.f32.mxu0 %v8123
  %8489 = vmatmul.mubr.f32.gmra.mrb[0].mxu0 %v8122
  %v8490 = vpop.f32.mrb[0].mxu0
  %v8491 = vadd.f32 %v8301, %v8490
  %v8492 = vpop.f32.mrb[0].mxu0
  %8493 = vmatprep.mubr.f32.mxu0 %v8127
  %8494 = vmatmul.mubr.f32.gmra.mrb[0].mxu0 %v8126
  %v8495 = vpop.f32.mrb[0].mxu0
  %v8496 = vadd.f32 %v8306, %v8495
  %v8497 = vpop.f32.mrb[0].mxu0
  %8498 = vmatprep.mubr.f32.mxu0 %v8131
  %8499 = vmatmul.mubr.f32.gmra.mrb[0].mxu0 %v8130
  %v8500 = vpop.f32.mrb[0].mxu0
  %v8501 = vadd.f32 %v8311, %v8500
  %v8502 = vpop.f32.mrb[0].mxu0
  %8503 = vmatprep.mubr.f32.mxu0 %v8135
  %8504 = vmatmul.mubr.f32.gmra.mrb[0].mxu0 %v8134
  %v8505 = vpop.f32.mrb[0].mxu0
  %v8506 = vadd.f32 %v8316, %v8505
  %v8507 = vpop.f32.mrb[0].mxu0
  %8508 = vmatprep.mubr.f32.mxu0 %v8139
  %8509 = vmatmul.mubr.f32.gmra.mrb[0].mxu0 %v8138
  %v8510 = vpop.f32.mrb[0].mxu0
  %v8511 = vadd.f32 %v8321, %v8510
  %v8512 = vpop.f32.mrb[0].mxu0
  %8513 = vmatprep.mubr.f32.mxu0 %v8143
  %8514 = vmatmul.mubr.f32.gmra.mrb[0].mxu0 %v8142
  %v8515 = vpop.f32.mrb[0].mxu0
  %v8516 = vadd.f32 %v8326, %v8515
  %v8517 = vpop.f32.mrb[0].mxu0
  %8518 = vmatprep.mubr.f32.mxu0 %v8147
  %8519 = vmatmul.mubr.f32.gmra.mrb[0].mxu0 %v8146
  %v8520 = vpop.f32.mrb[0].mxu0
  %v8521 = vadd.f32 %v8331, %v8520
  %v8522 = vpop.f32.mrb[0].mxu0
  %8523 = vmatprep.mubr.f32.mxu0 %v8151
  %8524 = vmatmul.mubr.f32.gmra.mrb[0].mxu0 %v8150
  %v8525 = vpop.f32.mrb[0].mxu0
  %v8526 = vadd.f32 %v8336, %v8525
  %v8527 = vpop.f32.mrb[0].mxu0
  %8528 = vmatprep.mubr.f32.mxu0 %v8155
  %8529 = vmatmul.mubr.f32.gmra.mrb[0].mxu0 %v8154
  %v8530 = vpop.f32.mrb[0].mxu0
  %v8531 = vadd.f32 %v8341, %v8530
  %v8532 = vpop.f32.mrb[0].mxu0
  %8533 = vmatprep.mubr.f32.mxu0 %v8159
  %8534 = vmatmul.mubr.f32.gmra.mrb[0].mxu0 %v8158
  %v8535 = vpop.f32.mrb[0].mxu0
  %v8536 = vadd.f32 %v8346, %v8535
  %v8537 = vpop.f32.mrb[0].mxu0
  %8538 = vmatprep.mubr.f32.mxu0 %v8163
  %8539 = vmatmul.mubr.f32.gmra.mrb[0].mxu0 %v8162
  %v8540 = vpop.f32.mrb[0].mxu0
  %v8541 = vadd.f32 %v8351, %v8540
  %v8542 = vpop.f32.mrb[0].mxu0
  %8543 = vdwg.mxu0
  %s8544 = scalar_lea.vmem %s5, 1600
  %v8545 = vld [vmem:[%s8544] sm:$0xff]
  %v8546 = vld [vmem:[%s8544 + $0x8] sm:$0xff]
  %v8547 = vld [vmem:[%s8544 + $0x10] sm:$0xff]
  %v8548 = vld [vmem:[%s8544 + $0x18] sm:$0xff]
  %v8549 = vld [vmem:[%s8544 + $0x20] sm:$0xff]
  %v8550 = vld [vmem:[%s8544 + $0x28] sm:$0xff]
  %v8551 = vld [vmem:[%s8544 + $0x30] sm:$0xff]
  %v8552 = vld [vmem:[%s8544 + $0x38] sm:$0xff]
  %v8553 = vld [vmem:[%s8544 + $0x40] sm:$0xff]
  %v8554 = vld [vmem:[%s8544 + $0x48] sm:$0xff]
  %v8555 = vld [vmem:[%s8544 + $0x50] sm:$0xff]
  %v8556 = vld [vmem:[%s8544 + $0x58] sm:$0xff]
  %v8557 = vld [vmem:[%s8544 + $0x60] sm:$0xff]
  %v8558 = vld [vmem:[%s8544 + $0x68] sm:$0xff]
  %v8559 = vld [vmem:[%s8544 + $0x70] sm:$0xff]
  %v8560 = vld [vmem:[%s8544 + $0x78] sm:$0xff]
  %v8561 = vld [vmem:[%s8544 + $0x80] sm:$0xff]
  %v8562 = vld [vmem:[%s8544 + $0x88] sm:$0xff]
  %v8563 = vld [vmem:[%s8544 + $0x90] sm:$0xff]
  %v8564 = vld [vmem:[%s8544 + $0x98] sm:$0xff]
  %v8565 = vld [vmem:[%s8544 + $0xa0] sm:$0xff]
  %v8566 = vld [vmem:[%s8544 + $0xa8] sm:$0xff]
  %v8567 = vld [vmem:[%s8544 + $0xb0] sm:$0xff]
  %v8568 = vld [vmem:[%s8544 + $0xb8] sm:$0xff]
  %v8569 = vld [vmem:[%s8544 + $0xc0] sm:$0xff]
  %v8570 = vld [vmem:[%s8544 + $0xc8] sm:$0xff]
  %v8571 = vld [vmem:[%s8544 + $0xd0] sm:$0xff]
  %v8572 = vld [vmem:[%s8544 + $0xd8] sm:$0xff]
  %v8573 = vld [vmem:[%s8544 + $0xe0] sm:$0xff]
  %v8574 = vld [vmem:[%s8544 + $0xe8] sm:$0xff]
  %v8575 = vld [vmem:[%s8544 + $0xf0] sm:$0xff]
  %v8576 = vld [vmem:[%s8544 + $0xf8] sm:$0xff]
  %v8577 = vld [vmem:[%s8544 + $0x100] sm:$0xff]
  %v8578 = vld [vmem:[%s8544 + $0x108] sm:$0xff]
  %v8579 = vld [vmem:[%s8544 + $0x110] sm:$0xff]
  %v8580 = vld [vmem:[%s8544 + $0x118] sm:$0xff]
  %v8581 = vld [vmem:[%s8544 + $0x120] sm:$0xff]
  %v8582 = vld [vmem:[%s8544 + $0x128] sm:$0xff]
  %v8583 = vld [vmem:[%s8544 + $0x130] sm:$0xff]
  %v8584 = vld [vmem:[%s8544 + $0x138] sm:$0xff]
  %v8585 = vld [vmem:[%s8544 + $0x140] sm:$0xff]
  %v8586 = vld [vmem:[%s8544 + $0x148] sm:$0xff]
  %v8587 = vld [vmem:[%s8544 + $0x150] sm:$0xff]
  %v8588 = vld [vmem:[%s8544 + $0x158] sm:$0xff]
  %v8589 = vld [vmem:[%s8544 + $0x160] sm:$0xff]
  %v8590 = vld [vmem:[%s8544 + $0x168] sm:$0xff]
  %v8591 = vld [vmem:[%s8544 + $0x170] sm:$0xff]
  %v8592 = vld [vmem:[%s8544 + $0x178] sm:$0xff]
  %v8593 = vld [vmem:[%s8544 + $0x180] sm:$0xff]
  %v8594 = vld [vmem:[%s8544 + $0x188] sm:$0xff]
  %v8595 = vld [vmem:[%s8544 + $0x190] sm:$0xff]
  %v8596 = vld [vmem:[%s8544 + $0x198] sm:$0xff]
  %v8597 = vld [vmem:[%s8544 + $0x1a0] sm:$0xff]
  %v8598 = vld [vmem:[%s8544 + $0x1a8] sm:$0xff]
  %v8599 = vld [vmem:[%s8544 + $0x1b0] sm:$0xff]
  %v8600 = vld [vmem:[%s8544 + $0x1b8] sm:$0xff]
  %v8601 = vld [vmem:[%s8544 + $0x1c0] sm:$0xff]
  %v8602 = vld [vmem:[%s8544 + $0x1c8] sm:$0xff]
  %v8603 = vld [vmem:[%s8544 + $0x1d0] sm:$0xff]
  %v8604 = vld [vmem:[%s8544 + $0x1d8] sm:$0xff]
  %v8605 = vld [vmem:[%s8544 + $0x1e0] sm:$0xff]
  %v8606 = vld [vmem:[%s8544 + $0x1e8] sm:$0xff]
  %v8607 = vld [vmem:[%s8544 + $0x1f0] sm:$0xff]
  %v8608 = vld [vmem:[%s8544 + $0x1f8] sm:$0xff]
  %v8609 = vld [vmem:[%s8544 + $0x200] sm:$0xff]
  %v8610 = vld [vmem:[%s8544 + $0x208] sm:$0xff]
  %v8611 = vld [vmem:[%s8544 + $0x210] sm:$0xff]
  %v8612 = vld [vmem:[%s8544 + $0x218] sm:$0xff]
  %v8613 = vld [vmem:[%s8544 + $0x220] sm:$0xff]
  %v8614 = vld [vmem:[%s8544 + $0x228] sm:$0xff]
  %v8615 = vld [vmem:[%s8544 + $0x230] sm:$0xff]
  %v8616 = vld [vmem:[%s8544 + $0x238] sm:$0xff]
  %v8617 = vld [vmem:[%s8544 + $0x240] sm:$0xff]
  %v8618 = vld [vmem:[%s8544 + $0x248] sm:$0xff]
  %v8619 = vld [vmem:[%s8544 + $0x250] sm:$0xff]
  %v8620 = vld [vmem:[%s8544 + $0x258] sm:$0xff]
  %v8621 = vld [vmem:[%s8544 + $0x260] sm:$0xff]
  %v8622 = vld [vmem:[%s8544 + $0x268] sm:$0xff]
  %v8623 = vld [vmem:[%s8544 + $0x270] sm:$0xff]
  %v8624 = vld [vmem:[%s8544 + $0x278] sm:$0xff]
  %v8625 = vld [vmem:[%s8544 + $0x280] sm:$0xff]
  %v8626 = vld [vmem:[%s8544 + $0x288] sm:$0xff]
  %v8627 = vld [vmem:[%s8544 + $0x290] sm:$0xff]
  %v8628 = vld [vmem:[%s8544 + $0x298] sm:$0xff]
  %v8629 = vld [vmem:[%s8544 + $0x2a0] sm:$0xff]
  %v8630 = vld [vmem:[%s8544 + $0x2a8] sm:$0xff]
  %v8631 = vld [vmem:[%s8544 + $0x2b0] sm:$0xff]
  %v8632 = vld [vmem:[%s8544 + $0x2b8] sm:$0xff]
  %v8633 = vld [vmem:[%s8544 + $0x2c0] sm:$0xff]
  %v8634 = vld [vmem:[%s8544 + $0x2c8] sm:$0xff]
  %v8635 = vld [vmem:[%s8544 + $0x2d0] sm:$0xff]
  %v8636 = vld [vmem:[%s8544 + $0x2d8] sm:$0xff]
  %v8637 = vld [vmem:[%s8544 + $0x2e0] sm:$0xff]
  %v8638 = vld [vmem:[%s8544 + $0x2e8] sm:$0xff]
  %v8639 = vld [vmem:[%s8544 + $0x2f0] sm:$0xff]
  %v8640 = vld [vmem:[%s8544 + $0x2f8] sm:$0xff]
  %v8641 = vld [vmem:[%s8544 + $0x300] sm:$0xff]
  %v8642 = vld [vmem:[%s8544 + $0x308] sm:$0xff]
  %v8643 = vld [vmem:[%s8544 + $0x310] sm:$0xff]
  %v8644 = vld [vmem:[%s8544 + $0x318] sm:$0xff]
  %8645 = vmatprep.subr.mxu0 0.0
  %8646 = vmatpush1.msra.mxu0 %v7265
  %8647 = vmatprep.subr.mxu0 0.0
  %8648 = vmatpush1.msra.mxu0 %v7270
  %8649 = vmatprep.subr.mxu0 0.0
  %8650 = vmatpush1.msra.mxu0 %v7275
  %8651 = vmatprep.subr.mxu0 0.0
  %8652 = vmatpush1.msra.mxu0 %v7280
  %8653 = vmatprep.subr.mxu0 0.0
  %8654 = vmatpush1.msra.mxu0 %v7285
  %8655 = vmatprep.subr.mxu0 0.0
  %8656 = vmatpush1.msra.mxu0 %v7290
  %8657 = vmatprep.subr.mxu0 0.0
  %8658 = vmatpush1.msra.mxu0 %v7295
  %8659 = vmatprep.subr.mxu0 0.0
  %8660 = vmatpush1.msra.mxu0 %v7300
  %8661 = vmatprep.subr.mxu0 0.0
  %8662 = vmatpush1.msra.mxu0 %v7305
  %8663 = vmatprep.subr.mxu0 0.0
  %8664 = vmatpush1.msra.mxu0 %v7310
  %8665 = vmatprep.subr.mxu0 0.0
  %8666 = vmatpush1.msra.mxu0 %v7315
  %8667 = vmatprep.subr.mxu0 0.0
  %8668 = vmatpush1.msra.mxu0 %v7320
  %8669 = vmatprep.subr.mxu0 0.0
  %8670 = vmatpush1.msra.mxu0 %v7325
  %8671 = vmatprep.subr.mxu0 0.0
  %8672 = vmatpush1.msra.mxu0 %v7330
  %8673 = vmatprep.subr.mxu0 0.0
  %8674 = vmatpush1.msra.mxu0 %v7335
  %8675 = vmatprep.subr.mxu0 0.0
  %8676 = vmatpush1.msra.mxu0 %v7340
  %8677 = vmatprep.subr.mxu0 0.0
  %8678 = vmatpush1.msra.mxu0 %v7345
  %8679 = vmatprep.subr.mxu0 0.0
  %8680 = vmatpush1.msra.mxu0 %v7350
  %8681 = vmatprep.subr.mxu0 0.0
  %8682 = vmatpush1.msra.mxu0 %v7355
  %8683 = vmatprep.subr.mxu0 0.0
  %8684 = vmatpush1.msra.mxu0 %v7360
  %8685 = vmatprep.subr.mxu0 0.0
  %8686 = vmatpush1.msra.mxu0 %v7365
  %8687 = vmatprep.subr.mxu0 0.0
  %8688 = vmatpush1.msra.mxu0 %v7370
  %8689 = vmatprep.subr.mxu0 0.0
  %8690 = vmatpush1.msra.mxu0 %v7375
  %8691 = vmatprep.subr.mxu0 0.0
  %8692 = vmatpush1.msra.mxu0 %v7380
  %8693 = vmatprep.subr.mxu0 0.0
  %8694 = vmatpush1.msra.mxu0 %v7385
  %8695 = vmatprep.subr.mxu0 0.0
  %8696 = vmatpush1.msra.mxu0 %v7390
  %8697 = vmatprep.subr.mxu0 0.0
  %8698 = vmatpush1.msra.mxu0 %v7395
  %8699 = vmatprep.subr.mxu0 0.0
  %8700 = vmatpush1.msra.mxu0 %v7400
  %8701 = vmatprep.subr.mxu0 0.0
  %8702 = vmatpush1.msra.mxu0 %v7405
  %8703 = vmatprep.subr.mxu0 0.0
  %8704 = vmatpush1.msra.mxu0 %v7410
  %8705 = vmatprep.subr.mxu0 0.0
  %8706 = vmatpush1.msra.mxu0 %v7415
  %8707 = vmatprep.subr.mxu0 0.0
  %8708 = vmatpush1.msra.mxu0 %v7420
  %8709 = vmatprep.mubr.f32.mxu0 %v8546
  %8710 = vmatmul.mubr.f32.gmra.mrb[0].mxu0 %v8545
  %v8711 = vpop.f32.mrb[0].mxu0
  %v8712 = vadd.f32 0.0, %v8711
  %v8713 = vpop.f32.mrb[0].mxu0
  %8714 = vmatprep.mubr.f32.mxu0 %v8550
  %8715 = vmatmul.mubr.f32.gmra.mrb[0].mxu0 %v8549
  %v8716 = vpop.f32.mrb[0].mxu0
  %v8717 = vadd.f32 0.0, %v8716
  %v8718 = vpop.f32.mrb[0].mxu0
  %8719 = vmatprep.mubr.f32.mxu0 %v8554
  %8720 = vmatmul.mubr.f32.gmra.mrb[0].mxu0 %v8553
  %v8721 = vpop.f32.mrb[0].mxu0
  %v8722 = vadd.f32 0.0, %v8721
  %v8723 = vpop.f32.mrb[0].mxu0
  %8724 = vmatprep.mubr.f32.mxu0 %v8558
  %8725 = vmatmul.mubr.f32.gmra.mrb[0].mxu0 %v8557
  %v8726 = vpop.f32.mrb[0].mxu0
  %v8727 = vadd.f32 0.0, %v8726
  %v8728 = vpop.f32.mrb[0].mxu0
  %8729 = vmatprep.mubr.f32.mxu0 %v8562
  %8730 = vmatmul.mubr.f32.gmra.mrb[0].mxu0 %v8561
  %v8731 = vpop.f32.mrb[0].mxu0
  %v8732 = vadd.f32 0.0, %v8731
  %v8733 = vpop.f32.mrb[0].mxu0
  %8734 = vmatprep.mubr.f32.mxu0 %v8566
  %8735 = vmatmul.mubr.f32.gmra.mrb[0].mxu0 %v8565
  %v8736 = vpop.f32.mrb[0].mxu0
  %v8737 = vadd.f32 0.0, %v8736
  %v8738 = vpop.f32.mrb[0].mxu0
  %8739 = vmatprep.mubr.f32.mxu0 %v8570
  %8740 = vmatmul.mubr.f32.gmra.mrb[0].mxu0 %v8569
  %v8741 = vpop.f32.mrb[0].mxu0
  %v8742 = vadd.f32 0.0, %v8741
  %v8743 = vpop.f32.mrb[0].mxu0
  %8744 = vmatprep.mubr.f32.mxu0 %v8574
  %8745 = vmatmul.mubr.f32.gmra.mrb[0].mxu0 %v8573
  %v8746 = vpop.f32.mrb[0].mxu0
  %v8747 = vadd.f32 0.0, %v8746
  %v8748 = vpop.f32.mrb[0].mxu0
  %8749 = vmatprep.mubr.f32.mxu0 %v8578
  %8750 = vmatmul.mubr.f32.gmra.mrb[0].mxu0 %v8577
  %v8751 = vpop.f32.mrb[0].mxu0
  %v8752 = vadd.f32 0.0, %v8751
  %v8753 = vpop.f32.mrb[0].mxu0
  %8754 = vmatprep.mubr.f32.mxu0 %v8582
  %8755 = vmatmul.mubr.f32.gmra.mrb[0].mxu0 %v8581
  %v8756 = vpop.f32.mrb[0].mxu0
  %v8757 = vadd.f32 0.0, %v8756
  %v8758 = vpop.f32.mrb[0].mxu0
  %8759 = vmatprep.mubr.f32.mxu0 %v8586
  %8760 = vmatmul.mubr.f32.gmra.mrb[0].mxu0 %v8585
  %v8761 = vpop.f32.mrb[0].mxu0
  %v8762 = vadd.f32 0.0, %v8761
  %v8763 = vpop.f32.mrb[0].mxu0
  %8764 = vmatprep.mubr.f32.mxu0 %v8590
  %8765 = vmatmul.mubr.f32.gmra.mrb[0].mxu0 %v8589
  %v8766 = vpop.f32.mrb[0].mxu0
  %v8767 = vadd.f32 0.0, %v8766
  %v8768 = vpop.f32.mrb[0].mxu0
  %8769 = vmatprep.mubr.f32.mxu0 %v8594
  %8770 = vmatmul.mubr.f32.gmra.mrb[0].mxu0 %v8593
  %v8771 = vpop.f32.mrb[0].mxu0
  %v8772 = vadd.f32 0.0, %v8771
  %v8773 = vpop.f32.mrb[0].mxu0
  %8774 = vmatprep.mubr.f32.mxu0 %v8598
  %8775 = vmatmul.mubr.f32.gmra.mrb[0].mxu0 %v8597
  %v8776 = vpop.f32.mrb[0].mxu0
  %v8777 = vadd.f32 0.0, %v8776
  %v8778 = vpop.f32.mrb[0].mxu0
  %8779 = vmatprep.mubr.f32.mxu0 %v8602
  %8780 = vmatmul.mubr.f32.gmra.mrb[0].mxu0 %v8601
  %v8781 = vpop.f32.mrb[0].mxu0
  %v8782 = vadd.f32 0.0, %v8781
  %v8783 = vpop.f32.mrb[0].mxu0
  %8784 = vmatprep.mubr.f32.mxu0 %v8606
  %8785 = vmatmul.mubr.f32.gmra.mrb[0].mxu0 %v8605
  %v8786 = vpop.f32.mrb[0].mxu0
  %v8787 = vadd.f32 0.0, %v8786
  %v8788 = vpop.f32.mrb[0].mxu0
  %8789 = vmatprep.mubr.f32.mxu0 %v8610
  %8790 = vmatmul.mubr.f32.gmra.mrb[0].mxu0 %v8609
  %v8791 = vpop.f32.mrb[0].mxu0
  %v8792 = vadd.f32 0.0, %v8791
  %v8793 = vpop.f32.mrb[0].mxu0
  %8794 = vmatprep.mubr.f32.mxu0 %v8614
  %8795 = vmatmul.mubr.f32.gmra.mrb[0].mxu0 %v8613
  %v8796 = vpop.f32.mrb[0].mxu0
  %v8797 = vadd.f32 0.0, %v8796
  %v8798 = vpop.f32.mrb[0].mxu0
  %8799 = vmatprep.mubr.f32.mxu0 %v8618
  %8800 = vmatmul.mubr.f32.gmra.mrb[0].mxu0 %v8617
  %v8801 = vpop.f32.mrb[0].mxu0
  %v8802 = vadd.f32 0.0, %v8801
  %v8803 = vpop.f32.mrb[0].mxu0
  %8804 = vmatprep.mubr.f32.mxu0 %v8622
  %8805 = vmatmul.mubr.f32.gmra.mrb[0].mxu0 %v8621
  %v8806 = vpop.f32.mrb[0].mxu0
  %v8807 = vadd.f32 0.0, %v8806
  %v8808 = vpop.f32.mrb[0].mxu0
  %8809 = vmatprep.mubr.f32.mxu0 %v8626
  %8810 = vmatmul.mubr.f32.gmra.mrb[0].mxu0 %v8625
  %v8811 = vpop.f32.mrb[0].mxu0
  %v8812 = vadd.f32 0.0, %v8811
  %v8813 = vpop.f32.mrb[0].mxu0
  %8814 = vmatprep.mubr.f32.mxu0 %v8630
  %8815 = vmatmul.mubr.f32.gmra.mrb[0].mxu0 %v8629
  %v8816 = vpop.f32.mrb[0].mxu0
  %v8817 = vadd.f32 0.0, %v8816
  %v8818 = vpop.f32.mrb[0].mxu0
  %8819 = vmatprep.mubr.f32.mxu0 %v8634
  %8820 = vmatmul.mubr.f32.gmra.mrb[0].mxu0 %v8633
  %v8821 = vpop.f32.mrb[0].mxu0
  %v8822 = vadd.f32 0.0, %v8821
  %v8823 = vpop.f32.mrb[0].mxu0
  %8824 = vmatprep.mubr.f32.mxu0 %v8638
  %8825 = vmatmul.mubr.f32.gmra.mrb[0].mxu0 %v8637
  %v8826 = vpop.f32.mrb[0].mxu0
  %v8827 = vadd.f32 0.0, %v8826
  %v8828 = vpop.f32.mrb[0].mxu0
  %8829 = vmatprep.mubr.f32.mxu0 %v8642
  %8830 = vmatmul.mubr.f32.gmra.mrb[0].mxu0 %v8641
  %v8831 = vpop.f32.mrb[0].mxu0
  %v8832 = vadd.f32 0.0, %v8831
  %v8833 = vpop.f32.mrb[0].mxu0
  %8834 = vdwg.mxu0
  %8835 = vmatprep.subr.mxu0 0.0
  %8836 = vmatpush1.msra.mxu0 %v7425
  %8837 = vmatprep.subr.mxu0 0.0
  %8838 = vmatpush1.msra.mxu0 %v7430
  %8839 = vmatprep.subr.mxu0 0.0
  %8840 = vmatpush1.msra.mxu0 %v7435
  %8841 = vmatprep.subr.mxu0 0.0
  %8842 = vmatpush1.msra.mxu0 %v7440
  %8843 = vmatprep.subr.mxu0 0.0
  %8844 = vmatpush1.msra.mxu0 %v7445
  %8845 = vmatprep.subr.mxu0 0.0
  %8846 = vmatpush1.msra.mxu0 %v7450
  %8847 = vmatprep.subr.mxu0 0.0
  %8848 = vmatpush1.msra.mxu0 %v7455
  %8849 = vmatprep.subr.mxu0 0.0
  %8850 = vmatpush1.msra.mxu0 %v7460
  %8851 = vmatprep.subr.mxu0 0.0
  %8852 = vmatpush1.msra.mxu0 %v7465
  %8853 = vmatprep.subr.mxu0 0.0
  %8854 = vmatpush1.msra.mxu0 %v7470
  %8855 = vmatprep.subr.mxu0 0.0
  %8856 = vmatpush1.msra.mxu0 %v7475
  %8857 = vmatprep.subr.mxu0 0.0
  %8858 = vmatpush1.msra.mxu0 %v7480
  %8859 = vmatprep.subr.mxu0 0.0
  %8860 = vmatpush1.msra.mxu0 %v7485
  %8861 = vmatprep.subr.mxu0 0.0
  %8862 = vmatpush1.msra.mxu0 %v7490
  %8863 = vmatprep.subr.mxu0 0.0
  %8864 = vmatpush1.msra.mxu0 %v7495
  %8865 = vmatprep.subr.mxu0 0.0
  %8866 = vmatpush1.msra.mxu0 %v7500
  %8867 = vmatprep.subr.mxu0 0.0
  %8868 = vmatpush1.msra.mxu0 %v7505
  %8869 = vmatprep.subr.mxu0 0.0
  %8870 = vmatpush1.msra.mxu0 %v7510
  %8871 = vmatprep.subr.mxu0 0.0
  %8872 = vmatpush1.msra.mxu0 %v7515
  %8873 = vmatprep.subr.mxu0 0.0
  %8874 = vmatpush1.msra.mxu0 %v7520
  %8875 = vmatprep.subr.mxu0 0.0
  %8876 = vmatpush1.msra.mxu0 %v7525
  %8877 = vmatprep.subr.mxu0 0.0
  %8878 = vmatpush1.msra.mxu0 %v7530
  %8879 = vmatprep.subr.mxu0 0.0
  %8880 = vmatpush1.msra.mxu0 %v7535
  %8881 = vmatprep.subr.mxu0 0.0
  %8882 = vmatpush1.msra.mxu0 %v7540
  %8883 = vmatprep.subr.mxu0 0.0
  %8884 = vmatpush1.msra.mxu0 %v7545
  %8885 = vmatprep.subr.mxu0 0.0
  %8886 = vmatpush1.msra.mxu0 %v7550
  %8887 = vmatprep.subr.mxu0 0.0
  %8888 = vmatpush1.msra.mxu0 %v7555
  %8889 = vmatprep.subr.mxu0 0.0
  %8890 = vmatpush1.msra.mxu0 %v7560
  %8891 = vmatprep.subr.mxu0 0.0
  %8892 = vmatpush1.msra.mxu0 %v7565
  %8893 = vmatprep.subr.mxu0 0.0
  %8894 = vmatpush1.msra.mxu0 %v7570
  %8895 = vmatprep.subr.mxu0 0.0
  %8896 = vmatpush1.msra.mxu0 %v7575
  %8897 = vmatprep.subr.mxu0 0.0
  %8898 = vmatpush1.msra.mxu0 %v7580
  %8899 = vmatprep.mubr.f32.mxu0 %v8548
  %8900 = vmatmul.mubr.f32.gmra.mrb[0].mxu0 %v8547
  %v8901 = vpop.f32.mrb[0].mxu0
  %v8902 = vadd.f32 %v8712, %v8901
  %v8903 = vpop.f32.mrb[0].mxu0
  %8904 = vmatprep.mubr.f32.mxu0 %v8552
  %8905 = vmatmul.mubr.f32.gmra.mrb[0].mxu0 %v8551
  %v8906 = vpop.f32.mrb[0].mxu0
  %v8907 = vadd.f32 %v8717, %v8906
  %v8908 = vpop.f32.mrb[0].mxu0
  %8909 = vmatprep.mubr.f32.mxu0 %v8556
  %8910 = vmatmul.mubr.f32.gmra.mrb[0].mxu0 %v8555
  %v8911 = vpop.f32.mrb[0].mxu0
  %v8912 = vadd.f32 %v8722, %v8911
  %v8913 = vpop.f32.mrb[0].mxu0
  %8914 = vmatprep.mubr.f32.mxu0 %v8560
  %8915 = vmatmul.mubr.f32.gmra.mrb[0].mxu0 %v8559
  %v8916 = vpop.f32.mrb[0].mxu0
  %v8917 = vadd.f32 %v8727, %v8916
  %v8918 = vpop.f32.mrb[0].mxu0
  %8919 = vmatprep.mubr.f32.mxu0 %v8564
  %8920 = vmatmul.mubr.f32.gmra.mrb[0].mxu0 %v8563
  %v8921 = vpop.f32.mrb[0].mxu0
  %v8922 = vadd.f32 %v8732, %v8921
  %v8923 = vpop.f32.mrb[0].mxu0
  %8924 = vmatprep.mubr.f32.mxu0 %v8568
  %8925 = vmatmul.mubr.f32.gmra.mrb[0].mxu0 %v8567
  %v8926 = vpop.f32.mrb[0].mxu0
  %v8927 = vadd.f32 %v8737, %v8926
  %v8928 = vpop.f32.mrb[0].mxu0
  %8929 = vmatprep.mubr.f32.mxu0 %v8572
  %8930 = vmatmul.mubr.f32.gmra.mrb[0].mxu0 %v8571
  %v8931 = vpop.f32.mrb[0].mxu0
  %v8932 = vadd.f32 %v8742, %v8931
  %v8933 = vpop.f32.mrb[0].mxu0
  %8934 = vmatprep.mubr.f32.mxu0 %v8576
  %8935 = vmatmul.mubr.f32.gmra.mrb[0].mxu0 %v8575
  %v8936 = vpop.f32.mrb[0].mxu0
  %v8937 = vadd.f32 %v8747, %v8936
  %v8938 = vpop.f32.mrb[0].mxu0
  %8939 = vmatprep.mubr.f32.mxu0 %v8580
  %8940 = vmatmul.mubr.f32.gmra.mrb[0].mxu0 %v8579
  %v8941 = vpop.f32.mrb[0].mxu0
  %v8942 = vadd.f32 %v8752, %v8941
  %v8943 = vpop.f32.mrb[0].mxu0
  %8944 = vmatprep.mubr.f32.mxu0 %v8584
  %8945 = vmatmul.mubr.f32.gmra.mrb[0].mxu0 %v8583
  %v8946 = vpop.f32.mrb[0].mxu0
  %v8947 = vadd.f32 %v8757, %v8946
  %v8948 = vpop.f32.mrb[0].mxu0
  %8949 = vmatprep.mubr.f32.mxu0 %v8588
  %8950 = vmatmul.mubr.f32.gmra.mrb[0].mxu0 %v8587
  %v8951 = vpop.f32.mrb[0].mxu0
  %v8952 = vadd.f32 %v8762, %v8951
  %v8953 = vpop.f32.mrb[0].mxu0
  %8954 = vmatprep.mubr.f32.mxu0 %v8592
  %8955 = vmatmul.mubr.f32.gmra.mrb[0].mxu0 %v8591
  %v8956 = vpop.f32.mrb[0].mxu0
  %v8957 = vadd.f32 %v8767, %v8956
  %v8958 = vpop.f32.mrb[0].mxu0
  %8959 = vmatprep.mubr.f32.mxu0 %v8596
  %8960 = vmatmul.mubr.f32.gmra.mrb[0].mxu0 %v8595
  %v8961 = vpop.f32.mrb[0].mxu0
  %v8962 = vadd.f32 %v8772, %v8961
  %v8963 = vpop.f32.mrb[0].mxu0
  %8964 = vmatprep.mubr.f32.mxu0 %v8600
  %8965 = vmatmul.mubr.f32.gmra.mrb[0].mxu0 %v8599
  %v8966 = vpop.f32.mrb[0].mxu0
  %v8967 = vadd.f32 %v8777, %v8966
  %v8968 = vpop.f32.mrb[0].mxu0
  %8969 = vmatprep.mubr.f32.mxu0 %v8604
  %8970 = vmatmul.mubr.f32.gmra.mrb[0].mxu0 %v8603
  %v8971 = vpop.f32.mrb[0].mxu0
  %v8972 = vadd.f32 %v8782, %v8971
  %v8973 = vpop.f32.mrb[0].mxu0
  %8974 = vmatprep.mubr.f32.mxu0 %v8608
  %8975 = vmatmul.mubr.f32.gmra.mrb[0].mxu0 %v8607
  %v8976 = vpop.f32.mrb[0].mxu0
  %v8977 = vadd.f32 %v8787, %v8976
  %v8978 = vpop.f32.mrb[0].mxu0
  %8979 = vmatprep.mubr.f32.mxu0 %v8612
  %8980 = vmatmul.mubr.f32.gmra.mrb[0].mxu0 %v8611
  %v8981 = vpop.f32.mrb[0].mxu0
  %v8982 = vadd.f32 %v8792, %v8981
  %v8983 = vpop.f32.mrb[0].mxu0
  %8984 = vmatprep.mubr.f32.mxu0 %v8616
  %8985 = vmatmul.mubr.f32.gmra.mrb[0].mxu0 %v8615
  %v8986 = vpop.f32.mrb[0].mxu0
  %v8987 = vadd.f32 %v8797, %v8986
  %v8988 = vpop.f32.mrb[0].mxu0
  %8989 = vmatprep.mubr.f32.mxu0 %v8620
  %8990 = vmatmul.mubr.f32.gmra.mrb[0].mxu0 %v8619
  %v8991 = vpop.f32.mrb[0].mxu0
  %v8992 = vadd.f32 %v8802, %v8991
  %v8993 = vpop.f32.mrb[0].mxu0
  %8994 = vmatprep.mubr.f32.mxu0 %v8624
  %8995 = vmatmul.mubr.f32.gmra.mrb[0].mxu0 %v8623
  %v8996 = vpop.f32.mrb[0].mxu0
  %v8997 = vadd.f32 %v8807, %v8996
  %v8998 = vpop.f32.mrb[0].mxu0
  %8999 = vmatprep.mubr.f32.mxu0 %v8628
  %9000 = vmatmul.mubr.f32.gmra.mrb[0].mxu0 %v8627
  %v9001 = vpop.f32.mrb[0].mxu0
  %v9002 = vadd.f32 %v8812, %v9001
  %v9003 = vpop.f32.mrb[0].mxu0
  %9004 = vmatprep.mubr.f32.mxu0 %v8632
  %9005 = vmatmul.mubr.f32.gmra.mrb[0].mxu0 %v8631
  %v9006 = vpop.f32.mrb[0].mxu0
  %v9007 = vadd.f32 %v8817, %v9006
  %v9008 = vpop.f32.mrb[0].mxu0
  %9009 = vmatprep.mubr.f32.mxu0 %v8636
  %9010 = vmatmul.mubr.f32.gmra.mrb[0].mxu0 %v8635
  %v9011 = vpop.f32.mrb[0].mxu0
  %v9012 = vadd.f32 %v8822, %v9011
  %v9013 = vpop.f32.mrb[0].mxu0
  %9014 = vmatprep.mubr.f32.mxu0 %v8640
  %9015 = vmatmul.mubr.f32.gmra.mrb[0].mxu0 %v8639
  %v9016 = vpop.f32.mrb[0].mxu0
  %v9017 = vadd.f32 %v8827, %v9016
  %v9018 = vpop.f32.mrb[0].mxu0
  %9019 = vmatprep.mubr.f32.mxu0 %v8644
  %9020 = vmatmul.mubr.f32.gmra.mrb[0].mxu0 %v8643
  %v9021 = vpop.f32.mrb[0].mxu0
  %v9022 = vadd.f32 %v8832, %v9021
  %v9023 = vpop.f32.mrb[0].mxu0
  %9024 = vdwg.mxu0
  %s9025 = scalar_lea.vmem %s5, 2400
  %v9026 = vld [vmem:[%s9025] sm:$0xff]
  %v9027 = vld [vmem:[%s9025 + $0x8] sm:$0xff]
  %v9028 = vld [vmem:[%s9025 + $0x10] sm:$0xff]
  %v9029 = vld [vmem:[%s9025 + $0x18] sm:$0xff]
  %v9030 = vld [vmem:[%s9025 + $0x20] sm:$0xff]
  %v9031 = vld [vmem:[%s9025 + $0x28] sm:$0xff]
  %v9032 = vld [vmem:[%s9025 + $0x30] sm:$0xff]
  %v9033 = vld [vmem:[%s9025 + $0x38] sm:$0xff]
  %v9034 = vld [vmem:[%s9025 + $0x40] sm:$0xff]
  %v9035 = vld [vmem:[%s9025 + $0x48] sm:$0xff]
  %v9036 = vld [vmem:[%s9025 + $0x50] sm:$0xff]
  %v9037 = vld [vmem:[%s9025 + $0x58] sm:$0xff]
  %v9038 = vld [vmem:[%s9025 + $0x60] sm:$0xff]
  %v9039 = vld [vmem:[%s9025 + $0x68] sm:$0xff]
  %v9040 = vld [vmem:[%s9025 + $0x70] sm:$0xff]
  %v9041 = vld [vmem:[%s9025 + $0x78] sm:$0xff]
  %v9042 = vld [vmem:[%s9025 + $0x80] sm:$0xff]
  %v9043 = vld [vmem:[%s9025 + $0x88] sm:$0xff]
  %v9044 = vld [vmem:[%s9025 + $0x90] sm:$0xff]
  %v9045 = vld [vmem:[%s9025 + $0x98] sm:$0xff]
  %v9046 = vld [vmem:[%s9025 + $0xa0] sm:$0xff]
  %v9047 = vld [vmem:[%s9025 + $0xa8] sm:$0xff]
  %v9048 = vld [vmem:[%s9025 + $0xb0] sm:$0xff]
  %v9049 = vld [vmem:[%s9025 + $0xb8] sm:$0xff]
  %v9050 = vld [vmem:[%s9025 + $0xc0] sm:$0xff]
  %v9051 = vld [vmem:[%s9025 + $0xc8] sm:$0xff]
  %v9052 = vld [vmem:[%s9025 + $0xd0] sm:$0xff]
  %v9053 = vld [vmem:[%s9025 + $0xd8] sm:$0xff]
  %v9054 = vld [vmem:[%s9025 + $0xe0] sm:$0xff]
  %v9055 = vld [vmem:[%s9025 + $0xe8] sm:$0xff]
  %v9056 = vld [vmem:[%s9025 + $0xf0] sm:$0xff]
  %v9057 = vld [vmem:[%s9025 + $0xf8] sm:$0xff]
  %v9058 = vld [vmem:[%s9025 + $0x100] sm:$0xff]
  %v9059 = vld [vmem:[%s9025 + $0x108] sm:$0xff]
  %v9060 = vld [vmem:[%s9025 + $0x110] sm:$0xff]
  %v9061 = vld [vmem:[%s9025 + $0x118] sm:$0xff]
  %v9062 = vld [vmem:[%s9025 + $0x120] sm:$0xff]
  %v9063 = vld [vmem:[%s9025 + $0x128] sm:$0xff]
  %v9064 = vld [vmem:[%s9025 + $0x130] sm:$0xff]
  %v9065 = vld [vmem:[%s9025 + $0x138] sm:$0xff]
  %v9066 = vld [vmem:[%s9025 + $0x140] sm:$0xff]
  %v9067 = vld [vmem:[%s9025 + $0x148] sm:$0xff]
  %v9068 = vld [vmem:[%s9025 + $0x150] sm:$0xff]
  %v9069 = vld [vmem:[%s9025 + $0x158] sm:$0xff]
  %v9070 = vld [vmem:[%s9025 + $0x160] sm:$0xff]
  %v9071 = vld [vmem:[%s9025 + $0x168] sm:$0xff]
  %v9072 = vld [vmem:[%s9025 + $0x170] sm:$0xff]
  %v9073 = vld [vmem:[%s9025 + $0x178] sm:$0xff]
  %v9074 = vld [vmem:[%s9025 + $0x180] sm:$0xff]
  %v9075 = vld [vmem:[%s9025 + $0x188] sm:$0xff]
  %v9076 = vld [vmem:[%s9025 + $0x190] sm:$0xff]
  %v9077 = vld [vmem:[%s9025 + $0x198] sm:$0xff]
  %v9078 = vld [vmem:[%s9025 + $0x1a0] sm:$0xff]
  %v9079 = vld [vmem:[%s9025 + $0x1a8] sm:$0xff]
  %v9080 = vld [vmem:[%s9025 + $0x1b0] sm:$0xff]
  %v9081 = vld [vmem:[%s9025 + $0x1b8] sm:$0xff]
  %v9082 = vld [vmem:[%s9025 + $0x1c0] sm:$0xff]
  %v9083 = vld [vmem:[%s9025 + $0x1c8] sm:$0xff]
  %v9084 = vld [vmem:[%s9025 + $0x1d0] sm:$0xff]
  %v9085 = vld [vmem:[%s9025 + $0x1d8] sm:$0xff]
  %v9086 = vld [vmem:[%s9025 + $0x1e0] sm:$0xff]
  %v9087 = vld [vmem:[%s9025 + $0x1e8] sm:$0xff]
  %v9088 = vld [vmem:[%s9025 + $0x1f0] sm:$0xff]
  %v9089 = vld [vmem:[%s9025 + $0x1f8] sm:$0xff]
  %v9090 = vld [vmem:[%s9025 + $0x200] sm:$0xff]
  %v9091 = vld [vmem:[%s9025 + $0x208] sm:$0xff]
  %v9092 = vld [vmem:[%s9025 + $0x210] sm:$0xff]
  %v9093 = vld [vmem:[%s9025 + $0x218] sm:$0xff]
  %v9094 = vld [vmem:[%s9025 + $0x220] sm:$0xff]
  %v9095 = vld [vmem:[%s9025 + $0x228] sm:$0xff]
  %v9096 = vld [vmem:[%s9025 + $0x230] sm:$0xff]
  %v9097 = vld [vmem:[%s9025 + $0x238] sm:$0xff]
  %v9098 = vld [vmem:[%s9025 + $0x240] sm:$0xff]
  %v9099 = vld [vmem:[%s9025 + $0x248] sm:$0xff]
  %v9100 = vld [vmem:[%s9025 + $0x250] sm:$0xff]
  %v9101 = vld [vmem:[%s9025 + $0x258] sm:$0xff]
  %v9102 = vld [vmem:[%s9025 + $0x260] sm:$0xff]
  %v9103 = vld [vmem:[%s9025 + $0x268] sm:$0xff]
  %v9104 = vld [vmem:[%s9025 + $0x270] sm:$0xff]
  %v9105 = vld [vmem:[%s9025 + $0x278] sm:$0xff]
  %v9106 = vld [vmem:[%s9025 + $0x280] sm:$0xff]
  %v9107 = vld [vmem:[%s9025 + $0x288] sm:$0xff]
  %v9108 = vld [vmem:[%s9025 + $0x290] sm:$0xff]
  %v9109 = vld [vmem:[%s9025 + $0x298] sm:$0xff]
  %v9110 = vld [vmem:[%s9025 + $0x2a0] sm:$0xff]
  %v9111 = vld [vmem:[%s9025 + $0x2a8] sm:$0xff]
  %v9112 = vld [vmem:[%s9025 + $0x2b0] sm:$0xff]
  %v9113 = vld [vmem:[%s9025 + $0x2b8] sm:$0xff]
  %v9114 = vld [vmem:[%s9025 + $0x2c0] sm:$0xff]
  %v9115 = vld [vmem:[%s9025 + $0x2c8] sm:$0xff]
  %v9116 = vld [vmem:[%s9025 + $0x2d0] sm:$0xff]
  %v9117 = vld [vmem:[%s9025 + $0x2d8] sm:$0xff]
  %v9118 = vld [vmem:[%s9025 + $0x2e0] sm:$0xff]
  %v9119 = vld [vmem:[%s9025 + $0x2e8] sm:$0xff]
  %v9120 = vld [vmem:[%s9025 + $0x2f0] sm:$0xff]
  %v9121 = vld [vmem:[%s9025 + $0x2f8] sm:$0xff]
  %v9122 = vld [vmem:[%s9025 + $0x300] sm:$0xff]
  %v9123 = vld [vmem:[%s9025 + $0x308] sm:$0xff]
  %v9124 = vld [vmem:[%s9025 + $0x310] sm:$0xff]
  %v9125 = vld [vmem:[%s9025 + $0x318] sm:$0xff]
  %9126 = vmatprep.subr.mxu0 0.0
  %9127 = vmatpush1.msra.mxu0 %v7265
  %9128 = vmatprep.subr.mxu0 0.0
  %9129 = vmatpush1.msra.mxu0 %v7270
  %9130 = vmatprep.subr.mxu0 0.0
  %9131 = vmatpush1.msra.mxu0 %v7275
  %9132 = vmatprep.subr.mxu0 0.0
  %9133 = vmatpush1.msra.mxu0 %v7280
  %9134 = vmatprep.subr.mxu0 0.0
  %9135 = vmatpush1.msra.mxu0 %v7285
  %9136 = vmatprep.subr.mxu0 0.0
  %9137 = vmatpush1.msra.mxu0 %v7290
  %9138 = vmatprep.subr.mxu0 0.0
  %9139 = vmatpush1.msra.mxu0 %v7295
  %9140 = vmatprep.subr.mxu0 0.0
  %9141 = vmatpush1.msra.mxu0 %v7300
  %9142 = vmatprep.subr.mxu0 0.0
  %9143 = vmatpush1.msra.mxu0 %v7305
  %9144 = vmatprep.subr.mxu0 0.0
  %9145 = vmatpush1.msra.mxu0 %v7310
  %9146 = vmatprep.subr.mxu0 0.0
  %9147 = vmatpush1.msra.mxu0 %v7315
  %9148 = vmatprep.subr.mxu0 0.0
  %9149 = vmatpush1.msra.mxu0 %v7320
  %9150 = vmatprep.subr.mxu0 0.0
  %9151 = vmatpush1.msra.mxu0 %v7325
  %9152 = vmatprep.subr.mxu0 0.0
  %9153 = vmatpush1.msra.mxu0 %v7330
  %9154 = vmatprep.subr.mxu0 0.0
  %9155 = vmatpush1.msra.mxu0 %v7335
  %9156 = vmatprep.subr.mxu0 0.0
  %9157 = vmatpush1.msra.mxu0 %v7340
  %9158 = vmatprep.subr.mxu0 0.0
  %9159 = vmatpush1.msra.mxu0 %v7345
  %9160 = vmatprep.subr.mxu0 0.0
  %9161 = vmatpush1.msra.mxu0 %v7350
  %9162 = vmatprep.subr.mxu0 0.0
  %9163 = vmatpush1.msra.mxu0 %v7355
  %9164 = vmatprep.subr.mxu0 0.0
  %9165 = vmatpush1.msra.mxu0 %v7360
  %9166 = vmatprep.subr.mxu0 0.0
  %9167 = vmatpush1.msra.mxu0 %v7365
  %9168 = vmatprep.subr.mxu0 0.0
  %9169 = vmatpush1.msra.mxu0 %v7370
  %9170 = vmatprep.subr.mxu0 0.0
  %9171 = vmatpush1.msra.mxu0 %v7375
  %9172 = vmatprep.subr.mxu0 0.0
  %9173 = vmatpush1.msra.mxu0 %v7380
  %9174 = vmatprep.subr.mxu0 0.0
  %9175 = vmatpush1.msra.mxu0 %v7385
  %9176 = vmatprep.subr.mxu0 0.0
  %9177 = vmatpush1.msra.mxu0 %v7390
  %9178 = vmatprep.subr.mxu0 0.0
  %9179 = vmatpush1.msra.mxu0 %v7395
  %9180 = vmatprep.subr.mxu0 0.0
  %9181 = vmatpush1.msra.mxu0 %v7400
  %9182 = vmatprep.subr.mxu0 0.0
  %9183 = vmatpush1.msra.mxu0 %v7405
  %9184 = vmatprep.subr.mxu0 0.0
  %9185 = vmatpush1.msra.mxu0 %v7410
  %9186 = vmatprep.subr.mxu0 0.0
  %9187 = vmatpush1.msra.mxu0 %v7415
  %9188 = vmatprep.subr.mxu0 0.0
  %9189 = vmatpush1.msra.mxu0 %v7420
  %9190 = vmatprep.mubr.f32.mxu0 %v9027
  %9191 = vmatmul.mubr.f32.gmra.mrb[0].mxu0 %v9026
  %v9192 = vpop.f32.mrb[0].mxu0
  %v9193 = vadd.f32 0.0, %v9192
  %v9194 = vpop.f32.mrb[0].mxu0
  %9195 = vmatprep.mubr.f32.mxu0 %v9031
  %9196 = vmatmul.mubr.f32.gmra.mrb[0].mxu0 %v9030
  %v9197 = vpop.f32.mrb[0].mxu0
  %v9198 = vadd.f32 0.0, %v9197
  %v9199 = vpop.f32.mrb[0].mxu0
  %9200 = vmatprep.mubr.f32.mxu0 %v9035
  %9201 = vmatmul.mubr.f32.gmra.mrb[0].mxu0 %v9034
  %v9202 = vpop.f32.mrb[0].mxu0
  %v9203 = vadd.f32 0.0, %v9202
  %v9204 = vpop.f32.mrb[0].mxu0
  %9205 = vmatprep.mubr.f32.mxu0 %v9039
  %9206 = vmatmul.mubr.f32.gmra.mrb[0].mxu0 %v9038
  %v9207 = vpop.f32.mrb[0].mxu0
  %v9208 = vadd.f32 0.0, %v9207
  %v9209 = vpop.f32.mrb[0].mxu0
  %9210 = vmatprep.mubr.f32.mxu0 %v9043
  %9211 = vmatmul.mubr.f32.gmra.mrb[0].mxu0 %v9042
  %v9212 = vpop.f32.mrb[0].mxu0
  %v9213 = vadd.f32 0.0, %v9212
  %v9214 = vpop.f32.mrb[0].mxu0
  %9215 = vmatprep.mubr.f32.mxu0 %v9047
  %9216 = vmatmul.mubr.f32.gmra.mrb[0].mxu0 %v9046
  %v9217 = vpop.f32.mrb[0].mxu0
  %v9218 = vadd.f32 0.0, %v9217
  %v9219 = vpop.f32.mrb[0].mxu0
  %9220 = vmatprep.mubr.f32.mxu0 %v9051
  %9221 = vmatmul.mubr.f32.gmra.mrb[0].mxu0 %v9050
  %v9222 = vpop.f32.mrb[0].mxu0
  %v9223 = vadd.f32 0.0, %v9222
  %v9224 = vpop.f32.mrb[0].mxu0
  %9225 = vmatprep.mubr.f32.mxu0 %v9055
  %9226 = vmatmul.mubr.f32.gmra.mrb[0].mxu0 %v9054
  %v9227 = vpop.f32.mrb[0].mxu0
  %v9228 = vadd.f32 0.0, %v9227
  %v9229 = vpop.f32.mrb[0].mxu0
  %9230 = vmatprep.mubr.f32.mxu0 %v9059
  %9231 = vmatmul.mubr.f32.gmra.mrb[0].mxu0 %v9058
  %v9232 = vpop.f32.mrb[0].mxu0
  %v9233 = vadd.f32 0.0, %v9232
  %v9234 = vpop.f32.mrb[0].mxu0
  %9235 = vmatprep.mubr.f32.mxu0 %v9063
  %9236 = vmatmul.mubr.f32.gmra.mrb[0].mxu0 %v9062
  %v9237 = vpop.f32.mrb[0].mxu0
  %v9238 = vadd.f32 0.0, %v9237
  %v9239 = vpop.f32.mrb[0].mxu0
  %9240 = vmatprep.mubr.f32.mxu0 %v9067
  %9241 = vmatmul.mubr.f32.gmra.mrb[0].mxu0 %v9066
  %v9242 = vpop.f32.mrb[0].mxu0
  %v9243 = vadd.f32 0.0, %v9242
  %v9244 = vpop.f32.mrb[0].mxu0
  %9245 = vmatprep.mubr.f32.mxu0 %v9071
  %9246 = vmatmul.mubr.f32.gmra.mrb[0].mxu0 %v9070
  %v9247 = vpop.f32.mrb[0].mxu0
  %v9248 = vadd.f32 0.0, %v9247
  %v9249 = vpop.f32.mrb[0].mxu0
  %9250 = vmatprep.mubr.f32.mxu0 %v9075
  %9251 = vmatmul.mubr.f32.gmra.mrb[0].mxu0 %v9074
  %v9252 = vpop.f32.mrb[0].mxu0
  %v9253 = vadd.f32 0.0, %v9252
  %v9254 = vpop.f32.mrb[0].mxu0
  %9255 = vmatprep.mubr.f32.mxu0 %v9079
  %9256 = vmatmul.mubr.f32.gmra.mrb[0].mxu0 %v9078
  %v9257 = vpop.f32.mrb[0].mxu0
  %v9258 = vadd.f32 0.0, %v9257
  %v9259 = vpop.f32.mrb[0].mxu0
  %9260 = vmatprep.mubr.f32.mxu0 %v9083
  %9261 = vmatmul.mubr.f32.gmra.mrb[0].mxu0 %v9082
  %v9262 = vpop.f32.mrb[0].mxu0
  %v9263 = vadd.f32 0.0, %v9262
  %v9264 = vpop.f32.mrb[0].mxu0
  %9265 = vmatprep.mubr.f32.mxu0 %v9087
  %9266 = vmatmul.mubr.f32.gmra.mrb[0].mxu0 %v9086
  %v9267 = vpop.f32.mrb[0].mxu0
  %v9268 = vadd.f32 0.0, %v9267
  %v9269 = vpop.f32.mrb[0].mxu0
  %9270 = vmatprep.mubr.f32.mxu0 %v9091
  %9271 = vmatmul.mubr.f32.gmra.mrb[0].mxu0 %v9090
  %v9272 = vpop.f32.mrb[0].mxu0
  %v9273 = vadd.f32 0.0, %v9272
  %v9274 = vpop.f32.mrb[0].mxu0
  %9275 = vmatprep.mubr.f32.mxu0 %v9095
  %9276 = vmatmul.mubr.f32.gmra.mrb[0].mxu0 %v9094
  %v9277 = vpop.f32.mrb[0].mxu0
  %v9278 = vadd.f32 0.0, %v9277
  %v9279 = vpop.f32.mrb[0].mxu0
  %9280 = vmatprep.mubr.f32.mxu0 %v9099
  %9281 = vmatmul.mubr.f32.gmra.mrb[0].mxu0 %v9098
  %v9282 = vpop.f32.mrb[0].mxu0
  %v9283 = vadd.f32 0.0, %v9282
  %v9284 = vpop.f32.mrb[0].mxu0
  %9285 = vmatprep.mubr.f32.mxu0 %v9103
  %9286 = vmatmul.mubr.f32.gmra.mrb[0].mxu0 %v9102
  %v9287 = vpop.f32.mrb[0].mxu0
  %v9288 = vadd.f32 0.0, %v9287
  %v9289 = vpop.f32.mrb[0].mxu0
  %9290 = vmatprep.mubr.f32.mxu0 %v9107
  %9291 = vmatmul.mubr.f32.gmra.mrb[0].mxu0 %v9106
  %v9292 = vpop.f32.mrb[0].mxu0
  %v9293 = vadd.f32 0.0, %v9292
  %v9294 = vpop.f32.mrb[0].mxu0
  %9295 = vmatprep.mubr.f32.mxu0 %v9111
  %9296 = vmatmul.mubr.f32.gmra.mrb[0].mxu0 %v9110
  %v9297 = vpop.f32.mrb[0].mxu0
  %v9298 = vadd.f32 0.0, %v9297
  %v9299 = vpop.f32.mrb[0].mxu0
  %9300 = vmatprep.mubr.f32.mxu0 %v9115
  %9301 = vmatmul.mubr.f32.gmra.mrb[0].mxu0 %v9114
  %v9302 = vpop.f32.mrb[0].mxu0
  %v9303 = vadd.f32 0.0, %v9302
  %v9304 = vpop.f32.mrb[0].mxu0
  %9305 = vmatprep.mubr.f32.mxu0 %v9119
  %9306 = vmatmul.mubr.f32.gmra.mrb[0].mxu0 %v9118
  %v9307 = vpop.f32.mrb[0].mxu0
  %v9308 = vadd.f32 0.0, %v9307
  %v9309 = vpop.f32.mrb[0].mxu0
  %9310 = vmatprep.mubr.f32.mxu0 %v9123
  %9311 = vmatmul.mubr.f32.gmra.mrb[0].mxu0 %v9122
  %v9312 = vpop.f32.mrb[0].mxu0
  %v9313 = vadd.f32 0.0, %v9312
  %v9314 = vpop.f32.mrb[0].mxu0
  %9315 = vdwg.mxu0
  %9316 = vmatprep.subr.mxu0 0.0
  %9317 = vmatpush1.msra.mxu0 %v7425
  %9318 = vmatprep.subr.mxu0 0.0
  %9319 = vmatpush1.msra.mxu0 %v7430
  %9320 = vmatprep.subr.mxu0 0.0
  %9321 = vmatpush1.msra.mxu0 %v7435
  %9322 = vmatprep.subr.mxu0 0.0
  %9323 = vmatpush1.msra.mxu0 %v7440
  %9324 = vmatprep.subr.mxu0 0.0
  %9325 = vmatpush1.msra.mxu0 %v7445
  %9326 = vmatprep.subr.mxu0 0.0
  %9327 = vmatpush1.msra.mxu0 %v7450
  %9328 = vmatprep.subr.mxu0 0.0
  %9329 = vmatpush1.msra.mxu0 %v7455
  %9330 = vmatprep.subr.mxu0 0.0
  %9331 = vmatpush1.msra.mxu0 %v7460
  %9332 = vmatprep.subr.mxu0 0.0
  %9333 = vmatpush1.msra.mxu0 %v7465
  %9334 = vmatprep.subr.mxu0 0.0
  %9335 = vmatpush1.msra.mxu0 %v7470
  %9336 = vmatprep.subr.mxu0 0.0
  %9337 = vmatpush1.msra.mxu0 %v7475
  %9338 = vmatprep.subr.mxu0 0.0
  %9339 = vmatpush1.msra.mxu0 %v7480
  %9340 = vmatprep.subr.mxu0 0.0
  %9341 = vmatpush1.msra.mxu0 %v7485
  %9342 = vmatprep.subr.mxu0 0.0
  %9343 = vmatpush1.msra.mxu0 %v7490
  %9344 = vmatprep.subr.mxu0 0.0
  %9345 = vmatpush1.msra.mxu0 %v7495
  %9346 = vmatprep.subr.mxu0 0.0
  %9347 = vmatpush1.msra.mxu0 %v7500
  %9348 = vmatprep.subr.mxu0 0.0
  %9349 = vmatpush1.msra.mxu0 %v7505
  %9350 = vmatprep.subr.mxu0 0.0
  %9351 = vmatpush1.msra.mxu0 %v7510
  %9352 = vmatprep.subr.mxu0 0.0
  %9353 = vmatpush1.msra.mxu0 %v7515
  %9354 = vmatprep.subr.mxu0 0.0
  %9355 = vmatpush1.msra.mxu0 %v7520
  %9356 = vmatprep.subr.mxu0 0.0
  %9357 = vmatpush1.msra.mxu0 %v7525
  %9358 = vmatprep.subr.mxu0 0.0
  %9359 = vmatpush1.msra.mxu0 %v7530
  %9360 = vmatprep.subr.mxu0 0.0
  %9361 = vmatpush1.msra.mxu0 %v7535
  %9362 = vmatprep.subr.mxu0 0.0
  %9363 = vmatpush1.msra.mxu0 %v7540
  %9364 = vmatprep.subr.mxu0 0.0
  %9365 = vmatpush1.msra.mxu0 %v7545
  %9366 = vmatprep.subr.mxu0 0.0
  %9367 = vmatpush1.msra.mxu0 %v7550
  %9368 = vmatprep.subr.mxu0 0.0
  %9369 = vmatpush1.msra.mxu0 %v7555
  %9370 = vmatprep.subr.mxu0 0.0
  %9371 = vmatpush1.msra.mxu0 %v7560
  %9372 = vmatprep.subr.mxu0 0.0
  %9373 = vmatpush1.msra.mxu0 %v7565
  %9374 = vmatprep.subr.mxu0 0.0
  %9375 = vmatpush1.msra.mxu0 %v7570
  %9376 = vmatprep.subr.mxu0 0.0
  %9377 = vmatpush1.msra.mxu0 %v7575
  %9378 = vmatprep.subr.mxu0 0.0
  %9379 = vmatpush1.msra.mxu0 %v7580
  %9380 = vmatprep.mubr.f32.mxu0 %v9029
  %9381 = vmatmul.mubr.f32.gmra.mrb[0].mxu0 %v9028
  %v9382 = vpop.f32.mrb[0].mxu0
  %v9383 = vadd.f32 %v9193, %v9382
  %v9384 = vpop.f32.mrb[0].mxu0
  %9385 = vmatprep.mubr.f32.mxu0 %v9033
  %9386 = vmatmul.mubr.f32.gmra.mrb[0].mxu0 %v9032
  %v9387 = vpop.f32.mrb[0].mxu0
  %v9388 = vadd.f32 %v9198, %v9387
  %v9389 = vpop.f32.mrb[0].mxu0
  %9390 = vmatprep.mubr.f32.mxu0 %v9037
  %9391 = vmatmul.mubr.f32.gmra.mrb[0].mxu0 %v9036
  %v9392 = vpop.f32.mrb[0].mxu0
  %v9393 = vadd.f32 %v9203, %v9392
  %v9394 = vpop.f32.mrb[0].mxu0
  %9395 = vmatprep.mubr.f32.mxu0 %v9041
  %9396 = vmatmul.mubr.f32.gmra.mrb[0].mxu0 %v9040
  %v9397 = vpop.f32.mrb[0].mxu0
  %v9398 = vadd.f32 %v9208, %v9397
  %v9399 = vpop.f32.mrb[0].mxu0
  %9400 = vmatprep.mubr.f32.mxu0 %v9045
  %9401 = vmatmul.mubr.f32.gmra.mrb[0].mxu0 %v9044
  %v9402 = vpop.f32.mrb[0].mxu0
  %v9403 = vadd.f32 %v9213, %v9402
  %v9404 = vpop.f32.mrb[0].mxu0
  %9405 = vmatprep.mubr.f32.mxu0 %v9049
  %9406 = vmatmul.mubr.f32.gmra.mrb[0].mxu0 %v9048
  %v9407 = vpop.f32.mrb[0].mxu0
  %v9408 = vadd.f32 %v9218, %v9407
  %v9409 = vpop.f32.mrb[0].mxu0
  %9410 = vmatprep.mubr.f32.mxu0 %v9053
  %9411 = vmatmul.mubr.f32.gmra.mrb[0].mxu0 %v9052
  %v9412 = vpop.f32.mrb[0].mxu0
  %v9413 = vadd.f32 %v9223, %v9412
  %v9414 = vpop.f32.mrb[0].mxu0
  %9415 = vmatprep.mubr.f32.mxu0 %v9057
  %9416 = vmatmul.mubr.f32.gmra.mrb[0].mxu0 %v9056
  %v9417 = vpop.f32.mrb[0].mxu0
  %v9418 = vadd.f32 %v9228, %v9417
  %v9419 = vpop.f32.mrb[0].mxu0
  %9420 = vmatprep.mubr.f32.mxu0 %v9061
  %9421 = vmatmul.mubr.f32.gmra.mrb[0].mxu0 %v9060
  %v9422 = vpop.f32.mrb[0].mxu0
  %v9423 = vadd.f32 %v9233, %v9422
  %v9424 = vpop.f32.mrb[0].mxu0
  %9425 = vmatprep.mubr.f32.mxu0 %v9065
  %9426 = vmatmul.mubr.f32.gmra.mrb[0].mxu0 %v9064
  %v9427 = vpop.f32.mrb[0].mxu0
  %v9428 = vadd.f32 %v9238, %v9427
  %v9429 = vpop.f32.mrb[0].mxu0
  %9430 = vmatprep.mubr.f32.mxu0 %v9069
  %9431 = vmatmul.mubr.f32.gmra.mrb[0].mxu0 %v9068
  %v9432 = vpop.f32.mrb[0].mxu0
  %v9433 = vadd.f32 %v9243, %v9432
  %v9434 = vpop.f32.mrb[0].mxu0
  %9435 = vmatprep.mubr.f32.mxu0 %v9073
  %9436 = vmatmul.mubr.f32.gmra.mrb[0].mxu0 %v9072
  %v9437 = vpop.f32.mrb[0].mxu0
  %v9438 = vadd.f32 %v9248, %v9437
  %v9439 = vpop.f32.mrb[0].mxu0
  %9440 = vmatprep.mubr.f32.mxu0 %v9077
  %9441 = vmatmul.mubr.f32.gmra.mrb[0].mxu0 %v9076
  %v9442 = vpop.f32.mrb[0].mxu0
  %v9443 = vadd.f32 %v9253, %v9442
  %v9444 = vpop.f32.mrb[0].mxu0
  %9445 = vmatprep.mubr.f32.mxu0 %v9081
  %9446 = vmatmul.mubr.f32.gmra.mrb[0].mxu0 %v9080
  %v9447 = vpop.f32.mrb[0].mxu0
  %v9448 = vadd.f32 %v9258, %v9447
  %v9449 = vpop.f32.mrb[0].mxu0
  %9450 = vmatprep.mubr.f32.mxu0 %v9085
  %9451 = vmatmul.mubr.f32.gmra.mrb[0].mxu0 %v9084
  %v9452 = vpop.f32.mrb[0].mxu0
  %v9453 = vadd.f32 %v9263, %v9452
  %v9454 = vpop.f32.mrb[0].mxu0
  %9455 = vmatprep.mubr.f32.mxu0 %v9089
  %9456 = vmatmul.mubr.f32.gmra.mrb[0].mxu0 %v9088
  %v9457 = vpop.f32.mrb[0].mxu0
  %v9458 = vadd.f32 %v9268, %v9457
  %v9459 = vpop.f32.mrb[0].mxu0
  %9460 = vmatprep.mubr.f32.mxu0 %v9093
  %9461 = vmatmul.mubr.f32.gmra.mrb[0].mxu0 %v9092
  %v9462 = vpop.f32.mrb[0].mxu0
  %v9463 = vadd.f32 %v9273, %v9462
  %v9464 = vpop.f32.mrb[0].mxu0
  %9465 = vmatprep.mubr.f32.mxu0 %v9097
  %9466 = vmatmul.mubr.f32.gmra.mrb[0].mxu0 %v9096
  %v9467 = vpop.f32.mrb[0].mxu0
  %v9468 = vadd.f32 %v9278, %v9467
  %v9469 = vpop.f32.mrb[0].mxu0
  %9470 = vmatprep.mubr.f32.mxu0 %v9101
  %9471 = vmatmul.mubr.f32.gmra.mrb[0].mxu0 %v9100
  %v9472 = vpop.f32.mrb[0].mxu0
  %v9473 = vadd.f32 %v9283, %v9472
  %v9474 = vpop.f32.mrb[0].mxu0
  %9475 = vmatprep.mubr.f32.mxu0 %v9105
  %9476 = vmatmul.mubr.f32.gmra.mrb[0].mxu0 %v9104
  %v9477 = vpop.f32.mrb[0].mxu0
  %v9478 = vadd.f32 %v9288, %v9477
  %v9479 = vpop.f32.mrb[0].mxu0
  %9480 = vmatprep.mubr.f32.mxu0 %v9109
  %9481 = vmatmul.mubr.f32.gmra.mrb[0].mxu0 %v9108
  %v9482 = vpop.f32.mrb[0].mxu0
  %v9483 = vadd.f32 %v9293, %v9482
  %v9484 = vpop.f32.mrb[0].mxu0
  %9485 = vmatprep.mubr.f32.mxu0 %v9113
  %9486 = vmatmul.mubr.f32.gmra.mrb[0].mxu0 %v9112
  %v9487 = vpop.f32.mrb[0].mxu0
  %v9488 = vadd.f32 %v9298, %v9487
  %v9489 = vpop.f32.mrb[0].mxu0
  %9490 = vmatprep.mubr.f32.mxu0 %v9117
  %9491 = vmatmul.mubr.f32.gmra.mrb[0].mxu0 %v9116
  %v9492 = vpop.f32.mrb[0].mxu0
  %v9493 = vadd.f32 %v9303, %v9492
  %v9494 = vpop.f32.mrb[0].mxu0
  %9495 = vmatprep.mubr.f32.mxu0 %v9121
  %9496 = vmatmul.mubr.f32.gmra.mrb[0].mxu0 %v9120
  %v9497 = vpop.f32.mrb[0].mxu0
  %v9498 = vadd.f32 %v9308, %v9497
  %v9499 = vpop.f32.mrb[0].mxu0
  %9500 = vmatprep.mubr.f32.mxu0 %v9125
  %9501 = vmatmul.mubr.f32.gmra.mrb[0].mxu0 %v9124
  %v9502 = vpop.f32.mrb[0].mxu0
  %v9503 = vadd.f32 %v9313, %v9502
  %v9504 = vpop.f32.mrb[0].mxu0
  %9505 = vdwg.mxu0
  %v9506 = vmax.f32 %v7940, %v8421
  %v9507 = vmax.f32 %v7945, %v8426
  %v9508 = vmax.f32 %v7950, %v8431
  %v9509 = vmax.f32 %v7955, %v8436
  %v9510 = vmax.f32 %v7960, %v8441
  %v9511 = vmax.f32 %v7965, %v8446
  %v9512 = vmax.f32 %v7970, %v8451
  %v9513 = vmax.f32 %v7975, %v8456
  %v9514 = vmax.f32 %v7980, %v8461
  %v9515 = vmax.f32 %v7985, %v8466
  %v9516 = vmax.f32 %v7990, %v8471
  %v9517 = vmax.f32 %v7995, %v8476
  %v9518 = vmax.f32 %v8000, %v8481
  %v9519 = vmax.f32 %v8005, %v8486
  %v9520 = vmax.f32 %v8010, %v8491
  %v9521 = vmax.f32 %v8015, %v8496
  %v9522 = vmax.f32 %v8020, %v8501
  %v9523 = vmax.f32 %v8025, %v8506
  %v9524 = vmax.f32 %v8030, %v8511
  %v9525 = vmax.f32 %v8035, %v8516
  %v9526 = vmax.f32 %v8040, %v8521
  %v9527 = vmax.f32 %v8045, %v8526
  %v9528 = vmax.f32 %v8050, %v8531
  %v9529 = vmax.f32 %v8055, %v8536
  %v9530 = vmax.f32 %v8060, %v8541
  %v9531 = vmax.f32 %v8902, %v9383
  %v9532 = vmax.f32 %v8907, %v9388
  %v9533 = vmax.f32 %v8912, %v9393
  %v9534 = vmax.f32 %v8917, %v9398
  %v9535 = vmax.f32 %v8922, %v9403
  %v9536 = vmax.f32 %v8927, %v9408
  %v9537 = vmax.f32 %v8932, %v9413
  %v9538 = vmax.f32 %v8937, %v9418
  %v9539 = vmax.f32 %v8942, %v9423
  %v9540 = vmax.f32 %v8947, %v9428
  %v9541 = vmax.f32 %v8952, %v9433
  %v9542 = vmax.f32 %v8957, %v9438
  %v9543 = vmax.f32 %v8962, %v9443
  %v9544 = vmax.f32 %v8967, %v9448
  %v9545 = vmax.f32 %v8972, %v9453
  %v9546 = vmax.f32 %v8977, %v9458
  %v9547 = vmax.f32 %v8982, %v9463
  %v9548 = vmax.f32 %v8987, %v9468
  %v9549 = vmax.f32 %v8992, %v9473
  %v9550 = vmax.f32 %v8997, %v9478
  %v9551 = vmax.f32 %v9002, %v9483
  %v9552 = vmax.f32 %v9007, %v9488
  %v9553 = vmax.f32 %v9012, %v9493
  %v9554 = vmax.f32 %v9017, %v9498
  %v9555 = vmax.f32 %v9022, %v9503
  %v9556 = vmax.f32 %v9506, %v9531
  %v9557 = vmax.f32 %v9507, %v9532
  %v9558 = vmax.f32 %v9508, %v9533
  %v9559 = vmax.f32 %v9509, %v9534
  %v9560 = vmax.f32 %v9510, %v9535
  %v9561 = vmax.f32 %v9511, %v9536
  %v9562 = vmax.f32 %v9512, %v9537
  %v9563 = vmax.f32 %v9513, %v9538
  %v9564 = vmax.f32 %v9514, %v9539
  %v9565 = vmax.f32 %v9515, %v9540
  %v9566 = vmax.f32 %v9516, %v9541
  %v9567 = vmax.f32 %v9517, %v9542
  %v9568 = vmax.f32 %v9518, %v9543
  %v9569 = vmax.f32 %v9519, %v9544
  %v9570 = vmax.f32 %v9520, %v9545
  %v9571 = vmax.f32 %v9521, %v9546
  %v9572 = vmax.f32 %v9522, %v9547
  %v9573 = vmax.f32 %v9523, %v9548
  %v9574 = vmax.f32 %v9524, %v9549
  %v9575 = vmax.f32 %v9525, %v9550
  %v9576 = vmax.f32 %v9526, %v9551
  %v9577 = vmax.f32 %v9527, %v9552
  %v9578 = vmax.f32 %v9528, %v9553
  %v9579 = vmax.f32 %v9529, %v9554
  %v9580 = vmax.f32 %v9530, %v9555
  %v9581 = vld [vmem:[%s4] sm:$0x1]
  %v9583 = vlaneseq
  %v9584 = vshrl.u32 %v9583, 7
  %v9585 = vsub.s32 0, %v9584
  %v9586 = vrot.slane %v9581, %v9585
  %v9588 = vadd.f32 %v9556, %v9586
  %v9589 = vadd.f32 %v9557, %v9586
  %v9590 = vadd.f32 %v9558, %v9586
  %v9591 = vadd.f32 %v9559, %v9586
  %v9592 = vadd.f32 %v9560, %v9586
  %v9593 = vadd.f32 %v9561, %v9586
  %v9594 = vadd.f32 %v9562, %v9586
  %v9595 = vadd.f32 %v9563, %v9586
  %v9596 = vadd.f32 %v9564, %v9586
  %v9597 = vadd.f32 %v9565, %v9586
  %v9598 = vadd.f32 %v9566, %v9586
  %v9599 = vadd.f32 %v9567, %v9586
  %v9600 = vadd.f32 %v9568, %v9586
  %v9601 = vadd.f32 %v9569, %v9586
  %v9602 = vadd.f32 %v9570, %v9586
  %v9603 = vadd.f32 %v9571, %v9586
  %v9604 = vadd.f32 %v9572, %v9586
  %v9605 = vadd.f32 %v9573, %v9586
  %v9606 = vadd.f32 %v9574, %v9586
  %v9607 = vadd.f32 %v9575, %v9586
  %v9608 = vadd.f32 %v9576, %v9586
  %v9609 = vadd.f32 %v9577, %v9586
  %v9610 = vadd.f32 %v9578, %v9586
  %v9611 = vadd.f32 %v9579, %v9586
  %v9612 = vadd.f32 %v9580, %v9586
  %v9613 = vmax.f32 %v9588, 0.0
  %v9614 = vmax.f32 %v9589, 0.0
  %v9615 = vmax.f32 %v9590, 0.0
  %v9616 = vmax.f32 %v9591, 0.0
  %v9617 = vmax.f32 %v9592, 0.0
  %v9618 = vmax.f32 %v9593, 0.0
  %v9619 = vmax.f32 %v9594, 0.0
  %v9620 = vmax.f32 %v9595, 0.0
  %v9621 = vmax.f32 %v9596, 0.0
  %v9622 = vmax.f32 %v9597, 0.0
  %v9623 = vmax.f32 %v9598, 0.0
  %v9624 = vmax.f32 %v9599, 0.0
  %v9625 = vmax.f32 %v9600, 0.0
  %v9626 = vmax.f32 %v9601, 0.0
  %v9627 = vmax.f32 %v9602, 0.0
  %v9628 = vmax.f32 %v9603, 0.0
  %v9629 = vmax.f32 %v9604, 0.0
  %v9630 = vmax.f32 %v9605, 0.0
  %v9631 = vmax.f32 %v9606, 0.0
  %v9632 = vmax.f32 %v9607, 0.0
  %v9633 = vmax.f32 %v9608, 0.0
  %v9634 = vmax.f32 %v9609, 0.0
  %v9635 = vmax.f32 %v9610, 0.0
  %v9636 = vmax.f32 %v9611, 0.0
  %v9637 = vmax.f32 %v9612, 0.0
  %v9638 = vld [vmem:[%s6] sm:$0xff]
  %v9639 = vld [vmem:[%s6 + $0x8] sm:$0xff]
  %v9640 = vld [vmem:[%s6 + $0x10] sm:$0xff]
  %v9641 = vld [vmem:[%s6 + $0x18] sm:$0xff]
  %v9642 = vld [vmem:[%s6 + $0x20] sm:$0xff]
  %v9643 = vld [vmem:[%s6 + $0x28] sm:$0xff]
  %v9644 = vld [vmem:[%s6 + $0x30] sm:$0xff]
  %v9645 = vld [vmem:[%s6 + $0x38] sm:$0xff]
  %v9646 = vld [vmem:[%s6 + $0x40] sm:$0xff]
  %v9647 = vld [vmem:[%s6 + $0x48] sm:$0xff]
  %v9648 = vld [vmem:[%s6 + $0x50] sm:$0xff]
  %v9649 = vld [vmem:[%s6 + $0x58] sm:$0xff]
  %v9650 = vld [vmem:[%s6 + $0x60] sm:$0xff]
  %v9651 = vld [vmem:[%s6 + $0x68] sm:$0xff]
  %v9652 = vld [vmem:[%s6 + $0x70] sm:$0xff]
  %v9653 = vld [vmem:[%s6 + $0x78] sm:$0xff]
  %v9654 = vld [vmem:[%s6 + $0x80] sm:$0xff]
  %v9655 = vld [vmem:[%s6 + $0x88] sm:$0xff]
  %v9656 = vld [vmem:[%s6 + $0x90] sm:$0xff]
  %v9657 = vld [vmem:[%s6 + $0x98] sm:$0xff]
  %v9658 = vld [vmem:[%s6 + $0xa0] sm:$0xff]
  %v9659 = vld [vmem:[%s6 + $0xa8] sm:$0xff]
  %v9660 = vld [vmem:[%s6 + $0xb0] sm:$0xff]
  %v9661 = vld [vmem:[%s6 + $0xb8] sm:$0xff]
  %v9662 = vld [vmem:[%s6 + $0xc0] sm:$0xff]
  %v9663 = vld [vmem:[%s6 + $0xc8] sm:$0xff]
  %v9664 = vld [vmem:[%s6 + $0xd0] sm:$0xff]
  %v9665 = vld [vmem:[%s6 + $0xd8] sm:$0xff]
  %v9666 = vld [vmem:[%s6 + $0xe0] sm:$0xff]
  %v9667 = vld [vmem:[%s6 + $0xe8] sm:$0xff]
  %v9668 = vld [vmem:[%s6 + $0xf0] sm:$0xff]
  %v9669 = vld [vmem:[%s6 + $0xf8] sm:$0xff]
  %v9670 = vld [vmem:[%s6 + $0x100] sm:$0xff]
  %v9671 = vld [vmem:[%s6 + $0x108] sm:$0xff]
  %v9672 = vld [vmem:[%s6 + $0x110] sm:$0xff]
  %v9673 = vld [vmem:[%s6 + $0x118] sm:$0xff]
  %v9674 = vld [vmem:[%s6 + $0x120] sm:$0xff]
  %v9675 = vld [vmem:[%s6 + $0x128] sm:$0xff]
  %v9676 = vld [vmem:[%s6 + $0x130] sm:$0xff]
  %v9677 = vld [vmem:[%s6 + $0x138] sm:$0xff]
  %v9678 = vld [vmem:[%s6 + $0x140] sm:$0xff]
  %v9679 = vld [vmem:[%s6 + $0x148] sm:$0xff]
  %v9680 = vld [vmem:[%s6 + $0x150] sm:$0xff]
  %v9681 = vld [vmem:[%s6 + $0x158] sm:$0xff]
  %v9682 = vld [vmem:[%s6 + $0x160] sm:$0xff]
  %v9683 = vld [vmem:[%s6 + $0x168] sm:$0xff]
  %v9684 = vld [vmem:[%s6 + $0x170] sm:$0xff]
  %v9685 = vld [vmem:[%s6 + $0x178] sm:$0xff]
  %v9686 = vld [vmem:[%s6 + $0x180] sm:$0xff]
  %v9687 = vld [vmem:[%s6 + $0x188] sm:$0xff]
  %v9688 = vld [vmem:[%s6 + $0x190] sm:$0xff]
  %v9689 = vld [vmem:[%s6 + $0x198] sm:$0xff]
  %v9690 = vld [vmem:[%s6 + $0x1a0] sm:$0xff]
  %v9691 = vld [vmem:[%s6 + $0x1a8] sm:$0xff]
  %v9692 = vld [vmem:[%s6 + $0x1b0] sm:$0xff]
  %v9693 = vld [vmem:[%s6 + $0x1b8] sm:$0xff]
  %v9694 = vld [vmem:[%s6 + $0x1c0] sm:$0xff]
  %v9695 = vld [vmem:[%s6 + $0x1c8] sm:$0xff]
  %v9696 = vld [vmem:[%s6 + $0x1d0] sm:$0xff]
  %v9697 = vld [vmem:[%s6 + $0x1d8] sm:$0xff]
  %v9698 = vld [vmem:[%s6 + $0x1e0] sm:$0xff]
  %v9699 = vld [vmem:[%s6 + $0x1e8] sm:$0xff]
  %v9700 = vld [vmem:[%s6 + $0x1f0] sm:$0xff]
  %v9701 = vld [vmem:[%s6 + $0x1f8] sm:$0xff]
  %v9702 = vld [vmem:[%s6 + $0x200] sm:$0xff]
  %v9703 = vld [vmem:[%s6 + $0x208] sm:$0xff]
  %v9704 = vld [vmem:[%s6 + $0x210] sm:$0xff]
  %v9705 = vld [vmem:[%s6 + $0x218] sm:$0xff]
  %v9706 = vld [vmem:[%s6 + $0x220] sm:$0xff]
  %v9707 = vld [vmem:[%s6 + $0x228] sm:$0xff]
  %v9708 = vld [vmem:[%s6 + $0x230] sm:$0xff]
  %v9709 = vld [vmem:[%s6 + $0x238] sm:$0xff]
  %v9710 = vld [vmem:[%s6 + $0x240] sm:$0xff]
  %v9711 = vld [vmem:[%s6 + $0x248] sm:$0xff]
  %v9712 = vld [vmem:[%s6 + $0x250] sm:$0xff]
  %v9713 = vld [vmem:[%s6 + $0x258] sm:$0xff]
  %v9714 = vld [vmem:[%s6 + $0x260] sm:$0xff]
  %v9715 = vld [vmem:[%s6 + $0x268] sm:$0xff]
  %v9716 = vld [vmem:[%s6 + $0x270] sm:$0xff]
  %v9717 = vld [vmem:[%s6 + $0x278] sm:$0xff]
  %v9718 = vld [vmem:[%s6 + $0x280] sm:$0xff]
  %v9719 = vld [vmem:[%s6 + $0x288] sm:$0xff]
  %v9720 = vld [vmem:[%s6 + $0x290] sm:$0xff]
  %v9721 = vld [vmem:[%s6 + $0x298] sm:$0xff]
  %v9722 = vld [vmem:[%s6 + $0x2a0] sm:$0xff]
  %v9723 = vld [vmem:[%s6 + $0x2a8] sm:$0xff]
  %v9724 = vld [vmem:[%s6 + $0x2b0] sm:$0xff]
  %v9725 = vld [vmem:[%s6 + $0x2b8] sm:$0xff]
  %v9726 = vld [vmem:[%s6 + $0x2c0] sm:$0xff]
  %v9727 = vld [vmem:[%s6 + $0x2c8] sm:$0xff]
  %v9728 = vld [vmem:[%s6 + $0x2d0] sm:$0xff]
  %v9729 = vld [vmem:[%s6 + $0x2d8] sm:$0xff]
  %v9730 = vld [vmem:[%s6 + $0x2e0] sm:$0xff]
  %v9731 = vld [vmem:[%s6 + $0x2e8] sm:$0xff]
  %v9732 = vld [vmem:[%s6 + $0x2f0] sm:$0xff]
  %v9733 = vld [vmem:[%s6 + $0x2f8] sm:$0xff]
  %v9734 = vld [vmem:[%s6 + $0x300] sm:$0xff]
  %v9735 = vld [vmem:[%s6 + $0x308] sm:$0xff]
  %v9736 = vld [vmem:[%s6 + $0x310] sm:$0xff]
  %v9737 = vld [vmem:[%s6 + $0x318] sm:$0xff]
  %v9738 = vld [vmem:[%s6 + $0x320] sm:$0xff]
  %v9739 = vld [vmem:[%s6 + $0x328] sm:$0xff]
  %v9740 = vld [vmem:[%s6 + $0x330] sm:$0xff]
  %v9741 = vld [vmem:[%s6 + $0x338] sm:$0xff]
  %v9742 = vld [vmem:[%s6 + $0x340] sm:$0xff]
  %v9743 = vld [vmem:[%s6 + $0x348] sm:$0xff]
  %v9744 = vld [vmem:[%s6 + $0x350] sm:$0xff]
  %v9745 = vld [vmem:[%s6 + $0x358] sm:$0xff]
  %v9746 = vld [vmem:[%s6 + $0x360] sm:$0xff]
  %v9747 = vld [vmem:[%s6 + $0x368] sm:$0xff]
  %v9748 = vld [vmem:[%s6 + $0x370] sm:$0xff]
  %v9749 = vld [vmem:[%s6 + $0x378] sm:$0xff]
  %v9750 = vld [vmem:[%s6 + $0x380] sm:$0xff]
  %v9751 = vld [vmem:[%s6 + $0x388] sm:$0xff]
  %v9752 = vld [vmem:[%s6 + $0x390] sm:$0xff]
  %v9753 = vld [vmem:[%s6 + $0x398] sm:$0xff]
  %v9754 = vld [vmem:[%s6 + $0x3a0] sm:$0xff]
  %v9755 = vld [vmem:[%s6 + $0x3a8] sm:$0xff]
  %v9756 = vld [vmem:[%s6 + $0x3b0] sm:$0xff]
  %v9757 = vld [vmem:[%s6 + $0x3b8] sm:$0xff]
  %v9758 = vld [vmem:[%s6 + $0x3c0] sm:$0xff]
  %v9759 = vld [vmem:[%s6 + $0x3c8] sm:$0xff]
  %v9760 = vld [vmem:[%s6 + $0x3d0] sm:$0xff]
  %v9761 = vld [vmem:[%s6 + $0x3d8] sm:$0xff]
  %v9762 = vld [vmem:[%s6 + $0x3e0] sm:$0xff]
  %v9763 = vld [vmem:[%s6 + $0x3e8] sm:$0xff]
  %v9764 = vld [vmem:[%s6 + $0x3f0] sm:$0xff]
  %v9765 = vld [vmem:[%s6 + $0x3f8] sm:$0xff]
  %v9766 = vld [vmem:[%s6 + $0x400] sm:$0xff]
  %v9767 = vld [vmem:[%s6 + $0x408] sm:$0xff]
  %v9768 = vld [vmem:[%s6 + $0x410] sm:$0xff]
  %v9769 = vld [vmem:[%s6 + $0x418] sm:$0xff]
  %v9770 = vld [vmem:[%s6 + $0x420] sm:$0xff]
  %v9771 = vld [vmem:[%s6 + $0x428] sm:$0xff]
  %v9772 = vld [vmem:[%s6 + $0x430] sm:$0xff]
  %v9773 = vld [vmem:[%s6 + $0x438] sm:$0xff]
  %v9774 = vld [vmem:[%s6 + $0x440] sm:$0xff]
  %v9775 = vld [vmem:[%s6 + $0x448] sm:$0xff]
  %v9776 = vld [vmem:[%s6 + $0x450] sm:$0xff]
  %v9777 = vld [vmem:[%s6 + $0x458] sm:$0xff]
  %v9778 = vld [vmem:[%s6 + $0x460] sm:$0xff]
  %v9779 = vld [vmem:[%s6 + $0x468] sm:$0xff]
  %v9780 = vld [vmem:[%s6 + $0x470] sm:$0xff]
  %v9781 = vld [vmem:[%s6 + $0x478] sm:$0xff]
  %v9782 = vld [vmem:[%s6 + $0x480] sm:$0xff]
  %v9783 = vld [vmem:[%s6 + $0x488] sm:$0xff]
  %v9784 = vld [vmem:[%s6 + $0x490] sm:$0xff]
  %v9785 = vld [vmem:[%s6 + $0x498] sm:$0xff]
  %v9786 = vld [vmem:[%s6 + $0x4a0] sm:$0xff]
  %v9787 = vld [vmem:[%s6 + $0x4a8] sm:$0xff]
  %v9788 = vld [vmem:[%s6 + $0x4b0] sm:$0xff]
  %v9789 = vld [vmem:[%s6 + $0x4b8] sm:$0xff]
  %v9790 = vld [vmem:[%s6 + $0x4c0] sm:$0xff]
  %v9791 = vld [vmem:[%s6 + $0x4c8] sm:$0xff]
  %v9792 = vld [vmem:[%s6 + $0x4d0] sm:$0xff]
  %v9793 = vld [vmem:[%s6 + $0x4d8] sm:$0xff]
  %v9794 = vld [vmem:[%s6 + $0x4e0] sm:$0xff]
  %v9795 = vld [vmem:[%s6 + $0x4e8] sm:$0xff]
  %v9796 = vld [vmem:[%s6 + $0x4f0] sm:$0xff]
  %v9797 = vld [vmem:[%s6 + $0x4f8] sm:$0xff]
  %v9798 = vld [vmem:[%s6 + $0x500] sm:$0xff]
  %v9799 = vld [vmem:[%s6 + $0x508] sm:$0xff]
  %v9800 = vld [vmem:[%s6 + $0x510] sm:$0xff]
  %v9801 = vld [vmem:[%s6 + $0x518] sm:$0xff]
  %v9802 = vld [vmem:[%s6 + $0x520] sm:$0xff]
  %v9803 = vld [vmem:[%s6 + $0x528] sm:$0xff]
  %v9804 = vld [vmem:[%s6 + $0x530] sm:$0xff]
  %v9805 = vld [vmem:[%s6 + $0x538] sm:$0xff]
  %v9806 = vld [vmem:[%s6 + $0x540] sm:$0xff]
  %v9807 = vld [vmem:[%s6 + $0x548] sm:$0xff]
  %v9808 = vld [vmem:[%s6 + $0x550] sm:$0xff]
  %v9809 = vld [vmem:[%s6 + $0x558] sm:$0xff]
  %v9810 = vld [vmem:[%s6 + $0x560] sm:$0xff]
  %v9811 = vld [vmem:[%s6 + $0x568] sm:$0xff]
  %v9812 = vld [vmem:[%s6 + $0x570] sm:$0xff]
  %v9813 = vld [vmem:[%s6 + $0x578] sm:$0xff]
  %v9814 = vld [vmem:[%s6 + $0x580] sm:$0xff]
  %v9815 = vld [vmem:[%s6 + $0x588] sm:$0xff]
  %v9816 = vld [vmem:[%s6 + $0x590] sm:$0xff]
  %v9817 = vld [vmem:[%s6 + $0x598] sm:$0xff]
  %v9818 = vld [vmem:[%s6 + $0x5a0] sm:$0xff]
  %v9819 = vld [vmem:[%s6 + $0x5a8] sm:$0xff]
  %v9820 = vld [vmem:[%s6 + $0x5b0] sm:$0xff]
  %v9821 = vld [vmem:[%s6 + $0x5b8] sm:$0xff]
  %v9822 = vld [vmem:[%s6 + $0x5c0] sm:$0xff]
  %v9823 = vld [vmem:[%s6 + $0x5c8] sm:$0xff]
  %v9824 = vld [vmem:[%s6 + $0x5d0] sm:$0xff]
  %v9825 = vld [vmem:[%s6 + $0x5d8] sm:$0xff]
  %v9826 = vld [vmem:[%s6 + $0x5e0] sm:$0xff]
  %v9827 = vld [vmem:[%s6 + $0x5e8] sm:$0xff]
  %v9828 = vld [vmem:[%s6 + $0x5f0] sm:$0xff]
  %v9829 = vld [vmem:[%s6 + $0x5f8] sm:$0xff]
  %v9830 = vld [vmem:[%s6 + $0x600] sm:$0xff]
  %v9831 = vld [vmem:[%s6 + $0x608] sm:$0xff]
  %v9832 = vld [vmem:[%s6 + $0x610] sm:$0xff]
  %v9833 = vld [vmem:[%s6 + $0x618] sm:$0xff]
  %v9834 = vld [vmem:[%s6 + $0x620] sm:$0xff]
  %v9835 = vld [vmem:[%s6 + $0x628] sm:$0xff]
  %v9836 = vld [vmem:[%s6 + $0x630] sm:$0xff]
  %v9837 = vld [vmem:[%s6 + $0x638] sm:$0xff]
  %v9838 = vld [vmem:[%s6 + $0x640] sm:$0xff]
  %v9839 = vld [vmem:[%s6 + $0x648] sm:$0xff]
  %v9840 = vld [vmem:[%s6 + $0x650] sm:$0xff]
  %v9841 = vld [vmem:[%s6 + $0x658] sm:$0xff]
  %v9842 = vld [vmem:[%s6 + $0x660] sm:$0xff]
  %v9843 = vld [vmem:[%s6 + $0x668] sm:$0xff]
  %v9844 = vld [vmem:[%s6 + $0x670] sm:$0xff]
  %v9845 = vld [vmem:[%s6 + $0x678] sm:$0xff]
  %v9846 = vld [vmem:[%s6 + $0x680] sm:$0xff]
  %v9847 = vld [vmem:[%s6 + $0x688] sm:$0xff]
  %v9848 = vld [vmem:[%s6 + $0x690] sm:$0xff]
  %v9849 = vld [vmem:[%s6 + $0x698] sm:$0xff]
  %v9850 = vld [vmem:[%s6 + $0x6a0] sm:$0xff]
  %v9851 = vld [vmem:[%s6 + $0x6a8] sm:$0xff]
  %v9852 = vld [vmem:[%s6 + $0x6b0] sm:$0xff]
  %v9853 = vld [vmem:[%s6 + $0x6b8] sm:$0xff]
  %v9854 = vld [vmem:[%s6 + $0x6c0] sm:$0xff]
  %v9855 = vld [vmem:[%s6 + $0x6c8] sm:$0xff]
  %v9856 = vld [vmem:[%s6 + $0x6d0] sm:$0xff]
  %v9857 = vld [vmem:[%s6 + $0x6d8] sm:$0xff]
  %v9858 = vld [vmem:[%s6 + $0x6e0] sm:$0xff]
  %v9859 = vld [vmem:[%s6 + $0x6e8] sm:$0xff]
  %v9860 = vld [vmem:[%s6 + $0x6f0] sm:$0xff]
  %v9861 = vld [vmem:[%s6 + $0x6f8] sm:$0xff]
  %v9862 = vld [vmem:[%s6 + $0x700] sm:$0xff]
  %v9863 = vld [vmem:[%s6 + $0x708] sm:$0xff]
  %v9864 = vld [vmem:[%s6 + $0x710] sm:$0xff]
  %v9865 = vld [vmem:[%s6 + $0x718] sm:$0xff]
  %v9866 = vld [vmem:[%s6 + $0x720] sm:$0xff]
  %v9867 = vld [vmem:[%s6 + $0x728] sm:$0xff]
  %v9868 = vld [vmem:[%s6 + $0x730] sm:$0xff]
  %v9869 = vld [vmem:[%s6 + $0x738] sm:$0xff]
  %v9870 = vld [vmem:[%s6 + $0x740] sm:$0xff]
  %v9871 = vld [vmem:[%s6 + $0x748] sm:$0xff]
  %v9872 = vld [vmem:[%s6 + $0x750] sm:$0xff]
  %v9873 = vld [vmem:[%s6 + $0x758] sm:$0xff]
  %v9874 = vld [vmem:[%s6 + $0x760] sm:$0xff]
  %v9875 = vld [vmem:[%s6 + $0x768] sm:$0xff]
  %v9876 = vld [vmem:[%s6 + $0x770] sm:$0xff]
  %v9877 = vld [vmem:[%s6 + $0x778] sm:$0xff]
  %v9878 = vld [vmem:[%s6 + $0x780] sm:$0xff]
  %v9879 = vld [vmem:[%s6 + $0x788] sm:$0xff]
  %v9880 = vld [vmem:[%s6 + $0x790] sm:$0xff]
  %v9881 = vld [vmem:[%s6 + $0x798] sm:$0xff]
  %v9882 = vld [vmem:[%s6 + $0x7a0] sm:$0xff]
  %v9883 = vld [vmem:[%s6 + $0x7a8] sm:$0xff]
  %v9884 = vld [vmem:[%s6 + $0x7b0] sm:$0xff]
  %v9885 = vld [vmem:[%s6 + $0x7b8] sm:$0xff]
  %v9886 = vld [vmem:[%s6 + $0x7c0] sm:$0xff]
  %v9887 = vld [vmem:[%s6 + $0x7c8] sm:$0xff]
  %v9888 = vld [vmem:[%s6 + $0x7d0] sm:$0xff]
  %v9889 = vld [vmem:[%s6 + $0x7d8] sm:$0xff]
  %v9890 = vld [vmem:[%s6 + $0x7e0] sm:$0xff]
  %v9891 = vld [vmem:[%s6 + $0x7e8] sm:$0xff]
  %v9892 = vld [vmem:[%s6 + $0x7f0] sm:$0xff]
  %v9893 = vld [vmem:[%s6 + $0x7f8] sm:$0xff]
  %v9894 = vld [vmem:[%s6 + $0x800] sm:$0xff]
  %v9895 = vld [vmem:[%s6 + $0x808] sm:$0xff]
  %v9896 = vld [vmem:[%s6 + $0x810] sm:$0xff]
  %v9897 = vld [vmem:[%s6 + $0x818] sm:$0xff]
  %v9898 = vld [vmem:[%s6 + $0x820] sm:$0xff]
  %v9899 = vld [vmem:[%s6 + $0x828] sm:$0xff]
  %v9900 = vld [vmem:[%s6 + $0x830] sm:$0xff]
  %v9901 = vld [vmem:[%s6 + $0x838] sm:$0xff]
  %v9902 = vld [vmem:[%s6 + $0x840] sm:$0xff]
  %v9903 = vld [vmem:[%s6 + $0x848] sm:$0xff]
  %v9904 = vld [vmem:[%s6 + $0x850] sm:$0xff]
  %v9905 = vld [vmem:[%s6 + $0x858] sm:$0xff]
  %v9906 = vld [vmem:[%s6 + $0x860] sm:$0xff]
  %v9907 = vld [vmem:[%s6 + $0x868] sm:$0xff]
  %v9908 = vld [vmem:[%s6 + $0x870] sm:$0xff]
  %v9909 = vld [vmem:[%s6 + $0x878] sm:$0xff]
  %v9910 = vld [vmem:[%s6 + $0x880] sm:$0xff]
  %v9911 = vld [vmem:[%s6 + $0x888] sm:$0xff]
  %v9912 = vld [vmem:[%s6 + $0x890] sm:$0xff]
  %v9913 = vld [vmem:[%s6 + $0x898] sm:$0xff]
  %v9914 = vld [vmem:[%s6 + $0x8a0] sm:$0xff]
  %v9915 = vld [vmem:[%s6 + $0x8a8] sm:$0xff]
  %v9916 = vld [vmem:[%s6 + $0x8b0] sm:$0xff]
  %v9917 = vld [vmem:[%s6 + $0x8b8] sm:$0xff]
  %v9918 = vld [vmem:[%s6 + $0x8c0] sm:$0xff]
  %v9919 = vld [vmem:[%s6 + $0x8c8] sm:$0xff]
  %v9920 = vld [vmem:[%s6 + $0x8d0] sm:$0xff]
  %v9921 = vld [vmem:[%s6 + $0x8d8] sm:$0xff]
  %v9922 = vld [vmem:[%s6 + $0x8e0] sm:$0xff]
  %v9923 = vld [vmem:[%s6 + $0x8e8] sm:$0xff]
  %v9924 = vld [vmem:[%s6 + $0x8f0] sm:$0xff]
  %v9925 = vld [vmem:[%s6 + $0x8f8] sm:$0xff]
  %v9926 = vld [vmem:[%s6 + $0x900] sm:$0xff]
  %v9927 = vld [vmem:[%s6 + $0x908] sm:$0xff]
  %v9928 = vld [vmem:[%s6 + $0x910] sm:$0xff]
  %v9929 = vld [vmem:[%s6 + $0x918] sm:$0xff]
  %v9930 = vld [vmem:[%s6 + $0x920] sm:$0xff]
  %v9931 = vld [vmem:[%s6 + $0x928] sm:$0xff]
  %v9932 = vld [vmem:[%s6 + $0x930] sm:$0xff]
  %v9933 = vld [vmem:[%s6 + $0x938] sm:$0xff]
  %v9934 = vld [vmem:[%s6 + $0x940] sm:$0xff]
  %v9935 = vld [vmem:[%s6 + $0x948] sm:$0xff]
  %v9936 = vld [vmem:[%s6 + $0x950] sm:$0xff]
  %v9937 = vld [vmem:[%s6 + $0x958] sm:$0xff]
  %v9938 = vld [vmem:[%s6 + $0x960] sm:$0xff]
  %v9939 = vld [vmem:[%s6 + $0x968] sm:$0xff]
  %v9940 = vld [vmem:[%s6 + $0x970] sm:$0xff]
  %v9941 = vld [vmem:[%s6 + $0x978] sm:$0xff]
  %v9942 = vld [vmem:[%s6 + $0x980] sm:$0xff]
  %v9943 = vld [vmem:[%s6 + $0x988] sm:$0xff]
  %v9944 = vld [vmem:[%s6 + $0x990] sm:$0xff]
  %v9945 = vld [vmem:[%s6 + $0x998] sm:$0xff]
  %v9946 = vld [vmem:[%s6 + $0x9a0] sm:$0xff]
  %v9947 = vld [vmem:[%s6 + $0x9a8] sm:$0xff]
  %v9948 = vld [vmem:[%s6 + $0x9b0] sm:$0xff]
  %v9949 = vld [vmem:[%s6 + $0x9b8] sm:$0xff]
  %v9950 = vld [vmem:[%s6 + $0x9c0] sm:$0xff]
  %v9951 = vld [vmem:[%s6 + $0x9c8] sm:$0xff]
  %v9952 = vld [vmem:[%s6 + $0x9d0] sm:$0xff]
  %v9953 = vld [vmem:[%s6 + $0x9d8] sm:$0xff]
  %v9954 = vld [vmem:[%s6 + $0x9e0] sm:$0xff]
  %v9955 = vld [vmem:[%s6 + $0x9e8] sm:$0xff]
  %v9956 = vld [vmem:[%s6 + $0x9f0] sm:$0xff]
  %v9957 = vld [vmem:[%s6 + $0x9f8] sm:$0xff]
  %v9958 = vld [vmem:[%s6 + $0xa00] sm:$0xff]
  %v9959 = vld [vmem:[%s6 + $0xa08] sm:$0xff]
  %v9960 = vld [vmem:[%s6 + $0xa10] sm:$0xff]
  %v9961 = vld [vmem:[%s6 + $0xa18] sm:$0xff]
  %v9962 = vld [vmem:[%s6 + $0xa20] sm:$0xff]
  %v9963 = vld [vmem:[%s6 + $0xa28] sm:$0xff]
  %v9964 = vld [vmem:[%s6 + $0xa30] sm:$0xff]
  %v9965 = vld [vmem:[%s6 + $0xa38] sm:$0xff]
  %v9966 = vld [vmem:[%s6 + $0xa40] sm:$0xff]
  %v9967 = vld [vmem:[%s6 + $0xa48] sm:$0xff]
  %v9968 = vld [vmem:[%s6 + $0xa50] sm:$0xff]
  %v9969 = vld [vmem:[%s6 + $0xa58] sm:$0xff]
  %v9970 = vld [vmem:[%s6 + $0xa60] sm:$0xff]
  %v9971 = vld [vmem:[%s6 + $0xa68] sm:$0xff]
  %v9972 = vld [vmem:[%s6 + $0xa70] sm:$0xff]
  %v9973 = vld [vmem:[%s6 + $0xa78] sm:$0xff]
  %v9974 = vld [vmem:[%s6 + $0xa80] sm:$0xff]
  %v9975 = vld [vmem:[%s6 + $0xa88] sm:$0xff]
  %v9976 = vld [vmem:[%s6 + $0xa90] sm:$0xff]
  %v9977 = vld [vmem:[%s6 + $0xa98] sm:$0xff]
  %v9978 = vld [vmem:[%s6 + $0xaa0] sm:$0xff]
  %v9979 = vld [vmem:[%s6 + $0xaa8] sm:$0xff]
  %v9980 = vld [vmem:[%s6 + $0xab0] sm:$0xff]
  %v9981 = vld [vmem:[%s6 + $0xab8] sm:$0xff]
  %v9982 = vld [vmem:[%s6 + $0xac0] sm:$0xff]
  %v9983 = vld [vmem:[%s6 + $0xac8] sm:$0xff]
  %v9984 = vld [vmem:[%s6 + $0xad0] sm:$0xff]
  %v9985 = vld [vmem:[%s6 + $0xad8] sm:$0xff]
  %v9986 = vld [vmem:[%s6 + $0xae0] sm:$0xff]
  %v9987 = vld [vmem:[%s6 + $0xae8] sm:$0xff]
  %v9988 = vld [vmem:[%s6 + $0xaf0] sm:$0xff]
  %v9989 = vld [vmem:[%s6 + $0xaf8] sm:$0xff]
  %v9990 = vld [vmem:[%s6 + $0xb00] sm:$0xff]
  %v9991 = vld [vmem:[%s6 + $0xb08] sm:$0xff]
  %v9992 = vld [vmem:[%s6 + $0xb10] sm:$0xff]
  %v9993 = vld [vmem:[%s6 + $0xb18] sm:$0xff]
  %v9994 = vld [vmem:[%s6 + $0xb20] sm:$0xff]
  %v9995 = vld [vmem:[%s6 + $0xb28] sm:$0xff]
  %v9996 = vld [vmem:[%s6 + $0xb30] sm:$0xff]
  %v9997 = vld [vmem:[%s6 + $0xb38] sm:$0xff]
  %v9998 = vld [vmem:[%s6 + $0xb40] sm:$0xff]
  %v9999 = vld [vmem:[%s6 + $0xb48] sm:$0xff]
  %v10000 = vld [vmem:[%s6 + $0xb50] sm:$0xff]
  %v10001 = vld [vmem:[%s6 + $0xb58] sm:$0xff]
  %v10002 = vld [vmem:[%s6 + $0xb60] sm:$0xff]
  %v10003 = vld [vmem:[%s6 + $0xb68] sm:$0xff]
  %v10004 = vld [vmem:[%s6 + $0xb70] sm:$0xff]
  %v10005 = vld [vmem:[%s6 + $0xb78] sm:$0xff]
  %v10006 = vld [vmem:[%s6 + $0xb80] sm:$0xff]
  %v10007 = vld [vmem:[%s6 + $0xb88] sm:$0xff]
  %v10008 = vld [vmem:[%s6 + $0xb90] sm:$0xff]
  %v10009 = vld [vmem:[%s6 + $0xb98] sm:$0xff]
  %v10010 = vld [vmem:[%s6 + $0xba0] sm:$0xff]
  %v10011 = vld [vmem:[%s6 + $0xba8] sm:$0xff]
  %v10012 = vld [vmem:[%s6 + $0xbb0] sm:$0xff]
  %v10013 = vld [vmem:[%s6 + $0xbb8] sm:$0xff]
  %v10014 = vld [vmem:[%s6 + $0xbc0] sm:$0xff]
  %v10015 = vld [vmem:[%s6 + $0xbc8] sm:$0xff]
  %v10016 = vld [vmem:[%s6 + $0xbd0] sm:$0xff]
  %v10017 = vld [vmem:[%s6 + $0xbd8] sm:$0xff]
  %v10018 = vld [vmem:[%s6 + $0xbe0] sm:$0xff]
  %v10019 = vld [vmem:[%s6 + $0xbe8] sm:$0xff]
  %v10020 = vld [vmem:[%s6 + $0xbf0] sm:$0xff]
  %v10021 = vld [vmem:[%s6 + $0xbf8] sm:$0xff]
  %v10022 = vld [vmem:[%s6 + $0xc00] sm:$0xff]
  %v10023 = vld [vmem:[%s6 + $0xc08] sm:$0xff]
  %v10024 = vld [vmem:[%s6 + $0xc10] sm:$0xff]
  %v10025 = vld [vmem:[%s6 + $0xc18] sm:$0xff]
  %v10026 = vld [vmem:[%s6 + $0xc20] sm:$0xff]
  %v10027 = vld [vmem:[%s6 + $0xc28] sm:$0xff]
  %v10028 = vld [vmem:[%s6 + $0xc30] sm:$0xff]
  %v10029 = vld [vmem:[%s6 + $0xc38] sm:$0xff]
  %v10030 = vld [vmem:[%s6 + $0xc40] sm:$0xff]
  %v10031 = vld [vmem:[%s6 + $0xc48] sm:$0xff]
  %v10032 = vld [vmem:[%s6 + $0xc50] sm:$0xff]
  %v10033 = vld [vmem:[%s6 + $0xc58] sm:$0xff]
  %v10034 = vld [vmem:[%s6 + $0xc60] sm:$0xff]
  %v10035 = vld [vmem:[%s6 + $0xc68] sm:$0xff]
  %v10036 = vld [vmem:[%s6 + $0xc70] sm:$0xff]
  %v10037 = vld [vmem:[%s6 + $0xc78] sm:$0xff]
  %v10038 = vld [vmem:[%s7] sm:$0x1]
  %v10040 = vlaneseq
  %v10041 = vshrl.u32 %v10040, 7
  %v10042 = vsub.s32 0, %v10041
  %v10043 = vrot.slane %v10038, %v10042
  %10045 = vmatprep.subr.mxu0 0.0
  %10046 = vmatpush1.msra.mxu0 %v9638
  %10047 = vmatprep.subr.mxu0 0.0
  %10048 = vmatpush1.msra.mxu0 %v9639
  %10049 = vmatprep.subr.mxu0 0.0
  %10050 = vmatpush1.msra.mxu0 %v9640
  %10051 = vmatprep.subr.mxu0 0.0
  %10052 = vmatpush1.msra.mxu0 %v9641
  %10053 = vmatprep.subr.mxu0 0.0
  %10054 = vmatpush1.msra.mxu0 %v9642
  %10055 = vmatprep.subr.mxu0 0.0
  %10056 = vmatpush1.msra.mxu0 %v9643
  %10057 = vmatprep.subr.mxu0 0.0
  %10058 = vmatpush1.msra.mxu0 %v9644
  %10059 = vmatprep.subr.mxu0 0.0
  %10060 = vmatpush1.msra.mxu0 %v9645
  %10061 = vmatprep.subr.mxu0 0.0
  %10062 = vmatpush1.msra.mxu0 %v9646
  %10063 = vmatprep.subr.mxu0 0.0
  %10064 = vmatpush1.msra.mxu0 %v9647
  %10065 = vmatprep.subr.mxu0 0.0
  %10066 = vmatpush1.msra.mxu0 %v9648
  %10067 = vmatprep.subr.mxu0 0.0
  %10068 = vmatpush1.msra.mxu0 %v9649
  %10069 = vmatprep.subr.mxu0 0.0
  %10070 = vmatpush1.msra.mxu0 %v9650
  %10071 = vmatprep.subr.mxu0 0.0
  %10072 = vmatpush1.msra.mxu0 %v9651
  %10073 = vmatprep.subr.mxu0 0.0
  %10074 = vmatpush1.msra.mxu0 %v9652
  %10075 = vmatprep.subr.mxu0 0.0
  %10076 = vmatpush1.msra.mxu0 %v9653
  %10077 = vmatprep.subr.mxu0 0.0
  %10078 = vmatpush1.msra.mxu0 %v9654
  %10079 = vmatprep.subr.mxu0 0.0
  %10080 = vmatpush1.msra.mxu0 %v9655
  %10081 = vmatprep.subr.mxu0 0.0
  %10082 = vmatpush1.msra.mxu0 %v9656
  %10083 = vmatprep.subr.mxu0 0.0
  %10084 = vmatpush1.msra.mxu0 %v9657
  %10085 = vmatprep.subr.mxu0 0.0
  %10086 = vmatpush1.msra.mxu0 %v9658
  %10087 = vmatprep.subr.mxu0 0.0
  %10088 = vmatpush1.msra.mxu0 %v9659
  %10089 = vmatprep.subr.mxu0 0.0
  %10090 = vmatpush1.msra.mxu0 %v9660
  %10091 = vmatprep.subr.mxu0 0.0
  %10092 = vmatpush1.msra.mxu0 %v9661
  %10093 = vmatprep.subr.mxu0 0.0
  %10094 = vmatpush1.msra.mxu0 %v9662
  %10095 = vmatprep.subr.mxu0 0.0
  %10096 = vmatpush1.msra.mxu0 %v9663
  %10097 = vmatprep.subr.mxu0 0.0
  %10098 = vmatpush1.msra.mxu0 %v9664
  %10099 = vmatprep.subr.mxu0 0.0
  %10100 = vmatpush1.msra.mxu0 %v9665
  %10101 = vmatprep.subr.mxu0 0.0
  %10102 = vmatpush1.msra.mxu0 %v9666
  %10103 = vmatprep.subr.mxu0 0.0
  %10104 = vmatpush1.msra.mxu0 %v9667
  %10105 = vmatprep.subr.mxu0 0.0
  %10106 = vmatpush1.msra.mxu0 %v9668
  %10107 = vmatprep.subr.mxu0 0.0
  %10108 = vmatpush1.msra.mxu0 %v9669
  %10109 = vmatprep.mubr.f32.mxu0 %v9614
  %10110 = vmatmul.mubr.f32.gmra.mrb[0].mxu0 %v9613
  %v10111 = vpop.f32.mrb[0].mxu0
  %v10112 = vadd.f32 %v10043, %v10111
  %v10113 = vpop.f32.mrb[0].mxu0
  %10114 = vdwg.mxu0
  %10115 = vmatprep.subr.mxu0 0.0
  %10116 = vmatpush1.msra.mxu0 %v9670
  %10117 = vmatprep.subr.mxu0 0.0
  %10118 = vmatpush1.msra.mxu0 %v9671
  %10119 = vmatprep.subr.mxu0 0.0
  %10120 = vmatpush1.msra.mxu0 %v9672
  %10121 = vmatprep.subr.mxu0 0.0
  %10122 = vmatpush1.msra.mxu0 %v9673
  %10123 = vmatprep.subr.mxu0 0.0
  %10124 = vmatpush1.msra.mxu0 %v9674
  %10125 = vmatprep.subr.mxu0 0.0
  %10126 = vmatpush1.msra.mxu0 %v9675
  %10127 = vmatprep.subr.mxu0 0.0
  %10128 = vmatpush1.msra.mxu0 %v9676
  %10129 = vmatprep.subr.mxu0 0.0
  %10130 = vmatpush1.msra.mxu0 %v9677
  %10131 = vmatprep.subr.mxu0 0.0
  %10132 = vmatpush1.msra.mxu0 %v9678
  %10133 = vmatprep.subr.mxu0 0.0
  %10134 = vmatpush1.msra.mxu0 %v9679
  %10135 = vmatprep.subr.mxu0 0.0
  %10136 = vmatpush1.msra.mxu0 %v9680
  %10137 = vmatprep.subr.mxu0 0.0
  %10138 = vmatpush1.msra.mxu0 %v9681
  %10139 = vmatprep.subr.mxu0 0.0
  %10140 = vmatpush1.msra.mxu0 %v9682
  %10141 = vmatprep.subr.mxu0 0.0
  %10142 = vmatpush1.msra.mxu0 %v9683
  %10143 = vmatprep.subr.mxu0 0.0
  %10144 = vmatpush1.msra.mxu0 %v9684
  %10145 = vmatprep.subr.mxu0 0.0
  %10146 = vmatpush1.msra.mxu0 %v9685
  %10147 = vmatprep.subr.mxu0 0.0
  %10148 = vmatpush1.msra.mxu0 %v9686
  %10149 = vmatprep.subr.mxu0 0.0
  %10150 = vmatpush1.msra.mxu0 %v9687
  %10151 = vmatprep.subr.mxu0 0.0
  %10152 = vmatpush1.msra.mxu0 %v9688
  %10153 = vmatprep.subr.mxu0 0.0
  %10154 = vmatpush1.msra.mxu0 %v9689
  %10155 = vmatprep.subr.mxu0 0.0
  %10156 = vmatpush1.msra.mxu0 %v9690
  %10157 = vmatprep.subr.mxu0 0.0
  %10158 = vmatpush1.msra.mxu0 %v9691
  %10159 = vmatprep.subr.mxu0 0.0
  %10160 = vmatpush1.msra.mxu0 %v9692
  %10161 = vmatprep.subr.mxu0 0.0
  %10162 = vmatpush1.msra.mxu0 %v9693
  %10163 = vmatprep.subr.mxu0 0.0
  %10164 = vmatpush1.msra.mxu0 %v9694
  %10165 = vmatprep.subr.mxu0 0.0
  %10166 = vmatpush1.msra.mxu0 %v9695
  %10167 = vmatprep.subr.mxu0 0.0
  %10168 = vmatpush1.msra.mxu0 %v9696
  %10169 = vmatprep.subr.mxu0 0.0
  %10170 = vmatpush1.msra.mxu0 %v9697
  %10171 = vmatprep.subr.mxu0 0.0
  %10172 = vmatpush1.msra.mxu0 %v9698
  %10173 = vmatprep.subr.mxu0 0.0
  %10174 = vmatpush1.msra.mxu0 %v9699
  %10175 = vmatprep.subr.mxu0 0.0
  %10176 = vmatpush1.msra.mxu0 %v9700
  %10177 = vmatprep.subr.mxu0 0.0
  %10178 = vmatpush1.msra.mxu0 %v9701
  %10179 = vmatprep.mubr.f32.mxu0 %v9616
  %10180 = vmatmul.mubr.f32.gmra.mrb[0].mxu0 %v9615
  %v10181 = vpop.f32.mrb[0].mxu0
  %v10182 = vadd.f32 %v10112, %v10181
  %v10183 = vpop.f32.mrb[0].mxu0
  %10184 = vdwg.mxu0
  %10185 = vmatprep.subr.mxu0 0.0
  %10186 = vmatpush1.msra.mxu0 %v9702
  %10187 = vmatprep.subr.mxu0 0.0
  %10188 = vmatpush1.msra.mxu0 %v9703
  %10189 = vmatprep.subr.mxu0 0.0
  %10190 = vmatpush1.msra.mxu0 %v9704
  %10191 = vmatprep.subr.mxu0 0.0
  %10192 = vmatpush1.msra.mxu0 %v9705
  %10193 = vmatprep.subr.mxu0 0.0
  %10194 = vmatpush1.msra.mxu0 %v9706
  %10195 = vmatprep.subr.mxu0 0.0
  %10196 = vmatpush1.msra.mxu0 %v9707
  %10197 = vmatprep.subr.mxu0 0.0
  %10198 = vmatpush1.msra.mxu0 %v9708
  %10199 = vmatprep.subr.mxu0 0.0
  %10200 = vmatpush1.msra.mxu0 %v9709
  %10201 = vmatprep.subr.mxu0 0.0
  %10202 = vmatpush1.msra.mxu0 %v9710
  %10203 = vmatprep.subr.mxu0 0.0
  %10204 = vmatpush1.msra.mxu0 %v9711
  %10205 = vmatprep.subr.mxu0 0.0
  %10206 = vmatpush1.msra.mxu0 %v9712
  %10207 = vmatprep.subr.mxu0 0.0
  %10208 = vmatpush1.msra.mxu0 %v9713
  %10209 = vmatprep.subr.mxu0 0.0
  %10210 = vmatpush1.msra.mxu0 %v9714
  %10211 = vmatprep.subr.mxu0 0.0
  %10212 = vmatpush1.msra.mxu0 %v9715
  %10213 = vmatprep.subr.mxu0 0.0
  %10214 = vmatpush1.msra.mxu0 %v9716
  %10215 = vmatprep.subr.mxu0 0.0
  %10216 = vmatpush1.msra.mxu0 %v9717
  %10217 = vmatprep.subr.mxu0 0.0
  %10218 = vmatpush1.msra.mxu0 %v9718
  %10219 = vmatprep.subr.mxu0 0.0
  %10220 = vmatpush1.msra.mxu0 %v9719
  %10221 = vmatprep.subr.mxu0 0.0
  %10222 = vmatpush1.msra.mxu0 %v9720
  %10223 = vmatprep.subr.mxu0 0.0
  %10224 = vmatpush1.msra.mxu0 %v9721
  %10225 = vmatprep.subr.mxu0 0.0
  %10226 = vmatpush1.msra.mxu0 %v9722
  %10227 = vmatprep.subr.mxu0 0.0
  %10228 = vmatpush1.msra.mxu0 %v9723
  %10229 = vmatprep.subr.mxu0 0.0
  %10230 = vmatpush1.msra.mxu0 %v9724
  %10231 = vmatprep.subr.mxu0 0.0
  %10232 = vmatpush1.msra.mxu0 %v9725
  %10233 = vmatprep.subr.mxu0 0.0
  %10234 = vmatpush1.msra.mxu0 %v9726
  %10235 = vmatprep.subr.mxu0 0.0
  %10236 = vmatpush1.msra.mxu0 %v9727
  %10237 = vmatprep.subr.mxu0 0.0
  %10238 = vmatpush1.msra.mxu0 %v9728
  %10239 = vmatprep.subr.mxu0 0.0
  %10240 = vmatpush1.msra.mxu0 %v9729
  %10241 = vmatprep.subr.mxu0 0.0
  %10242 = vmatpush1.msra.mxu0 %v9730
  %10243 = vmatprep.subr.mxu0 0.0
  %10244 = vmatpush1.msra.mxu0 %v9731
  %10245 = vmatprep.subr.mxu0 0.0
  %10246 = vmatpush1.msra.mxu0 %v9732
  %10247 = vmatprep.subr.mxu0 0.0
  %10248 = vmatpush1.msra.mxu0 %v9733
  %10249 = vmatprep.mubr.f32.mxu0 %v9618
  %10250 = vmatmul.mubr.f32.gmra.mrb[0].mxu0 %v9617
  %v10251 = vpop.f32.mrb[0].mxu0
  %v10252 = vadd.f32 %v10182, %v10251
  %v10253 = vpop.f32.mrb[0].mxu0
  %10254 = vdwg.mxu0
  %10255 = vmatprep.subr.mxu0 0.0
  %10256 = vmatpush1.msra.mxu0 %v9734
  %10257 = vmatprep.subr.mxu0 0.0
  %10258 = vmatpush1.msra.mxu0 %v9735
  %10259 = vmatprep.subr.mxu0 0.0
  %10260 = vmatpush1.msra.mxu0 %v9736
  %10261 = vmatprep.subr.mxu0 0.0
  %10262 = vmatpush1.msra.mxu0 %v9737
  %10263 = vmatprep.subr.mxu0 0.0
  %10264 = vmatpush1.msra.mxu0 %v9738
  %10265 = vmatprep.subr.mxu0 0.0
  %10266 = vmatpush1.msra.mxu0 %v9739
  %10267 = vmatprep.subr.mxu0 0.0
  %10268 = vmatpush1.msra.mxu0 %v9740
  %10269 = vmatprep.subr.mxu0 0.0
  %10270 = vmatpush1.msra.mxu0 %v9741
  %10271 = vmatprep.subr.mxu0 0.0
  %10272 = vmatpush1.msra.mxu0 %v9742
  %10273 = vmatprep.subr.mxu0 0.0
  %10274 = vmatpush1.msra.mxu0 %v9743
  %10275 = vmatprep.subr.mxu0 0.0
  %10276 = vmatpush1.msra.mxu0 %v9744
  %10277 = vmatprep.subr.mxu0 0.0
  %10278 = vmatpush1.msra.mxu0 %v9745
  %10279 = vmatprep.subr.mxu0 0.0
  %10280 = vmatpush1.msra.mxu0 %v9746
  %10281 = vmatprep.subr.mxu0 0.0
  %10282 = vmatpush1.msra.mxu0 %v9747
  %10283 = vmatprep.subr.mxu0 0.0
  %10284 = vmatpush1.msra.mxu0 %v9748
  %10285 = vmatprep.subr.mxu0 0.0
  %10286 = vmatpush1.msra.mxu0 %v9749
  %10287 = vmatprep.subr.mxu0 0.0
  %10288 = vmatpush1.msra.mxu0 %v9750
  %10289 = vmatprep.subr.mxu0 0.0
  %10290 = vmatpush1.msra.mxu0 %v9751
  %10291 = vmatprep.subr.mxu0 0.0
  %10292 = vmatpush1.msra.mxu0 %v9752
  %10293 = vmatprep.subr.mxu0 0.0
  %10294 = vmatpush1.msra.mxu0 %v9753
  %10295 = vmatprep.subr.mxu0 0.0
  %10296 = vmatpush1.msra.mxu0 %v9754
  %10297 = vmatprep.subr.mxu0 0.0
  %10298 = vmatpush1.msra.mxu0 %v9755
  %10299 = vmatprep.subr.mxu0 0.0
  %10300 = vmatpush1.msra.mxu0 %v9756
  %10301 = vmatprep.subr.mxu0 0.0
  %10302 = vmatpush1.msra.mxu0 %v9757
  %10303 = vmatprep.subr.mxu0 0.0
  %10304 = vmatpush1.msra.mxu0 %v9758
  %10305 = vmatprep.subr.mxu0 0.0
  %10306 = vmatpush1.msra.mxu0 %v9759
  %10307 = vmatprep.subr.mxu0 0.0
  %10308 = vmatpush1.msra.mxu0 %v9760
  %10309 = vmatprep.subr.mxu0 0.0
  %10310 = vmatpush1.msra.mxu0 %v9761
  %10311 = vmatprep.subr.mxu0 0.0
  %10312 = vmatpush1.msra.mxu0 %v9762
  %10313 = vmatprep.subr.mxu0 0.0
  %10314 = vmatpush1.msra.mxu0 %v9763
  %10315 = vmatprep.subr.mxu0 0.0
  %10316 = vmatpush1.msra.mxu0 %v9764
  %10317 = vmatprep.subr.mxu0 0.0
  %10318 = vmatpush1.msra.mxu0 %v9765
  %10319 = vmatprep.mubr.f32.mxu0 %v9620
  %10320 = vmatmul.mubr.f32.gmra.mrb[0].mxu0 %v9619
  %v10321 = vpop.f32.mrb[0].mxu0
  %v10322 = vadd.f32 %v10252, %v10321
  %v10323 = vpop.f32.mrb[0].mxu0
  %10324 = vdwg.mxu0
  %10325 = vmatprep.subr.mxu0 0.0
  %10326 = vmatpush1.msra.mxu0 %v9766
  %10327 = vmatprep.subr.mxu0 0.0
  %10328 = vmatpush1.msra.mxu0 %v9767
  %10329 = vmatprep.subr.mxu0 0.0
  %10330 = vmatpush1.msra.mxu0 %v9768
  %10331 = vmatprep.subr.mxu0 0.0
  %10332 = vmatpush1.msra.mxu0 %v9769
  %10333 = vmatprep.subr.mxu0 0.0
  %10334 = vmatpush1.msra.mxu0 %v9770
  %10335 = vmatprep.subr.mxu0 0.0
  %10336 = vmatpush1.msra.mxu0 %v9771
  %10337 = vmatprep.subr.mxu0 0.0
  %10338 = vmatpush1.msra.mxu0 %v9772
  %10339 = vmatprep.subr.mxu0 0.0
  %10340 = vmatpush1.msra.mxu0 %v9773
  %10341 = vmatprep.subr.mxu0 0.0
  %10342 = vmatpush1.msra.mxu0 %v9774
  %10343 = vmatprep.subr.mxu0 0.0
  %10344 = vmatpush1.msra.mxu0 %v9775
  %10345 = vmatprep.subr.mxu0 0.0
  %10346 = vmatpush1.msra.mxu0 %v9776
  %10347 = vmatprep.subr.mxu0 0.0
  %10348 = vmatpush1.msra.mxu0 %v9777
  %10349 = vmatprep.subr.mxu0 0.0
  %10350 = vmatpush1.msra.mxu0 %v9778
  %10351 = vmatprep.subr.mxu0 0.0
  %10352 = vmatpush1.msra.mxu0 %v9779
  %10353 = vmatprep.subr.mxu0 0.0
  %10354 = vmatpush1.msra.mxu0 %v9780
  %10355 = vmatprep.subr.mxu0 0.0
  %10356 = vmatpush1.msra.mxu0 %v9781
  %10357 = vmatprep.subr.mxu0 0.0
  %10358 = vmatpush1.msra.mxu0 %v9782
  %10359 = vmatprep.subr.mxu0 0.0
  %10360 = vmatpush1.msra.mxu0 %v9783
  %10361 = vmatprep.subr.mxu0 0.0
  %10362 = vmatpush1.msra.mxu0 %v9784
  %10363 = vmatprep.subr.mxu0 0.0
  %10364 = vmatpush1.msra.mxu0 %v9785
  %10365 = vmatprep.subr.mxu0 0.0
  %10366 = vmatpush1.msra.mxu0 %v9786
  %10367 = vmatprep.subr.mxu0 0.0
  %10368 = vmatpush1.msra.mxu0 %v9787
  %10369 = vmatprep.subr.mxu0 0.0
  %10370 = vmatpush1.msra.mxu0 %v9788
  %10371 = vmatprep.subr.mxu0 0.0
  %10372 = vmatpush1.msra.mxu0 %v9789
  %10373 = vmatprep.subr.mxu0 0.0
  %10374 = vmatpush1.msra.mxu0 %v9790
  %10375 = vmatprep.subr.mxu0 0.0
  %10376 = vmatpush1.msra.mxu0 %v9791
  %10377 = vmatprep.subr.mxu0 0.0
  %10378 = vmatpush1.msra.mxu0 %v9792
  %10379 = vmatprep.subr.mxu0 0.0
  %10380 = vmatpush1.msra.mxu0 %v9793
  %10381 = vmatprep.subr.mxu0 0.0
  %10382 = vmatpush1.msra.mxu0 %v9794
  %10383 = vmatprep.subr.mxu0 0.0
  %10384 = vmatpush1.msra.mxu0 %v9795
  %10385 = vmatprep.subr.mxu0 0.0
  %10386 = vmatpush1.msra.mxu0 %v9796
  %10387 = vmatprep.subr.mxu0 0.0
  %10388 = vmatpush1.msra.mxu0 %v9797
  %10389 = vmatprep.mubr.f32.mxu0 %v9622
  %10390 = vmatmul.mubr.f32.gmra.mrb[0].mxu0 %v9621
  %v10391 = vpop.f32.mrb[0].mxu0
  %v10392 = vadd.f32 %v10322, %v10391
  %v10393 = vpop.f32.mrb[0].mxu0
  %10394 = vdwg.mxu0
  %10395 = vmatprep.subr.mxu0 0.0
  %10396 = vmatpush1.msra.mxu0 %v9798
  %10397 = vmatprep.subr.mxu0 0.0
  %10398 = vmatpush1.msra.mxu0 %v9799
  %10399 = vmatprep.subr.mxu0 0.0
  %10400 = vmatpush1.msra.mxu0 %v9800
  %10401 = vmatprep.subr.mxu0 0.0
  %10402 = vmatpush1.msra.mxu0 %v9801
  %10403 = vmatprep.subr.mxu0 0.0
  %10404 = vmatpush1.msra.mxu0 %v9802
  %10405 = vmatprep.subr.mxu0 0.0
  %10406 = vmatpush1.msra.mxu0 %v9803
  %10407 = vmatprep.subr.mxu0 0.0
  %10408 = vmatpush1.msra.mxu0 %v9804
  %10409 = vmatprep.subr.mxu0 0.0
  %10410 = vmatpush1.msra.mxu0 %v9805
  %10411 = vmatprep.subr.mxu0 0.0
  %10412 = vmatpush1.msra.mxu0 %v9806
  %10413 = vmatprep.subr.mxu0 0.0
  %10414 = vmatpush1.msra.mxu0 %v9807
  %10415 = vmatprep.subr.mxu0 0.0
  %10416 = vmatpush1.msra.mxu0 %v9808
  %10417 = vmatprep.subr.mxu0 0.0
  %10418 = vmatpush1.msra.mxu0 %v9809
  %10419 = vmatprep.subr.mxu0 0.0
  %10420 = vmatpush1.msra.mxu0 %v9810
  %10421 = vmatprep.subr.mxu0 0.0
  %10422 = vmatpush1.msra.mxu0 %v9811
  %10423 = vmatprep.subr.mxu0 0.0
  %10424 = vmatpush1.msra.mxu0 %v9812
  %10425 = vmatprep.subr.mxu0 0.0
  %10426 = vmatpush1.msra.mxu0 %v9813
  %10427 = vmatprep.subr.mxu0 0.0
  %10428 = vmatpush1.msra.mxu0 %v9814
  %10429 = vmatprep.subr.mxu0 0.0
  %10430 = vmatpush1.msra.mxu0 %v9815
  %10431 = vmatprep.subr.mxu0 0.0
  %10432 = vmatpush1.msra.mxu0 %v9816
  %10433 = vmatprep.subr.mxu0 0.0
  %10434 = vmatpush1.msra.mxu0 %v9817
  %10435 = vmatprep.subr.mxu0 0.0
  %10436 = vmatpush1.msra.mxu0 %v9818
  %10437 = vmatprep.subr.mxu0 0.0
  %10438 = vmatpush1.msra.mxu0 %v9819
  %10439 = vmatprep.subr.mxu0 0.0
  %10440 = vmatpush1.msra.mxu0 %v9820
  %10441 = vmatprep.subr.mxu0 0.0
  %10442 = vmatpush1.msra.mxu0 %v9821
  %10443 = vmatprep.subr.mxu0 0.0
  %10444 = vmatpush1.msra.mxu0 %v9822
  %10445 = vmatprep.subr.mxu0 0.0
  %10446 = vmatpush1.msra.mxu0 %v9823
  %10447 = vmatprep.subr.mxu0 0.0
  %10448 = vmatpush1.msra.mxu0 %v9824
  %10449 = vmatprep.subr.mxu0 0.0
  %10450 = vmatpush1.msra.mxu0 %v9825
  %10451 = vmatprep.subr.mxu0 0.0
  %10452 = vmatpush1.msra.mxu0 %v9826
  %10453 = vmatprep.subr.mxu0 0.0
  %10454 = vmatpush1.msra.mxu0 %v9827
  %10455 = vmatprep.subr.mxu0 0.0
  %10456 = vmatpush1.msra.mxu0 %v9828
  %10457 = vmatprep.subr.mxu0 0.0
  %10458 = vmatpush1.msra.mxu0 %v9829
  %10459 = vmatprep.mubr.f32.mxu0 %v9624
  %10460 = vmatmul.mubr.f32.gmra.mrb[0].mxu0 %v9623
  %v10461 = vpop.f32.mrb[0].mxu0
  %v10462 = vadd.f32 %v10392, %v10461
  %v10463 = vpop.f32.mrb[0].mxu0
  %10464 = vdwg.mxu0
  %10465 = vmatprep.subr.mxu0 0.0
  %10466 = vmatpush1.msra.mxu0 %v9830
  %10467 = vmatprep.subr.mxu0 0.0
  %10468 = vmatpush1.msra.mxu0 %v9831
  %10469 = vmatprep.subr.mxu0 0.0
  %10470 = vmatpush1.msra.mxu0 %v9832
  %10471 = vmatprep.subr.mxu0 0.0
  %10472 = vmatpush1.msra.mxu0 %v9833
  %10473 = vmatprep.subr.mxu0 0.0
  %10474 = vmatpush1.msra.mxu0 %v9834
  %10475 = vmatprep.subr.mxu0 0.0
  %10476 = vmatpush1.msra.mxu0 %v9835
  %10477 = vmatprep.subr.mxu0 0.0
  %10478 = vmatpush1.msra.mxu0 %v9836
  %10479 = vmatprep.subr.mxu0 0.0
  %10480 = vmatpush1.msra.mxu0 %v9837
  %10481 = vmatprep.subr.mxu0 0.0
  %10482 = vmatpush1.msra.mxu0 %v9838
  %10483 = vmatprep.subr.mxu0 0.0
  %10484 = vmatpush1.msra.mxu0 %v9839
  %10485 = vmatprep.subr.mxu0 0.0
  %10486 = vmatpush1.msra.mxu0 %v9840
  %10487 = vmatprep.subr.mxu0 0.0
  %10488 = vmatpush1.msra.mxu0 %v9841
  %10489 = vmatprep.subr.mxu0 0.0
  %10490 = vmatpush1.msra.mxu0 %v9842
  %10491 = vmatprep.subr.mxu0 0.0
  %10492 = vmatpush1.msra.mxu0 %v9843
  %10493 = vmatprep.subr.mxu0 0.0
  %10494 = vmatpush1.msra.mxu0 %v9844
  %10495 = vmatprep.subr.mxu0 0.0
  %10496 = vmatpush1.msra.mxu0 %v9845
  %10497 = vmatprep.subr.mxu0 0.0
  %10498 = vmatpush1.msra.mxu0 %v9846
  %10499 = vmatprep.subr.mxu0 0.0
  %10500 = vmatpush1.msra.mxu0 %v9847
  %10501 = vmatprep.subr.mxu0 0.0
  %10502 = vmatpush1.msra.mxu0 %v9848
  %10503 = vmatprep.subr.mxu0 0.0
  %10504 = vmatpush1.msra.mxu0 %v9849
  %10505 = vmatprep.subr.mxu0 0.0
  %10506 = vmatpush1.msra.mxu0 %v9850
  %10507 = vmatprep.subr.mxu0 0.0
  %10508 = vmatpush1.msra.mxu0 %v9851
  %10509 = vmatprep.subr.mxu0 0.0
  %10510 = vmatpush1.msra.mxu0 %v9852
  %10511 = vmatprep.subr.mxu0 0.0
  %10512 = vmatpush1.msra.mxu0 %v9853
  %10513 = vmatprep.subr.mxu0 0.0
  %10514 = vmatpush1.msra.mxu0 %v9854
  %10515 = vmatprep.subr.mxu0 0.0
  %10516 = vmatpush1.msra.mxu0 %v9855
  %10517 = vmatprep.subr.mxu0 0.0
  %10518 = vmatpush1.msra.mxu0 %v9856
  %10519 = vmatprep.subr.mxu0 0.0
  %10520 = vmatpush1.msra.mxu0 %v9857
  %10521 = vmatprep.subr.mxu0 0.0
  %10522 = vmatpush1.msra.mxu0 %v9858
  %10523 = vmatprep.subr.mxu0 0.0
  %10524 = vmatpush1.msra.mxu0 %v9859
  %10525 = vmatprep.subr.mxu0 0.0
  %10526 = vmatpush1.msra.mxu0 %v9860
  %10527 = vmatprep.subr.mxu0 0.0
  %10528 = vmatpush1.msra.mxu0 %v9861
  %10529 = vmatprep.mubr.f32.mxu0 %v9626
  %10530 = vmatmul.mubr.f32.gmra.mrb[0].mxu0 %v9625
  %v10531 = vpop.f32.mrb[0].mxu0
  %v10532 = vadd.f32 %v10462, %v10531
  %v10533 = vpop.f32.mrb[0].mxu0
  %10534 = vdwg.mxu0
  %10535 = vmatprep.subr.mxu0 0.0
  %10536 = vmatpush1.msra.mxu0 %v9862
  %10537 = vmatprep.subr.mxu0 0.0
  %10538 = vmatpush1.msra.mxu0 %v9863
  %10539 = vmatprep.subr.mxu0 0.0
  %10540 = vmatpush1.msra.mxu0 %v9864
  %10541 = vmatprep.subr.mxu0 0.0
  %10542 = vmatpush1.msra.mxu0 %v9865
  %10543 = vmatprep.subr.mxu0 0.0
  %10544 = vmatpush1.msra.mxu0 %v9866
  %10545 = vmatprep.subr.mxu0 0.0
  %10546 = vmatpush1.msra.mxu0 %v9867
  %10547 = vmatprep.subr.mxu0 0.0
  %10548 = vmatpush1.msra.mxu0 %v9868
  %10549 = vmatprep.subr.mxu0 0.0
  %10550 = vmatpush1.msra.mxu0 %v9869
  %10551 = vmatprep.subr.mxu0 0.0
  %10552 = vmatpush1.msra.mxu0 %v9870
  %10553 = vmatprep.subr.mxu0 0.0
  %10554 = vmatpush1.msra.mxu0 %v9871
  %10555 = vmatprep.subr.mxu0 0.0
  %10556 = vmatpush1.msra.mxu0 %v9872
  %10557 = vmatprep.subr.mxu0 0.0
  %10558 = vmatpush1.msra.mxu0 %v9873
  %10559 = vmatprep.subr.mxu0 0.0
  %10560 = vmatpush1.msra.mxu0 %v9874
  %10561 = vmatprep.subr.mxu0 0.0
  %10562 = vmatpush1.msra.mxu0 %v9875
  %10563 = vmatprep.subr.mxu0 0.0
  %10564 = vmatpush1.msra.mxu0 %v9876
  %10565 = vmatprep.subr.mxu0 0.0
  %10566 = vmatpush1.msra.mxu0 %v9877
  %10567 = vmatprep.subr.mxu0 0.0
  %10568 = vmatpush1.msra.mxu0 %v9878
  %10569 = vmatprep.subr.mxu0 0.0
  %10570 = vmatpush1.msra.mxu0 %v9879
  %10571 = vmatprep.subr.mxu0 0.0
  %10572 = vmatpush1.msra.mxu0 %v9880
  %10573 = vmatprep.subr.mxu0 0.0
  %10574 = vmatpush1.msra.mxu0 %v9881
  %10575 = vmatprep.subr.mxu0 0.0
  %10576 = vmatpush1.msra.mxu0 %v9882
  %10577 = vmatprep.subr.mxu0 0.0
  %10578 = vmatpush1.msra.mxu0 %v9883
  %10579 = vmatprep.subr.mxu0 0.0
  %10580 = vmatpush1.msra.mxu0 %v9884
  %10581 = vmatprep.subr.mxu0 0.0
  %10582 = vmatpush1.msra.mxu0 %v9885
  %10583 = vmatprep.subr.mxu0 0.0
  %10584 = vmatpush1.msra.mxu0 %v9886
  %10585 = vmatprep.subr.mxu0 0.0
  %10586 = vmatpush1.msra.mxu0 %v9887
  %10587 = vmatprep.subr.mxu0 0.0
  %10588 = vmatpush1.msra.mxu0 %v9888
  %10589 = vmatprep.subr.mxu0 0.0
  %10590 = vmatpush1.msra.mxu0 %v9889
  %10591 = vmatprep.subr.mxu0 0.0
  %10592 = vmatpush1.msra.mxu0 %v9890
  %10593 = vmatprep.subr.mxu0 0.0
  %10594 = vmatpush1.msra.mxu0 %v9891
  %10595 = vmatprep.subr.mxu0 0.0
  %10596 = vmatpush1.msra.mxu0 %v9892
  %10597 = vmatprep.subr.mxu0 0.0
  %10598 = vmatpush1.msra.mxu0 %v9893
  %10599 = vmatprep.mubr.f32.mxu0 %v9628
  %10600 = vmatmul.mubr.f32.gmra.mrb[0].mxu0 %v9627
  %v10601 = vpop.f32.mrb[0].mxu0
  %v10602 = vadd.f32 %v10532, %v10601
  %v10603 = vpop.f32.mrb[0].mxu0
  %10604 = vdwg.mxu0
  %10605 = vmatprep.subr.mxu0 0.0
  %10606 = vmatpush1.msra.mxu0 %v9894
  %10607 = vmatprep.subr.mxu0 0.0
  %10608 = vmatpush1.msra.mxu0 %v9895
  %10609 = vmatprep.subr.mxu0 0.0
  %10610 = vmatpush1.msra.mxu0 %v9896
  %10611 = vmatprep.subr.mxu0 0.0
  %10612 = vmatpush1.msra.mxu0 %v9897
  %10613 = vmatprep.subr.mxu0 0.0
  %10614 = vmatpush1.msra.mxu0 %v9898
  %10615 = vmatprep.subr.mxu0 0.0
  %10616 = vmatpush1.msra.mxu0 %v9899
  %10617 = vmatprep.subr.mxu0 0.0
  %10618 = vmatpush1.msra.mxu0 %v9900
  %10619 = vmatprep.subr.mxu0 0.0
  %10620 = vmatpush1.msra.mxu0 %v9901
  %10621 = vmatprep.subr.mxu0 0.0
  %10622 = vmatpush1.msra.mxu0 %v9902
  %10623 = vmatprep.subr.mxu0 0.0
  %10624 = vmatpush1.msra.mxu0 %v9903
  %10625 = vmatprep.subr.mxu0 0.0
  %10626 = vmatpush1.msra.mxu0 %v9904
  %10627 = vmatprep.subr.mxu0 0.0
  %10628 = vmatpush1.msra.mxu0 %v9905
  %10629 = vmatprep.subr.mxu0 0.0
  %10630 = vmatpush1.msra.mxu0 %v9906
  %10631 = vmatprep.subr.mxu0 0.0
  %10632 = vmatpush1.msra.mxu0 %v9907
  %10633 = vmatprep.subr.mxu0 0.0
  %10634 = vmatpush1.msra.mxu0 %v9908
  %10635 = vmatprep.subr.mxu0 0.0
  %10636 = vmatpush1.msra.mxu0 %v9909
  %10637 = vmatprep.subr.mxu0 0.0
  %10638 = vmatpush1.msra.mxu0 %v9910
  %10639 = vmatprep.subr.mxu0 0.0
  %10640 = vmatpush1.msra.mxu0 %v9911
  %10641 = vmatprep.subr.mxu0 0.0
  %10642 = vmatpush1.msra.mxu0 %v9912
  %10643 = vmatprep.subr.mxu0 0.0
  %10644 = vmatpush1.msra.mxu0 %v9913
  %10645 = vmatprep.subr.mxu0 0.0
  %10646 = vmatpush1.msra.mxu0 %v9914
  %10647 = vmatprep.subr.mxu0 0.0
  %10648 = vmatpush1.msra.mxu0 %v9915
  %10649 = vmatprep.subr.mxu0 0.0
  %10650 = vmatpush1.msra.mxu0 %v9916
  %10651 = vmatprep.subr.mxu0 0.0
  %10652 = vmatpush1.msra.mxu0 %v9917
  %10653 = vmatprep.subr.mxu0 0.0
  %10654 = vmatpush1.msra.mxu0 %v9918
  %10655 = vmatprep.subr.mxu0 0.0
  %10656 = vmatpush1.msra.mxu0 %v9919
  %10657 = vmatprep.subr.mxu0 0.0
  %10658 = vmatpush1.msra.mxu0 %v9920
  %10659 = vmatprep.subr.mxu0 0.0
  %10660 = vmatpush1.msra.mxu0 %v9921
  %10661 = vmatprep.subr.mxu0 0.0
  %10662 = vmatpush1.msra.mxu0 %v9922
  %10663 = vmatprep.subr.mxu0 0.0
  %10664 = vmatpush1.msra.mxu0 %v9923
  %10665 = vmatprep.subr.mxu0 0.0
  %10666 = vmatpush1.msra.mxu0 %v9924
  %10667 = vmatprep.subr.mxu0 0.0
  %10668 = vmatpush1.msra.mxu0 %v9925
  %10669 = vmatprep.mubr.f32.mxu0 %v9630
  %10670 = vmatmul.mubr.f32.gmra.mrb[0].mxu0 %v9629
  %v10671 = vpop.f32.mrb[0].mxu0
  %v10672 = vadd.f32 %v10602, %v10671
  %v10673 = vpop.f32.mrb[0].mxu0
  %10674 = vdwg.mxu0
  %10675 = vmatprep.subr.mxu0 0.0
  %10676 = vmatpush1.msra.mxu0 %v9926
  %10677 = vmatprep.subr.mxu0 0.0
  %10678 = vmatpush1.msra.mxu0 %v9927
  %10679 = vmatprep.subr.mxu0 0.0
  %10680 = vmatpush1.msra.mxu0 %v9928
  %10681 = vmatprep.subr.mxu0 0.0
  %10682 = vmatpush1.msra.mxu0 %v9929
  %10683 = vmatprep.subr.mxu0 0.0
  %10684 = vmatpush1.msra.mxu0 %v9930
  %10685 = vmatprep.subr.mxu0 0.0
  %10686 = vmatpush1.msra.mxu0 %v9931
  %10687 = vmatprep.subr.mxu0 0.0
  %10688 = vmatpush1.msra.mxu0 %v9932
  %10689 = vmatprep.subr.mxu0 0.0
  %10690 = vmatpush1.msra.mxu0 %v9933
  %10691 = vmatprep.subr.mxu0 0.0
  %10692 = vmatpush1.msra.mxu0 %v9934
  %10693 = vmatprep.subr.mxu0 0.0
  %10694 = vmatpush1.msra.mxu0 %v9935
  %10695 = vmatprep.subr.mxu0 0.0
  %10696 = vmatpush1.msra.mxu0 %v9936
  %10697 = vmatprep.subr.mxu0 0.0
  %10698 = vmatpush1.msra.mxu0 %v9937
  %10699 = vmatprep.subr.mxu0 0.0
  %10700 = vmatpush1.msra.mxu0 %v9938
  %10701 = vmatprep.subr.mxu0 0.0
  %10702 = vmatpush1.msra.mxu0 %v9939
  %10703 = vmatprep.subr.mxu0 0.0
  %10704 = vmatpush1.msra.mxu0 %v9940
  %10705 = vmatprep.subr.mxu0 0.0
  %10706 = vmatpush1.msra.mxu0 %v9941
  %10707 = vmatprep.subr.mxu0 0.0
  %10708 = vmatpush1.msra.mxu0 %v9942
  %10709 = vmatprep.subr.mxu0 0.0
  %10710 = vmatpush1.msra.mxu0 %v9943
  %10711 = vmatprep.subr.mxu0 0.0
  %10712 = vmatpush1.msra.mxu0 %v9944
  %10713 = vmatprep.subr.mxu0 0.0
  %10714 = vmatpush1.msra.mxu0 %v9945
  %10715 = vmatprep.subr.mxu0 0.0
  %10716 = vmatpush1.msra.mxu0 %v9946
  %10717 = vmatprep.subr.mxu0 0.0
  %10718 = vmatpush1.msra.mxu0 %v9947
  %10719 = vmatprep.subr.mxu0 0.0
  %10720 = vmatpush1.msra.mxu0 %v9948
  %10721 = vmatprep.subr.mxu0 0.0
  %10722 = vmatpush1.msra.mxu0 %v9949
  %10723 = vmatprep.subr.mxu0 0.0
  %10724 = vmatpush1.msra.mxu0 %v9950
  %10725 = vmatprep.subr.mxu0 0.0
  %10726 = vmatpush1.msra.mxu0 %v9951
  %10727 = vmatprep.subr.mxu0 0.0
  %10728 = vmatpush1.msra.mxu0 %v9952
  %10729 = vmatprep.subr.mxu0 0.0
  %10730 = vmatpush1.msra.mxu0 %v9953
  %10731 = vmatprep.subr.mxu0 0.0
  %10732 = vmatpush1.msra.mxu0 %v9954
  %10733 = vmatprep.subr.mxu0 0.0
  %10734 = vmatpush1.msra.mxu0 %v9955
  %10735 = vmatprep.subr.mxu0 0.0
  %10736 = vmatpush1.msra.mxu0 %v9956
  %10737 = vmatprep.subr.mxu0 0.0
  %10738 = vmatpush1.msra.mxu0 %v9957
  %10739 = vmatprep.mubr.f32.mxu0 %v9632
  %10740 = vmatmul.mubr.f32.gmra.mrb[0].mxu0 %v9631
  %v10741 = vpop.f32.mrb[0].mxu0
  %v10742 = vadd.f32 %v10672, %v10741
  %v10743 = vpop.f32.mrb[0].mxu0
  %10744 = vdwg.mxu0
  %10745 = vmatprep.subr.mxu0 0.0
  %10746 = vmatpush1.msra.mxu0 %v9958
  %10747 = vmatprep.subr.mxu0 0.0
  %10748 = vmatpush1.msra.mxu0 %v9959
  %10749 = vmatprep.subr.mxu0 0.0
  %10750 = vmatpush1.msra.mxu0 %v9960
  %10751 = vmatprep.subr.mxu0 0.0
  %10752 = vmatpush1.msra.mxu0 %v9961
  %10753 = vmatprep.subr.mxu0 0.0
  %10754 = vmatpush1.msra.mxu0 %v9962
  %10755 = vmatprep.subr.mxu0 0.0
  %10756 = vmatpush1.msra.mxu0 %v9963
  %10757 = vmatprep.subr.mxu0 0.0
  %10758 = vmatpush1.msra.mxu0 %v9964
  %10759 = vmatprep.subr.mxu0 0.0
  %10760 = vmatpush1.msra.mxu0 %v9965
  %10761 = vmatprep.subr.mxu0 0.0
  %10762 = vmatpush1.msra.mxu0 %v9966
  %10763 = vmatprep.subr.mxu0 0.0
  %10764 = vmatpush1.msra.mxu0 %v9967
  %10765 = vmatprep.subr.mxu0 0.0
  %10766 = vmatpush1.msra.mxu0 %v9968
  %10767 = vmatprep.subr.mxu0 0.0
  %10768 = vmatpush1.msra.mxu0 %v9969
  %10769 = vmatprep.subr.mxu0 0.0
  %10770 = vmatpush1.msra.mxu0 %v9970
  %10771 = vmatprep.subr.mxu0 0.0
  %10772 = vmatpush1.msra.mxu0 %v9971
  %10773 = vmatprep.subr.mxu0 0.0
  %10774 = vmatpush1.msra.mxu0 %v9972
  %10775 = vmatprep.subr.mxu0 0.0
  %10776 = vmatpush1.msra.mxu0 %v9973
  %10777 = vmatprep.subr.mxu0 0.0
  %10778 = vmatpush1.msra.mxu0 %v9974
  %10779 = vmatprep.subr.mxu0 0.0
  %10780 = vmatpush1.msra.mxu0 %v9975
  %10781 = vmatprep.subr.mxu0 0.0
  %10782 = vmatpush1.msra.mxu0 %v9976
  %10783 = vmatprep.subr.mxu0 0.0
  %10784 = vmatpush1.msra.mxu0 %v9977
  %10785 = vmatprep.subr.mxu0 0.0
  %10786 = vmatpush1.msra.mxu0 %v9978
  %10787 = vmatprep.subr.mxu0 0.0
  %10788 = vmatpush1.msra.mxu0 %v9979
  %10789 = vmatprep.subr.mxu0 0.0
  %10790 = vmatpush1.msra.mxu0 %v9980
  %10791 = vmatprep.subr.mxu0 0.0
  %10792 = vmatpush1.msra.mxu0 %v9981
  %10793 = vmatprep.subr.mxu0 0.0
  %10794 = vmatpush1.msra.mxu0 %v9982
  %10795 = vmatprep.subr.mxu0 0.0
  %10796 = vmatpush1.msra.mxu0 %v9983
  %10797 = vmatprep.subr.mxu0 0.0
  %10798 = vmatpush1.msra.mxu0 %v9984
  %10799 = vmatprep.subr.mxu0 0.0
  %10800 = vmatpush1.msra.mxu0 %v9985
  %10801 = vmatprep.subr.mxu0 0.0
  %10802 = vmatpush1.msra.mxu0 %v9986
  %10803 = vmatprep.subr.mxu0 0.0
  %10804 = vmatpush1.msra.mxu0 %v9987
  %10805 = vmatprep.subr.mxu0 0.0
  %10806 = vmatpush1.msra.mxu0 %v9988
  %10807 = vmatprep.subr.mxu0 0.0
  %10808 = vmatpush1.msra.mxu0 %v9989
  %10809 = vmatprep.mubr.f32.mxu0 %v9634
  %10810 = vmatmul.mubr.f32.gmra.mrb[0].mxu0 %v9633
  %v10811 = vpop.f32.mrb[0].mxu0
  %v10812 = vadd.f32 %v10742, %v10811
  %v10813 = vpop.f32.mrb[0].mxu0
  %10814 = vdwg.mxu0
  %10815 = vmatprep.subr.mxu0 0.0
  %10816 = vmatpush1.msra.mxu0 %v9990
  %10817 = vmatprep.subr.mxu0 0.0
  %10818 = vmatpush1.msra.mxu0 %v9991
  %10819 = vmatprep.subr.mxu0 0.0
  %10820 = vmatpush1.msra.mxu0 %v9992
  %10821 = vmatprep.subr.mxu0 0.0
  %10822 = vmatpush1.msra.mxu0 %v9993
  %10823 = vmatprep.subr.mxu0 0.0
  %10824 = vmatpush1.msra.mxu0 %v9994
  %10825 = vmatprep.subr.mxu0 0.0
  %10826 = vmatpush1.msra.mxu0 %v9995
  %10827 = vmatprep.subr.mxu0 0.0
  %10828 = vmatpush1.msra.mxu0 %v9996
  %10829 = vmatprep.subr.mxu0 0.0
  %10830 = vmatpush1.msra.mxu0 %v9997
  %10831 = vmatprep.subr.mxu0 0.0
  %10832 = vmatpush1.msra.mxu0 %v9998
  %10833 = vmatprep.subr.mxu0 0.0
  %10834 = vmatpush1.msra.mxu0 %v9999
  %10835 = vmatprep.subr.mxu0 0.0
  %10836 = vmatpush1.msra.mxu0 %v10000
  %10837 = vmatprep.subr.mxu0 0.0
  %10838 = vmatpush1.msra.mxu0 %v10001
  %10839 = vmatprep.subr.mxu0 0.0
  %10840 = vmatpush1.msra.mxu0 %v10002
  %10841 = vmatprep.subr.mxu0 0.0
  %10842 = vmatpush1.msra.mxu0 %v10003
  %10843 = vmatprep.subr.mxu0 0.0
  %10844 = vmatpush1.msra.mxu0 %v10004
  %10845 = vmatprep.subr.mxu0 0.0
  %10846 = vmatpush1.msra.mxu0 %v10005
  %10847 = vmatprep.subr.mxu0 0.0
  %10848 = vmatpush1.msra.mxu0 %v10006
  %10849 = vmatprep.subr.mxu0 0.0
  %10850 = vmatpush1.msra.mxu0 %v10007
  %10851 = vmatprep.subr.mxu0 0.0
  %10852 = vmatpush1.msra.mxu0 %v10008
  %10853 = vmatprep.subr.mxu0 0.0
  %10854 = vmatpush1.msra.mxu0 %v10009
  %10855 = vmatprep.subr.mxu0 0.0
  %10856 = vmatpush1.msra.mxu0 %v10010
  %10857 = vmatprep.subr.mxu0 0.0
  %10858 = vmatpush1.msra.mxu0 %v10011
  %10859 = vmatprep.subr.mxu0 0.0
  %10860 = vmatpush1.msra.mxu0 %v10012
  %10861 = vmatprep.subr.mxu0 0.0
  %10862 = vmatpush1.msra.mxu0 %v10013
  %10863 = vmatprep.subr.mxu0 0.0
  %10864 = vmatpush1.msra.mxu0 %v10014
  %10865 = vmatprep.subr.mxu0 0.0
  %10866 = vmatpush1.msra.mxu0 %v10015
  %10867 = vmatprep.subr.mxu0 0.0
  %10868 = vmatpush1.msra.mxu0 %v10016
  %10869 = vmatprep.subr.mxu0 0.0
  %10870 = vmatpush1.msra.mxu0 %v10017
  %10871 = vmatprep.subr.mxu0 0.0
  %10872 = vmatpush1.msra.mxu0 %v10018
  %10873 = vmatprep.subr.mxu0 0.0
  %10874 = vmatpush1.msra.mxu0 %v10019
  %10875 = vmatprep.subr.mxu0 0.0
  %10876 = vmatpush1.msra.mxu0 %v10020
  %10877 = vmatprep.subr.mxu0 0.0
  %10878 = vmatpush1.msra.mxu0 %v10021
  %10879 = vmatprep.mubr.f32.mxu0 %v9636
  %10880 = vmatmul.mubr.f32.gmra.mrb[0].mxu0 %v9635
  %v10881 = vpop.f32.mrb[0].mxu0
  %v10882 = vadd.f32 %v10812, %v10881
  %v10883 = vpop.f32.mrb[0].mxu0
  %10884 = vdwg.mxu0
  %10885 = vmatprep.subr.mxu0 0.0
  %10886 = vmatpush1.msra.mxu0 %v10022
  %10887 = vmatprep.subr.mxu0 0.0
  %10888 = vmatpush1.msra.mxu0 %v10023
  %10889 = vmatprep.subr.mxu0 0.0
  %10890 = vmatpush1.msra.mxu0 %v10024
  %10891 = vmatprep.subr.mxu0 0.0
  %10892 = vmatpush1.msra.mxu0 %v10025
  %10893 = vmatprep.subr.mxu0 0.0
  %10894 = vmatpush1.msra.mxu0 %v10026
  %10895 = vmatprep.subr.mxu0 0.0
  %10896 = vmatpush1.msra.mxu0 %v10027
  %10897 = vmatprep.subr.mxu0 0.0
  %10898 = vmatpush1.msra.mxu0 %v10028
  %10899 = vmatprep.subr.mxu0 0.0
  %10900 = vmatpush1.msra.mxu0 %v10029
  %10901 = vmatprep.subr.mxu0 0.0
  %10902 = vmatpush1.msra.mxu0 %v10030
  %10903 = vmatprep.subr.mxu0 0.0
  %10904 = vmatpush1.msra.mxu0 %v10031
  %10905 = vmatprep.subr.mxu0 0.0
  %10906 = vmatpush1.msra.mxu0 %v10032
  %10907 = vmatprep.subr.mxu0 0.0
  %10908 = vmatpush1.msra.mxu0 %v10033
  %10909 = vmatprep.subr.mxu0 0.0
  %10910 = vmatpush1.msra.mxu0 %v10034
  %10911 = vmatprep.subr.mxu0 0.0
  %10912 = vmatpush1.msra.mxu0 %v10035
  %10913 = vmatprep.subr.mxu0 0.0
  %10914 = vmatpush1.msra.mxu0 %v10036
  %10915 = vmatprep.subr.mxu0 0.0
  %10916 = vmatpush1.msra.mxu0 %v10037
  %10917 = vmatprep.subr.mxu0 0.0
  %10918 = vmatpush1.msra.mxu0 0.0
  %10919 = vmatprep.subr.mxu0 0.0
  %10920 = vmatpush1.msra.mxu0 0.0
  %10921 = vmatprep.subr.mxu0 0.0
  %10922 = vmatpush1.msra.mxu0 0.0
  %10923 = vmatprep.subr.mxu0 0.0
  %10924 = vmatpush1.msra.mxu0 0.0
  %10925 = vmatprep.subr.mxu0 0.0
  %10926 = vmatpush1.msra.mxu0 0.0
  %10927 = vmatprep.subr.mxu0 0.0
  %10928 = vmatpush1.msra.mxu0 0.0
  %10929 = vmatprep.subr.mxu0 0.0
  %10930 = vmatpush1.msra.mxu0 0.0
  %10931 = vmatprep.subr.mxu0 0.0
  %10932 = vmatpush1.msra.mxu0 0.0
  %10933 = vmatprep.subr.mxu0 0.0
  %10934 = vmatpush1.msra.mxu0 0.0
  %10935 = vmatprep.subr.mxu0 0.0
  %10936 = vmatpush1.msra.mxu0 0.0
  %10937 = vmatprep.subr.mxu0 0.0
  %10938 = vmatpush1.msra.mxu0 0.0
  %10939 = vmatprep.subr.mxu0 0.0
  %10940 = vmatpush1.msra.mxu0 0.0
  %10941 = vmatprep.subr.mxu0 0.0
  %10942 = vmatpush1.msra.mxu0 0.0
  %10943 = vmatprep.subr.mxu0 0.0
  %10944 = vmatpush1.msra.mxu0 0.0
  %10945 = vmatprep.subr.mxu0 0.0
  %10946 = vmatpush1.msra.mxu0 0.0
  %10947 = vmatprep.subr.mxu0 0.0
  %10948 = vmatpush1.msra.mxu0 0.0
  %10949 = vmatprep.mubr.f32.mxu0 0.0
  %10950 = vmatmul.mubr.f32.gmra.mrb[0].mxu0 %v9637
  %v10951 = vpop.f32.mrb[0].mxu0
  %v10952 = vadd.f32 %v10882, %v10951
  %v10953 = vpop.f32.mrb[0].mxu0
  %10954 = vdwg.mxu0
  %v10955 = vmax.f32 %v10952, 0.0
  %v10956 = vld [vmem:[%s8] sm:$0xff]
  %v10957 = vld [vmem:[%s8 + $0x8] sm:$0xff]
  %v10958 = vld [vmem:[%s8 + $0x10] sm:$0xff]
  %v10959 = vld [vmem:[%s8 + $0x18] sm:$0xff]
  %v10960 = vld [vmem:[%s8 + $0x20] sm:$0xff]
  %v10961 = vld [vmem:[%s8 + $0x28] sm:$0xff]
  %v10962 = vld [vmem:[%s8 + $0x30] sm:$0xff]
  %v10963 = vld [vmem:[%s8 + $0x38] sm:$0xff]
  %v10964 = vld [vmem:[%s8 + $0x40] sm:$0xff]
  %v10965 = vld [vmem:[%s8 + $0x48] sm:$0xff]
  %v10966 = vld [vmem:[%s8 + $0x50] sm:$0xff]
  %v10967 = vld [vmem:[%s8 + $0x58] sm:$0xff]
  %v10968 = vld [vmem:[%s8 + $0x60] sm:$0xff]
  %v10969 = vld [vmem:[%s8 + $0x68] sm:$0xff]
  %v10970 = vld [vmem:[%s8 + $0x70] sm:$0xff]
  %v10971 = vld [vmem:[%s8 + $0x78] sm:$0xff]
  %v10972 = vld [vmem:[%s9] sm:$0x1]
  %v10974 = vlaneseq
  %v10975 = vshrl.u32 %v10974, 7
  %v10976 = vsub.s32 0, %v10975
  %v10977 = vrot.slane %v10972, %v10976
  %10979 = vmatprep.subr.mxu0 0.0
  %10980 = vmatpush1.msra.mxu0 %v10956
  %10981 = vmatprep.subr.mxu0 0.0
  %10982 = vmatpush1.msra.mxu0 %v10957
  %10983 = vmatprep.subr.mxu0 0.0
  %10984 = vmatpush1.msra.mxu0 %v10958
  %10985 = vmatprep.subr.mxu0 0.0
  %10986 = vmatpush1.msra.mxu0 %v10959
  %10987 = vmatprep.subr.mxu0 0.0
  %10988 = vmatpush1.msra.mxu0 %v10960
  %10989 = vmatprep.subr.mxu0 0.0
  %10990 = vmatpush1.msra.mxu0 %v10961
  %10991 = vmatprep.subr.mxu0 0.0
  %10992 = vmatpush1.msra.mxu0 %v10962
  %10993 = vmatprep.subr.mxu0 0.0
  %10994 = vmatpush1.msra.mxu0 %v10963
  %10995 = vmatprep.subr.mxu0 0.0
  %10996 = vmatpush1.msra.mxu0 %v10964
  %10997 = vmatprep.subr.mxu0 0.0
  %10998 = vmatpush1.msra.mxu0 %v10965
  %10999 = vmatprep.subr.mxu0 0.0
  %11000 = vmatpush1.msra.mxu0 %v10966
  %11001 = vmatprep.subr.mxu0 0.0
  %11002 = vmatpush1.msra.mxu0 %v10967
  %11003 = vmatprep.subr.mxu0 0.0
  %11004 = vmatpush1.msra.mxu0 %v10968
  %11005 = vmatprep.subr.mxu0 0.0
  %11006 = vmatpush1.msra.mxu0 %v10969
  %11007 = vmatprep.subr.mxu0 0.0
  %11008 = vmatpush1.msra.mxu0 %v10970
  %11009 = vmatprep.subr.mxu0 0.0
  %11010 = vmatpush1.msra.mxu0 %v10971
  %11011 = vmatprep.subr.mxu0 0.0
  %11012 = vmatpush1.msra.mxu0 0.0
  %11013 = vmatprep.subr.mxu0 0.0
  %11014 = vmatpush1.msra.mxu0 0.0
  %11015 = vmatprep.subr.mxu0 0.0
  %11016 = vmatpush1.msra.mxu0 0.0
  %11017 = vmatprep.subr.mxu0 0.0
  %11018 = vmatpush1.msra.mxu0 0.0
  %11019 = vmatprep.subr.mxu0 0.0
  %11020 = vmatpush1.msra.mxu0 0.0
  %11021 = vmatprep.subr.mxu0 0.0
  %11022 = vmatpush1.msra.mxu0 0.0
  %11023 = vmatprep.subr.mxu0 0.0
  %11024 = vmatpush1.msra.mxu0 0.0
  %11025 = vmatprep.subr.mxu0 0.0
  %11026 = vmatpush1.msra.mxu0 0.0
  %11027 = vmatprep.subr.mxu0 0.0
  %11028 = vmatpush1.msra.mxu0 0.0
  %11029 = vmatprep.subr.mxu0 0.0
  %11030 = vmatpush1.msra.mxu0 0.0
  %11031 = vmatprep.subr.mxu0 0.0
  %11032 = vmatpush1.msra.mxu0 0.0
  %11033 = vmatprep.subr.mxu0 0.0
  %11034 = vmatpush1.msra.mxu0 0.0
  %11035 = vmatprep.subr.mxu0 0.0
  %11036 = vmatpush1.msra.mxu0 0.0
  %11037 = vmatprep.subr.mxu0 0.0
  %11038 = vmatpush1.msra.mxu0 0.0
  %11039 = vmatprep.subr.mxu0 0.0
  %11040 = vmatpush1.msra.mxu0 0.0
  %11041 = vmatprep.subr.mxu0 0.0
  %11042 = vmatpush1.msra.mxu0 0.0
  %11043 = vmatprep.mubr.f32.mxu0 0.0
  %11044 = vmatmul.mubr.f32.gmra.mrb[0].mxu0 %v10955
  %v11045 = vpop.f32.mrb[0].mxu0
  %v11046 = vadd.f32 %v10977, %v11045
  %v11047 = vpop.f32.mrb[0].mxu0
  %11048 = vdwg.mxu0
  %v11049 = vmax.f32 %v11046, 0.0
  %v11050 = vld [vmem:[%s10] sm:$0xff]
  %v11051 = vld [vmem:[%s10 + $0x8] sm:$0xff]
  %v11052 = vld [vmem:[%s10 + $0x10] sm:$0xff]
  %v11053 = vld [vmem:[%s10 + $0x18] sm:$0xff]
  %v11054 = vld [vmem:[%s10 + $0x20] sm:$0xff]
  %v11055 = vld [vmem:[%s10 + $0x28] sm:$0xff]
  %v11056 = vld [vmem:[%s10 + $0x30] sm:$0xff]
  %v11057 = vld [vmem:[%s10 + $0x38] sm:$0xff]
  %v11058 = vld [vmem:[%s10 + $0x40] sm:$0xff]
  %v11059 = vld [vmem:[%s10 + $0x48] sm:$0xff]
  %v11060 = vld [vmem:[%s10 + $0x50] sm:$0xff]
  %v11061 = vld [vmem:[%s10 + $0x58] sm:$0xff]
  %v11062 = vld [vmem:[%s10 + $0x60] sm:$0xff]
  %v11063 = vld [vmem:[%s10 + $0x68] sm:$0xff]
  %v11064 = vld [vmem:[%s10 + $0x70] sm:$0xff]
  %v11065 = vld [vmem:[%s10 + $0x78] sm:$0xff]
  %v11066 = vld [vmem:[%s11] sm:$0x1]
  %v11068 = vlaneseq
  %v11069 = vshrl.u32 %v11068, 7
  %v11070 = vsub.s32 0, %v11069
  %v11071 = vrot.slane %v11066, %v11070
  %11073 = vmatprep.subr.mxu0 0.0
  %11074 = vmatpush1.msra.mxu0 %v11050
  %11075 = vmatprep.subr.mxu0 0.0
  %11076 = vmatpush1.msra.mxu0 %v11051
  %11077 = vmatprep.subr.mxu0 0.0
  %11078 = vmatpush1.msra.mxu0 %v11052
  %11079 = vmatprep.subr.mxu0 0.0
  %11080 = vmatpush1.msra.mxu0 %v11053
  %11081 = vmatprep.subr.mxu0 0.0
  %11082 = vmatpush1.msra.mxu0 %v11054
  %11083 = vmatprep.subr.mxu0 0.0
  %11084 = vmatpush1.msra.mxu0 %v11055
  %11085 = vmatprep.subr.mxu0 0.0
  %11086 = vmatpush1.msra.mxu0 %v11056
  %11087 = vmatprep.subr.mxu0 0.0
  %11088 = vmatpush1.msra.mxu0 %v11057
  %11089 = vmatprep.subr.mxu0 0.0
  %11090 = vmatpush1.msra.mxu0 %v11058
  %11091 = vmatprep.subr.mxu0 0.0
  %11092 = vmatpush1.msra.mxu0 %v11059
  %11093 = vmatprep.subr.mxu0 0.0
  %11094 = vmatpush1.msra.mxu0 %v11060
  %11095 = vmatprep.subr.mxu0 0.0
  %11096 = vmatpush1.msra.mxu0 %v11061
  %11097 = vmatprep.subr.mxu0 0.0
  %11098 = vmatpush1.msra.mxu0 %v11062
  %11099 = vmatprep.subr.mxu0 0.0
  %11100 = vmatpush1.msra.mxu0 %v11063
  %11101 = vmatprep.subr.mxu0 0.0
  %11102 = vmatpush1.msra.mxu0 %v11064
  %11103 = vmatprep.subr.mxu0 0.0
  %11104 = vmatpush1.msra.mxu0 %v11065
  %11105 = vmatprep.subr.mxu0 0.0
  %11106 = vmatpush1.msra.mxu0 0.0
  %11107 = vmatprep.subr.mxu0 0.0
  %11108 = vmatpush1.msra.mxu0 0.0
  %11109 = vmatprep.subr.mxu0 0.0
  %11110 = vmatpush1.msra.mxu0 0.0
  %11111 = vmatprep.subr.mxu0 0.0
  %11112 = vmatpush1.msra.mxu0 0.0
  %11113 = vmatprep.subr.mxu0 0.0
  %11114 = vmatpush1.msra.mxu0 0.0
  %11115 = vmatprep.subr.mxu0 0.0
  %11116 = vmatpush1.msra.mxu0 0.0
  %11117 = vmatprep.subr.mxu0 0.0
  %11118 = vmatpush1.msra.mxu0 0.0
  %11119 = vmatprep.subr.mxu0 0.0
  %11120 = vmatpush1.msra.mxu0 0.0
  %11121 = vmatprep.subr.mxu0 0.0
  %11122 = vmatpush1.msra.mxu0 0.0
  %11123 = vmatprep.subr.mxu0 0.0
  %11124 = vmatpush1.msra.mxu0 0.0
  %11125 = vmatprep.subr.mxu0 0.0
  %11126 = vmatpush1.msra.mxu0 0.0
  %11127 = vmatprep.subr.mxu0 0.0
  %11128 = vmatpush1.msra.mxu0 0.0
  %11129 = vmatprep.subr.mxu0 0.0
  %11130 = vmatpush1.msra.mxu0 0.0
  %11131 = vmatprep.subr.mxu0 0.0
  %11132 = vmatpush1.msra.mxu0 0.0
  %11133 = vmatprep.subr.mxu0 0.0
  %11134 = vmatpush1.msra.mxu0 0.0
  %11135 = vmatprep.subr.mxu0 0.0
  %11136 = vmatpush1.msra.mxu0 0.0
  %11137 = vmatprep.mubr.f32.mxu0 0.0
  %11138 = vmatmul.mubr.f32.gmra.mrb[0].mxu0 %v11049
  %v11139 = vpop.f32.mrb[0].mxu0
  %v11140 = vadd.f32 %v11071, %v11139
  %v11141 = vpop.f32.mrb[0].mxu0
  %11142 = vdwg.mxu0
  %11143 = vmax.xlane.f32.xlu0 %v11140
  %v11144 = vpop.xlane.xlu0 %11143
  %v11145 = vsub.f32 %v11140, %v11144
  %v11146 = vmul.f32 %v11145, 1.442695
  %v11147 = vpow.pop %v11146
  %11148 = vadd.xlane.f32.xlu0 %v11147
  %v11149 = vpop.xlane.xlu0 %11148
  %v11150 = vlog2.pop %v11149
  %v11151 = vmul.f32 %v11150, 0.6931472
  %v11152 = vadd.f32 %v11151, %v11144
  %v11153 = vsub.f32 %v11140, %v11152
  %11154 = vst [vmem:[%s12] sm:$0xff] %v11153
  // Predicated region
  $region50: #{cnn_cifar_forward.1} parent=0 // pred_check
    _
  $region51: #{cnn_cifar_forward.1} parent=0 // pred_check_branch
    %11156 = sbr.rel (0) target = $region53
  $region52: #{cnn_cifar_forward.1} parent=0 // pred_region
    _
  $region53: #{cnn_cifar_forward.1} parent=0 // pred_fallthru
    _
  // Predicated region
  $region54: #{cnn_cifar_forward.1} parent=0 // pred_check
    _
  $region55: #{cnn_cifar_forward.1} parent=0 // pred_check_branch
    %11158 = sbr.rel (0) target = $region57
  $region56: #{cnn_cifar_forward.1} parent=0 // pred_region
    _
  $region57: #{cnn_cifar_forward.1} parent=0 // pred_fallthru
    _

</llo_original>
